<compile_context>
chip_gen: v5e
topology: v5e:2x2
jax: 0.10.0
libtpu: 0.0.40
codegen_flags: <defaults>
</compile_context>

<pallas_src>
import jax
import jax.numpy as jnp
from jax.experimental import pallas as pl
from jax.experimental.pallas import tpu as pltpu

_MIB = 1024 * 1024


def _round_up(a, b):
    return (a + b - 1) // b * b


def _tpu_profile():
    """Best-effort query of (generation name, physical VMEM bytes)."""
    phys_vmem = 64 * _MIB  # conservative default (v7x-sized)
    name = ""
    try:
        info = pltpu.get_tpu_info()
        phys_vmem = int(getattr(info, "vmem_capacity_bytes", phys_vmem)) or phys_vmem
        for attr in ("chip_version", "version", "chip"):
            v = getattr(info, attr, None)
            if v is not None:
                name = str(v).lower()
                break
    except Exception:
        pass
    return name, phys_vmem


def _defaults_for(name, phys_vmem):
    """Per-generation (tm_target, tk_ff_target, lane multiple, is_v5, is_v7)."""
    is_v5 = "v5" in name
    is_v6 = "v6" in name
    is_v7 = "v7" in name
    if is_v6:
        return 768, 2048, 256, False, False   # 918 TF/s vs ~1.35 TB/s -> tm ~768
    if is_v7:
        return 512, 1024, 256, False, True    # 996 TF/s vs ~3.2 TB/s, 64 MiB VMEM
    if is_v5:
        return 384, 1024, 128, True, False    # 197 TF/s vs ~0.82 TB/s
    # Unknown chip: infer profile from VMEM capacity.
    if phys_vmem <= 64 * _MIB:
        return 512, 1024, 256, False, False
    return 768, 2048, 256, False, False


def _pick_tk_ff(d_ff, target, mult):
    """Largest divisor of d_ff that is <= target and a multiple of `mult`;
    otherwise pad d_ff so a multiple-of-`mult` tile divides it."""
    best = 0
    for cand in range(mult, min(target, d_ff) + 1, mult):
        if d_ff % cand == 0:
            best = cand
    if best:
        return best, d_ff
    tk = min(target, _round_up(d_ff, mult))
    return tk, _round_up(d_ff, tk)


def _vmem_bytes(tm, tk, d_model, out_itemsize, w_bufs):
    bf16, f32 = 2, 4
    return (2 * tm * d_model * bf16            # x tile (double-buffered)
            + w_bufs * d_model * tk * bf16     # W1 slabs
            + 2 * tk * f32                     # b1 slabs
            + w_bufs * tk * d_model * bf16     # W2 slabs
            + 2 * d_model * f32                # b2
            + 2 * tm * d_model * out_itemsize  # output tile
            + tm * d_model * f32)              # f32 accumulator scratch


def _weight_spec(shape, index_map, deep_buffer):
    """BlockSpec for a streamed weight slab; 3-deep buffering on v5e if supported."""
    if deep_buffer:
        try:
            return pl.BlockSpec(shape, index_map, pipeline_mode=pl.Buffered(3))
        except TypeError:
            pass
    return pl.BlockSpec(shape, index_map)


def _make_ffn_kernel(approx_sigmoid):
    def ffn_kernel(x_ref, w1_ref, b1_ref, w2_ref, b2_ref, o_ref, acc_ref):
        # grid = (M_tiles, d_ff_tiles); axis 1 is the streamed reduction over d_ff.
        k = pl.program_id(1)

        @pl.when(k == 0)
        def _init():
            acc_ref[...] = jnp.zeros_like(acc_ref)

        # First matmul (MXU, bf16 in / f32 out) + bias for this d_ff slab.
        h = jnp.dot(x_ref[...], w1_ref[...],
                    preferred_element_type=jnp.float32)            # (tm, tk_ff) f32
        h = h + b1_ref[...].astype(jnp.float32)

        # x_ff * SiLU(x_ff) = h * (h * sigmoid(h))   (VPU/EUP, f32)
        if approx_sigmoid:
            # v5e EUP relief: divide routed to the approx-reciprocal path.
            sig = pl.reciprocal(1.0 + jnp.exp(-h), approx=True)
        else:
            sig = jax.nn.sigmoid(h)
        act = h * (h * sig)

        # Second matmul into the f32 accumulator (cast activations to MXU dtype).
        acc_ref[...] += jnp.dot(act.astype(w2_ref.dtype), w2_ref[...],
                                preferred_element_type=jnp.float32)  # (tm, d_model)

        @pl.when(k == pl.num_programs(1) - 1)
        def _finalize():
            o_ref[...] = (acc_ref[...] + b2_ref[...].astype(jnp.float32)).astype(o_ref.dtype)

    return ffn_kernel


def feed_forward(x, w1, b1, w2, b2, *, tm=None, tk_ff=None, approx_sigmoid=False):
    """x: [..., d_model]; w1: [d_model, d_ff]; b1: [d_ff] or [1, d_ff];
       w2: [d_ff, d_model]; b2: [d_model] or [1, d_model]  ->  [..., d_model]"""
    orig_shape = x.shape
    out_dtype = x.dtype
    d_model = orig_shape[-1]
    d_ff = w1.shape[1]
    assert d_model % 128 == 0, "d_model must be a multiple of 128"
    assert w1.shape[0] == d_model and w2.shape == (d_ff, d_model)

    # Enforce MXU-native operands inside the wrapper (f32 operands would cut MXU rate
    # and double weight HBM traffic); biases stay f32 and are added in f32 in-kernel.
    x2d = x.reshape(-1, d_model).astype(jnp.bfloat16)
    w1 = w1.astype(jnp.bfloat16)
    w2 = w2.astype(jnp.bfloat16)
    b1 = jnp.asarray(b1).reshape(1, -1).astype(jnp.float32)
    b2 = jnp.asarray(b2).reshape(1, -1).astype(jnp.float32)
    M = x2d.shape[0]

    name, phys_vmem = _tpu_profile()
    tm_t, tk_t, mult, is_v5, is_v7 = _defaults_for(name, phys_vmem)
    if tm is None:
        tm = tm_t
    if tk_ff is None:
        tk_ff = tk_t

    # Row tile: big enough (per generation) to be MXU-bound instead of weight-BW-bound,
    # but never over-padding tiny inputs.
    tm = min(tm, _round_up(M, 128))
    if is_v7 and M >= 256:
        # Guarantee >= 2 M tiles so the "parallel" axis shards across both TensorCores.
        tm = min(tm, _round_up(-(-M // 2), 128))

    # d_ff reduction tile (streamed weights); pad d_ff if no good divisor exists.
    tk_ff, d_ff_p = _pick_tk_ff(d_ff, tk_ff, mult)

    # VMEM budget: never request the whole physical VMEM (v7x only has 64 MiB);
    # shrink tiles if the double-buffered working set would not fit.
    cap = min(int(phys_vmem * 0.85), 110 * _MIB)
    out_itemsize = jnp.dtype(out_dtype).itemsize
    w_bufs_est = 3 if is_v5 else 2
    while _vmem_bytes(tm, tk_ff, d_model, out_itemsize, w_bufs_est) > cap:
        if tk_ff > mult and tk_ff % 2 == 0 and d_ff_p % (tk_ff // 2) == 0:
            tk_ff //= 2
        elif tm > 128:
            tm -= 128
        else:
            break
    assert d_ff_p % tk_ff == 0
    n_k = d_ff_p // tk_ff

    Mp = _round_up(M, tm)
    if Mp != M:
        x2d = jnp.pad(x2d, ((0, Mp - M), (0, 0)))
    if d_ff_p != d_ff:
        pad = d_ff_p - d_ff
        w1 = jnp.pad(w1, ((0, 0), (0, pad)))
        b1 = jnp.pad(b1, ((0, 0), (0, pad)))
        w2 = jnp.pad(w2, ((0, pad), (0, 0)))
    n_m = Mp // tm

    deep_buffer = is_v5 and n_k >= 3  # pl.Buffered(3) on streamed weights (v5e only)

    needed = _vmem_bytes(tm, tk_ff, d_model, out_itemsize, 3 if deep_buffer else 2)
    vmem_limit = int(min(cap, max(needed + needed // 4 + 4 * _MIB, 32 * _MIB)))

    cost = pl.CostEstimate(
        flops=4 * Mp * d_model * d_ff_p,
        transcendentals=Mp * d_ff_p,
        bytes_accessed=(
            Mp * d_model * 2                      # x (bf16, read once)
            + n_m * 2 * d_model * d_ff_p * 2      # W1 + W2 (bf16), re-streamed per M tile
            + n_m * (d_ff_p + d_model) * 4        # biases (f32), re-streamed per M tile
            + Mp * d_model * out_itemsize         # output
        ),
    )

    out = pl.pallas_call(
        _make_ffn_kernel(approx_sigmoid),
        out_shape=jax.ShapeDtypeStruct((Mp, d_model), out_dtype),
        grid_spec=pltpu.PrefetchScalarGridSpec(
            num_scalar_prefetch=0,
            grid=(n_m, n_k),
            in_specs=[
                pl.BlockSpec((tm, d_model), lambda i, k: (i, 0)),    # x tile (resident over k)
                _weight_spec((d_model, tk_ff), lambda i, k: (0, k), deep_buffer),  # W1 slab
                pl.BlockSpec((1, tk_ff), lambda i, k: (0, k)),       # b1 slab
                _weight_spec((tk_ff, d_model), lambda i, k: (k, 0), deep_buffer),  # W2 slab
                pl.BlockSpec((1, d_model), lambda i, k: (0, 0)),     # b2 (tiny, resident)
            ],
            # TODO(synk): for d_model >= 8k on v7x add an output-N grid axis (tile d_model
            # for W2/acc/out) so the f32 accumulator + x/out buffers still fit in 64 MiB.
            out_specs=pl.BlockSpec((tm, d_model), lambda i, k: (i, 0)),
            scratch_shapes=[pltpu.VMEM((tm, d_model), jnp.float32)],  # f32 accumulator
        ),
        compiler_params=pltpu.CompilerParams(
            dimension_semantics=("parallel", "arbitrary"),
            vmem_limit_bytes=vmem_limit,
        ),
        cost_estimate=cost,
    )(x2d, w1, b1, w2, b2)

    return out[:M].reshape(orig_shape)


if __name__ == "__main__":
    # Shapes matching the PyTorch module defaults (d_model=512, d_ff=2048), small batch/seq.
    batch, seq = 2, 8
    d_model, d_ff = 512, 2048

    key = jax.random.PRNGKey(0)
    kx, kw1, kb1, kw2, kb2 = jax.random.split(key, 5)

    x = jax.random.normal(kx, (batch, seq, d_model), dtype=jnp.float32)
    # PyTorch nn.Linear params, pre-transposed to [in, out] layout.
    w1 = jax.random.normal(kw1, (d_model, d_ff), dtype=jnp.float32) * 0.02
    b1 = jax.random.normal(kb1, (1, d_ff), dtype=jnp.float32) * 0.02
    w2 = jax.random.normal(kw2, (d_ff, d_model), dtype=jnp.float32) * 0.02
    b2 = jax.random.normal(kb2, (1, d_model), dtype=jnp.float32) * 0.02

    # bf16 matmul operands (MXU-native); biases stay f32 (added in f32 inside the kernel).
    xb = x.astype(jnp.bfloat16)
    w1b = w1.astype(jnp.bfloat16)
    w2b = w2.astype(jnp.bfloat16)

    out = feed_forward(xb, w1b, b1, w2b, b2)
    jax.block_until_ready(out)
    assert out.shape == (batch, seq, d_model)

    # Reference in plain JAX, mirroring the kernel's precision choices
    # (bf16 matmul operands, f32 accumulation, bf16 output).
    x32 = xb.astype(jnp.float32).reshape(batch * seq, d_model)
    w1f = w1b.astype(jnp.float32)
    w2f = w2b.astype(jnp.float32)
    h_ref = x32 @ w1f + b1
    act_ref = h_ref * (h_ref * jax.nn.sigmoid(h_ref))
    y_ref = act_ref.astype(jnp.bfloat16).astype(jnp.float32) @ w2f + b2
    y_ref = y_ref.reshape(batch, seq, d_model)

    out_f32 = out.astype(jnp.float32)
    max_err = jnp.max(jnp.abs(out_f32 - y_ref))
    assert jnp.allclose(out_f32, y_ref, atol=2e-2, rtol=2e-2), f"mismatch vs reference: {max_err}"

    print("KERNEL_OK")
</pallas_src>

<mosaic_0001>
module attributes {stable_mosaic.version = 11 : i64} {
  func.func @ffn_kernel(%arg0: i32, %arg1: i32, %arg2: memref<128x512xbf16, #tpu.memory_space<vmem>>, %arg3: memref<512x1024xbf16, #tpu.memory_space<vmem>>, %arg4: memref<1x1024xf32, #tpu.memory_space<vmem>>, %arg5: memref<1024x512xbf16, #tpu.memory_space<vmem>>, %arg6: memref<1x512xf32, #tpu.memory_space<vmem>>, %arg7: memref<128x512xbf16, #tpu.memory_space<vmem>>, %arg8: memref<128x512xf32, #tpu.memory_space<vmem>>) attributes {dimension_semantics = [#tpu.dimension_semantics<parallel>, #tpu.dimension_semantics<arbitrary>], iteration_bounds = array<i64: 1, 2>, scalar_prefetch = 0 : i64, scratch_operands = 1 : i64, tpu.core_type = #tpu.core_type<tc>, window_params = [{transform_indices = @transform_0, window_bounds = array<i64: 128, 512>}, {transform_indices = @transform_1, window_bounds = array<i64: 512, 1024>}, {transform_indices = @transform_2, window_bounds = array<i64: 1, 1024>}, {transform_indices = @transform_3, window_bounds = array<i64: 1024, 512>}, {pipeline_mode = #tpu.pipeline_mode<synchronous>, transform_indices = @transform_4, window_bounds = array<i64: 1, 512>}, {transform_indices = @transform_5, window_bounds = array<i64: 128, 512>}]} {
    %c0_i32 = arith.constant 0 : i32
    %0 = arith.cmpi eq, %arg1, %c0_i32 : i32
    %1 = arith.extui %0 : i1 to i32
    %c0_i32_0 = arith.constant 0 : i32
    %2 = arith.cmpi ne, %1, %c0_i32_0 : i32
    scf.if %2 {
      %cst_15 = arith.constant 0.000000e+00 : f32
      %25 = vector.broadcast %cst_15 : f32 to vector<128x512xf32>
      %c0_16 = arith.constant 0 : index
      %c0_17 = arith.constant 0 : index
      %26 = vector.load %arg8[%c0_16, %c0_17] : memref<128x512xf32, #tpu.memory_space<vmem>>, vector<128x512xf32>
      tpu.vector_store %arg8[%c0_16, %c0_17], %25 {strides = array<i32>} : memref<128x512xf32, #tpu.memory_space<vmem>>, vector<128x512xf32>,
    } else {
    }
    %c0 = arith.constant 0 : index
    %c0_1 = arith.constant 0 : index
    %3 = vector.load %arg2[%c0, %c0_1] : memref<128x512xbf16, #tpu.memory_space<vmem>>, vector<128x512xbf16>
    %c0_2 = arith.constant 0 : index
    %c0_3 = arith.constant 0 : index
    %4 = vector.load %arg3[%c0_2, %c0_3] : memref<512x1024xbf16, #tpu.memory_space<vmem>>, vector<512x1024xbf16>
    %cst = arith.constant dense<0.000000e+00> : vector<128x1024xf32>
    %5 = tpu.matmul %3, %4, %cst {dimension_numbers = #tpu.dot_dimension_numbers<[1], [0], [0], [1], [0, 0, 1, 1], [], []>} : vector<128x512xbf16>, vector<512x1024xbf16>, vector<128x1024xf32> -> vector<128x1024xf32>
    %c0_4 = arith.constant 0 : index
    %c0_5 = arith.constant 0 : index
    %6 = vector.load %arg4[%c0_4, %c0_5] : memref<1x1024xf32, #tpu.memory_space<vmem>>, vector<1x1024xf32>
    %7 = vector.broadcast %6 : vector<1x1024xf32> to vector<128x1024xf32>
    %8 = arith.addf %5, %7 : vector<128x1024xf32>
    %9 = arith.negf %8 : vector<128x1024xf32>
    %10 = math.exp %9 : vector<128x1024xf32>
    %cst_6 = arith.constant 1.000000e+00 : f32
    %11 = vector.broadcast %cst_6 : f32 to vector<128x1024xf32>
    %12 = arith.addf %11, %10 : vector<128x1024xf32>
    %13 = arith.divf %11, %12 : vector<128x1024xf32>
    %14 = arith.mulf %8, %13 : vector<128x1024xf32>
    %15 = arith.mulf %8, %14 : vector<128x1024xf32>
    %c0_7 = arith.constant 0 : index
    %c0_8 = arith.constant 0 : index
    %16 = vector.load %arg8[%c0_7, %c0_8] : memref<128x512xf32, #tpu.memory_space<vmem>>, vector<128x512xf32>
    %17 = arith.truncf %15 : vector<128x1024xf32> to vector<128x1024xbf16>
    %c0_9 = arith.constant 0 : index
    %c0_10 = arith.constant 0 : index
    %18 = vector.load %arg5[%c0_9, %c0_10] : memref<1024x512xbf16, #tpu.memory_space<vmem>>, vector<1024x512xbf16>
    %cst_11 = arith.constant dense<0.000000e+00> : vector<128x512xf32>
    %19 = tpu.matmul %17, %18, %cst_11 {dimension_numbers = #tpu.dot_dimension_numbers<[1], [0], [0], [1], [0, 0, 1, 1], [], []>} : vector<128x1024xbf16>, vector<1024x512xbf16>, vector<128x512xf32> -> vector<128x512xf32>
    %20 = arith.addf %16, %19 : vector<128x512xf32>
    %c0_12 = arith.constant 0 : index
    %c0_13 = arith.constant 0 : index
    %21 = vector.load %arg8[%c0_12, %c0_13] : memref<128x512xf32, #tpu.memory_space<vmem>>, vector<128x512xf32>
    tpu.vector_store %arg8[%c0_12, %c0_13], %20 {strides = array<i32>} : memref<128x512xf32, #tpu.memory_space<vmem>>, vector<128x512xf32>,
    %c1_i32 = arith.constant 1 : i32
    %22 = arith.cmpi eq, %arg1, %c1_i32 : i32
    %23 = arith.extui %22 : i1 to i32
    %c0_i32_14 = arith.constant 0 : i32
    %24 = arith.cmpi ne, %23, %c0_i32_14 : i32
    scf.if %24 {
      %c0_15 = arith.constant 0 : index
      %c0_16 = arith.constant 0 : index
      %25 = vector.load %arg8[%c0_15, %c0_16] : memref<128x512xf32, #tpu.memory_space<vmem>>, vector<128x512xf32>
      %c0_17 = arith.constant 0 : index
      %c0_18 = arith.constant 0 : index
      %26 = vector.load %arg6[%c0_17, %c0_18] : memref<1x512xf32, #tpu.memory_space<vmem>>, vector<1x512xf32>
      %27 = vector.broadcast %26 : vector<1x512xf32> to vector<128x512xf32>
      %28 = arith.addf %25, %27 : vector<128x512xf32>
      %29 = arith.truncf %28 : vector<128x512xf32> to vector<128x512xbf16>
      %c0_19 = arith.constant 0 : index
      %c0_20 = arith.constant 0 : index
      %30 = vector.load %arg7[%c0_19, %c0_20] : memref<128x512xbf16, #tpu.memory_space<vmem>>, vector<128x512xbf16>
      tpu.vector_store %arg7[%c0_19, %c0_20], %29 {strides = array<i32>} : memref<128x512xbf16, #tpu.memory_space<vmem>>, vector<128x512xbf16>,
    } else {
    }
    return
  }
  func.func @transform_0(%arg0: i32, %arg1: i32) -> (i32, i32) {
    %c0_i32 = arith.constant 0 : i32
    %c0_i32_0 = arith.constant 0 : i32
    return %arg0, %c0_i32 : i32, i32
  }
  func.func @transform_1(%arg0: i32, %arg1: i32) -> (i32, i32) {
    %c0_i32 = arith.constant 0 : i32
    %c0_i32_0 = arith.constant 0 : i32
    return %c0_i32, %arg1 : i32, i32
  }
  func.func @transform_2(%arg0: i32, %arg1: i32) -> (i32, i32) {
    %c0_i32 = arith.constant 0 : i32
    %c0_i32_0 = arith.constant 0 : i32
    return %c0_i32, %arg1 : i32, i32
  }
  func.func @transform_3(%arg0: i32, %arg1: i32) -> (i32, i32) {
    %c0_i32 = arith.constant 0 : i32
    %c0_i32_0 = arith.constant 0 : i32
    return %arg1, %c0_i32 : i32, i32
  }
  func.func @transform_4(%arg0: i32, %arg1: i32) -> (i32, i32) {
    %c0_i32 = arith.constant 0 : i32
    %c0_i32_0 = arith.constant 0 : i32
    %c0_i32_1 = arith.constant 0 : i32
    return %c0_i32, %c0_i32_0 : i32, i32
  }
  func.func @transform_5(%arg0: i32, %arg1: i32) -> (i32, i32) {
    %c0_i32 = arith.constant 0 : i32
    %c0_i32_0 = arith.constant 0 : i32
    return %arg0, %c0_i32 : i32, i32
  }
}

</mosaic_0001>

<llo_original>
// kernel: tpu_custom_call.1
$region0: #{tpu_custom_call.1}
  #allocation0 [shape = 'u32[]', space=smem, size = 0x4, offset = 0x4, fixed_abs, tag = 'smem constant byte address 0x4 - core index']
  #allocation1 [shape = 'u32[72,128]{1,0:T(1,128)}', space=vmem, size = 0x9000, scoped, tag = 'internal scratch']
  #allocation2 [shape = 'f32[128,512]{1,0:T(8,128)}', space=vmem, size = 0x40000, scoped, tag = 'scratch operand']
  %s0 = inlined_call_operand.hbm [shape: bf16[128,512], index: 0, kind: input, shape index: {}]
  %s1 = inlined_call_operand.hbm [shape: bf16[512,2048], index: 1, kind: input, shape index: {}]
  %s2 = inlined_call_operand.hbm [shape: f32[1,2048], index: 2, kind: input, shape index: {}]
  %s3 = inlined_call_operand.hbm [shape: bf16[2048,512], index: 3, kind: input, shape index: {}]
  %s4 = inlined_call_operand.hbm [shape: f32[1,512], index: 4, kind: input, shape index: {}]
  %s5 = inlined_call_operand.hbm [shape: bf16[128,512], index: 5, kind: output, shape index: {}]
  %s6 = sld [smem:[#allocation0]]
  $region81: #{tpu_custom_call.1} parent=0
    _
  %s8 = ssub.s32 1, %s6
  %s9 = scalar_select 0, %s8, %s6
  $region1: #{tpu_custom_call.1} parent=0
    #allocation3 [shape = 'u8[131072]{0}', space=vmem, size = 0x20000, scoped, tag = 'input window, operand 0, single buffered']
    #allocation4 [shape = 's32[2]{0}', space=sflag, size = 0x8, scoped, tag = 'scoped memory for tpu_custom_call.1']
    #allocation5 [shape = 's32[2]{0}', space=sflag, size = 0x8, scoped, tag = 'scoped memory for tpu_custom_call.1']
    #allocation6 [shape = 'u8[2097152]{0}', space=vmem, size = 0x200000, scoped, tag = 'input window, operand 1']
    #allocation7 [shape = 's32[2]{0}', space=sflag, size = 0x8, scoped, tag = 'scoped memory for tpu_custom_call.1']
    #allocation8 [shape = 'u8[8192]{0}', space=vmem, size = 0x2000, scoped, tag = 'input window, operand 2']
    #allocation9 [shape = 'u8[2097152]{0}', space=vmem, size = 0x200000, scoped, tag = 'input window, operand 3']
    #allocation10 [shape = 's32[2]{0}', space=sflag, size = 0x8, scoped, tag = 'scoped memory for tpu_custom_call.1']
    #allocation11 [shape = 'u8[2048]{0}', space=vmem, size = 0x800, scoped, tag = 'input window, operand 4, single buffered']
    #allocation12 [shape = 'u8[131072]{0}', space=vmem, size = 0x20000, scoped, tag = 'output window, operand 0, single buffered']
    %10 = vsyncpa [#allocation4], 0
    %11 = vsyncpa [#allocation7], 0
    %s12 = scalar_lea.sflag [#allocation7], 1
    %13 = vsyncpa %s12, 0
    %14 = vsyncpa [#allocation10], 0
    %s15 = scalar_lea.sflag [#allocation10], 1
    %16 = vsyncpa %s15, 0
    %17 = vsyncpa [#allocation5], 0
    loop: start=0, step=1, limit=4
    $region2: #{tpu_custom_call.1} parent=1 // loop_pre_header
      _
    $region3: #{tpu_custom_call.1} parent=1 // loop_header
      %s19 = sphi 0, %s23
      %p20 = scmp.ge.s32.totalorder %s19, 4
      %s26 = sphi 0, %s38
      %s27 = sphi 0, %s34
      %s28 = sphi 0, %s26
      %s29 = sphi 0, %s27
      %s30 = sphi 0, %s28
      %s31 = sphi 0, %s29
      %s41 = sphi 0, %s43
      %s44 = sphi 0, %s41
      %s45 = sphi 0, %s44
      %s61 = sphi 0, %s45
      %s67 = sphi 0, %s69
      %s70 = sphi 0, %s67
      %s71 = sphi 0, %s70
      %s87 = sphi 0, %s71
      %s93 = sphi 0, %s95
      %s96 = sphi 0, %s93
      %s97 = sphi 0, %s96
      %s113 = sphi 0, %s97
      %s119 = sphi 0, %s121
      %s122 = sphi 0, %s119
      %s123 = sphi 0, %s122
      %s139 = sphi 0, %s123
      %s143 = sphi 0, %s143
      %s145 = sphi 0, %s143
      %s146 = sphi 0, %s145
      %s160 = sphi 0, %s146
      %s166 = sphi 0, %s168
      %s169 = sphi 0, %s166
      %s170 = sphi 0, %s169
      %s186 = sphi 0, %s170
    $region4: #{tpu_custom_call.1} parent=1 // loop_header_branch
      %22 = sbr.rel (%p20) target = $region8
    $region5: #{tpu_custom_call.1} parent=1 // loop_body
      %s24 = ssub.s32 %s19, 1
      %s25 = ssub.s32 %s19, 2
      %s32 = sadd.s32 1, %s27
      %p33 = scmp.ge.s32.totalorder %s32, 2
      %s34 = scalar_select %p33, 0, %s32
      %s35 = sadd.s32 1, %s26
      %s36 = scalar_select %p33, %s35, %s26
      %p37 = scmp.ge.s32.totalorder %s36, 1
      %s38 = scalar_select %p37, 0, %s36
      %s39 = ssub.s32 %s26, %s38
      %p40 = scmp.eq.s32.totalorder %s39, 0
      %s42 = sadd.s32 %s41, 1
      %s43 = scalar_select %p40, %s41, %s42
      %p46 = pneg %p40
      %p47 = scmp.eq.s32.totalorder %s19, 1
      %p48 = por %p46, %p47
      %p49 = scmp.ne.s32.totalorder %s41, %s44
      %p50 = scmp.eq.s32.totalorder %s19, 0
      %p51 = por %p49, %p50
      %p52 = scmp.ne.s32.totalorder %s41, %s44
      %p53 = scmp.eq.s32.totalorder %s24, 1
      %p54 = por %p52, %p53
      %p55 = scmp.ne.s32.totalorder %s44, %s45
      %p56 = scmp.eq.s32.totalorder %s24, 0
      %p57 = por %p55, %p56
      %p58 = scmp.ne.s32.totalorder %s44, %s45
      %p59 = scmp.eq.s32.totalorder %s25, 1
      %p60 = por %p58, %p59
      %p62 = scmp.ne.s32.totalorder %s45, %s61
      %p63 = scmp.eq.s32.totalorder %s25, 0
      %p64 = por %p62, %p63
      %s65 = ssub.s32 %s27, %s34
      %p66 = scmp.eq.s32.totalorder %s65, 0
      %s68 = sadd.s32 %s67, 1
      %s69 = scalar_select %p66, %s67, %s68
      %p72 = pneg %p66
      %p73 = scmp.eq.s32.totalorder %s19, 1
      %p74 = por %p72, %p73
      %p75 = scmp.ne.s32.totalorder %s67, %s70
      %p76 = scmp.eq.s32.totalorder %s19, 0
      %p77 = por %p75, %p76
      %p78 = scmp.ne.s32.totalorder %s67, %s70
      %p79 = scmp.eq.s32.totalorder %s24, 1
      %p80 = por %p78, %p79
      %p81 = scmp.ne.s32.totalorder %s70, %s71
      %p82 = scmp.eq.s32.totalorder %s24, 0
      %p83 = por %p81, %p82
      %p84 = scmp.ne.s32.totalorder %s70, %s71
      %p85 = scmp.eq.s32.totalorder %s25, 1
      %p86 = por %p84, %p85
      %p88 = scmp.ne.s32.totalorder %s71, %s87
      %p89 = scmp.eq.s32.totalorder %s25, 0
      %p90 = por %p88, %p89
      %s91 = ssub.s32 %s27, %s34
      %p92 = scmp.eq.s32.totalorder %s91, 0
      %s94 = sadd.s32 %s93, 1
      %s95 = scalar_select %p92, %s93, %s94
      %p98 = pneg %p92
      %p99 = scmp.eq.s32.totalorder %s19, 1
      %p100 = por %p98, %p99
      %p101 = scmp.ne.s32.totalorder %s93, %s96
      %p102 = scmp.eq.s32.totalorder %s19, 0
      %p103 = por %p101, %p102
      %p104 = scmp.ne.s32.totalorder %s93, %s96
      %p105 = scmp.eq.s32.totalorder %s24, 1
      %p106 = por %p104, %p105
      %p107 = scmp.ne.s32.totalorder %s96, %s97
      %p108 = scmp.eq.s32.totalorder %s24, 0
      %p109 = por %p107, %p108
      %p110 = scmp.ne.s32.totalorder %s96, %s97
      %p111 = scmp.eq.s32.totalorder %s25, 1
      %p112 = por %p110, %p111
      %p114 = scmp.ne.s32.totalorder %s97, %s113
      %p115 = scmp.eq.s32.totalorder %s25, 0
      %p116 = por %p114, %p115
      %s117 = ssub.s32 %s27, %s34
      %p118 = scmp.eq.s32.totalorder %s117, 0
      %s120 = sadd.s32 %s119, 1
      %s121 = scalar_select %p118, %s119, %s120
      %p124 = pneg %p118
      %p125 = scmp.eq.s32.totalorder %s19, 1
      %p126 = por %p124, %p125
      %p127 = scmp.ne.s32.totalorder %s119, %s122
      %p128 = scmp.eq.s32.totalorder %s19, 0
      %p129 = por %p127, %p128
      %p130 = scmp.ne.s32.totalorder %s119, %s122
      %p131 = scmp.eq.s32.totalorder %s24, 1
      %p132 = por %p130, %p131
      %p133 = scmp.ne.s32.totalorder %s122, %s123
      %p134 = scmp.eq.s32.totalorder %s24, 0
      %p135 = por %p133, %p134
      %p136 = scmp.ne.s32.totalorder %s122, %s123
      %p137 = scmp.eq.s32.totalorder %s25, 1
      %p138 = por %p136, %p137
      %p140 = scmp.ne.s32.totalorder %s123, %s139
      %p141 = scmp.eq.s32.totalorder %s25, 0
      %p142 = por %p140, %p141
      %s144 = sadd.s32 %s143, 1
      %p147 = scmp.eq.s32.totalorder %s19, 1
      %p148 = scmp.ne.s32.totalorder %s143, %s145
      %p149 = scmp.eq.s32.totalorder %s19, 0
      %p150 = por %p148, %p149
      %p151 = scmp.ne.s32.totalorder %s143, %s145
      %p152 = scmp.eq.s32.totalorder %s24, 1
      %p153 = por %p151, %p152
      %p154 = scmp.ne.s32.totalorder %s145, %s146
      %p155 = scmp.eq.s32.totalorder %s24, 0
      %p156 = por %p154, %p155
      %p157 = scmp.ne.s32.totalorder %s145, %s146
      %p158 = scmp.eq.s32.totalorder %s25, 1
      %p159 = por %p157, %p158
      %p161 = scmp.ne.s32.totalorder %s146, %s160
      %p162 = scmp.eq.s32.totalorder %s25, 0
      %p163 = por %p161, %p162
      %s164 = ssub.s32 %s26, %s38
      %p165 = scmp.eq.s32.totalorder %s164, 0
      %s167 = sadd.s32 %s166, 1
      %s168 = scalar_select %p165, %s166, %s167
      %p171 = pneg %p165
      %p172 = scmp.eq.s32.totalorder %s19, 1
      %p173 = por %p171, %p172
      %p174 = scmp.ne.s32.totalorder %s166, %s169
      %p175 = scmp.eq.s32.totalorder %s19, 0
      %p176 = por %p174, %p175
      %p177 = scmp.ne.s32.totalorder %s166, %s169
      %p178 = scmp.eq.s32.totalorder %s24, 1
      %p179 = por %p177, %p178
      %p180 = scmp.ne.s32.totalorder %s169, %s170
      %p181 = scmp.eq.s32.totalorder %s24, 0
      %p182 = por %p180, %p181
      %p183 = scmp.ne.s32.totalorder %s169, %s170
      %p184 = scmp.eq.s32.totalorder %s25, 1
      %p185 = por %p183, %p184
      %p187 = scmp.ne.s32.totalorder %s170, %s186
      %p188 = scmp.eq.s32.totalorder %s25, 0
      %p189 = por %p187, %p188
      %p190 = scmp.le.s32.totalorder 1, %s19
      %p191 = scmp.lt.s32.totalorder %s19, 3
      %p192 = pnand %p190, %p191
      %p193 = pneg %p192
      // Predicated region
      $region9: #{tpu_custom_call.1} parent=5 // pred_check
        _
      $region10: #{tpu_custom_call.1} parent=5 // pred_check_branch
        %195 = sbr.rel (%p192) target = $region12
      $region11: #{tpu_custom_call.1} parent=5 // pred_region
        %s196 = ssub.s32 %s19, 1
        // Predicated region
        $region13: #{tpu_custom_call.1} parent=11 // pred_check
          %p197 = pneg %p57
        $region14: #{tpu_custom_call.1} parent=11 // pred_check_branch
          %199 = sbr.rel (%p197) target = $region16
        $region15: #{tpu_custom_call.1} parent=11 // pred_region
          %s200 = smul.u32 16, %s28
          %202 = vsyncadd [#allocation4], 0
          %s203 = smul.addr %s200, 4
          %s204 = smul.addr %s203, 4
          %s205 = scalar_lea.hbm %s0, %s204
          %s206 = sshll.u32 %s205, 4
          %s207 = int_to_ptr.hbm [resolvable:$true] %s206
          %s208 = sshll.u32 [#allocation3], 4
          %s209 = int_to_ptr.vmem [resolvable:$true] %s208
          %214 = dma.hbm_to_vmem [thread:$0]  %s207, 4096, %s209, [#allocation4], 256, 256, 16
        $region16: #{tpu_custom_call.1} parent=11 // pred_fallthru
          _
        // Predicated region
        $region17: #{tpu_custom_call.1} parent=11 // pred_check
          %p215 = pneg %p156
        $region18: #{tpu_custom_call.1} parent=11 // pred_check_branch
          %217 = sbr.rel (%p215) target = $region20
        $region19: #{tpu_custom_call.1} parent=11 // pred_region
          %219 = vsyncadd [#allocation10], 0
          %s221 = sshll.u32 %s4, 4
          %s222 = int_to_ptr.hbm [resolvable:$true] %s221
          %s223 = sshll.u32 [#allocation11], 4
          %s224 = int_to_ptr.vmem [resolvable:$true] %s223
          %226 = dma.hbm_to_vmem [thread:$0]  %s222, 64, %s224, [#allocation10]
        $region20: #{tpu_custom_call.1} parent=11 // pred_fallthru
          _
      $region12: #{tpu_custom_call.1} parent=5 // pred_fallthru
        _
      %p227 = scmp.lt.s32.totalorder %s19, 2
      // Predicated region
      $region21: #{tpu_custom_call.1} parent=5 // pred_check
        %p228 = pneg %p227
      $region22: #{tpu_custom_call.1} parent=5 // pred_check_branch
        %230 = sbr.rel (%p228) target = $region24
      $region23: #{tpu_custom_call.1} parent=5 // pred_region
        // Predicated region
        $region25: #{tpu_custom_call.1} parent=23 // pred_check
          %p231 = pneg %p77
        $region26: #{tpu_custom_call.1} parent=23 // pred_check_branch
          %233 = sbr.rel (%p231) target = $region28
        $region27: #{tpu_custom_call.1} parent=23 // pred_region
          %s234 = sand.u32 %s19, 1
          %s235 = scalar_lea.sflag [#allocation7], %s234
          %s236 = sand.u32 %s67, 1
          %s237 = smul.addr %s236, 2048
          %s238 = scalar_lea.vmem [#allocation6], %s237
          %s239 = smul.u32 8, %s27
          %241 = vsyncadd %s235, 0
          %s242 = smul.addr %s239, 4
          %s243 = scalar_lea.hbm %s1, %s242
          %s244 = sshll.u32 %s243, 4
          %s245 = int_to_ptr.hbm [resolvable:$true] %s244
          %s246 = sshll.u32 %s238, 4
          %s247 = int_to_ptr.vmem [resolvable:$true] %s246
          %252 = dma.hbm_to_vmem [thread:$0]  %s245, 32768, %s247, %s235, 1024, 512, 32
        $region28: #{tpu_custom_call.1} parent=23 // pred_fallthru
          _
        // Predicated region
        $region29: #{tpu_custom_call.1} parent=23 // pred_check
          %p253 = pneg %p103
        $region30: #{tpu_custom_call.1} parent=23 // pred_check_branch
          %255 = sbr.rel (%p253) target = $region32
        $region31: #{tpu_custom_call.1} parent=23 // pred_region
          %s256 = sand.u32 %s19, 1
          %s257 = scalar_lea.sflag [#allocation7], %s256
          %s258 = sand.u32 %s93, 1
          %s259 = smul.addr %s258, 8
          %s260 = scalar_lea.vmem [#allocation8], %s259
          %s261 = smul.u32 8, %s27
          %263 = vsyncadd %s257, 0
          %s264 = scalar_lea.hbm %s2, %s261
          %s266 = sshll.u32 %s264, 4
          %s267 = int_to_ptr.hbm [resolvable:$true] %s266
          %s268 = sshll.u32 %s260, 4
          %s269 = int_to_ptr.vmem [resolvable:$true] %s268
          %271 = dma.hbm_to_vmem [thread:$0]  %s267, 128, %s269, %s257
        $region32: #{tpu_custom_call.1} parent=23 // pred_fallthru
          _
        // Predicated region
        $region33: #{tpu_custom_call.1} parent=23 // pred_check
          %p272 = pneg %p129
        $region34: #{tpu_custom_call.1} parent=23 // pred_check_branch
          %274 = sbr.rel (%p272) target = $region36
        $region35: #{tpu_custom_call.1} parent=23 // pred_region
          %s275 = sand.u32 %s19, 1
          %s276 = scalar_lea.sflag [#allocation10], %s275
          %s277 = sand.u32 %s119, 1
          %s278 = smul.addr %s277, 2048
          %s279 = scalar_lea.vmem [#allocation9], %s278
          %s280 = smul.u32 128, %s27
          %282 = vsyncadd %s276, 0
          %s283 = smul.addr %s280, 4
          %s284 = smul.addr %s283, 4
          %s285 = scalar_lea.hbm %s3, %s284
          %s286 = sshll.u32 %s285, 4
          %s287 = int_to_ptr.hbm [resolvable:$true] %s286
          %s288 = sshll.u32 %s279, 4
          %s289 = int_to_ptr.vmem [resolvable:$true] %s288
          %294 = dma.hbm_to_vmem [thread:$0]  %s287, 32768, %s289, %s276, 256, 256, 16
        $region36: #{tpu_custom_call.1} parent=23 // pred_fallthru
          _
      $region24: #{tpu_custom_call.1} parent=5 // pred_fallthru
        _
      %p295 = scmp.le.s32.totalorder 1, %s19
      %p296 = scmp.lt.s32.totalorder %s19, 3
      %p297 = pnand %p295, %p296
      %p298 = pneg %p297
      // Predicated region
      $region37: #{tpu_custom_call.1} parent=5 // pred_check
        _
      $region38: #{tpu_custom_call.1} parent=5 // pred_check_branch
        %300 = sbr.rel (%p297) target = $region40
      $region39: #{tpu_custom_call.1} parent=5 // pred_region
        %s301 = ssub.s32 %s19, 1
        // Predicated region
        $region41: #{tpu_custom_call.1} parent=39 // pred_check
          %p302 = pneg %p57
        $region42: #{tpu_custom_call.1} parent=39 // pred_check_branch
          %304 = sbr.rel (%p302) target = $region44
        $region43: #{tpu_custom_call.1} parent=39 // pred_region
          %306 = dma.done [#allocation4], 4096
        $region44: #{tpu_custom_call.1} parent=39 // pred_fallthru
          _
        %s307 = sand.u32 %s24, 1
        %s308 = scalar_lea.sflag [#allocation7], %s307
        %s309 = sand.u32 %s70, 1
        %s310 = smul.addr %s309, 2048
        %s311 = scalar_lea.vmem [#allocation6], %s310
        // Predicated region
        $region45: #{tpu_custom_call.1} parent=39 // pred_check
          %p312 = pneg %p83
        $region46: #{tpu_custom_call.1} parent=39 // pred_check_branch
          %314 = sbr.rel (%p312) target = $region48
        $region47: #{tpu_custom_call.1} parent=39 // pred_region
          %316 = dma.done %s308, 32768
        $region48: #{tpu_custom_call.1} parent=39 // pred_fallthru
          _
        %s317 = sand.u32 %s24, 1
        %s318 = scalar_lea.sflag [#allocation7], %s317
        %s319 = sand.u32 %s96, 1
        %s320 = smul.addr %s319, 8
        %s321 = scalar_lea.vmem [#allocation8], %s320
        // Predicated region
        $region49: #{tpu_custom_call.1} parent=39 // pred_check
          %p322 = pneg %p109
        $region50: #{tpu_custom_call.1} parent=39 // pred_check_branch
          %324 = sbr.rel (%p322) target = $region52
        $region51: #{tpu_custom_call.1} parent=39 // pred_region
          %326 = dma.done %s318, 128
        $region52: #{tpu_custom_call.1} parent=39 // pred_fallthru
          _
        %s327 = sand.u32 %s24, 1
        %s328 = scalar_lea.sflag [#allocation10], %s327
        %s329 = sand.u32 %s122, 1
        %s330 = smul.addr %s329, 2048
        %s331 = scalar_lea.vmem [#allocation9], %s330
        // Predicated region
        $region53: #{tpu_custom_call.1} parent=39 // pred_check
          %p332 = pneg %p135
        $region54: #{tpu_custom_call.1} parent=39 // pred_check_branch
          %334 = sbr.rel (%p332) target = $region56
        $region55: #{tpu_custom_call.1} parent=39 // pred_region
          %336 = dma.done %s328, 32768
        $region56: #{tpu_custom_call.1} parent=39 // pred_fallthru
          _
        // Predicated region
        $region57: #{tpu_custom_call.1} parent=39 // pred_check
          %p337 = pneg %p156
        $region58: #{tpu_custom_call.1} parent=39 // pred_check_branch
          %339 = sbr.rel (%p337) target = $region60
        $region59: #{tpu_custom_call.1} parent=39 // pred_region
          %341 = dma.done [#allocation10], 64
        $region60: #{tpu_custom_call.1} parent=39 // pred_fallthru
          _
        %p342 = pneg %p57
        %p343 = pneg %p54
        %s344 = sand.u32 %s24, 1
        %s345 = scalar_lea.sflag [#allocation7], %s344
        %s346 = sand.u32 %s70, 1
        %s347 = smul.addr %s346, 2048
        %s348 = scalar_lea.vmem [#allocation6], %s347
        %p349 = pneg %p83
        %p350 = pneg %p80
        %s351 = sand.u32 %s24, 1
        %s352 = scalar_lea.sflag [#allocation7], %s351
        %s353 = sand.u32 %s96, 1
        %s354 = smul.addr %s353, 8
        %s355 = scalar_lea.vmem [#allocation8], %s354
        %p356 = pneg %p109
        %p357 = pneg %p106
        %s358 = sand.u32 %s24, 1
        %s359 = scalar_lea.sflag [#allocation10], %s358
        %s360 = sand.u32 %s122, 1
        %s361 = smul.addr %s360, 2048
        %s362 = scalar_lea.vmem [#allocation9], %s361
        %p363 = pneg %p135
        %p364 = pneg %p132
        %p365 = pneg %p156
        %p366 = pneg %p153
        %p367 = pneg %p182
        %p368 = pneg %p179
        %s369 = smul.u32 16, %s28
        %s370 = smul.u32 8, %s29
        %s371 = smul.u32 8, %s29
        %s372 = smul.u32 128, %s29
        %s373 = smul.u32 16, %s28
        %p374 = scmp.eq.s32.totalorder %s29, 0
        // Predicated region
        $region61: #{tpu_custom_call.1} parent=39 // pred_check
          %p375 = pneg %p374
        $region62: #{tpu_custom_call.1} parent=39 // pred_check_branch
          %377 = sbr.rel (%p375) target = $region64
        $region63: #{tpu_custom_call.1} parent=39 // pred_region
          %378 = vst [vmem:[#allocation2] sm:$0xff] 0.0
          %379 = vst [vmem:[#allocation2 + $0x8] sm:$0xff] 0.0
          %380 = vst [vmem:[#allocation2 + $0x10] sm:$0xff] 0.0
          %381 = vst [vmem:[#allocation2 + $0x18] sm:$0xff] 0.0
          %382 = vst [vmem:[#allocation2 + $0x20] sm:$0xff] 0.0
          %383 = vst [vmem:[#allocation2 + $0x28] sm:$0xff] 0.0
          %384 = vst [vmem:[#allocation2 + $0x30] sm:$0xff] 0.0
          %385 = vst [vmem:[#allocation2 + $0x38] sm:$0xff] 0.0
          %386 = vst [vmem:[#allocation2 + $0x40] sm:$0xff] 0.0
          %387 = vst [vmem:[#allocation2 + $0x48] sm:$0xff] 0.0
          %388 = vst [vmem:[#allocation2 + $0x50] sm:$0xff] 0.0
          %389 = vst [vmem:[#allocation2 + $0x58] sm:$0xff] 0.0
          %390 = vst [vmem:[#allocation2 + $0x60] sm:$0xff] 0.0
          %391 = vst [vmem:[#allocation2 + $0x68] sm:$0xff] 0.0
          %392 = vst [vmem:[#allocation2 + $0x70] sm:$0xff] 0.0
          %393 = vst [vmem:[#allocation2 + $0x78] sm:$0xff] 0.0
          %394 = vst [vmem:[#allocation2 + $0x80] sm:$0xff] 0.0
          %395 = vst [vmem:[#allocation2 + $0x88] sm:$0xff] 0.0
          %396 = vst [vmem:[#allocation2 + $0x90] sm:$0xff] 0.0
          %397 = vst [vmem:[#allocation2 + $0x98] sm:$0xff] 0.0
          %398 = vst [vmem:[#allocation2 + $0xa0] sm:$0xff] 0.0
          %399 = vst [vmem:[#allocation2 + $0xa8] sm:$0xff] 0.0
          %400 = vst [vmem:[#allocation2 + $0xb0] sm:$0xff] 0.0
          %401 = vst [vmem:[#allocation2 + $0xb8] sm:$0xff] 0.0
          %402 = vst [vmem:[#allocation2 + $0xc0] sm:$0xff] 0.0
          %403 = vst [vmem:[#allocation2 + $0xc8] sm:$0xff] 0.0
          %404 = vst [vmem:[#allocation2 + $0xd0] sm:$0xff] 0.0
          %405 = vst [vmem:[#allocation2 + $0xd8] sm:$0xff] 0.0
          %406 = vst [vmem:[#allocation2 + $0xe0] sm:$0xff] 0.0
          %407 = vst [vmem:[#allocation2 + $0xe8] sm:$0xff] 0.0
          %408 = vst [vmem:[#allocation2 + $0xf0] sm:$0xff] 0.0
          %409 = vst [vmem:[#allocation2 + $0xf8] sm:$0xff] 0.0
          %410 = vst [vmem:[#allocation2 + $0x100] sm:$0xff] 0.0
          %411 = vst [vmem:[#allocation2 + $0x108] sm:$0xff] 0.0
          %412 = vst [vmem:[#allocation2 + $0x110] sm:$0xff] 0.0
          %413 = vst [vmem:[#allocation2 + $0x118] sm:$0xff] 0.0
          %414 = vst [vmem:[#allocation2 + $0x120] sm:$0xff] 0.0
          %415 = vst [vmem:[#allocation2 + $0x128] sm:$0xff] 0.0
          %416 = vst [vmem:[#allocation2 + $0x130] sm:$0xff] 0.0
          %417 = vst [vmem:[#allocation2 + $0x138] sm:$0xff] 0.0
          %418 = vst [vmem:[#allocation2 + $0x140] sm:$0xff] 0.0
          %419 = vst [vmem:[#allocation2 + $0x148] sm:$0xff] 0.0
          %420 = vst [vmem:[#allocation2 + $0x150] sm:$0xff] 0.0
          %421 = vst [vmem:[#allocation2 + $0x158] sm:$0xff] 0.0
          %422 = vst [vmem:[#allocation2 + $0x160] sm:$0xff] 0.0
          %423 = vst [vmem:[#allocation2 + $0x168] sm:$0xff] 0.0
          %424 = vst [vmem:[#allocation2 + $0x170] sm:$0xff] 0.0
          %425 = vst [vmem:[#allocation2 + $0x178] sm:$0xff] 0.0
          %426 = vst [vmem:[#allocation2 + $0x180] sm:$0xff] 0.0
          %427 = vst [vmem:[#allocation2 + $0x188] sm:$0xff] 0.0
          %428 = vst [vmem:[#allocation2 + $0x190] sm:$0xff] 0.0
          %429 = vst [vmem:[#allocation2 + $0x198] sm:$0xff] 0.0
          %430 = vst [vmem:[#allocation2 + $0x1a0] sm:$0xff] 0.0
          %431 = vst [vmem:[#allocation2 + $0x1a8] sm:$0xff] 0.0
          %432 = vst [vmem:[#allocation2 + $0x1b0] sm:$0xff] 0.0
          %433 = vst [vmem:[#allocation2 + $0x1b8] sm:$0xff] 0.0
          %434 = vst [vmem:[#allocation2 + $0x1c0] sm:$0xff] 0.0
          %435 = vst [vmem:[#allocation2 + $0x1c8] sm:$0xff] 0.0
          %436 = vst [vmem:[#allocation2 + $0x1d0] sm:$0xff] 0.0
          %437 = vst [vmem:[#allocation2 + $0x1d8] sm:$0xff] 0.0
          %438 = vst [vmem:[#allocation2 + $0x1e0] sm:$0xff] 0.0
          %439 = vst [vmem:[#allocation2 + $0x1e8] sm:$0xff] 0.0
          %440 = vst [vmem:[#allocation2 + $0x1f0] sm:$0xff] 0.0
          %441 = vst [vmem:[#allocation2 + $0x1f8] sm:$0xff] 0.0
        $region64: #{tpu_custom_call.1} parent=39 // pred_fallthru
          _
        %v442 = vld [vmem:[#allocation3] sm:$0xff]
        %v443 = vld [vmem:[#allocation3 + $0x8] sm:$0xff]
        %v444 = vld [vmem:[#allocation3 + $0x10] sm:$0xff]
        %v445 = vld [vmem:[#allocation3 + $0x18] sm:$0xff]
        %v446 = vld [vmem:[#allocation3 + $0x20] sm:$0xff]
        %v447 = vld [vmem:[#allocation3 + $0x28] sm:$0xff]
        %v448 = vld [vmem:[#allocation3 + $0x30] sm:$0xff]
        %v449 = vld [vmem:[#allocation3 + $0x38] sm:$0xff]
        %v450 = vld [vmem:[#allocation3 + $0x40] sm:$0xff]
        %v451 = vld [vmem:[#allocation3 + $0x48] sm:$0xff]
        %v452 = vld [vmem:[#allocation3 + $0x50] sm:$0xff]
        %v453 = vld [vmem:[#allocation3 + $0x58] sm:$0xff]
        %v454 = vld [vmem:[#allocation3 + $0x60] sm:$0xff]
        %v455 = vld [vmem:[#allocation3 + $0x68] sm:$0xff]
        %v456 = vld [vmem:[#allocation3 + $0x70] sm:$0xff]
        %v457 = vld [vmem:[#allocation3 + $0x78] sm:$0xff]
        %v458 = vld [vmem:[#allocation3 + $0x80] sm:$0xff]
        %v459 = vld [vmem:[#allocation3 + $0x88] sm:$0xff]
        %v460 = vld [vmem:[#allocation3 + $0x90] sm:$0xff]
        %v461 = vld [vmem:[#allocation3 + $0x98] sm:$0xff]
        %v462 = vld [vmem:[#allocation3 + $0xa0] sm:$0xff]
        %v463 = vld [vmem:[#allocation3 + $0xa8] sm:$0xff]
        %v464 = vld [vmem:[#allocation3 + $0xb0] sm:$0xff]
        %v465 = vld [vmem:[#allocation3 + $0xb8] sm:$0xff]
        %v466 = vld [vmem:[#allocation3 + $0xc0] sm:$0xff]
        %v467 = vld [vmem:[#allocation3 + $0xc8] sm:$0xff]
        %v468 = vld [vmem:[#allocation3 + $0xd0] sm:$0xff]
        %v469 = vld [vmem:[#allocation3 + $0xd8] sm:$0xff]
        %v470 = vld [vmem:[#allocation3 + $0xe0] sm:$0xff]
        %v471 = vld [vmem:[#allocation3 + $0xe8] sm:$0xff]
        %v472 = vld [vmem:[#allocation3 + $0xf0] sm:$0xff]
        %v473 = vld [vmem:[#allocation3 + $0xf8] sm:$0xff]
        %v474 = vld [vmem:[%s311] sm:$0xff]
        %v475 = vld [vmem:[%s311 + $0x8] sm:$0xff]
        %v476 = vld [vmem:[%s311 + $0x10] sm:$0xff]
        %v477 = vld [vmem:[%s311 + $0x18] sm:$0xff]
        %v478 = vld [vmem:[%s311 + $0x20] sm:$0xff]
        %v479 = vld [vmem:[%s311 + $0x28] sm:$0xff]
        %v480 = vld [vmem:[%s311 + $0x30] sm:$0xff]
        %v481 = vld [vmem:[%s311 + $0x38] sm:$0xff]
        %v482 = vld [vmem:[%s311 + $0x40] sm:$0xff]
        %v483 = vld [vmem:[%s311 + $0x48] sm:$0xff]
        %v484 = vld [vmem:[%s311 + $0x50] sm:$0xff]
        %v485 = vld [vmem:[%s311 + $0x58] sm:$0xff]
        %v486 = vld [vmem:[%s311 + $0x60] sm:$0xff]
        %v487 = vld [vmem:[%s311 + $0x68] sm:$0xff]
        %v488 = vld [vmem:[%s311 + $0x70] sm:$0xff]
        %v489 = vld [vmem:[%s311 + $0x78] sm:$0xff]
        %v490 = vld [vmem:[%s311 + $0x80] sm:$0xff]
        %v491 = vld [vmem:[%s311 + $0x88] sm:$0xff]
        %v492 = vld [vmem:[%s311 + $0x90] sm:$0xff]
        %v493 = vld [vmem:[%s311 + $0x98] sm:$0xff]
        %v494 = vld [vmem:[%s311 + $0xa0] sm:$0xff]
        %v495 = vld [vmem:[%s311 + $0xa8] sm:$0xff]
        %v496 = vld [vmem:[%s311 + $0xb0] sm:$0xff]
        %v497 = vld [vmem:[%s311 + $0xb8] sm:$0xff]
        %v498 = vld [vmem:[%s311 + $0xc0] sm:$0xff]
        %v499 = vld [vmem:[%s311 + $0xc8] sm:$0xff]
        %v500 = vld [vmem:[%s311 + $0xd0] sm:$0xff]
        %v501 = vld [vmem:[%s311 + $0xd8] sm:$0xff]
        %v502 = vld [vmem:[%s311 + $0xe0] sm:$0xff]
        %v503 = vld [vmem:[%s311 + $0xe8] sm:$0xff]
        %v504 = vld [vmem:[%s311 + $0xf0] sm:$0xff]
        %v505 = vld [vmem:[%s311 + $0xf8] sm:$0xff]
        %v506 = vld [vmem:[%s311 + $0x100] sm:$0xff]
        %v507 = vld [vmem:[%s311 + $0x108] sm:$0xff]
        %v508 = vld [vmem:[%s311 + $0x110] sm:$0xff]
        %v509 = vld [vmem:[%s311 + $0x118] sm:$0xff]
        %v510 = vld [vmem:[%s311 + $0x120] sm:$0xff]
        %v511 = vld [vmem:[%s311 + $0x128] sm:$0xff]
        %v512 = vld [vmem:[%s311 + $0x130] sm:$0xff]
        %v513 = vld [vmem:[%s311 + $0x138] sm:$0xff]
        %v514 = vld [vmem:[%s311 + $0x140] sm:$0xff]
        %v515 = vld [vmem:[%s311 + $0x148] sm:$0xff]
        %v516 = vld [vmem:[%s311 + $0x150] sm:$0xff]
        %v517 = vld [vmem:[%s311 + $0x158] sm:$0xff]
        %v518 = vld [vmem:[%s311 + $0x160] sm:$0xff]
        %v519 = vld [vmem:[%s311 + $0x168] sm:$0xff]
        %v520 = vld [vmem:[%s311 + $0x170] sm:$0xff]
        %v521 = vld [vmem:[%s311 + $0x178] sm:$0xff]
        %v522 = vld [vmem:[%s311 + $0x180] sm:$0xff]
        %v523 = vld [vmem:[%s311 + $0x188] sm:$0xff]
        %v524 = vld [vmem:[%s311 + $0x190] sm:$0xff]
        %v525 = vld [vmem:[%s311 + $0x198] sm:$0xff]
        %v526 = vld [vmem:[%s311 + $0x1a0] sm:$0xff]
        %v527 = vld [vmem:[%s311 + $0x1a8] sm:$0xff]
        %v528 = vld [vmem:[%s311 + $0x1b0] sm:$0xff]
        %v529 = vld [vmem:[%s311 + $0x1b8] sm:$0xff]
        %v530 = vld [vmem:[%s311 + $0x1c0] sm:$0xff]
        %v531 = vld [vmem:[%s311 + $0x1c8] sm:$0xff]
        %v532 = vld [vmem:[%s311 + $0x1d0] sm:$0xff]
        %v533 = vld [vmem:[%s311 + $0x1d8] sm:$0xff]
        %v534 = vld [vmem:[%s311 + $0x1e0] sm:$0xff]
        %v535 = vld [vmem:[%s311 + $0x1e8] sm:$0xff]
        %v536 = vld [vmem:[%s311 + $0x1f0] sm:$0xff]
        %v537 = vld [vmem:[%s311 + $0x1f8] sm:$0xff]
        %v538 = vld [vmem:[%s311 + $0x200] sm:$0xff]
        %v539 = vld [vmem:[%s311 + $0x208] sm:$0xff]
        %v540 = vld [vmem:[%s311 + $0x210] sm:$0xff]
        %v541 = vld [vmem:[%s311 + $0x218] sm:$0xff]
        %v542 = vld [vmem:[%s311 + $0x220] sm:$0xff]
        %v543 = vld [vmem:[%s311 + $0x228] sm:$0xff]
        %v544 = vld [vmem:[%s311 + $0x230] sm:$0xff]
        %v545 = vld [vmem:[%s311 + $0x238] sm:$0xff]
        %v546 = vld [vmem:[%s311 + $0x240] sm:$0xff]
        %v547 = vld [vmem:[%s311 + $0x248] sm:$0xff]
        %v548 = vld [vmem:[%s311 + $0x250] sm:$0xff]
        %v549 = vld [vmem:[%s311 + $0x258] sm:$0xff]
        %v550 = vld [vmem:[%s311 + $0x260] sm:$0xff]
        %v551 = vld [vmem:[%s311 + $0x268] sm:$0xff]
        %v552 = vld [vmem:[%s311 + $0x270] sm:$0xff]
        %v553 = vld [vmem:[%s311 + $0x278] sm:$0xff]
        %v554 = vld [vmem:[%s311 + $0x280] sm:$0xff]
        %v555 = vld [vmem:[%s311 + $0x288] sm:$0xff]
        %v556 = vld [vmem:[%s311 + $0x290] sm:$0xff]
        %v557 = vld [vmem:[%s311 + $0x298] sm:$0xff]
        %v558 = vld [vmem:[%s311 + $0x2a0] sm:$0xff]
        %v559 = vld [vmem:[%s311 + $0x2a8] sm:$0xff]
        %v560 = vld [vmem:[%s311 + $0x2b0] sm:$0xff]
        %v561 = vld [vmem:[%s311 + $0x2b8] sm:$0xff]
        %v562 = vld [vmem:[%s311 + $0x2c0] sm:$0xff]
        %v563 = vld [vmem:[%s311 + $0x2c8] sm:$0xff]
        %v564 = vld [vmem:[%s311 + $0x2d0] sm:$0xff]
        %v565 = vld [vmem:[%s311 + $0x2d8] sm:$0xff]
        %v566 = vld [vmem:[%s311 + $0x2e0] sm:$0xff]
        %v567 = vld [vmem:[%s311 + $0x2e8] sm:$0xff]
        %v568 = vld [vmem:[%s311 + $0x2f0] sm:$0xff]
        %v569 = vld [vmem:[%s311 + $0x2f8] sm:$0xff]
        %v570 = vld [vmem:[%s311 + $0x300] sm:$0xff]
        %v571 = vld [vmem:[%s311 + $0x308] sm:$0xff]
        %v572 = vld [vmem:[%s311 + $0x310] sm:$0xff]
        %v573 = vld [vmem:[%s311 + $0x318] sm:$0xff]
        %v574 = vld [vmem:[%s311 + $0x320] sm:$0xff]
        %v575 = vld [vmem:[%s311 + $0x328] sm:$0xff]
        %v576 = vld [vmem:[%s311 + $0x330] sm:$0xff]
        %v577 = vld [vmem:[%s311 + $0x338] sm:$0xff]
        %v578 = vld [vmem:[%s311 + $0x340] sm:$0xff]
        %v579 = vld [vmem:[%s311 + $0x348] sm:$0xff]
        %v580 = vld [vmem:[%s311 + $0x350] sm:$0xff]
        %v581 = vld [vmem:[%s311 + $0x358] sm:$0xff]
        %v582 = vld [vmem:[%s311 + $0x360] sm:$0xff]
        %v583 = vld [vmem:[%s311 + $0x368] sm:$0xff]
        %v584 = vld [vmem:[%s311 + $0x370] sm:$0xff]
        %v585 = vld [vmem:[%s311 + $0x378] sm:$0xff]
        %v586 = vld [vmem:[%s311 + $0x380] sm:$0xff]
        %v587 = vld [vmem:[%s311 + $0x388] sm:$0xff]
        %v588 = vld [vmem:[%s311 + $0x390] sm:$0xff]
        %v589 = vld [vmem:[%s311 + $0x398] sm:$0xff]
        %v590 = vld [vmem:[%s311 + $0x3a0] sm:$0xff]
        %v591 = vld [vmem:[%s311 + $0x3a8] sm:$0xff]
        %v592 = vld [vmem:[%s311 + $0x3b0] sm:$0xff]
        %v593 = vld [vmem:[%s311 + $0x3b8] sm:$0xff]
        %v594 = vld [vmem:[%s311 + $0x3c0] sm:$0xff]
        %v595 = vld [vmem:[%s311 + $0x3c8] sm:$0xff]
        %v596 = vld [vmem:[%s311 + $0x3d0] sm:$0xff]
        %v597 = vld [vmem:[%s311 + $0x3d8] sm:$0xff]
        %v598 = vld [vmem:[%s311 + $0x3e0] sm:$0xff]
        %v599 = vld [vmem:[%s311 + $0x3e8] sm:$0xff]
        %v600 = vld [vmem:[%s311 + $0x3f0] sm:$0xff]
        %v601 = vld [vmem:[%s311 + $0x3f8] sm:$0xff]
        %v602 = vld [vmem:[%s311 + $0x400] sm:$0xff]
        %v603 = vld [vmem:[%s311 + $0x408] sm:$0xff]
        %v604 = vld [vmem:[%s311 + $0x410] sm:$0xff]
        %v605 = vld [vmem:[%s311 + $0x418] sm:$0xff]
        %v606 = vld [vmem:[%s311 + $0x420] sm:$0xff]
        %v607 = vld [vmem:[%s311 + $0x428] sm:$0xff]
        %v608 = vld [vmem:[%s311 + $0x430] sm:$0xff]
        %v609 = vld [vmem:[%s311 + $0x438] sm:$0xff]
        %v610 = vld [vmem:[%s311 + $0x440] sm:$0xff]
        %v611 = vld [vmem:[%s311 + $0x448] sm:$0xff]
        %v612 = vld [vmem:[%s311 + $0x450] sm:$0xff]
        %v613 = vld [vmem:[%s311 + $0x458] sm:$0xff]
        %v614 = vld [vmem:[%s311 + $0x460] sm:$0xff]
        %v615 = vld [vmem:[%s311 + $0x468] sm:$0xff]
        %v616 = vld [vmem:[%s311 + $0x470] sm:$0xff]
        %v617 = vld [vmem:[%s311 + $0x478] sm:$0xff]
        %v618 = vld [vmem:[%s311 + $0x480] sm:$0xff]
        %v619 = vld [vmem:[%s311 + $0x488] sm:$0xff]
        %v620 = vld [vmem:[%s311 + $0x490] sm:$0xff]
        %v621 = vld [vmem:[%s311 + $0x498] sm:$0xff]
        %v622 = vld [vmem:[%s311 + $0x4a0] sm:$0xff]
        %v623 = vld [vmem:[%s311 + $0x4a8] sm:$0xff]
        %v624 = vld [vmem:[%s311 + $0x4b0] sm:$0xff]
        %v625 = vld [vmem:[%s311 + $0x4b8] sm:$0xff]
        %v626 = vld [vmem:[%s311 + $0x4c0] sm:$0xff]
        %v627 = vld [vmem:[%s311 + $0x4c8] sm:$0xff]
        %v628 = vld [vmem:[%s311 + $0x4d0] sm:$0xff]
        %v629 = vld [vmem:[%s311 + $0x4d8] sm:$0xff]
        %v630 = vld [vmem:[%s311 + $0x4e0] sm:$0xff]
        %v631 = vld [vmem:[%s311 + $0x4e8] sm:$0xff]
        %v632 = vld [vmem:[%s311 + $0x4f0] sm:$0xff]
        %v633 = vld [vmem:[%s311 + $0x4f8] sm:$0xff]
        %v634 = vld [vmem:[%s311 + $0x500] sm:$0xff]
        %v635 = vld [vmem:[%s311 + $0x508] sm:$0xff]
        %v636 = vld [vmem:[%s311 + $0x510] sm:$0xff]
        %v637 = vld [vmem:[%s311 + $0x518] sm:$0xff]
        %v638 = vld [vmem:[%s311 + $0x520] sm:$0xff]
        %v639 = vld [vmem:[%s311 + $0x528] sm:$0xff]
        %v640 = vld [vmem:[%s311 + $0x530] sm:$0xff]
        %v641 = vld [vmem:[%s311 + $0x538] sm:$0xff]
        %v642 = vld [vmem:[%s311 + $0x540] sm:$0xff]
        %v643 = vld [vmem:[%s311 + $0x548] sm:$0xff]
        %v644 = vld [vmem:[%s311 + $0x550] sm:$0xff]
        %v645 = vld [vmem:[%s311 + $0x558] sm:$0xff]
        %v646 = vld [vmem:[%s311 + $0x560] sm:$0xff]
        %v647 = vld [vmem:[%s311 + $0x568] sm:$0xff]
        %v648 = vld [vmem:[%s311 + $0x570] sm:$0xff]
        %v649 = vld [vmem:[%s311 + $0x578] sm:$0xff]
        %v650 = vld [vmem:[%s311 + $0x580] sm:$0xff]
        %v651 = vld [vmem:[%s311 + $0x588] sm:$0xff]
        %v652 = vld [vmem:[%s311 + $0x590] sm:$0xff]
        %v653 = vld [vmem:[%s311 + $0x598] sm:$0xff]
        %v654 = vld [vmem:[%s311 + $0x5a0] sm:$0xff]
        %v655 = vld [vmem:[%s311 + $0x5a8] sm:$0xff]
        %v656 = vld [vmem:[%s311 + $0x5b0] sm:$0xff]
        %v657 = vld [vmem:[%s311 + $0x5b8] sm:$0xff]
        %v658 = vld [vmem:[%s311 + $0x5c0] sm:$0xff]
        %v659 = vld [vmem:[%s311 + $0x5c8] sm:$0xff]
        %v660 = vld [vmem:[%s311 + $0x5d0] sm:$0xff]
        %v661 = vld [vmem:[%s311 + $0x5d8] sm:$0xff]
        %v662 = vld [vmem:[%s311 + $0x5e0] sm:$0xff]
        %v663 = vld [vmem:[%s311 + $0x5e8] sm:$0xff]
        %v664 = vld [vmem:[%s311 + $0x5f0] sm:$0xff]
        %v665 = vld [vmem:[%s311 + $0x5f8] sm:$0xff]
        %v666 = vld [vmem:[%s311 + $0x600] sm:$0xff]
        %v667 = vld [vmem:[%s311 + $0x608] sm:$0xff]
        %v668 = vld [vmem:[%s311 + $0x610] sm:$0xff]
        %v669 = vld [vmem:[%s311 + $0x618] sm:$0xff]
        %v670 = vld [vmem:[%s311 + $0x620] sm:$0xff]
        %v671 = vld [vmem:[%s311 + $0x628] sm:$0xff]
        %v672 = vld [vmem:[%s311 + $0x630] sm:$0xff]
        %v673 = vld [vmem:[%s311 + $0x638] sm:$0xff]
        %v674 = vld [vmem:[%s311 + $0x640] sm:$0xff]
        %v675 = vld [vmem:[%s311 + $0x648] sm:$0xff]
        %v676 = vld [vmem:[%s311 + $0x650] sm:$0xff]
        %v677 = vld [vmem:[%s311 + $0x658] sm:$0xff]
        %v678 = vld [vmem:[%s311 + $0x660] sm:$0xff]
        %v679 = vld [vmem:[%s311 + $0x668] sm:$0xff]
        %v680 = vld [vmem:[%s311 + $0x670] sm:$0xff]
        %v681 = vld [vmem:[%s311 + $0x678] sm:$0xff]
        %v682 = vld [vmem:[%s311 + $0x680] sm:$0xff]
        %v683 = vld [vmem:[%s311 + $0x688] sm:$0xff]
        %v684 = vld [vmem:[%s311 + $0x690] sm:$0xff]
        %v685 = vld [vmem:[%s311 + $0x698] sm:$0xff]
        %v686 = vld [vmem:[%s311 + $0x6a0] sm:$0xff]
        %v687 = vld [vmem:[%s311 + $0x6a8] sm:$0xff]
        %v688 = vld [vmem:[%s311 + $0x6b0] sm:$0xff]
        %v689 = vld [vmem:[%s311 + $0x6b8] sm:$0xff]
        %v690 = vld [vmem:[%s311 + $0x6c0] sm:$0xff]
        %v691 = vld [vmem:[%s311 + $0x6c8] sm:$0xff]
        %v692 = vld [vmem:[%s311 + $0x6d0] sm:$0xff]
        %v693 = vld [vmem:[%s311 + $0x6d8] sm:$0xff]
        %v694 = vld [vmem:[%s311 + $0x6e0] sm:$0xff]
        %v695 = vld [vmem:[%s311 + $0x6e8] sm:$0xff]
        %v696 = vld [vmem:[%s311 + $0x6f0] sm:$0xff]
        %v697 = vld [vmem:[%s311 + $0x6f8] sm:$0xff]
        %v698 = vld [vmem:[%s311 + $0x700] sm:$0xff]
        %v699 = vld [vmem:[%s311 + $0x708] sm:$0xff]
        %v700 = vld [vmem:[%s311 + $0x710] sm:$0xff]
        %v701 = vld [vmem:[%s311 + $0x718] sm:$0xff]
        %v702 = vld [vmem:[%s311 + $0x720] sm:$0xff]
        %v703 = vld [vmem:[%s311 + $0x728] sm:$0xff]
        %v704 = vld [vmem:[%s311 + $0x730] sm:$0xff]
        %v705 = vld [vmem:[%s311 + $0x738] sm:$0xff]
        %v706 = vld [vmem:[%s311 + $0x740] sm:$0xff]
        %v707 = vld [vmem:[%s311 + $0x748] sm:$0xff]
        %v708 = vld [vmem:[%s311 + $0x750] sm:$0xff]
        %v709 = vld [vmem:[%s311 + $0x758] sm:$0xff]
        %v710 = vld [vmem:[%s311 + $0x760] sm:$0xff]
        %v711 = vld [vmem:[%s311 + $0x768] sm:$0xff]
        %v712 = vld [vmem:[%s311 + $0x770] sm:$0xff]
        %v713 = vld [vmem:[%s311 + $0x778] sm:$0xff]
        %v714 = vld [vmem:[%s311 + $0x780] sm:$0xff]
        %v715 = vld [vmem:[%s311 + $0x788] sm:$0xff]
        %v716 = vld [vmem:[%s311 + $0x790] sm:$0xff]
        %v717 = vld [vmem:[%s311 + $0x798] sm:$0xff]
        %v718 = vld [vmem:[%s311 + $0x7a0] sm:$0xff]
        %v719 = vld [vmem:[%s311 + $0x7a8] sm:$0xff]
        %v720 = vld [vmem:[%s311 + $0x7b0] sm:$0xff]
        %v721 = vld [vmem:[%s311 + $0x7b8] sm:$0xff]
        %v722 = vld [vmem:[%s311 + $0x7c0] sm:$0xff]
        %v723 = vld [vmem:[%s311 + $0x7c8] sm:$0xff]
        %v724 = vld [vmem:[%s311 + $0x7d0] sm:$0xff]
        %v725 = vld [vmem:[%s311 + $0x7d8] sm:$0xff]
        %v726 = vld [vmem:[%s311 + $0x7e0] sm:$0xff]
        %v727 = vld [vmem:[%s311 + $0x7e8] sm:$0xff]
        %v728 = vld [vmem:[%s311 + $0x7f0] sm:$0xff]
        %v729 = vld [vmem:[%s311 + $0x7f8] sm:$0xff]
        %v730 = vld [vmem:[%s321] sm:$0xff]
        %v732 = vperm.slane %v730, 0
        %v733 = vperm.slane %v730, 1
        %v734 = vperm.slane %v730, 2
        %v735 = vperm.slane %v730, 3
        %v736 = vperm.slane %v730, 4
        %v737 = vperm.slane %v730, 5
        %v738 = vperm.slane %v730, 6
        %v739 = vperm.slane %v730, 7
        %v780 = vunpack.c.l.b16 %v442
        %v781 = vunpack.c.h.b16 %v442
        %v782 = vunpack.c.l.b16 %v443
        %v783 = vunpack.c.h.b16 %v443
        %v784 = vunpack.c.l.b16 %v444
        %v785 = vunpack.c.h.b16 %v444
        %v786 = vunpack.c.l.b16 %v445
        %v787 = vunpack.c.h.b16 %v445
        %v788 = vunpack.c.l.b16 %v446
        %v789 = vunpack.c.h.b16 %v446
        %v790 = vunpack.c.l.b16 %v447
        %v791 = vunpack.c.h.b16 %v447
        %v792 = vunpack.c.l.b16 %v448
        %v793 = vunpack.c.h.b16 %v448
        %v794 = vunpack.c.l.b16 %v449
        %v795 = vunpack.c.h.b16 %v449
        %v796 = vunpack.c.l.b16 %v450
        %v797 = vunpack.c.h.b16 %v450
        %v798 = vunpack.c.l.b16 %v451
        %v799 = vunpack.c.h.b16 %v451
        %v800 = vunpack.c.l.b16 %v452
        %v801 = vunpack.c.h.b16 %v452
        %v802 = vunpack.c.l.b16 %v453
        %v803 = vunpack.c.h.b16 %v453
        %v804 = vunpack.c.l.b16 %v454
        %v805 = vunpack.c.h.b16 %v454
        %v806 = vunpack.c.l.b16 %v455
        %v807 = vunpack.c.h.b16 %v455
        %v808 = vunpack.c.l.b16 %v456
        %v809 = vunpack.c.h.b16 %v456
        %v810 = vunpack.c.l.b16 %v457
        %v811 = vunpack.c.h.b16 %v457
        %v812 = vunpack.c.l.b16 %v458
        %v813 = vunpack.c.h.b16 %v458
        %v814 = vunpack.c.l.b16 %v459
        %v815 = vunpack.c.h.b16 %v459
        %v816 = vunpack.c.l.b16 %v460
        %v817 = vunpack.c.h.b16 %v460
        %v818 = vunpack.c.l.b16 %v461
        %v819 = vunpack.c.h.b16 %v461
        %v820 = vunpack.c.l.b16 %v462
        %v821 = vunpack.c.h.b16 %v462
        %v822 = vunpack.c.l.b16 %v463
        %v823 = vunpack.c.h.b16 %v463
        %v824 = vunpack.c.l.b16 %v464
        %v825 = vunpack.c.h.b16 %v464
        %v826 = vunpack.c.l.b16 %v465
        %v827 = vunpack.c.h.b16 %v465
        %v828 = vunpack.c.l.b16 %v466
        %v829 = vunpack.c.h.b16 %v466
        %v830 = vunpack.c.l.b16 %v467
        %v831 = vunpack.c.h.b16 %v467
        %v832 = vunpack.c.l.b16 %v468
        %v833 = vunpack.c.h.b16 %v468
        %v834 = vunpack.c.l.b16 %v469
        %v835 = vunpack.c.h.b16 %v469
        %v836 = vunpack.c.l.b16 %v470
        %v837 = vunpack.c.h.b16 %v470
        %v838 = vunpack.c.l.b16 %v471
        %v839 = vunpack.c.h.b16 %v471
        %v840 = vunpack.c.l.b16 %v472
        %v841 = vunpack.c.h.b16 %v472
        %v842 = vunpack.c.l.b16 %v473
        %v843 = vunpack.c.h.b16 %v473
        %v844 = vpack.c.b16 %v784, %v780
        %v845 = vpack.c.b16 %v785, %v781
        %v846 = vpack.c.b16 %v786, %v782
        %v847 = vpack.c.b16 %v787, %v783
        %v848 = vpack.c.b16 %v792, %v788
        %v849 = vpack.c.b16 %v793, %v789
        %v850 = vpack.c.b16 %v794, %v790
        %v851 = vpack.c.b16 %v795, %v791
        %v852 = vpack.c.b16 %v800, %v796
        %v853 = vpack.c.b16 %v801, %v797
        %v854 = vpack.c.b16 %v802, %v798
        %v855 = vpack.c.b16 %v803, %v799
        %v856 = vpack.c.b16 %v808, %v804
        %v857 = vpack.c.b16 %v809, %v805
        %v858 = vpack.c.b16 %v810, %v806
        %v859 = vpack.c.b16 %v811, %v807
        %v860 = vpack.c.b16 %v816, %v812
        %v861 = vpack.c.b16 %v817, %v813
        %v862 = vpack.c.b16 %v818, %v814
        %v863 = vpack.c.b16 %v819, %v815
        %v864 = vpack.c.b16 %v824, %v820
        %v865 = vpack.c.b16 %v825, %v821
        %v866 = vpack.c.b16 %v826, %v822
        %v867 = vpack.c.b16 %v827, %v823
        %v868 = vpack.c.b16 %v832, %v828
        %v869 = vpack.c.b16 %v833, %v829
        %v870 = vpack.c.b16 %v834, %v830
        %v871 = vpack.c.b16 %v835, %v831
        %v872 = vpack.c.b16 %v840, %v836
        %v873 = vpack.c.b16 %v841, %v837
        %v874 = vpack.c.b16 %v842, %v838
        %v875 = vpack.c.b16 %v843, %v839
        %v1164 = vunpack.c.l.b16 %v474
        %v1165 = vunpack.c.h.b16 %v474
        %v1166 = vunpack.c.l.b16 %v475
        %v1167 = vunpack.c.h.b16 %v475
        %v1168 = vunpack.c.l.b16 %v476
        %v1169 = vunpack.c.h.b16 %v476
        %v1170 = vunpack.c.l.b16 %v477
        %v1171 = vunpack.c.h.b16 %v477
        %v1172 = vunpack.c.l.b16 %v478
        %v1173 = vunpack.c.h.b16 %v478
        %v1174 = vunpack.c.l.b16 %v479
        %v1175 = vunpack.c.h.b16 %v479
        %v1176 = vunpack.c.l.b16 %v480
        %v1177 = vunpack.c.h.b16 %v480
        %v1178 = vunpack.c.l.b16 %v481
        %v1179 = vunpack.c.h.b16 %v481
        %v1180 = vunpack.c.l.b16 %v482
        %v1181 = vunpack.c.h.b16 %v482
        %v1182 = vunpack.c.l.b16 %v483
        %v1183 = vunpack.c.h.b16 %v483
        %v1184 = vunpack.c.l.b16 %v484
        %v1185 = vunpack.c.h.b16 %v484
        %v1186 = vunpack.c.l.b16 %v485
        %v1187 = vunpack.c.h.b16 %v485
        %v1188 = vunpack.c.l.b16 %v486
        %v1189 = vunpack.c.h.b16 %v486
        %v1190 = vunpack.c.l.b16 %v487
        %v1191 = vunpack.c.h.b16 %v487
        %v1192 = vunpack.c.l.b16 %v488
        %v1193 = vunpack.c.h.b16 %v488
        %v1194 = vunpack.c.l.b16 %v489
        %v1195 = vunpack.c.h.b16 %v489
        %v1196 = vunpack.c.l.b16 %v490
        %v1197 = vunpack.c.h.b16 %v490
        %v1198 = vunpack.c.l.b16 %v491
        %v1199 = vunpack.c.h.b16 %v491
        %v1200 = vunpack.c.l.b16 %v492
        %v1201 = vunpack.c.h.b16 %v492
        %v1202 = vunpack.c.l.b16 %v493
        %v1203 = vunpack.c.h.b16 %v493
        %v1204 = vunpack.c.l.b16 %v494
        %v1205 = vunpack.c.h.b16 %v494
        %v1206 = vunpack.c.l.b16 %v495
        %v1207 = vunpack.c.h.b16 %v495
        %v1208 = vunpack.c.l.b16 %v496
        %v1209 = vunpack.c.h.b16 %v496
        %v1210 = vunpack.c.l.b16 %v497
        %v1211 = vunpack.c.h.b16 %v497
        %v1212 = vunpack.c.l.b16 %v498
        %v1213 = vunpack.c.h.b16 %v498
        %v1214 = vunpack.c.l.b16 %v499
        %v1215 = vunpack.c.h.b16 %v499
        %v1216 = vunpack.c.l.b16 %v500
        %v1217 = vunpack.c.h.b16 %v500
        %v1218 = vunpack.c.l.b16 %v501
        %v1219 = vunpack.c.h.b16 %v501
        %v1220 = vunpack.c.l.b16 %v502
        %v1221 = vunpack.c.h.b16 %v502
        %v1222 = vunpack.c.l.b16 %v503
        %v1223 = vunpack.c.h.b16 %v503
        %v1224 = vunpack.c.l.b16 %v504
        %v1225 = vunpack.c.h.b16 %v504
        %v1226 = vunpack.c.l.b16 %v505
        %v1227 = vunpack.c.h.b16 %v505
        %v1228 = vunpack.c.l.b16 %v506
        %v1229 = vunpack.c.h.b16 %v506
        %v1230 = vunpack.c.l.b16 %v507
        %v1231 = vunpack.c.h.b16 %v507
        %v1232 = vunpack.c.l.b16 %v508
        %v1233 = vunpack.c.h.b16 %v508
        %v1234 = vunpack.c.l.b16 %v509
        %v1235 = vunpack.c.h.b16 %v509
        %v1236 = vunpack.c.l.b16 %v510
        %v1237 = vunpack.c.h.b16 %v510
        %v1238 = vunpack.c.l.b16 %v511
        %v1239 = vunpack.c.h.b16 %v511
        %v1240 = vunpack.c.l.b16 %v512
        %v1241 = vunpack.c.h.b16 %v512
        %v1242 = vunpack.c.l.b16 %v513
        %v1243 = vunpack.c.h.b16 %v513
        %v1244 = vunpack.c.l.b16 %v514
        %v1245 = vunpack.c.h.b16 %v514
        %v1246 = vunpack.c.l.b16 %v515
        %v1247 = vunpack.c.h.b16 %v515
        %v1248 = vunpack.c.l.b16 %v516
        %v1249 = vunpack.c.h.b16 %v516
        %v1250 = vunpack.c.l.b16 %v517
        %v1251 = vunpack.c.h.b16 %v517
        %v1252 = vunpack.c.l.b16 %v518
        %v1253 = vunpack.c.h.b16 %v518
        %v1254 = vunpack.c.l.b16 %v519
        %v1255 = vunpack.c.h.b16 %v519
        %v1256 = vunpack.c.l.b16 %v520
        %v1257 = vunpack.c.h.b16 %v520
        %v1258 = vunpack.c.l.b16 %v521
        %v1259 = vunpack.c.h.b16 %v521
        %v1260 = vunpack.c.l.b16 %v522
        %v1261 = vunpack.c.h.b16 %v522
        %v1262 = vunpack.c.l.b16 %v523
        %v1263 = vunpack.c.h.b16 %v523
        %v1264 = vunpack.c.l.b16 %v524
        %v1265 = vunpack.c.h.b16 %v524
        %v1266 = vunpack.c.l.b16 %v525
        %v1267 = vunpack.c.h.b16 %v525
        %v1268 = vunpack.c.l.b16 %v526
        %v1269 = vunpack.c.h.b16 %v526
        %v1270 = vunpack.c.l.b16 %v527
        %v1271 = vunpack.c.h.b16 %v527
        %v1272 = vunpack.c.l.b16 %v528
        %v1273 = vunpack.c.h.b16 %v528
        %v1274 = vunpack.c.l.b16 %v529
        %v1275 = vunpack.c.h.b16 %v529
        %v1276 = vunpack.c.l.b16 %v530
        %v1277 = vunpack.c.h.b16 %v530
        %v1278 = vunpack.c.l.b16 %v531
        %v1279 = vunpack.c.h.b16 %v531
        %v1280 = vunpack.c.l.b16 %v532
        %v1281 = vunpack.c.h.b16 %v532
        %v1282 = vunpack.c.l.b16 %v533
        %v1283 = vunpack.c.h.b16 %v533
        %v1284 = vunpack.c.l.b16 %v534
        %v1285 = vunpack.c.h.b16 %v534
        %v1286 = vunpack.c.l.b16 %v535
        %v1287 = vunpack.c.h.b16 %v535
        %v1288 = vunpack.c.l.b16 %v536
        %v1289 = vunpack.c.h.b16 %v536
        %v1290 = vunpack.c.l.b16 %v537
        %v1291 = vunpack.c.h.b16 %v537
        %v1292 = vunpack.c.l.b16 %v538
        %v1293 = vunpack.c.h.b16 %v538
        %v1294 = vunpack.c.l.b16 %v539
        %v1295 = vunpack.c.h.b16 %v539
        %v1296 = vunpack.c.l.b16 %v540
        %v1297 = vunpack.c.h.b16 %v540
        %v1298 = vunpack.c.l.b16 %v541
        %v1299 = vunpack.c.h.b16 %v541
        %v1300 = vunpack.c.l.b16 %v542
        %v1301 = vunpack.c.h.b16 %v542
        %v1302 = vunpack.c.l.b16 %v543
        %v1303 = vunpack.c.h.b16 %v543
        %v1304 = vunpack.c.l.b16 %v544
        %v1305 = vunpack.c.h.b16 %v544
        %v1306 = vunpack.c.l.b16 %v545
        %v1307 = vunpack.c.h.b16 %v545
        %v1308 = vunpack.c.l.b16 %v546
        %v1309 = vunpack.c.h.b16 %v546
        %v1310 = vunpack.c.l.b16 %v547
        %v1311 = vunpack.c.h.b16 %v547
        %v1312 = vunpack.c.l.b16 %v548
        %v1313 = vunpack.c.h.b16 %v548
        %v1314 = vunpack.c.l.b16 %v549
        %v1315 = vunpack.c.h.b16 %v549
        %v1316 = vunpack.c.l.b16 %v550
        %v1317 = vunpack.c.h.b16 %v550
        %v1318 = vunpack.c.l.b16 %v551
        %v1319 = vunpack.c.h.b16 %v551
        %v1320 = vunpack.c.l.b16 %v552
        %v1321 = vunpack.c.h.b16 %v552
        %v1322 = vunpack.c.l.b16 %v553
        %v1323 = vunpack.c.h.b16 %v553
        %v1324 = vunpack.c.l.b16 %v554
        %v1325 = vunpack.c.h.b16 %v554
        %v1326 = vunpack.c.l.b16 %v555
        %v1327 = vunpack.c.h.b16 %v555
        %v1328 = vunpack.c.l.b16 %v556
        %v1329 = vunpack.c.h.b16 %v556
        %v1330 = vunpack.c.l.b16 %v557
        %v1331 = vunpack.c.h.b16 %v557
        %v1332 = vunpack.c.l.b16 %v558
        %v1333 = vunpack.c.h.b16 %v558
        %v1334 = vunpack.c.l.b16 %v559
        %v1335 = vunpack.c.h.b16 %v559
        %v1336 = vunpack.c.l.b16 %v560
        %v1337 = vunpack.c.h.b16 %v560
        %v1338 = vunpack.c.l.b16 %v561
        %v1339 = vunpack.c.h.b16 %v561
        %v1340 = vunpack.c.l.b16 %v562
        %v1341 = vunpack.c.h.b16 %v562
        %v1342 = vunpack.c.l.b16 %v563
        %v1343 = vunpack.c.h.b16 %v563
        %v1344 = vunpack.c.l.b16 %v564
        %v1345 = vunpack.c.h.b16 %v564
        %v1346 = vunpack.c.l.b16 %v565
        %v1347 = vunpack.c.h.b16 %v565
        %v1348 = vunpack.c.l.b16 %v566
        %v1349 = vunpack.c.h.b16 %v566
        %v1350 = vunpack.c.l.b16 %v567
        %v1351 = vunpack.c.h.b16 %v567
        %v1352 = vunpack.c.l.b16 %v568
        %v1353 = vunpack.c.h.b16 %v568
        %v1354 = vunpack.c.l.b16 %v569
        %v1355 = vunpack.c.h.b16 %v569
        %v1356 = vunpack.c.l.b16 %v570
        %v1357 = vunpack.c.h.b16 %v570
        %v1358 = vunpack.c.l.b16 %v571
        %v1359 = vunpack.c.h.b16 %v571
        %v1360 = vunpack.c.l.b16 %v572
        %v1361 = vunpack.c.h.b16 %v572
        %v1362 = vunpack.c.l.b16 %v573
        %v1363 = vunpack.c.h.b16 %v573
        %v1364 = vunpack.c.l.b16 %v574
        %v1365 = vunpack.c.h.b16 %v574
        %v1366 = vunpack.c.l.b16 %v575
        %v1367 = vunpack.c.h.b16 %v575
        %v1368 = vunpack.c.l.b16 %v576
        %v1369 = vunpack.c.h.b16 %v576
        %v1370 = vunpack.c.l.b16 %v577
        %v1371 = vunpack.c.h.b16 %v577
        %v1372 = vunpack.c.l.b16 %v578
        %v1373 = vunpack.c.h.b16 %v578
        %v1374 = vunpack.c.l.b16 %v579
        %v1375 = vunpack.c.h.b16 %v579
        %v1376 = vunpack.c.l.b16 %v580
        %v1377 = vunpack.c.h.b16 %v580
        %v1378 = vunpack.c.l.b16 %v581
        %v1379 = vunpack.c.h.b16 %v581
        %v1380 = vunpack.c.l.b16 %v582
        %v1381 = vunpack.c.h.b16 %v582
        %v1382 = vunpack.c.l.b16 %v583
        %v1383 = vunpack.c.h.b16 %v583
        %v1384 = vunpack.c.l.b16 %v584
        %v1385 = vunpack.c.h.b16 %v584
        %v1386 = vunpack.c.l.b16 %v585
        %v1387 = vunpack.c.h.b16 %v585
        %v1388 = vunpack.c.l.b16 %v586
        %v1389 = vunpack.c.h.b16 %v586
        %v1390 = vunpack.c.l.b16 %v587
        %v1391 = vunpack.c.h.b16 %v587
        %v1392 = vunpack.c.l.b16 %v588
        %v1393 = vunpack.c.h.b16 %v588
        %v1394 = vunpack.c.l.b16 %v589
        %v1395 = vunpack.c.h.b16 %v589
        %v1396 = vunpack.c.l.b16 %v590
        %v1397 = vunpack.c.h.b16 %v590
        %v1398 = vunpack.c.l.b16 %v591
        %v1399 = vunpack.c.h.b16 %v591
        %v1400 = vunpack.c.l.b16 %v592
        %v1401 = vunpack.c.h.b16 %v592
        %v1402 = vunpack.c.l.b16 %v593
        %v1403 = vunpack.c.h.b16 %v593
        %v1404 = vunpack.c.l.b16 %v594
        %v1405 = vunpack.c.h.b16 %v594
        %v1406 = vunpack.c.l.b16 %v595
        %v1407 = vunpack.c.h.b16 %v595
        %v1408 = vunpack.c.l.b16 %v596
        %v1409 = vunpack.c.h.b16 %v596
        %v1410 = vunpack.c.l.b16 %v597
        %v1411 = vunpack.c.h.b16 %v597
        %v1412 = vunpack.c.l.b16 %v598
        %v1413 = vunpack.c.h.b16 %v598
        %v1414 = vunpack.c.l.b16 %v599
        %v1415 = vunpack.c.h.b16 %v599
        %v1416 = vunpack.c.l.b16 %v600
        %v1417 = vunpack.c.h.b16 %v600
        %v1418 = vunpack.c.l.b16 %v601
        %v1419 = vunpack.c.h.b16 %v601
        %v1420 = vunpack.c.l.b16 %v602
        %v1421 = vunpack.c.h.b16 %v602
        %v1422 = vunpack.c.l.b16 %v603
        %v1423 = vunpack.c.h.b16 %v603
        %v1424 = vunpack.c.l.b16 %v604
        %v1425 = vunpack.c.h.b16 %v604
        %v1426 = vunpack.c.l.b16 %v605
        %v1427 = vunpack.c.h.b16 %v605
        %v1428 = vunpack.c.l.b16 %v606
        %v1429 = vunpack.c.h.b16 %v606
        %v1430 = vunpack.c.l.b16 %v607
        %v1431 = vunpack.c.h.b16 %v607
        %v1432 = vunpack.c.l.b16 %v608
        %v1433 = vunpack.c.h.b16 %v608
        %v1434 = vunpack.c.l.b16 %v609
        %v1435 = vunpack.c.h.b16 %v609
        %v1436 = vunpack.c.l.b16 %v610
        %v1437 = vunpack.c.h.b16 %v610
        %v1438 = vunpack.c.l.b16 %v611
        %v1439 = vunpack.c.h.b16 %v611
        %v1440 = vunpack.c.l.b16 %v612
        %v1441 = vunpack.c.h.b16 %v612
        %v1442 = vunpack.c.l.b16 %v613
        %v1443 = vunpack.c.h.b16 %v613
        %v1444 = vunpack.c.l.b16 %v614
        %v1445 = vunpack.c.h.b16 %v614
        %v1446 = vunpack.c.l.b16 %v615
        %v1447 = vunpack.c.h.b16 %v615
        %v1448 = vunpack.c.l.b16 %v616
        %v1449 = vunpack.c.h.b16 %v616
        %v1450 = vunpack.c.l.b16 %v617
        %v1451 = vunpack.c.h.b16 %v617
        %v1452 = vunpack.c.l.b16 %v618
        %v1453 = vunpack.c.h.b16 %v618
        %v1454 = vunpack.c.l.b16 %v619
        %v1455 = vunpack.c.h.b16 %v619
        %v1456 = vunpack.c.l.b16 %v620
        %v1457 = vunpack.c.h.b16 %v620
        %v1458 = vunpack.c.l.b16 %v621
        %v1459 = vunpack.c.h.b16 %v621
        %v1460 = vunpack.c.l.b16 %v622
        %v1461 = vunpack.c.h.b16 %v622
        %v1462 = vunpack.c.l.b16 %v623
        %v1463 = vunpack.c.h.b16 %v623
        %v1464 = vunpack.c.l.b16 %v624
        %v1465 = vunpack.c.h.b16 %v624
        %v1466 = vunpack.c.l.b16 %v625
        %v1467 = vunpack.c.h.b16 %v625
        %v1468 = vunpack.c.l.b16 %v626
        %v1469 = vunpack.c.h.b16 %v626
        %v1470 = vunpack.c.l.b16 %v627
        %v1471 = vunpack.c.h.b16 %v627
        %v1472 = vunpack.c.l.b16 %v628
        %v1473 = vunpack.c.h.b16 %v628
        %v1474 = vunpack.c.l.b16 %v629
        %v1475 = vunpack.c.h.b16 %v629
        %v1476 = vunpack.c.l.b16 %v630
        %v1477 = vunpack.c.h.b16 %v630
        %v1478 = vunpack.c.l.b16 %v631
        %v1479 = vunpack.c.h.b16 %v631
        %v1480 = vunpack.c.l.b16 %v632
        %v1481 = vunpack.c.h.b16 %v632
        %v1482 = vunpack.c.l.b16 %v633
        %v1483 = vunpack.c.h.b16 %v633
        %v1484 = vunpack.c.l.b16 %v634
        %v1485 = vunpack.c.h.b16 %v634
        %v1486 = vunpack.c.l.b16 %v635
        %v1487 = vunpack.c.h.b16 %v635
        %v1488 = vunpack.c.l.b16 %v636
        %v1489 = vunpack.c.h.b16 %v636
        %v1490 = vunpack.c.l.b16 %v637
        %v1491 = vunpack.c.h.b16 %v637
        %v1492 = vunpack.c.l.b16 %v638
        %v1493 = vunpack.c.h.b16 %v638
        %v1494 = vunpack.c.l.b16 %v639
        %v1495 = vunpack.c.h.b16 %v639
        %v1496 = vunpack.c.l.b16 %v640
        %v1497 = vunpack.c.h.b16 %v640
        %v1498 = vunpack.c.l.b16 %v641
        %v1499 = vunpack.c.h.b16 %v641
        %v1500 = vunpack.c.l.b16 %v642
        %v1501 = vunpack.c.h.b16 %v642
        %v1502 = vunpack.c.l.b16 %v643
        %v1503 = vunpack.c.h.b16 %v643
        %v1504 = vunpack.c.l.b16 %v644
        %v1505 = vunpack.c.h.b16 %v644
        %v1506 = vunpack.c.l.b16 %v645
        %v1507 = vunpack.c.h.b16 %v645
        %v1508 = vunpack.c.l.b16 %v646
        %v1509 = vunpack.c.h.b16 %v646
        %v1510 = vunpack.c.l.b16 %v647
        %v1511 = vunpack.c.h.b16 %v647
        %v1512 = vunpack.c.l.b16 %v648
        %v1513 = vunpack.c.h.b16 %v648
        %v1514 = vunpack.c.l.b16 %v649
        %v1515 = vunpack.c.h.b16 %v649
        %v1516 = vunpack.c.l.b16 %v650
        %v1517 = vunpack.c.h.b16 %v650
        %v1518 = vunpack.c.l.b16 %v651
        %v1519 = vunpack.c.h.b16 %v651
        %v1520 = vunpack.c.l.b16 %v652
        %v1521 = vunpack.c.h.b16 %v652
        %v1522 = vunpack.c.l.b16 %v653
        %v1523 = vunpack.c.h.b16 %v653
        %v1524 = vunpack.c.l.b16 %v654
        %v1525 = vunpack.c.h.b16 %v654
        %v1526 = vunpack.c.l.b16 %v655
        %v1527 = vunpack.c.h.b16 %v655
        %v1528 = vunpack.c.l.b16 %v656
        %v1529 = vunpack.c.h.b16 %v656
        %v1530 = vunpack.c.l.b16 %v657
        %v1531 = vunpack.c.h.b16 %v657
        %v1532 = vunpack.c.l.b16 %v658
        %v1533 = vunpack.c.h.b16 %v658
        %v1534 = vunpack.c.l.b16 %v659
        %v1535 = vunpack.c.h.b16 %v659
        %v1536 = vunpack.c.l.b16 %v660
        %v1537 = vunpack.c.h.b16 %v660
        %v1538 = vunpack.c.l.b16 %v661
        %v1539 = vunpack.c.h.b16 %v661
        %v1540 = vunpack.c.l.b16 %v662
        %v1541 = vunpack.c.h.b16 %v662
        %v1542 = vunpack.c.l.b16 %v663
        %v1543 = vunpack.c.h.b16 %v663
        %v1544 = vunpack.c.l.b16 %v664
        %v1545 = vunpack.c.h.b16 %v664
        %v1546 = vunpack.c.l.b16 %v665
        %v1547 = vunpack.c.h.b16 %v665
        %v1548 = vunpack.c.l.b16 %v666
        %v1549 = vunpack.c.h.b16 %v666
        %v1550 = vunpack.c.l.b16 %v667
        %v1551 = vunpack.c.h.b16 %v667
        %v1552 = vunpack.c.l.b16 %v668
        %v1553 = vunpack.c.h.b16 %v668
        %v1554 = vunpack.c.l.b16 %v669
        %v1555 = vunpack.c.h.b16 %v669
        %v1556 = vunpack.c.l.b16 %v670
        %v1557 = vunpack.c.h.b16 %v670
        %v1558 = vunpack.c.l.b16 %v671
        %v1559 = vunpack.c.h.b16 %v671
        %v1560 = vunpack.c.l.b16 %v672
        %v1561 = vunpack.c.h.b16 %v672
        %v1562 = vunpack.c.l.b16 %v673
        %v1563 = vunpack.c.h.b16 %v673
        %v1564 = vunpack.c.l.b16 %v674
        %v1565 = vunpack.c.h.b16 %v674
        %v1566 = vunpack.c.l.b16 %v675
        %v1567 = vunpack.c.h.b16 %v675
        %v1568 = vunpack.c.l.b16 %v676
        %v1569 = vunpack.c.h.b16 %v676
        %v1570 = vunpack.c.l.b16 %v677
        %v1571 = vunpack.c.h.b16 %v677
        %v1572 = vunpack.c.l.b16 %v678
        %v1573 = vunpack.c.h.b16 %v678
        %v1574 = vunpack.c.l.b16 %v679
        %v1575 = vunpack.c.h.b16 %v679
        %v1576 = vunpack.c.l.b16 %v680
        %v1577 = vunpack.c.h.b16 %v680
        %v1578 = vunpack.c.l.b16 %v681
        %v1579 = vunpack.c.h.b16 %v681
        %v1580 = vunpack.c.l.b16 %v682
        %v1581 = vunpack.c.h.b16 %v682
        %v1582 = vunpack.c.l.b16 %v683
        %v1583 = vunpack.c.h.b16 %v683
        %v1584 = vunpack.c.l.b16 %v684
        %v1585 = vunpack.c.h.b16 %v684
        %v1586 = vunpack.c.l.b16 %v685
        %v1587 = vunpack.c.h.b16 %v685
        %v1588 = vunpack.c.l.b16 %v686
        %v1589 = vunpack.c.h.b16 %v686
        %v1590 = vunpack.c.l.b16 %v687
        %v1591 = vunpack.c.h.b16 %v687
        %v1592 = vunpack.c.l.b16 %v688
        %v1593 = vunpack.c.h.b16 %v688
        %v1594 = vunpack.c.l.b16 %v689
        %v1595 = vunpack.c.h.b16 %v689
        %v1596 = vunpack.c.l.b16 %v690
        %v1597 = vunpack.c.h.b16 %v690
        %v1598 = vunpack.c.l.b16 %v691
        %v1599 = vunpack.c.h.b16 %v691
        %v1600 = vunpack.c.l.b16 %v692
        %v1601 = vunpack.c.h.b16 %v692
        %v1602 = vunpack.c.l.b16 %v693
        %v1603 = vunpack.c.h.b16 %v693
        %v1604 = vunpack.c.l.b16 %v694
        %v1605 = vunpack.c.h.b16 %v694
        %v1606 = vunpack.c.l.b16 %v695
        %v1607 = vunpack.c.h.b16 %v695
        %v1608 = vunpack.c.l.b16 %v696
        %v1609 = vunpack.c.h.b16 %v696
        %v1610 = vunpack.c.l.b16 %v697
        %v1611 = vunpack.c.h.b16 %v697
        %v1612 = vunpack.c.l.b16 %v698
        %v1613 = vunpack.c.h.b16 %v698
        %v1614 = vunpack.c.l.b16 %v699
        %v1615 = vunpack.c.h.b16 %v699
        %v1616 = vunpack.c.l.b16 %v700
        %v1617 = vunpack.c.h.b16 %v700
        %v1618 = vunpack.c.l.b16 %v701
        %v1619 = vunpack.c.h.b16 %v701
        %v1620 = vunpack.c.l.b16 %v702
        %v1621 = vunpack.c.h.b16 %v702
        %v1622 = vunpack.c.l.b16 %v703
        %v1623 = vunpack.c.h.b16 %v703
        %v1624 = vunpack.c.l.b16 %v704
        %v1625 = vunpack.c.h.b16 %v704
        %v1626 = vunpack.c.l.b16 %v705
        %v1627 = vunpack.c.h.b16 %v705
        %v1628 = vunpack.c.l.b16 %v706
        %v1629 = vunpack.c.h.b16 %v706
        %v1630 = vunpack.c.l.b16 %v707
        %v1631 = vunpack.c.h.b16 %v707
        %v1632 = vunpack.c.l.b16 %v708
        %v1633 = vunpack.c.h.b16 %v708
        %v1634 = vunpack.c.l.b16 %v709
        %v1635 = vunpack.c.h.b16 %v709
        %v1636 = vunpack.c.l.b16 %v710
        %v1637 = vunpack.c.h.b16 %v710
        %v1638 = vunpack.c.l.b16 %v711
        %v1639 = vunpack.c.h.b16 %v711
        %v1640 = vunpack.c.l.b16 %v712
        %v1641 = vunpack.c.h.b16 %v712
        %v1642 = vunpack.c.l.b16 %v713
        %v1643 = vunpack.c.h.b16 %v713
        %v1644 = vunpack.c.l.b16 %v714
        %v1645 = vunpack.c.h.b16 %v714
        %v1646 = vunpack.c.l.b16 %v715
        %v1647 = vunpack.c.h.b16 %v715
        %v1648 = vunpack.c.l.b16 %v716
        %v1649 = vunpack.c.h.b16 %v716
        %v1650 = vunpack.c.l.b16 %v717
        %v1651 = vunpack.c.h.b16 %v717
        %v1652 = vunpack.c.l.b16 %v718
        %v1653 = vunpack.c.h.b16 %v718
        %v1654 = vunpack.c.l.b16 %v719
        %v1655 = vunpack.c.h.b16 %v719
        %v1656 = vunpack.c.l.b16 %v720
        %v1657 = vunpack.c.h.b16 %v720
        %v1658 = vunpack.c.l.b16 %v721
        %v1659 = vunpack.c.h.b16 %v721
        %v1660 = vunpack.c.l.b16 %v722
        %v1661 = vunpack.c.h.b16 %v722
        %v1662 = vunpack.c.l.b16 %v723
        %v1663 = vunpack.c.h.b16 %v723
        %v1664 = vunpack.c.l.b16 %v724
        %v1665 = vunpack.c.h.b16 %v724
        %v1666 = vunpack.c.l.b16 %v725
        %v1667 = vunpack.c.h.b16 %v725
        %v1668 = vunpack.c.l.b16 %v726
        %v1669 = vunpack.c.h.b16 %v726
        %v1670 = vunpack.c.l.b16 %v727
        %v1671 = vunpack.c.h.b16 %v727
        %v1672 = vunpack.c.l.b16 %v728
        %v1673 = vunpack.c.h.b16 %v728
        %v1674 = vunpack.c.l.b16 %v729
        %v1675 = vunpack.c.h.b16 %v729
        %v1676 = vpack.c.b16 %v1172, %v1164
        %v1677 = vpack.c.b16 %v1173, %v1165
        %v1678 = vpack.c.b16 %v1174, %v1166
        %v1679 = vpack.c.b16 %v1175, %v1167
        %v1680 = vpack.c.b16 %v1176, %v1168
        %v1681 = vpack.c.b16 %v1177, %v1169
        %v1682 = vpack.c.b16 %v1178, %v1170
        %v1683 = vpack.c.b16 %v1179, %v1171
        %v1684 = vpack.c.b16 %v1188, %v1180
        %v1685 = vpack.c.b16 %v1189, %v1181
        %v1686 = vpack.c.b16 %v1190, %v1182
        %v1687 = vpack.c.b16 %v1191, %v1183
        %v1688 = vpack.c.b16 %v1192, %v1184
        %v1689 = vpack.c.b16 %v1193, %v1185
        %v1690 = vpack.c.b16 %v1194, %v1186
        %v1691 = vpack.c.b16 %v1195, %v1187
        %v1692 = vpack.c.b16 %v1204, %v1196
        %v1693 = vpack.c.b16 %v1205, %v1197
        %v1694 = vpack.c.b16 %v1206, %v1198
        %v1695 = vpack.c.b16 %v1207, %v1199
        %v1696 = vpack.c.b16 %v1208, %v1200
        %v1697 = vpack.c.b16 %v1209, %v1201
        %v1698 = vpack.c.b16 %v1210, %v1202
        %v1699 = vpack.c.b16 %v1211, %v1203
        %v1700 = vpack.c.b16 %v1220, %v1212
        %v1701 = vpack.c.b16 %v1221, %v1213
        %v1702 = vpack.c.b16 %v1222, %v1214
        %v1703 = vpack.c.b16 %v1223, %v1215
        %v1704 = vpack.c.b16 %v1224, %v1216
        %v1705 = vpack.c.b16 %v1225, %v1217
        %v1706 = vpack.c.b16 %v1226, %v1218
        %v1707 = vpack.c.b16 %v1227, %v1219
        %v1708 = vpack.c.b16 %v1236, %v1228
        %v1709 = vpack.c.b16 %v1237, %v1229
        %v1710 = vpack.c.b16 %v1238, %v1230
        %v1711 = vpack.c.b16 %v1239, %v1231
        %v1712 = vpack.c.b16 %v1240, %v1232
        %v1713 = vpack.c.b16 %v1241, %v1233
        %v1714 = vpack.c.b16 %v1242, %v1234
        %v1715 = vpack.c.b16 %v1243, %v1235
        %v1716 = vpack.c.b16 %v1252, %v1244
        %v1717 = vpack.c.b16 %v1253, %v1245
        %v1718 = vpack.c.b16 %v1254, %v1246
        %v1719 = vpack.c.b16 %v1255, %v1247
        %v1720 = vpack.c.b16 %v1256, %v1248
        %v1721 = vpack.c.b16 %v1257, %v1249
        %v1722 = vpack.c.b16 %v1258, %v1250
        %v1723 = vpack.c.b16 %v1259, %v1251
        %v1724 = vpack.c.b16 %v1268, %v1260
        %v1725 = vpack.c.b16 %v1269, %v1261
        %v1726 = vpack.c.b16 %v1270, %v1262
        %v1727 = vpack.c.b16 %v1271, %v1263
        %v1728 = vpack.c.b16 %v1272, %v1264
        %v1729 = vpack.c.b16 %v1273, %v1265
        %v1730 = vpack.c.b16 %v1274, %v1266
        %v1731 = vpack.c.b16 %v1275, %v1267
        %v1732 = vpack.c.b16 %v1284, %v1276
        %v1733 = vpack.c.b16 %v1285, %v1277
        %v1734 = vpack.c.b16 %v1286, %v1278
        %v1735 = vpack.c.b16 %v1287, %v1279
        %v1736 = vpack.c.b16 %v1288, %v1280
        %v1737 = vpack.c.b16 %v1289, %v1281
        %v1738 = vpack.c.b16 %v1290, %v1282
        %v1739 = vpack.c.b16 %v1291, %v1283
        %v1740 = vpack.c.b16 %v1300, %v1292
        %v1741 = vpack.c.b16 %v1301, %v1293
        %v1742 = vpack.c.b16 %v1302, %v1294
        %v1743 = vpack.c.b16 %v1303, %v1295
        %v1744 = vpack.c.b16 %v1304, %v1296
        %v1745 = vpack.c.b16 %v1305, %v1297
        %v1746 = vpack.c.b16 %v1306, %v1298
        %v1747 = vpack.c.b16 %v1307, %v1299
        %v1748 = vpack.c.b16 %v1316, %v1308
        %v1749 = vpack.c.b16 %v1317, %v1309
        %v1750 = vpack.c.b16 %v1318, %v1310
        %v1751 = vpack.c.b16 %v1319, %v1311
        %v1752 = vpack.c.b16 %v1320, %v1312
        %v1753 = vpack.c.b16 %v1321, %v1313
        %v1754 = vpack.c.b16 %v1322, %v1314
        %v1755 = vpack.c.b16 %v1323, %v1315
        %v1756 = vpack.c.b16 %v1332, %v1324
        %v1757 = vpack.c.b16 %v1333, %v1325
        %v1758 = vpack.c.b16 %v1334, %v1326
        %v1759 = vpack.c.b16 %v1335, %v1327
        %v1760 = vpack.c.b16 %v1336, %v1328
        %v1761 = vpack.c.b16 %v1337, %v1329
        %v1762 = vpack.c.b16 %v1338, %v1330
        %v1763 = vpack.c.b16 %v1339, %v1331
        %v1764 = vpack.c.b16 %v1348, %v1340
        %v1765 = vpack.c.b16 %v1349, %v1341
        %v1766 = vpack.c.b16 %v1350, %v1342
        %v1767 = vpack.c.b16 %v1351, %v1343
        %v1768 = vpack.c.b16 %v1352, %v1344
        %v1769 = vpack.c.b16 %v1353, %v1345
        %v1770 = vpack.c.b16 %v1354, %v1346
        %v1771 = vpack.c.b16 %v1355, %v1347
        %v1772 = vpack.c.b16 %v1364, %v1356
        %v1773 = vpack.c.b16 %v1365, %v1357
        %v1774 = vpack.c.b16 %v1366, %v1358
        %v1775 = vpack.c.b16 %v1367, %v1359
        %v1776 = vpack.c.b16 %v1368, %v1360
        %v1777 = vpack.c.b16 %v1369, %v1361
        %v1778 = vpack.c.b16 %v1370, %v1362
        %v1779 = vpack.c.b16 %v1371, %v1363
        %v1780 = vpack.c.b16 %v1380, %v1372
        %v1781 = vpack.c.b16 %v1381, %v1373
        %v1782 = vpack.c.b16 %v1382, %v1374
        %v1783 = vpack.c.b16 %v1383, %v1375
        %v1784 = vpack.c.b16 %v1384, %v1376
        %v1785 = vpack.c.b16 %v1385, %v1377
        %v1786 = vpack.c.b16 %v1386, %v1378
        %v1787 = vpack.c.b16 %v1387, %v1379
        %v1788 = vpack.c.b16 %v1396, %v1388
        %v1789 = vpack.c.b16 %v1397, %v1389
        %v1790 = vpack.c.b16 %v1398, %v1390
        %v1791 = vpack.c.b16 %v1399, %v1391
        %v1792 = vpack.c.b16 %v1400, %v1392
        %v1793 = vpack.c.b16 %v1401, %v1393
        %v1794 = vpack.c.b16 %v1402, %v1394
        %v1795 = vpack.c.b16 %v1403, %v1395
        %v1796 = vpack.c.b16 %v1412, %v1404
        %v1797 = vpack.c.b16 %v1413, %v1405
        %v1798 = vpack.c.b16 %v1414, %v1406
        %v1799 = vpack.c.b16 %v1415, %v1407
        %v1800 = vpack.c.b16 %v1416, %v1408
        %v1801 = vpack.c.b16 %v1417, %v1409
        %v1802 = vpack.c.b16 %v1418, %v1410
        %v1803 = vpack.c.b16 %v1419, %v1411
        %v1804 = vpack.c.b16 %v1428, %v1420
        %v1805 = vpack.c.b16 %v1429, %v1421
        %v1806 = vpack.c.b16 %v1430, %v1422
        %v1807 = vpack.c.b16 %v1431, %v1423
        %v1808 = vpack.c.b16 %v1432, %v1424
        %v1809 = vpack.c.b16 %v1433, %v1425
        %v1810 = vpack.c.b16 %v1434, %v1426
        %v1811 = vpack.c.b16 %v1435, %v1427
        %v1812 = vpack.c.b16 %v1444, %v1436
        %v1813 = vpack.c.b16 %v1445, %v1437
        %v1814 = vpack.c.b16 %v1446, %v1438
        %v1815 = vpack.c.b16 %v1447, %v1439
        %v1816 = vpack.c.b16 %v1448, %v1440
        %v1817 = vpack.c.b16 %v1449, %v1441
        %v1818 = vpack.c.b16 %v1450, %v1442
        %v1819 = vpack.c.b16 %v1451, %v1443
        %v1820 = vpack.c.b16 %v1460, %v1452
        %v1821 = vpack.c.b16 %v1461, %v1453
        %v1822 = vpack.c.b16 %v1462, %v1454
        %v1823 = vpack.c.b16 %v1463, %v1455
        %v1824 = vpack.c.b16 %v1464, %v1456
        %v1825 = vpack.c.b16 %v1465, %v1457
        %v1826 = vpack.c.b16 %v1466, %v1458
        %v1827 = vpack.c.b16 %v1467, %v1459
        %v1828 = vpack.c.b16 %v1476, %v1468
        %v1829 = vpack.c.b16 %v1477, %v1469
        %v1830 = vpack.c.b16 %v1478, %v1470
        %v1831 = vpack.c.b16 %v1479, %v1471
        %v1832 = vpack.c.b16 %v1480, %v1472
        %v1833 = vpack.c.b16 %v1481, %v1473
        %v1834 = vpack.c.b16 %v1482, %v1474
        %v1835 = vpack.c.b16 %v1483, %v1475
        %v1836 = vpack.c.b16 %v1492, %v1484
        %v1837 = vpack.c.b16 %v1493, %v1485
        %v1838 = vpack.c.b16 %v1494, %v1486
        %v1839 = vpack.c.b16 %v1495, %v1487
        %v1840 = vpack.c.b16 %v1496, %v1488
        %v1841 = vpack.c.b16 %v1497, %v1489
        %v1842 = vpack.c.b16 %v1498, %v1490
        %v1843 = vpack.c.b16 %v1499, %v1491
        %v1844 = vpack.c.b16 %v1508, %v1500
        %v1845 = vpack.c.b16 %v1509, %v1501
        %v1846 = vpack.c.b16 %v1510, %v1502
        %v1847 = vpack.c.b16 %v1511, %v1503
        %v1848 = vpack.c.b16 %v1512, %v1504
        %v1849 = vpack.c.b16 %v1513, %v1505
        %v1850 = vpack.c.b16 %v1514, %v1506
        %v1851 = vpack.c.b16 %v1515, %v1507
        %v1852 = vpack.c.b16 %v1524, %v1516
        %v1853 = vpack.c.b16 %v1525, %v1517
        %v1854 = vpack.c.b16 %v1526, %v1518
        %v1855 = vpack.c.b16 %v1527, %v1519
        %v1856 = vpack.c.b16 %v1528, %v1520
        %v1857 = vpack.c.b16 %v1529, %v1521
        %v1858 = vpack.c.b16 %v1530, %v1522
        %v1859 = vpack.c.b16 %v1531, %v1523
        %v1860 = vpack.c.b16 %v1540, %v1532
        %v1861 = vpack.c.b16 %v1541, %v1533
        %v1862 = vpack.c.b16 %v1542, %v1534
        %v1863 = vpack.c.b16 %v1543, %v1535
        %v1864 = vpack.c.b16 %v1544, %v1536
        %v1865 = vpack.c.b16 %v1545, %v1537
        %v1866 = vpack.c.b16 %v1546, %v1538
        %v1867 = vpack.c.b16 %v1547, %v1539
        %v1868 = vpack.c.b16 %v1556, %v1548
        %v1869 = vpack.c.b16 %v1557, %v1549
        %v1870 = vpack.c.b16 %v1558, %v1550
        %v1871 = vpack.c.b16 %v1559, %v1551
        %v1872 = vpack.c.b16 %v1560, %v1552
        %v1873 = vpack.c.b16 %v1561, %v1553
        %v1874 = vpack.c.b16 %v1562, %v1554
        %v1875 = vpack.c.b16 %v1563, %v1555
        %v1876 = vpack.c.b16 %v1572, %v1564
        %v1877 = vpack.c.b16 %v1573, %v1565
        %v1878 = vpack.c.b16 %v1574, %v1566
        %v1879 = vpack.c.b16 %v1575, %v1567
        %v1880 = vpack.c.b16 %v1576, %v1568
        %v1881 = vpack.c.b16 %v1577, %v1569
        %v1882 = vpack.c.b16 %v1578, %v1570
        %v1883 = vpack.c.b16 %v1579, %v1571
        %v1884 = vpack.c.b16 %v1588, %v1580
        %v1885 = vpack.c.b16 %v1589, %v1581
        %v1886 = vpack.c.b16 %v1590, %v1582
        %v1887 = vpack.c.b16 %v1591, %v1583
        %v1888 = vpack.c.b16 %v1592, %v1584
        %v1889 = vpack.c.b16 %v1593, %v1585
        %v1890 = vpack.c.b16 %v1594, %v1586
        %v1891 = vpack.c.b16 %v1595, %v1587
        %v1892 = vpack.c.b16 %v1604, %v1596
        %v1893 = vpack.c.b16 %v1605, %v1597
        %v1894 = vpack.c.b16 %v1606, %v1598
        %v1895 = vpack.c.b16 %v1607, %v1599
        %v1896 = vpack.c.b16 %v1608, %v1600
        %v1897 = vpack.c.b16 %v1609, %v1601
        %v1898 = vpack.c.b16 %v1610, %v1602
        %v1899 = vpack.c.b16 %v1611, %v1603
        %v1900 = vpack.c.b16 %v1620, %v1612
        %v1901 = vpack.c.b16 %v1621, %v1613
        %v1902 = vpack.c.b16 %v1622, %v1614
        %v1903 = vpack.c.b16 %v1623, %v1615
        %v1904 = vpack.c.b16 %v1624, %v1616
        %v1905 = vpack.c.b16 %v1625, %v1617
        %v1906 = vpack.c.b16 %v1626, %v1618
        %v1907 = vpack.c.b16 %v1627, %v1619
        %v1908 = vpack.c.b16 %v1636, %v1628
        %v1909 = vpack.c.b16 %v1637, %v1629
        %v1910 = vpack.c.b16 %v1638, %v1630
        %v1911 = vpack.c.b16 %v1639, %v1631
        %v1912 = vpack.c.b16 %v1640, %v1632
        %v1913 = vpack.c.b16 %v1641, %v1633
        %v1914 = vpack.c.b16 %v1642, %v1634
        %v1915 = vpack.c.b16 %v1643, %v1635
        %v1916 = vpack.c.b16 %v1652, %v1644
        %v1917 = vpack.c.b16 %v1653, %v1645
        %v1918 = vpack.c.b16 %v1654, %v1646
        %v1919 = vpack.c.b16 %v1655, %v1647
        %v1920 = vpack.c.b16 %v1656, %v1648
        %v1921 = vpack.c.b16 %v1657, %v1649
        %v1922 = vpack.c.b16 %v1658, %v1650
        %v1923 = vpack.c.b16 %v1659, %v1651
        %v1924 = vpack.c.b16 %v1668, %v1660
        %v1925 = vpack.c.b16 %v1669, %v1661
        %v1926 = vpack.c.b16 %v1670, %v1662
        %v1927 = vpack.c.b16 %v1671, %v1663
        %v1928 = vpack.c.b16 %v1672, %v1664
        %v1929 = vpack.c.b16 %v1673, %v1665
        %v1930 = vpack.c.b16 %v1674, %v1666
        %v1931 = vpack.c.b16 %v1675, %v1667
        %2188 = vmatpush.bf16.msra.mxu0 %v1732
        %2189 = vmatpush.bf16.msra.mxu0 %v1724
        %2190 = vmatpush.bf16.msra.mxu0 %v1716
        %2191 = vmatpush.bf16.msra.mxu0 %v1708
        %2192 = vmatpush.bf16.msra.mxu0 %v1700
        %2193 = vmatpush.bf16.msra.mxu0 %v1692
        %2194 = vmatpush.bf16.msra.mxu0 %v1684
        %2195 = vmatpush.bf16.msra.mxu0 %v1676
        %2196 = vmatmul.bf16.gmra.mxu0 %v844
        %v2197 = vpop.f32.mrf.mxu0
        %v2198 = vadd.f32 %v732, %v2197
        %v2199 = vpop.f32.mrf.mxu0
        %v2200 = vadd.f32 %v732, %v2199
        %2201 = vmatmul.bf16.gmra.mxu0 %v848
        %v2202 = vpop.f32.mrf.mxu0
        %v2203 = vadd.f32 %v732, %v2202
        %v2204 = vpop.f32.mrf.mxu0
        %v2205 = vadd.f32 %v732, %v2204
        %2206 = vmatmul.bf16.gmra.mxu0 %v852
        %v2207 = vpop.f32.mrf.mxu0
        %v2208 = vadd.f32 %v732, %v2207
        %v2209 = vpop.f32.mrf.mxu0
        %v2210 = vadd.f32 %v732, %v2209
        %2211 = vmatmul.bf16.gmra.mxu0 %v856
        %v2212 = vpop.f32.mrf.mxu0
        %v2213 = vadd.f32 %v732, %v2212
        %v2214 = vpop.f32.mrf.mxu0
        %v2215 = vadd.f32 %v732, %v2214
        %2216 = vmatmul.bf16.gmra.mxu0 %v860
        %v2217 = vpop.f32.mrf.mxu0
        %v2218 = vadd.f32 %v732, %v2217
        %v2219 = vpop.f32.mrf.mxu0
        %v2220 = vadd.f32 %v732, %v2219
        %2221 = vmatmul.bf16.gmra.mxu0 %v864
        %v2222 = vpop.f32.mrf.mxu0
        %v2223 = vadd.f32 %v732, %v2222
        %v2224 = vpop.f32.mrf.mxu0
        %v2225 = vadd.f32 %v732, %v2224
        %2226 = vmatmul.bf16.gmra.mxu0 %v868
        %v2227 = vpop.f32.mrf.mxu0
        %v2228 = vadd.f32 %v732, %v2227
        %v2229 = vpop.f32.mrf.mxu0
        %v2230 = vadd.f32 %v732, %v2229
        %2231 = vmatmul.bf16.gmra.mxu0 %v872
        %v2232 = vpop.f32.mrf.mxu0
        %v2233 = vadd.f32 %v732, %v2232
        %v2234 = vpop.f32.mrf.mxu0
        %v2235 = vadd.f32 %v732, %v2234
        %2236 = vdwg.mxu0
        %2237 = vmatpush.bf16.msra.mxu0 %v1796
        %2238 = vmatpush.bf16.msra.mxu0 %v1788
        %2239 = vmatpush.bf16.msra.mxu0 %v1780
        %2240 = vmatpush.bf16.msra.mxu0 %v1772
        %2241 = vmatpush.bf16.msra.mxu0 %v1764
        %2242 = vmatpush.bf16.msra.mxu0 %v1756
        %2243 = vmatpush.bf16.msra.mxu0 %v1748
        %2244 = vmatpush.bf16.msra.mxu0 %v1740
        %2245 = vmatmul.bf16.gmra.mxu0 %v845
        %v2246 = vpop.f32.mrf.mxu0
        %v2247 = vadd.f32 %v2198, %v2246
        %v2248 = vpop.f32.mrf.mxu0
        %v2249 = vadd.f32 %v2200, %v2248
        %2250 = vmatmul.bf16.gmra.mxu0 %v849
        %v2251 = vpop.f32.mrf.mxu0
        %v2252 = vadd.f32 %v2203, %v2251
        %v2253 = vpop.f32.mrf.mxu0
        %v2254 = vadd.f32 %v2205, %v2253
        %2255 = vmatmul.bf16.gmra.mxu0 %v853
        %v2256 = vpop.f32.mrf.mxu0
        %v2257 = vadd.f32 %v2208, %v2256
        %v2258 = vpop.f32.mrf.mxu0
        %v2259 = vadd.f32 %v2210, %v2258
        %2260 = vmatmul.bf16.gmra.mxu0 %v857
        %v2261 = vpop.f32.mrf.mxu0
        %v2262 = vadd.f32 %v2213, %v2261
        %v2263 = vpop.f32.mrf.mxu0
        %v2264 = vadd.f32 %v2215, %v2263
        %2265 = vmatmul.bf16.gmra.mxu0 %v861
        %v2266 = vpop.f32.mrf.mxu0
        %v2267 = vadd.f32 %v2218, %v2266
        %v2268 = vpop.f32.mrf.mxu0
        %v2269 = vadd.f32 %v2220, %v2268
        %2270 = vmatmul.bf16.gmra.mxu0 %v865
        %v2271 = vpop.f32.mrf.mxu0
        %v2272 = vadd.f32 %v2223, %v2271
        %v2273 = vpop.f32.mrf.mxu0
        %v2274 = vadd.f32 %v2225, %v2273
        %2275 = vmatmul.bf16.gmra.mxu0 %v869
        %v2276 = vpop.f32.mrf.mxu0
        %v2277 = vadd.f32 %v2228, %v2276
        %v2278 = vpop.f32.mrf.mxu0
        %v2279 = vadd.f32 %v2230, %v2278
        %2280 = vmatmul.bf16.gmra.mxu0 %v873
        %v2281 = vpop.f32.mrf.mxu0
        %v2282 = vadd.f32 %v2233, %v2281
        %v2283 = vpop.f32.mrf.mxu0
        %v2284 = vadd.f32 %v2235, %v2283
        %2285 = vdwg.mxu0
        %2286 = vmatpush.bf16.msra.mxu0 %v1860
        %2287 = vmatpush.bf16.msra.mxu0 %v1852
        %2288 = vmatpush.bf16.msra.mxu0 %v1844
        %2289 = vmatpush.bf16.msra.mxu0 %v1836
        %2290 = vmatpush.bf16.msra.mxu0 %v1828
        %2291 = vmatpush.bf16.msra.mxu0 %v1820
        %2292 = vmatpush.bf16.msra.mxu0 %v1812
        %2293 = vmatpush.bf16.msra.mxu0 %v1804
        %2294 = vmatmul.bf16.gmra.mxu0 %v846
        %v2295 = vpop.f32.mrf.mxu0
        %v2296 = vadd.f32 %v2247, %v2295
        %v2297 = vpop.f32.mrf.mxu0
        %v2298 = vadd.f32 %v2249, %v2297
        %2299 = vmatmul.bf16.gmra.mxu0 %v850
        %v2300 = vpop.f32.mrf.mxu0
        %v2301 = vadd.f32 %v2252, %v2300
        %v2302 = vpop.f32.mrf.mxu0
        %v2303 = vadd.f32 %v2254, %v2302
        %2304 = vmatmul.bf16.gmra.mxu0 %v854
        %v2305 = vpop.f32.mrf.mxu0
        %v2306 = vadd.f32 %v2257, %v2305
        %v2307 = vpop.f32.mrf.mxu0
        %v2308 = vadd.f32 %v2259, %v2307
        %2309 = vmatmul.bf16.gmra.mxu0 %v858
        %v2310 = vpop.f32.mrf.mxu0
        %v2311 = vadd.f32 %v2262, %v2310
        %v2312 = vpop.f32.mrf.mxu0
        %v2313 = vadd.f32 %v2264, %v2312
        %2314 = vmatmul.bf16.gmra.mxu0 %v862
        %v2315 = vpop.f32.mrf.mxu0
        %v2316 = vadd.f32 %v2267, %v2315
        %v2317 = vpop.f32.mrf.mxu0
        %v2318 = vadd.f32 %v2269, %v2317
        %2319 = vmatmul.bf16.gmra.mxu0 %v866
        %v2320 = vpop.f32.mrf.mxu0
        %v2321 = vadd.f32 %v2272, %v2320
        %v2322 = vpop.f32.mrf.mxu0
        %v2323 = vadd.f32 %v2274, %v2322
        %2324 = vmatmul.bf16.gmra.mxu0 %v870
        %v2325 = vpop.f32.mrf.mxu0
        %v2326 = vadd.f32 %v2277, %v2325
        %v2327 = vpop.f32.mrf.mxu0
        %v2328 = vadd.f32 %v2279, %v2327
        %2329 = vmatmul.bf16.gmra.mxu0 %v874
        %v2330 = vpop.f32.mrf.mxu0
        %v2331 = vadd.f32 %v2282, %v2330
        %v2332 = vpop.f32.mrf.mxu0
        %v2333 = vadd.f32 %v2284, %v2332
        %2334 = vdwg.mxu0
        %2335 = vmatpush.bf16.msra.mxu0 %v1924
        %2336 = vmatpush.bf16.msra.mxu0 %v1916
        %2337 = vmatpush.bf16.msra.mxu0 %v1908
        %2338 = vmatpush.bf16.msra.mxu0 %v1900
        %2339 = vmatpush.bf16.msra.mxu0 %v1892
        %2340 = vmatpush.bf16.msra.mxu0 %v1884
        %2341 = vmatpush.bf16.msra.mxu0 %v1876
        %2342 = vmatpush.bf16.msra.mxu0 %v1868
        %2343 = vmatmul.bf16.gmra.mxu0 %v847
        %v2344 = vpop.f32.mrf.mxu0
        %v2345 = vadd.f32 %v2296, %v2344
        %v2346 = vpop.f32.mrf.mxu0
        %v2347 = vadd.f32 %v2298, %v2346
        %2348 = vmatmul.bf16.gmra.mxu0 %v851
        %v2349 = vpop.f32.mrf.mxu0
        %v2350 = vadd.f32 %v2301, %v2349
        %v2351 = vpop.f32.mrf.mxu0
        %v2352 = vadd.f32 %v2303, %v2351
        %2353 = vmatmul.bf16.gmra.mxu0 %v855
        %v2354 = vpop.f32.mrf.mxu0
        %v2355 = vadd.f32 %v2306, %v2354
        %v2356 = vpop.f32.mrf.mxu0
        %v2357 = vadd.f32 %v2308, %v2356
        %2358 = vmatmul.bf16.gmra.mxu0 %v859
        %v2359 = vpop.f32.mrf.mxu0
        %v2360 = vadd.f32 %v2311, %v2359
        %v2361 = vpop.f32.mrf.mxu0
        %v2362 = vadd.f32 %v2313, %v2361
        %2363 = vmatmul.bf16.gmra.mxu0 %v863
        %v2364 = vpop.f32.mrf.mxu0
        %v2365 = vadd.f32 %v2316, %v2364
        %v2366 = vpop.f32.mrf.mxu0
        %v2367 = vadd.f32 %v2318, %v2366
        %2368 = vmatmul.bf16.gmra.mxu0 %v867
        %v2369 = vpop.f32.mrf.mxu0
        %v2370 = vadd.f32 %v2321, %v2369
        %v2371 = vpop.f32.mrf.mxu0
        %v2372 = vadd.f32 %v2323, %v2371
        %2373 = vmatmul.bf16.gmra.mxu0 %v871
        %v2374 = vpop.f32.mrf.mxu0
        %v2375 = vadd.f32 %v2326, %v2374
        %v2376 = vpop.f32.mrf.mxu0
        %v2377 = vadd.f32 %v2328, %v2376
        %2378 = vmatmul.bf16.gmra.mxu0 %v875
        %v2379 = vpop.f32.mrf.mxu0
        %v2380 = vadd.f32 %v2331, %v2379
        %v2381 = vpop.f32.mrf.mxu0
        %v2382 = vadd.f32 %v2333, %v2381
        %2383 = vdwg.mxu0
        %2384 = vmatpush.bf16.msra.mxu0 %v1733
        %2385 = vmatpush.bf16.msra.mxu0 %v1725
        %2386 = vmatpush.bf16.msra.mxu0 %v1717
        %2387 = vmatpush.bf16.msra.mxu0 %v1709
        %2388 = vmatpush.bf16.msra.mxu0 %v1701
        %2389 = vmatpush.bf16.msra.mxu0 %v1693
        %2390 = vmatpush.bf16.msra.mxu0 %v1685
        %2391 = vmatpush.bf16.msra.mxu0 %v1677
        %2392 = vmatmul.bf16.gmra.mxu0 %v844
        %v2393 = vpop.f32.mrf.mxu0
        %v2394 = vadd.f32 %v733, %v2393
        %v2395 = vpop.f32.mrf.mxu0
        %v2396 = vadd.f32 %v733, %v2395
        %2397 = vmatmul.bf16.gmra.mxu0 %v848
        %v2398 = vpop.f32.mrf.mxu0
        %v2399 = vadd.f32 %v733, %v2398
        %v2400 = vpop.f32.mrf.mxu0
        %v2401 = vadd.f32 %v733, %v2400
        %2402 = vmatmul.bf16.gmra.mxu0 %v852
        %v2403 = vpop.f32.mrf.mxu0
        %v2404 = vadd.f32 %v733, %v2403
        %v2405 = vpop.f32.mrf.mxu0
        %v2406 = vadd.f32 %v733, %v2405
        %2407 = vmatmul.bf16.gmra.mxu0 %v856
        %v2408 = vpop.f32.mrf.mxu0
        %v2409 = vadd.f32 %v733, %v2408
        %v2410 = vpop.f32.mrf.mxu0
        %v2411 = vadd.f32 %v733, %v2410
        %2412 = vmatmul.bf16.gmra.mxu0 %v860
        %v2413 = vpop.f32.mrf.mxu0
        %v2414 = vadd.f32 %v733, %v2413
        %v2415 = vpop.f32.mrf.mxu0
        %v2416 = vadd.f32 %v733, %v2415
        %2417 = vmatmul.bf16.gmra.mxu0 %v864
        %v2418 = vpop.f32.mrf.mxu0
        %v2419 = vadd.f32 %v733, %v2418
        %v2420 = vpop.f32.mrf.mxu0
        %v2421 = vadd.f32 %v733, %v2420
        %2422 = vmatmul.bf16.gmra.mxu0 %v868
        %v2423 = vpop.f32.mrf.mxu0
        %v2424 = vadd.f32 %v733, %v2423
        %v2425 = vpop.f32.mrf.mxu0
        %v2426 = vadd.f32 %v733, %v2425
        %2427 = vmatmul.bf16.gmra.mxu0 %v872
        %v2428 = vpop.f32.mrf.mxu0
        %v2429 = vadd.f32 %v733, %v2428
        %v2430 = vpop.f32.mrf.mxu0
        %v2431 = vadd.f32 %v733, %v2430
        %2432 = vdwg.mxu0
        %2433 = vmatpush.bf16.msra.mxu0 %v1797
        %2434 = vmatpush.bf16.msra.mxu0 %v1789
        %2435 = vmatpush.bf16.msra.mxu0 %v1781
        %2436 = vmatpush.bf16.msra.mxu0 %v1773
        %2437 = vmatpush.bf16.msra.mxu0 %v1765
        %2438 = vmatpush.bf16.msra.mxu0 %v1757
        %2439 = vmatpush.bf16.msra.mxu0 %v1749
        %2440 = vmatpush.bf16.msra.mxu0 %v1741
        %2441 = vmatmul.bf16.gmra.mxu0 %v845
        %v2442 = vpop.f32.mrf.mxu0
        %v2443 = vadd.f32 %v2394, %v2442
        %v2444 = vpop.f32.mrf.mxu0
        %v2445 = vadd.f32 %v2396, %v2444
        %2446 = vmatmul.bf16.gmra.mxu0 %v849
        %v2447 = vpop.f32.mrf.mxu0
        %v2448 = vadd.f32 %v2399, %v2447
        %v2449 = vpop.f32.mrf.mxu0
        %v2450 = vadd.f32 %v2401, %v2449
        %2451 = vmatmul.bf16.gmra.mxu0 %v853
        %v2452 = vpop.f32.mrf.mxu0
        %v2453 = vadd.f32 %v2404, %v2452
        %v2454 = vpop.f32.mrf.mxu0
        %v2455 = vadd.f32 %v2406, %v2454
        %2456 = vmatmul.bf16.gmra.mxu0 %v857
        %v2457 = vpop.f32.mrf.mxu0
        %v2458 = vadd.f32 %v2409, %v2457
        %v2459 = vpop.f32.mrf.mxu0
        %v2460 = vadd.f32 %v2411, %v2459
        %2461 = vmatmul.bf16.gmra.mxu0 %v861
        %v2462 = vpop.f32.mrf.mxu0
        %v2463 = vadd.f32 %v2414, %v2462
        %v2464 = vpop.f32.mrf.mxu0
        %v2465 = vadd.f32 %v2416, %v2464
        %2466 = vmatmul.bf16.gmra.mxu0 %v865
        %v2467 = vpop.f32.mrf.mxu0
        %v2468 = vadd.f32 %v2419, %v2467
        %v2469 = vpop.f32.mrf.mxu0
        %v2470 = vadd.f32 %v2421, %v2469
        %2471 = vmatmul.bf16.gmra.mxu0 %v869
        %v2472 = vpop.f32.mrf.mxu0
        %v2473 = vadd.f32 %v2424, %v2472
        %v2474 = vpop.f32.mrf.mxu0
        %v2475 = vadd.f32 %v2426, %v2474
        %2476 = vmatmul.bf16.gmra.mxu0 %v873
        %v2477 = vpop.f32.mrf.mxu0
        %v2478 = vadd.f32 %v2429, %v2477
        %v2479 = vpop.f32.mrf.mxu0
        %v2480 = vadd.f32 %v2431, %v2479
        %2481 = vdwg.mxu0
        %2482 = vmatpush.bf16.msra.mxu0 %v1861
        %2483 = vmatpush.bf16.msra.mxu0 %v1853
        %2484 = vmatpush.bf16.msra.mxu0 %v1845
        %2485 = vmatpush.bf16.msra.mxu0 %v1837
        %2486 = vmatpush.bf16.msra.mxu0 %v1829
        %2487 = vmatpush.bf16.msra.mxu0 %v1821
        %2488 = vmatpush.bf16.msra.mxu0 %v1813
        %2489 = vmatpush.bf16.msra.mxu0 %v1805
        %2490 = vmatmul.bf16.gmra.mxu0 %v846
        %v2491 = vpop.f32.mrf.mxu0
        %v2492 = vadd.f32 %v2443, %v2491
        %v2493 = vpop.f32.mrf.mxu0
        %v2494 = vadd.f32 %v2445, %v2493
        %2495 = vmatmul.bf16.gmra.mxu0 %v850
        %v2496 = vpop.f32.mrf.mxu0
        %v2497 = vadd.f32 %v2448, %v2496
        %v2498 = vpop.f32.mrf.mxu0
        %v2499 = vadd.f32 %v2450, %v2498
        %2500 = vmatmul.bf16.gmra.mxu0 %v854
        %v2501 = vpop.f32.mrf.mxu0
        %v2502 = vadd.f32 %v2453, %v2501
        %v2503 = vpop.f32.mrf.mxu0
        %v2504 = vadd.f32 %v2455, %v2503
        %2505 = vmatmul.bf16.gmra.mxu0 %v858
        %v2506 = vpop.f32.mrf.mxu0
        %v2507 = vadd.f32 %v2458, %v2506
        %v2508 = vpop.f32.mrf.mxu0
        %v2509 = vadd.f32 %v2460, %v2508
        %2510 = vmatmul.bf16.gmra.mxu0 %v862
        %v2511 = vpop.f32.mrf.mxu0
        %v2512 = vadd.f32 %v2463, %v2511
        %v2513 = vpop.f32.mrf.mxu0
        %v2514 = vadd.f32 %v2465, %v2513
        %2515 = vmatmul.bf16.gmra.mxu0 %v866
        %v2516 = vpop.f32.mrf.mxu0
        %v2517 = vadd.f32 %v2468, %v2516
        %v2518 = vpop.f32.mrf.mxu0
        %v2519 = vadd.f32 %v2470, %v2518
        %2520 = vmatmul.bf16.gmra.mxu0 %v870
        %v2521 = vpop.f32.mrf.mxu0
        %v2522 = vadd.f32 %v2473, %v2521
        %v2523 = vpop.f32.mrf.mxu0
        %v2524 = vadd.f32 %v2475, %v2523
        %2525 = vmatmul.bf16.gmra.mxu0 %v874
        %v2526 = vpop.f32.mrf.mxu0
        %v2527 = vadd.f32 %v2478, %v2526
        %v2528 = vpop.f32.mrf.mxu0
        %v2529 = vadd.f32 %v2480, %v2528
        %2530 = vdwg.mxu0
        %2531 = vmatpush.bf16.msra.mxu0 %v1925
        %2532 = vmatpush.bf16.msra.mxu0 %v1917
        %2533 = vmatpush.bf16.msra.mxu0 %v1909
        %2534 = vmatpush.bf16.msra.mxu0 %v1901
        %2535 = vmatpush.bf16.msra.mxu0 %v1893
        %2536 = vmatpush.bf16.msra.mxu0 %v1885
        %2537 = vmatpush.bf16.msra.mxu0 %v1877
        %2538 = vmatpush.bf16.msra.mxu0 %v1869
        %2539 = vmatmul.bf16.gmra.mxu0 %v847
        %v2540 = vpop.f32.mrf.mxu0
        %v2541 = vadd.f32 %v2492, %v2540
        %v2542 = vpop.f32.mrf.mxu0
        %v2543 = vadd.f32 %v2494, %v2542
        %2544 = vmatmul.bf16.gmra.mxu0 %v851
        %v2545 = vpop.f32.mrf.mxu0
        %v2546 = vadd.f32 %v2497, %v2545
        %v2547 = vpop.f32.mrf.mxu0
        %v2548 = vadd.f32 %v2499, %v2547
        %2549 = vmatmul.bf16.gmra.mxu0 %v855
        %v2550 = vpop.f32.mrf.mxu0
        %v2551 = vadd.f32 %v2502, %v2550
        %v2552 = vpop.f32.mrf.mxu0
        %v2553 = vadd.f32 %v2504, %v2552
        %2554 = vmatmul.bf16.gmra.mxu0 %v859
        %v2555 = vpop.f32.mrf.mxu0
        %v2556 = vadd.f32 %v2507, %v2555
        %v2557 = vpop.f32.mrf.mxu0
        %v2558 = vadd.f32 %v2509, %v2557
        %2559 = vmatmul.bf16.gmra.mxu0 %v863
        %v2560 = vpop.f32.mrf.mxu0
        %v2561 = vadd.f32 %v2512, %v2560
        %v2562 = vpop.f32.mrf.mxu0
        %v2563 = vadd.f32 %v2514, %v2562
        %2564 = vmatmul.bf16.gmra.mxu0 %v867
        %v2565 = vpop.f32.mrf.mxu0
        %v2566 = vadd.f32 %v2517, %v2565
        %v2567 = vpop.f32.mrf.mxu0
        %v2568 = vadd.f32 %v2519, %v2567
        %2569 = vmatmul.bf16.gmra.mxu0 %v871
        %v2570 = vpop.f32.mrf.mxu0
        %v2571 = vadd.f32 %v2522, %v2570
        %v2572 = vpop.f32.mrf.mxu0
        %v2573 = vadd.f32 %v2524, %v2572
        %2574 = vmatmul.bf16.gmra.mxu0 %v875
        %v2575 = vpop.f32.mrf.mxu0
        %v2576 = vadd.f32 %v2527, %v2575
        %v2577 = vpop.f32.mrf.mxu0
        %v2578 = vadd.f32 %v2529, %v2577
        %2579 = vdwg.mxu0
        %2580 = vmatpush.bf16.msra.mxu0 %v1734
        %2581 = vmatpush.bf16.msra.mxu0 %v1726
        %2582 = vmatpush.bf16.msra.mxu0 %v1718
        %2583 = vmatpush.bf16.msra.mxu0 %v1710
        %2584 = vmatpush.bf16.msra.mxu0 %v1702
        %2585 = vmatpush.bf16.msra.mxu0 %v1694
        %2586 = vmatpush.bf16.msra.mxu0 %v1686
        %2587 = vmatpush.bf16.msra.mxu0 %v1678
        %2588 = vmatmul.bf16.gmra.mxu0 %v844
        %v2589 = vpop.f32.mrf.mxu0
        %v2590 = vadd.f32 %v734, %v2589
        %v2591 = vpop.f32.mrf.mxu0
        %v2592 = vadd.f32 %v734, %v2591
        %2593 = vmatmul.bf16.gmra.mxu0 %v848
        %v2594 = vpop.f32.mrf.mxu0
        %v2595 = vadd.f32 %v734, %v2594
        %v2596 = vpop.f32.mrf.mxu0
        %v2597 = vadd.f32 %v734, %v2596
        %2598 = vmatmul.bf16.gmra.mxu0 %v852
        %v2599 = vpop.f32.mrf.mxu0
        %v2600 = vadd.f32 %v734, %v2599
        %v2601 = vpop.f32.mrf.mxu0
        %v2602 = vadd.f32 %v734, %v2601
        %2603 = vmatmul.bf16.gmra.mxu0 %v856
        %v2604 = vpop.f32.mrf.mxu0
        %v2605 = vadd.f32 %v734, %v2604
        %v2606 = vpop.f32.mrf.mxu0
        %v2607 = vadd.f32 %v734, %v2606
        %2608 = vmatmul.bf16.gmra.mxu0 %v860
        %v2609 = vpop.f32.mrf.mxu0
        %v2610 = vadd.f32 %v734, %v2609
        %v2611 = vpop.f32.mrf.mxu0
        %v2612 = vadd.f32 %v734, %v2611
        %2613 = vmatmul.bf16.gmra.mxu0 %v864
        %v2614 = vpop.f32.mrf.mxu0
        %v2615 = vadd.f32 %v734, %v2614
        %v2616 = vpop.f32.mrf.mxu0
        %v2617 = vadd.f32 %v734, %v2616
        %2618 = vmatmul.bf16.gmra.mxu0 %v868
        %v2619 = vpop.f32.mrf.mxu0
        %v2620 = vadd.f32 %v734, %v2619
        %v2621 = vpop.f32.mrf.mxu0
        %v2622 = vadd.f32 %v734, %v2621
        %2623 = vmatmul.bf16.gmra.mxu0 %v872
        %v2624 = vpop.f32.mrf.mxu0
        %v2625 = vadd.f32 %v734, %v2624
        %v2626 = vpop.f32.mrf.mxu0
        %v2627 = vadd.f32 %v734, %v2626
        %2628 = vdwg.mxu0
        %2629 = vmatpush.bf16.msra.mxu0 %v1798
        %2630 = vmatpush.bf16.msra.mxu0 %v1790
        %2631 = vmatpush.bf16.msra.mxu0 %v1782
        %2632 = vmatpush.bf16.msra.mxu0 %v1774
        %2633 = vmatpush.bf16.msra.mxu0 %v1766
        %2634 = vmatpush.bf16.msra.mxu0 %v1758
        %2635 = vmatpush.bf16.msra.mxu0 %v1750
        %2636 = vmatpush.bf16.msra.mxu0 %v1742
        %2637 = vmatmul.bf16.gmra.mxu0 %v845
        %v2638 = vpop.f32.mrf.mxu0
        %v2639 = vadd.f32 %v2590, %v2638
        %v2640 = vpop.f32.mrf.mxu0
        %v2641 = vadd.f32 %v2592, %v2640
        %2642 = vmatmul.bf16.gmra.mxu0 %v849
        %v2643 = vpop.f32.mrf.mxu0
        %v2644 = vadd.f32 %v2595, %v2643
        %v2645 = vpop.f32.mrf.mxu0
        %v2646 = vadd.f32 %v2597, %v2645
        %2647 = vmatmul.bf16.gmra.mxu0 %v853
        %v2648 = vpop.f32.mrf.mxu0
        %v2649 = vadd.f32 %v2600, %v2648
        %v2650 = vpop.f32.mrf.mxu0
        %v2651 = vadd.f32 %v2602, %v2650
        %2652 = vmatmul.bf16.gmra.mxu0 %v857
        %v2653 = vpop.f32.mrf.mxu0
        %v2654 = vadd.f32 %v2605, %v2653
        %v2655 = vpop.f32.mrf.mxu0
        %v2656 = vadd.f32 %v2607, %v2655
        %2657 = vmatmul.bf16.gmra.mxu0 %v861
        %v2658 = vpop.f32.mrf.mxu0
        %v2659 = vadd.f32 %v2610, %v2658
        %v2660 = vpop.f32.mrf.mxu0
        %v2661 = vadd.f32 %v2612, %v2660
        %2662 = vmatmul.bf16.gmra.mxu0 %v865
        %v2663 = vpop.f32.mrf.mxu0
        %v2664 = vadd.f32 %v2615, %v2663
        %v2665 = vpop.f32.mrf.mxu0
        %v2666 = vadd.f32 %v2617, %v2665
        %2667 = vmatmul.bf16.gmra.mxu0 %v869
        %v2668 = vpop.f32.mrf.mxu0
        %v2669 = vadd.f32 %v2620, %v2668
        %v2670 = vpop.f32.mrf.mxu0
        %v2671 = vadd.f32 %v2622, %v2670
        %2672 = vmatmul.bf16.gmra.mxu0 %v873
        %v2673 = vpop.f32.mrf.mxu0
        %v2674 = vadd.f32 %v2625, %v2673
        %v2675 = vpop.f32.mrf.mxu0
        %v2676 = vadd.f32 %v2627, %v2675
        %2677 = vdwg.mxu0
        %2678 = vmatpush.bf16.msra.mxu0 %v1862
        %2679 = vmatpush.bf16.msra.mxu0 %v1854
        %2680 = vmatpush.bf16.msra.mxu0 %v1846
        %2681 = vmatpush.bf16.msra.mxu0 %v1838
        %2682 = vmatpush.bf16.msra.mxu0 %v1830
        %2683 = vmatpush.bf16.msra.mxu0 %v1822
        %2684 = vmatpush.bf16.msra.mxu0 %v1814
        %2685 = vmatpush.bf16.msra.mxu0 %v1806
        %2686 = vmatmul.bf16.gmra.mxu0 %v846
        %v2687 = vpop.f32.mrf.mxu0
        %v2688 = vadd.f32 %v2639, %v2687
        %v2689 = vpop.f32.mrf.mxu0
        %v2690 = vadd.f32 %v2641, %v2689
        %2691 = vmatmul.bf16.gmra.mxu0 %v850
        %v2692 = vpop.f32.mrf.mxu0
        %v2693 = vadd.f32 %v2644, %v2692
        %v2694 = vpop.f32.mrf.mxu0
        %v2695 = vadd.f32 %v2646, %v2694
        %2696 = vmatmul.bf16.gmra.mxu0 %v854
        %v2697 = vpop.f32.mrf.mxu0
        %v2698 = vadd.f32 %v2649, %v2697
        %v2699 = vpop.f32.mrf.mxu0
        %v2700 = vadd.f32 %v2651, %v2699
        %2701 = vmatmul.bf16.gmra.mxu0 %v858
        %v2702 = vpop.f32.mrf.mxu0
        %v2703 = vadd.f32 %v2654, %v2702
        %v2704 = vpop.f32.mrf.mxu0
        %v2705 = vadd.f32 %v2656, %v2704
        %2706 = vmatmul.bf16.gmra.mxu0 %v862
        %v2707 = vpop.f32.mrf.mxu0
        %v2708 = vadd.f32 %v2659, %v2707
        %v2709 = vpop.f32.mrf.mxu0
        %v2710 = vadd.f32 %v2661, %v2709
        %2711 = vmatmul.bf16.gmra.mxu0 %v866
        %v2712 = vpop.f32.mrf.mxu0
        %v2713 = vadd.f32 %v2664, %v2712
        %v2714 = vpop.f32.mrf.mxu0
        %v2715 = vadd.f32 %v2666, %v2714
        %2716 = vmatmul.bf16.gmra.mxu0 %v870
        %v2717 = vpop.f32.mrf.mxu0
        %v2718 = vadd.f32 %v2669, %v2717
        %v2719 = vpop.f32.mrf.mxu0
        %v2720 = vadd.f32 %v2671, %v2719
        %2721 = vmatmul.bf16.gmra.mxu0 %v874
        %v2722 = vpop.f32.mrf.mxu0
        %v2723 = vadd.f32 %v2674, %v2722
        %v2724 = vpop.f32.mrf.mxu0
        %v2725 = vadd.f32 %v2676, %v2724
        %2726 = vdwg.mxu0
        %2727 = vmatpush.bf16.msra.mxu0 %v1926
        %2728 = vmatpush.bf16.msra.mxu0 %v1918
        %2729 = vmatpush.bf16.msra.mxu0 %v1910
        %2730 = vmatpush.bf16.msra.mxu0 %v1902
        %2731 = vmatpush.bf16.msra.mxu0 %v1894
        %2732 = vmatpush.bf16.msra.mxu0 %v1886
        %2733 = vmatpush.bf16.msra.mxu0 %v1878
        %2734 = vmatpush.bf16.msra.mxu0 %v1870
        %2735 = vmatmul.bf16.gmra.mxu0 %v847
        %v2736 = vpop.f32.mrf.mxu0
        %v2737 = vadd.f32 %v2688, %v2736
        %v2738 = vpop.f32.mrf.mxu0
        %v2739 = vadd.f32 %v2690, %v2738
        %2740 = vmatmul.bf16.gmra.mxu0 %v851
        %v2741 = vpop.f32.mrf.mxu0
        %v2742 = vadd.f32 %v2693, %v2741
        %v2743 = vpop.f32.mrf.mxu0
        %v2744 = vadd.f32 %v2695, %v2743
        %2745 = vmatmul.bf16.gmra.mxu0 %v855
        %v2746 = vpop.f32.mrf.mxu0
        %v2747 = vadd.f32 %v2698, %v2746
        %v2748 = vpop.f32.mrf.mxu0
        %v2749 = vadd.f32 %v2700, %v2748
        %2750 = vmatmul.bf16.gmra.mxu0 %v859
        %v2751 = vpop.f32.mrf.mxu0
        %v2752 = vadd.f32 %v2703, %v2751
        %v2753 = vpop.f32.mrf.mxu0
        %v2754 = vadd.f32 %v2705, %v2753
        %2755 = vmatmul.bf16.gmra.mxu0 %v863
        %v2756 = vpop.f32.mrf.mxu0
        %v2757 = vadd.f32 %v2708, %v2756
        %v2758 = vpop.f32.mrf.mxu0
        %v2759 = vadd.f32 %v2710, %v2758
        %2760 = vmatmul.bf16.gmra.mxu0 %v867
        %v2761 = vpop.f32.mrf.mxu0
        %v2762 = vadd.f32 %v2713, %v2761
        %v2763 = vpop.f32.mrf.mxu0
        %v2764 = vadd.f32 %v2715, %v2763
        %2765 = vmatmul.bf16.gmra.mxu0 %v871
        %v2766 = vpop.f32.mrf.mxu0
        %v2767 = vadd.f32 %v2718, %v2766
        %v2768 = vpop.f32.mrf.mxu0
        %v2769 = vadd.f32 %v2720, %v2768
        %2770 = vmatmul.bf16.gmra.mxu0 %v875
        %v2771 = vpop.f32.mrf.mxu0
        %v2772 = vadd.f32 %v2723, %v2771
        %v2773 = vpop.f32.mrf.mxu0
        %v2774 = vadd.f32 %v2725, %v2773
        %2775 = vdwg.mxu0
        %2776 = vmatpush.bf16.msra.mxu0 %v1735
        %2777 = vmatpush.bf16.msra.mxu0 %v1727
        %2778 = vmatpush.bf16.msra.mxu0 %v1719
        %2779 = vmatpush.bf16.msra.mxu0 %v1711
        %2780 = vmatpush.bf16.msra.mxu0 %v1703
        %2781 = vmatpush.bf16.msra.mxu0 %v1695
        %2782 = vmatpush.bf16.msra.mxu0 %v1687
        %2783 = vmatpush.bf16.msra.mxu0 %v1679
        %2784 = vmatmul.bf16.gmra.mxu0 %v844
        %v2785 = vpop.f32.mrf.mxu0
        %v2786 = vadd.f32 %v735, %v2785
        %v2787 = vpop.f32.mrf.mxu0
        %v2788 = vadd.f32 %v735, %v2787
        %2789 = vmatmul.bf16.gmra.mxu0 %v848
        %v2790 = vpop.f32.mrf.mxu0
        %v2791 = vadd.f32 %v735, %v2790
        %v2792 = vpop.f32.mrf.mxu0
        %v2793 = vadd.f32 %v735, %v2792
        %2794 = vmatmul.bf16.gmra.mxu0 %v852
        %v2795 = vpop.f32.mrf.mxu0
        %v2796 = vadd.f32 %v735, %v2795
        %v2797 = vpop.f32.mrf.mxu0
        %v2798 = vadd.f32 %v735, %v2797
        %2799 = vmatmul.bf16.gmra.mxu0 %v856
        %v2800 = vpop.f32.mrf.mxu0
        %v2801 = vadd.f32 %v735, %v2800
        %v2802 = vpop.f32.mrf.mxu0
        %v2803 = vadd.f32 %v735, %v2802
        %2804 = vmatmul.bf16.gmra.mxu0 %v860
        %v2805 = vpop.f32.mrf.mxu0
        %v2806 = vadd.f32 %v735, %v2805
        %v2807 = vpop.f32.mrf.mxu0
        %v2808 = vadd.f32 %v735, %v2807
        %2809 = vmatmul.bf16.gmra.mxu0 %v864
        %v2810 = vpop.f32.mrf.mxu0
        %v2811 = vadd.f32 %v735, %v2810
        %v2812 = vpop.f32.mrf.mxu0
        %v2813 = vadd.f32 %v735, %v2812
        %2814 = vmatmul.bf16.gmra.mxu0 %v868
        %v2815 = vpop.f32.mrf.mxu0
        %v2816 = vadd.f32 %v735, %v2815
        %v2817 = vpop.f32.mrf.mxu0
        %v2818 = vadd.f32 %v735, %v2817
        %2819 = vmatmul.bf16.gmra.mxu0 %v872
        %v2820 = vpop.f32.mrf.mxu0
        %v2821 = vadd.f32 %v735, %v2820
        %v2822 = vpop.f32.mrf.mxu0
        %v2823 = vadd.f32 %v735, %v2822
        %2824 = vdwg.mxu0
        %2825 = vmatpush.bf16.msra.mxu0 %v1799
        %2826 = vmatpush.bf16.msra.mxu0 %v1791
        %2827 = vmatpush.bf16.msra.mxu0 %v1783
        %2828 = vmatpush.bf16.msra.mxu0 %v1775
        %2829 = vmatpush.bf16.msra.mxu0 %v1767
        %2830 = vmatpush.bf16.msra.mxu0 %v1759
        %2831 = vmatpush.bf16.msra.mxu0 %v1751
        %2832 = vmatpush.bf16.msra.mxu0 %v1743
        %2833 = vmatmul.bf16.gmra.mxu0 %v845
        %v2834 = vpop.f32.mrf.mxu0
        %v2835 = vadd.f32 %v2786, %v2834
        %v2836 = vpop.f32.mrf.mxu0
        %v2837 = vadd.f32 %v2788, %v2836
        %2838 = vmatmul.bf16.gmra.mxu0 %v849
        %v2839 = vpop.f32.mrf.mxu0
        %v2840 = vadd.f32 %v2791, %v2839
        %v2841 = vpop.f32.mrf.mxu0
        %v2842 = vadd.f32 %v2793, %v2841
        %2843 = vmatmul.bf16.gmra.mxu0 %v853
        %v2844 = vpop.f32.mrf.mxu0
        %v2845 = vadd.f32 %v2796, %v2844
        %v2846 = vpop.f32.mrf.mxu0
        %v2847 = vadd.f32 %v2798, %v2846
        %2848 = vmatmul.bf16.gmra.mxu0 %v857
        %v2849 = vpop.f32.mrf.mxu0
        %v2850 = vadd.f32 %v2801, %v2849
        %v2851 = vpop.f32.mrf.mxu0
        %v2852 = vadd.f32 %v2803, %v2851
        %2853 = vmatmul.bf16.gmra.mxu0 %v861
        %v2854 = vpop.f32.mrf.mxu0
        %v2855 = vadd.f32 %v2806, %v2854
        %v2856 = vpop.f32.mrf.mxu0
        %v2857 = vadd.f32 %v2808, %v2856
        %2858 = vmatmul.bf16.gmra.mxu0 %v865
        %v2859 = vpop.f32.mrf.mxu0
        %v2860 = vadd.f32 %v2811, %v2859
        %v2861 = vpop.f32.mrf.mxu0
        %v2862 = vadd.f32 %v2813, %v2861
        %2863 = vmatmul.bf16.gmra.mxu0 %v869
        %v2864 = vpop.f32.mrf.mxu0
        %v2865 = vadd.f32 %v2816, %v2864
        %v2866 = vpop.f32.mrf.mxu0
        %v2867 = vadd.f32 %v2818, %v2866
        %2868 = vmatmul.bf16.gmra.mxu0 %v873
        %v2869 = vpop.f32.mrf.mxu0
        %v2870 = vadd.f32 %v2821, %v2869
        %v2871 = vpop.f32.mrf.mxu0
        %v2872 = vadd.f32 %v2823, %v2871
        %2873 = vdwg.mxu0
        %2874 = vmatpush.bf16.msra.mxu0 %v1863
        %2875 = vmatpush.bf16.msra.mxu0 %v1855
        %2876 = vmatpush.bf16.msra.mxu0 %v1847
        %2877 = vmatpush.bf16.msra.mxu0 %v1839
        %2878 = vmatpush.bf16.msra.mxu0 %v1831
        %2879 = vmatpush.bf16.msra.mxu0 %v1823
        %2880 = vmatpush.bf16.msra.mxu0 %v1815
        %2881 = vmatpush.bf16.msra.mxu0 %v1807
        %2882 = vmatmul.bf16.gmra.mxu0 %v846
        %v2883 = vpop.f32.mrf.mxu0
        %v2884 = vadd.f32 %v2835, %v2883
        %v2885 = vpop.f32.mrf.mxu0
        %v2886 = vadd.f32 %v2837, %v2885
        %2887 = vmatmul.bf16.gmra.mxu0 %v850
        %v2888 = vpop.f32.mrf.mxu0
        %v2889 = vadd.f32 %v2840, %v2888
        %v2890 = vpop.f32.mrf.mxu0
        %v2891 = vadd.f32 %v2842, %v2890
        %2892 = vmatmul.bf16.gmra.mxu0 %v854
        %v2893 = vpop.f32.mrf.mxu0
        %v2894 = vadd.f32 %v2845, %v2893
        %v2895 = vpop.f32.mrf.mxu0
        %v2896 = vadd.f32 %v2847, %v2895
        %2897 = vmatmul.bf16.gmra.mxu0 %v858
        %v2898 = vpop.f32.mrf.mxu0
        %v2899 = vadd.f32 %v2850, %v2898
        %v2900 = vpop.f32.mrf.mxu0
        %v2901 = vadd.f32 %v2852, %v2900
        %2902 = vmatmul.bf16.gmra.mxu0 %v862
        %v2903 = vpop.f32.mrf.mxu0
        %v2904 = vadd.f32 %v2855, %v2903
        %v2905 = vpop.f32.mrf.mxu0
        %v2906 = vadd.f32 %v2857, %v2905
        %2907 = vmatmul.bf16.gmra.mxu0 %v866
        %v2908 = vpop.f32.mrf.mxu0
        %v2909 = vadd.f32 %v2860, %v2908
        %v2910 = vpop.f32.mrf.mxu0
        %v2911 = vadd.f32 %v2862, %v2910
        %2912 = vmatmul.bf16.gmra.mxu0 %v870
        %v2913 = vpop.f32.mrf.mxu0
        %v2914 = vadd.f32 %v2865, %v2913
        %v2915 = vpop.f32.mrf.mxu0
        %v2916 = vadd.f32 %v2867, %v2915
        %2917 = vmatmul.bf16.gmra.mxu0 %v874
        %v2918 = vpop.f32.mrf.mxu0
        %v2919 = vadd.f32 %v2870, %v2918
        %v2920 = vpop.f32.mrf.mxu0
        %v2921 = vadd.f32 %v2872, %v2920
        %2922 = vdwg.mxu0
        %2923 = vmatpush.bf16.msra.mxu0 %v1927
        %2924 = vmatpush.bf16.msra.mxu0 %v1919
        %2925 = vmatpush.bf16.msra.mxu0 %v1911
        %2926 = vmatpush.bf16.msra.mxu0 %v1903
        %2927 = vmatpush.bf16.msra.mxu0 %v1895
        %2928 = vmatpush.bf16.msra.mxu0 %v1887
        %2929 = vmatpush.bf16.msra.mxu0 %v1879
        %2930 = vmatpush.bf16.msra.mxu0 %v1871
        %2931 = vmatmul.bf16.gmra.mxu0 %v847
        %v2932 = vpop.f32.mrf.mxu0
        %v2933 = vadd.f32 %v2884, %v2932
        %v2934 = vpop.f32.mrf.mxu0
        %v2935 = vadd.f32 %v2886, %v2934
        %2936 = vmatmul.bf16.gmra.mxu0 %v851
        %v2937 = vpop.f32.mrf.mxu0
        %v2938 = vadd.f32 %v2889, %v2937
        %v2939 = vpop.f32.mrf.mxu0
        %v2940 = vadd.f32 %v2891, %v2939
        %2941 = vmatmul.bf16.gmra.mxu0 %v855
        %v2942 = vpop.f32.mrf.mxu0
        %v2943 = vadd.f32 %v2894, %v2942
        %v2944 = vpop.f32.mrf.mxu0
        %v2945 = vadd.f32 %v2896, %v2944
        %2946 = vmatmul.bf16.gmra.mxu0 %v859
        %v2947 = vpop.f32.mrf.mxu0
        %v2948 = vadd.f32 %v2899, %v2947
        %v2949 = vpop.f32.mrf.mxu0
        %v2950 = vadd.f32 %v2901, %v2949
        %2951 = vmatmul.bf16.gmra.mxu0 %v863
        %v2952 = vpop.f32.mrf.mxu0
        %v2953 = vadd.f32 %v2904, %v2952
        %v2954 = vpop.f32.mrf.mxu0
        %v2955 = vadd.f32 %v2906, %v2954
        %2956 = vmatmul.bf16.gmra.mxu0 %v867
        %v2957 = vpop.f32.mrf.mxu0
        %v2958 = vadd.f32 %v2909, %v2957
        %v2959 = vpop.f32.mrf.mxu0
        %v2960 = vadd.f32 %v2911, %v2959
        %2961 = vmatmul.bf16.gmra.mxu0 %v871
        %v2962 = vpop.f32.mrf.mxu0
        %v2963 = vadd.f32 %v2914, %v2962
        %v2964 = vpop.f32.mrf.mxu0
        %v2965 = vadd.f32 %v2916, %v2964
        %2966 = vmatmul.bf16.gmra.mxu0 %v875
        %v2967 = vpop.f32.mrf.mxu0
        %v2968 = vadd.f32 %v2919, %v2967
        %v2969 = vpop.f32.mrf.mxu0
        %v2970 = vadd.f32 %v2921, %v2969
        %2971 = vdwg.mxu0
        %2972 = vmatpush.bf16.msra.mxu0 %v1736
        %2973 = vmatpush.bf16.msra.mxu0 %v1728
        %2974 = vmatpush.bf16.msra.mxu0 %v1720
        %2975 = vmatpush.bf16.msra.mxu0 %v1712
        %2976 = vmatpush.bf16.msra.mxu0 %v1704
        %2977 = vmatpush.bf16.msra.mxu0 %v1696
        %2978 = vmatpush.bf16.msra.mxu0 %v1688
        %2979 = vmatpush.bf16.msra.mxu0 %v1680
        %2980 = vmatmul.bf16.gmra.mxu0 %v844
        %v2981 = vpop.f32.mrf.mxu0
        %v2982 = vadd.f32 %v736, %v2981
        %v2983 = vpop.f32.mrf.mxu0
        %v2984 = vadd.f32 %v736, %v2983
        %2985 = vmatmul.bf16.gmra.mxu0 %v848
        %v2986 = vpop.f32.mrf.mxu0
        %v2987 = vadd.f32 %v736, %v2986
        %v2988 = vpop.f32.mrf.mxu0
        %v2989 = vadd.f32 %v736, %v2988
        %2990 = vmatmul.bf16.gmra.mxu0 %v852
        %v2991 = vpop.f32.mrf.mxu0
        %v2992 = vadd.f32 %v736, %v2991
        %v2993 = vpop.f32.mrf.mxu0
        %v2994 = vadd.f32 %v736, %v2993
        %2995 = vmatmul.bf16.gmra.mxu0 %v856
        %v2996 = vpop.f32.mrf.mxu0
        %v2997 = vadd.f32 %v736, %v2996
        %v2998 = vpop.f32.mrf.mxu0
        %v2999 = vadd.f32 %v736, %v2998
        %3000 = vmatmul.bf16.gmra.mxu0 %v860
        %v3001 = vpop.f32.mrf.mxu0
        %v3002 = vadd.f32 %v736, %v3001
        %v3003 = vpop.f32.mrf.mxu0
        %v3004 = vadd.f32 %v736, %v3003
        %3005 = vmatmul.bf16.gmra.mxu0 %v864
        %v3006 = vpop.f32.mrf.mxu0
        %v3007 = vadd.f32 %v736, %v3006
        %v3008 = vpop.f32.mrf.mxu0
        %v3009 = vadd.f32 %v736, %v3008
        %3010 = vmatmul.bf16.gmra.mxu0 %v868
        %v3011 = vpop.f32.mrf.mxu0
        %v3012 = vadd.f32 %v736, %v3011
        %v3013 = vpop.f32.mrf.mxu0
        %v3014 = vadd.f32 %v736, %v3013
        %3015 = vmatmul.bf16.gmra.mxu0 %v872
        %v3016 = vpop.f32.mrf.mxu0
        %v3017 = vadd.f32 %v736, %v3016
        %v3018 = vpop.f32.mrf.mxu0
        %v3019 = vadd.f32 %v736, %v3018
        %3020 = vdwg.mxu0
        %3021 = vmatpush.bf16.msra.mxu0 %v1800
        %3022 = vmatpush.bf16.msra.mxu0 %v1792
        %3023 = vmatpush.bf16.msra.mxu0 %v1784
        %3024 = vmatpush.bf16.msra.mxu0 %v1776
        %3025 = vmatpush.bf16.msra.mxu0 %v1768
        %3026 = vmatpush.bf16.msra.mxu0 %v1760
        %3027 = vmatpush.bf16.msra.mxu0 %v1752
        %3028 = vmatpush.bf16.msra.mxu0 %v1744
        %3029 = vmatmul.bf16.gmra.mxu0 %v845
        %v3030 = vpop.f32.mrf.mxu0
        %v3031 = vadd.f32 %v2982, %v3030
        %v3032 = vpop.f32.mrf.mxu0
        %v3033 = vadd.f32 %v2984, %v3032
        %3034 = vmatmul.bf16.gmra.mxu0 %v849
        %v3035 = vpop.f32.mrf.mxu0
        %v3036 = vadd.f32 %v2987, %v3035
        %v3037 = vpop.f32.mrf.mxu0
        %v3038 = vadd.f32 %v2989, %v3037
        %3039 = vmatmul.bf16.gmra.mxu0 %v853
        %v3040 = vpop.f32.mrf.mxu0
        %v3041 = vadd.f32 %v2992, %v3040
        %v3042 = vpop.f32.mrf.mxu0
        %v3043 = vadd.f32 %v2994, %v3042
        %3044 = vmatmul.bf16.gmra.mxu0 %v857
        %v3045 = vpop.f32.mrf.mxu0
        %v3046 = vadd.f32 %v2997, %v3045
        %v3047 = vpop.f32.mrf.mxu0
        %v3048 = vadd.f32 %v2999, %v3047
        %3049 = vmatmul.bf16.gmra.mxu0 %v861
        %v3050 = vpop.f32.mrf.mxu0
        %v3051 = vadd.f32 %v3002, %v3050
        %v3052 = vpop.f32.mrf.mxu0
        %v3053 = vadd.f32 %v3004, %v3052
        %3054 = vmatmul.bf16.gmra.mxu0 %v865
        %v3055 = vpop.f32.mrf.mxu0
        %v3056 = vadd.f32 %v3007, %v3055
        %v3057 = vpop.f32.mrf.mxu0
        %v3058 = vadd.f32 %v3009, %v3057
        %3059 = vmatmul.bf16.gmra.mxu0 %v869
        %v3060 = vpop.f32.mrf.mxu0
        %v3061 = vadd.f32 %v3012, %v3060
        %v3062 = vpop.f32.mrf.mxu0
        %v3063 = vadd.f32 %v3014, %v3062
        %3064 = vmatmul.bf16.gmra.mxu0 %v873
        %v3065 = vpop.f32.mrf.mxu0
        %v3066 = vadd.f32 %v3017, %v3065
        %v3067 = vpop.f32.mrf.mxu0
        %v3068 = vadd.f32 %v3019, %v3067
        %3069 = vdwg.mxu0
        %3070 = vmatpush.bf16.msra.mxu0 %v1864
        %3071 = vmatpush.bf16.msra.mxu0 %v1856
        %3072 = vmatpush.bf16.msra.mxu0 %v1848
        %3073 = vmatpush.bf16.msra.mxu0 %v1840
        %3074 = vmatpush.bf16.msra.mxu0 %v1832
        %3075 = vmatpush.bf16.msra.mxu0 %v1824
        %3076 = vmatpush.bf16.msra.mxu0 %v1816
        %3077 = vmatpush.bf16.msra.mxu0 %v1808
        %3078 = vmatmul.bf16.gmra.mxu0 %v846
        %v3079 = vpop.f32.mrf.mxu0
        %v3080 = vadd.f32 %v3031, %v3079
        %v3081 = vpop.f32.mrf.mxu0
        %v3082 = vadd.f32 %v3033, %v3081
        %3083 = vmatmul.bf16.gmra.mxu0 %v850
        %v3084 = vpop.f32.mrf.mxu0
        %v3085 = vadd.f32 %v3036, %v3084
        %v3086 = vpop.f32.mrf.mxu0
        %v3087 = vadd.f32 %v3038, %v3086
        %3088 = vmatmul.bf16.gmra.mxu0 %v854
        %v3089 = vpop.f32.mrf.mxu0
        %v3090 = vadd.f32 %v3041, %v3089
        %v3091 = vpop.f32.mrf.mxu0
        %v3092 = vadd.f32 %v3043, %v3091
        %3093 = vmatmul.bf16.gmra.mxu0 %v858
        %v3094 = vpop.f32.mrf.mxu0
        %v3095 = vadd.f32 %v3046, %v3094
        %v3096 = vpop.f32.mrf.mxu0
        %v3097 = vadd.f32 %v3048, %v3096
        %3098 = vmatmul.bf16.gmra.mxu0 %v862
        %v3099 = vpop.f32.mrf.mxu0
        %v3100 = vadd.f32 %v3051, %v3099
        %v3101 = vpop.f32.mrf.mxu0
        %v3102 = vadd.f32 %v3053, %v3101
        %3103 = vmatmul.bf16.gmra.mxu0 %v866
        %v3104 = vpop.f32.mrf.mxu0
        %v3105 = vadd.f32 %v3056, %v3104
        %v3106 = vpop.f32.mrf.mxu0
        %v3107 = vadd.f32 %v3058, %v3106
        %3108 = vmatmul.bf16.gmra.mxu0 %v870
        %v3109 = vpop.f32.mrf.mxu0
        %v3110 = vadd.f32 %v3061, %v3109
        %v3111 = vpop.f32.mrf.mxu0
        %v3112 = vadd.f32 %v3063, %v3111
        %3113 = vmatmul.bf16.gmra.mxu0 %v874
        %v3114 = vpop.f32.mrf.mxu0
        %v3115 = vadd.f32 %v3066, %v3114
        %v3116 = vpop.f32.mrf.mxu0
        %v3117 = vadd.f32 %v3068, %v3116
        %3118 = vdwg.mxu0
        %3119 = vmatpush.bf16.msra.mxu0 %v1928
        %3120 = vmatpush.bf16.msra.mxu0 %v1920
        %3121 = vmatpush.bf16.msra.mxu0 %v1912
        %3122 = vmatpush.bf16.msra.mxu0 %v1904
        %3123 = vmatpush.bf16.msra.mxu0 %v1896
        %3124 = vmatpush.bf16.msra.mxu0 %v1888
        %3125 = vmatpush.bf16.msra.mxu0 %v1880
        %3126 = vmatpush.bf16.msra.mxu0 %v1872
        %3127 = vmatmul.bf16.gmra.mxu0 %v847
        %v3128 = vpop.f32.mrf.mxu0
        %v3129 = vadd.f32 %v3080, %v3128
        %v3130 = vpop.f32.mrf.mxu0
        %v3131 = vadd.f32 %v3082, %v3130
        %3132 = vmatmul.bf16.gmra.mxu0 %v851
        %v3133 = vpop.f32.mrf.mxu0
        %v3134 = vadd.f32 %v3085, %v3133
        %v3135 = vpop.f32.mrf.mxu0
        %v3136 = vadd.f32 %v3087, %v3135
        %3137 = vmatmul.bf16.gmra.mxu0 %v855
        %v3138 = vpop.f32.mrf.mxu0
        %v3139 = vadd.f32 %v3090, %v3138
        %v3140 = vpop.f32.mrf.mxu0
        %v3141 = vadd.f32 %v3092, %v3140
        %3142 = vmatmul.bf16.gmra.mxu0 %v859
        %v3143 = vpop.f32.mrf.mxu0
        %v3144 = vadd.f32 %v3095, %v3143
        %v3145 = vpop.f32.mrf.mxu0
        %v3146 = vadd.f32 %v3097, %v3145
        %3147 = vmatmul.bf16.gmra.mxu0 %v863
        %v3148 = vpop.f32.mrf.mxu0
        %v3149 = vadd.f32 %v3100, %v3148
        %v3150 = vpop.f32.mrf.mxu0
        %v3151 = vadd.f32 %v3102, %v3150
        %3152 = vmatmul.bf16.gmra.mxu0 %v867
        %v3153 = vpop.f32.mrf.mxu0
        %v3154 = vadd.f32 %v3105, %v3153
        %v3155 = vpop.f32.mrf.mxu0
        %v3156 = vadd.f32 %v3107, %v3155
        %3157 = vmatmul.bf16.gmra.mxu0 %v871
        %v3158 = vpop.f32.mrf.mxu0
        %v3159 = vadd.f32 %v3110, %v3158
        %v3160 = vpop.f32.mrf.mxu0
        %v3161 = vadd.f32 %v3112, %v3160
        %3162 = vmatmul.bf16.gmra.mxu0 %v875
        %v3163 = vpop.f32.mrf.mxu0
        %v3164 = vadd.f32 %v3115, %v3163
        %v3165 = vpop.f32.mrf.mxu0
        %v3166 = vadd.f32 %v3117, %v3165
        %3167 = vdwg.mxu0
        %3168 = vmatpush.bf16.msra.mxu0 %v1737
        %3169 = vmatpush.bf16.msra.mxu0 %v1729
        %3170 = vmatpush.bf16.msra.mxu0 %v1721
        %3171 = vmatpush.bf16.msra.mxu0 %v1713
        %3172 = vmatpush.bf16.msra.mxu0 %v1705
        %3173 = vmatpush.bf16.msra.mxu0 %v1697
        %3174 = vmatpush.bf16.msra.mxu0 %v1689
        %3175 = vmatpush.bf16.msra.mxu0 %v1681
        %3176 = vmatmul.bf16.gmra.mxu0 %v844
        %v3177 = vpop.f32.mrf.mxu0
        %v3178 = vadd.f32 %v737, %v3177
        %v3179 = vpop.f32.mrf.mxu0
        %v3180 = vadd.f32 %v737, %v3179
        %3181 = vmatmul.bf16.gmra.mxu0 %v848
        %v3182 = vpop.f32.mrf.mxu0
        %v3183 = vadd.f32 %v737, %v3182
        %v3184 = vpop.f32.mrf.mxu0
        %v3185 = vadd.f32 %v737, %v3184
        %3186 = vmatmul.bf16.gmra.mxu0 %v852
        %v3187 = vpop.f32.mrf.mxu0
        %v3188 = vadd.f32 %v737, %v3187
        %v3189 = vpop.f32.mrf.mxu0
        %v3190 = vadd.f32 %v737, %v3189
        %3191 = vmatmul.bf16.gmra.mxu0 %v856
        %v3192 = vpop.f32.mrf.mxu0
        %v3193 = vadd.f32 %v737, %v3192
        %v3194 = vpop.f32.mrf.mxu0
        %v3195 = vadd.f32 %v737, %v3194
        %3196 = vmatmul.bf16.gmra.mxu0 %v860
        %v3197 = vpop.f32.mrf.mxu0
        %v3198 = vadd.f32 %v737, %v3197
        %v3199 = vpop.f32.mrf.mxu0
        %v3200 = vadd.f32 %v737, %v3199
        %3201 = vmatmul.bf16.gmra.mxu0 %v864
        %v3202 = vpop.f32.mrf.mxu0
        %v3203 = vadd.f32 %v737, %v3202
        %v3204 = vpop.f32.mrf.mxu0
        %v3205 = vadd.f32 %v737, %v3204
        %3206 = vmatmul.bf16.gmra.mxu0 %v868
        %v3207 = vpop.f32.mrf.mxu0
        %v3208 = vadd.f32 %v737, %v3207
        %v3209 = vpop.f32.mrf.mxu0
        %v3210 = vadd.f32 %v737, %v3209
        %3211 = vmatmul.bf16.gmra.mxu0 %v872
        %v3212 = vpop.f32.mrf.mxu0
        %v3213 = vadd.f32 %v737, %v3212
        %v3214 = vpop.f32.mrf.mxu0
        %v3215 = vadd.f32 %v737, %v3214
        %3216 = vdwg.mxu0
        %3217 = vmatpush.bf16.msra.mxu0 %v1801
        %3218 = vmatpush.bf16.msra.mxu0 %v1793
        %3219 = vmatpush.bf16.msra.mxu0 %v1785
        %3220 = vmatpush.bf16.msra.mxu0 %v1777
        %3221 = vmatpush.bf16.msra.mxu0 %v1769
        %3222 = vmatpush.bf16.msra.mxu0 %v1761
        %3223 = vmatpush.bf16.msra.mxu0 %v1753
        %3224 = vmatpush.bf16.msra.mxu0 %v1745
        %3225 = vmatmul.bf16.gmra.mxu0 %v845
        %v3226 = vpop.f32.mrf.mxu0
        %v3227 = vadd.f32 %v3178, %v3226
        %v3228 = vpop.f32.mrf.mxu0
        %v3229 = vadd.f32 %v3180, %v3228
        %3230 = vmatmul.bf16.gmra.mxu0 %v849
        %v3231 = vpop.f32.mrf.mxu0
        %v3232 = vadd.f32 %v3183, %v3231
        %v3233 = vpop.f32.mrf.mxu0
        %v3234 = vadd.f32 %v3185, %v3233
        %3235 = vmatmul.bf16.gmra.mxu0 %v853
        %v3236 = vpop.f32.mrf.mxu0
        %v3237 = vadd.f32 %v3188, %v3236
        %v3238 = vpop.f32.mrf.mxu0
        %v3239 = vadd.f32 %v3190, %v3238
        %3240 = vmatmul.bf16.gmra.mxu0 %v857
        %v3241 = vpop.f32.mrf.mxu0
        %v3242 = vadd.f32 %v3193, %v3241
        %v3243 = vpop.f32.mrf.mxu0
        %v3244 = vadd.f32 %v3195, %v3243
        %3245 = vmatmul.bf16.gmra.mxu0 %v861
        %v3246 = vpop.f32.mrf.mxu0
        %v3247 = vadd.f32 %v3198, %v3246
        %v3248 = vpop.f32.mrf.mxu0
        %v3249 = vadd.f32 %v3200, %v3248
        %3250 = vmatmul.bf16.gmra.mxu0 %v865
        %v3251 = vpop.f32.mrf.mxu0
        %v3252 = vadd.f32 %v3203, %v3251
        %v3253 = vpop.f32.mrf.mxu0
        %v3254 = vadd.f32 %v3205, %v3253
        %3255 = vmatmul.bf16.gmra.mxu0 %v869
        %v3256 = vpop.f32.mrf.mxu0
        %v3257 = vadd.f32 %v3208, %v3256
        %v3258 = vpop.f32.mrf.mxu0
        %v3259 = vadd.f32 %v3210, %v3258
        %3260 = vmatmul.bf16.gmra.mxu0 %v873
        %v3261 = vpop.f32.mrf.mxu0
        %v3262 = vadd.f32 %v3213, %v3261
        %v3263 = vpop.f32.mrf.mxu0
        %v3264 = vadd.f32 %v3215, %v3263
        %3265 = vdwg.mxu0
        %3266 = vmatpush.bf16.msra.mxu0 %v1865
        %3267 = vmatpush.bf16.msra.mxu0 %v1857
        %3268 = vmatpush.bf16.msra.mxu0 %v1849
        %3269 = vmatpush.bf16.msra.mxu0 %v1841
        %3270 = vmatpush.bf16.msra.mxu0 %v1833
        %3271 = vmatpush.bf16.msra.mxu0 %v1825
        %3272 = vmatpush.bf16.msra.mxu0 %v1817
        %3273 = vmatpush.bf16.msra.mxu0 %v1809
        %3274 = vmatmul.bf16.gmra.mxu0 %v846
        %v3275 = vpop.f32.mrf.mxu0
        %v3276 = vadd.f32 %v3227, %v3275
        %v3277 = vpop.f32.mrf.mxu0
        %v3278 = vadd.f32 %v3229, %v3277
        %3279 = vmatmul.bf16.gmra.mxu0 %v850
        %v3280 = vpop.f32.mrf.mxu0
        %v3281 = vadd.f32 %v3232, %v3280
        %v3282 = vpop.f32.mrf.mxu0
        %v3283 = vadd.f32 %v3234, %v3282
        %3284 = vmatmul.bf16.gmra.mxu0 %v854
        %v3285 = vpop.f32.mrf.mxu0
        %v3286 = vadd.f32 %v3237, %v3285
        %v3287 = vpop.f32.mrf.mxu0
        %v3288 = vadd.f32 %v3239, %v3287
        %3289 = vmatmul.bf16.gmra.mxu0 %v858
        %v3290 = vpop.f32.mrf.mxu0
        %v3291 = vadd.f32 %v3242, %v3290
        %v3292 = vpop.f32.mrf.mxu0
        %v3293 = vadd.f32 %v3244, %v3292
        %3294 = vmatmul.bf16.gmra.mxu0 %v862
        %v3295 = vpop.f32.mrf.mxu0
        %v3296 = vadd.f32 %v3247, %v3295
        %v3297 = vpop.f32.mrf.mxu0
        %v3298 = vadd.f32 %v3249, %v3297
        %3299 = vmatmul.bf16.gmra.mxu0 %v866
        %v3300 = vpop.f32.mrf.mxu0
        %v3301 = vadd.f32 %v3252, %v3300
        %v3302 = vpop.f32.mrf.mxu0
        %v3303 = vadd.f32 %v3254, %v3302
        %3304 = vmatmul.bf16.gmra.mxu0 %v870
        %v3305 = vpop.f32.mrf.mxu0
        %v3306 = vadd.f32 %v3257, %v3305
        %v3307 = vpop.f32.mrf.mxu0
        %v3308 = vadd.f32 %v3259, %v3307
        %3309 = vmatmul.bf16.gmra.mxu0 %v874
        %v3310 = vpop.f32.mrf.mxu0
        %v3311 = vadd.f32 %v3262, %v3310
        %v3312 = vpop.f32.mrf.mxu0
        %v3313 = vadd.f32 %v3264, %v3312
        %3314 = vdwg.mxu0
        %3315 = vmatpush.bf16.msra.mxu0 %v1929
        %3316 = vmatpush.bf16.msra.mxu0 %v1921
        %3317 = vmatpush.bf16.msra.mxu0 %v1913
        %3318 = vmatpush.bf16.msra.mxu0 %v1905
        %3319 = vmatpush.bf16.msra.mxu0 %v1897
        %3320 = vmatpush.bf16.msra.mxu0 %v1889
        %3321 = vmatpush.bf16.msra.mxu0 %v1881
        %3322 = vmatpush.bf16.msra.mxu0 %v1873
        %3323 = vmatmul.bf16.gmra.mxu0 %v847
        %v3324 = vpop.f32.mrf.mxu0
        %v3325 = vadd.f32 %v3276, %v3324
        %v3326 = vpop.f32.mrf.mxu0
        %v3327 = vadd.f32 %v3278, %v3326
        %3328 = vmatmul.bf16.gmra.mxu0 %v851
        %v3329 = vpop.f32.mrf.mxu0
        %v3330 = vadd.f32 %v3281, %v3329
        %v3331 = vpop.f32.mrf.mxu0
        %v3332 = vadd.f32 %v3283, %v3331
        %3333 = vmatmul.bf16.gmra.mxu0 %v855
        %v3334 = vpop.f32.mrf.mxu0
        %v3335 = vadd.f32 %v3286, %v3334
        %v3336 = vpop.f32.mrf.mxu0
        %v3337 = vadd.f32 %v3288, %v3336
        %3338 = vmatmul.bf16.gmra.mxu0 %v859
        %v3339 = vpop.f32.mrf.mxu0
        %v3340 = vadd.f32 %v3291, %v3339
        %v3341 = vpop.f32.mrf.mxu0
        %v3342 = vadd.f32 %v3293, %v3341
        %3343 = vmatmul.bf16.gmra.mxu0 %v863
        %v3344 = vpop.f32.mrf.mxu0
        %v3345 = vadd.f32 %v3296, %v3344
        %v3346 = vpop.f32.mrf.mxu0
        %v3347 = vadd.f32 %v3298, %v3346
        %3348 = vmatmul.bf16.gmra.mxu0 %v867
        %v3349 = vpop.f32.mrf.mxu0
        %v3350 = vadd.f32 %v3301, %v3349
        %v3351 = vpop.f32.mrf.mxu0
        %v3352 = vadd.f32 %v3303, %v3351
        %3353 = vmatmul.bf16.gmra.mxu0 %v871
        %v3354 = vpop.f32.mrf.mxu0
        %v3355 = vadd.f32 %v3306, %v3354
        %v3356 = vpop.f32.mrf.mxu0
        %v3357 = vadd.f32 %v3308, %v3356
        %3358 = vmatmul.bf16.gmra.mxu0 %v875
        %v3359 = vpop.f32.mrf.mxu0
        %v3360 = vadd.f32 %v3311, %v3359
        %v3361 = vpop.f32.mrf.mxu0
        %v3362 = vadd.f32 %v3313, %v3361
        %3363 = vdwg.mxu0
        %3364 = vmatpush.bf16.msra.mxu0 %v1738
        %3365 = vmatpush.bf16.msra.mxu0 %v1730
        %3366 = vmatpush.bf16.msra.mxu0 %v1722
        %3367 = vmatpush.bf16.msra.mxu0 %v1714
        %3368 = vmatpush.bf16.msra.mxu0 %v1706
        %3369 = vmatpush.bf16.msra.mxu0 %v1698
        %3370 = vmatpush.bf16.msra.mxu0 %v1690
        %3371 = vmatpush.bf16.msra.mxu0 %v1682
        %3372 = vmatmul.bf16.gmra.mxu0 %v844
        %v3373 = vpop.f32.mrf.mxu0
        %v3374 = vadd.f32 %v738, %v3373
        %v3375 = vpop.f32.mrf.mxu0
        %v3376 = vadd.f32 %v738, %v3375
        %3377 = vmatmul.bf16.gmra.mxu0 %v848
        %v3378 = vpop.f32.mrf.mxu0
        %v3379 = vadd.f32 %v738, %v3378
        %v3380 = vpop.f32.mrf.mxu0
        %v3381 = vadd.f32 %v738, %v3380
        %3382 = vmatmul.bf16.gmra.mxu0 %v852
        %v3383 = vpop.f32.mrf.mxu0
        %v3384 = vadd.f32 %v738, %v3383
        %v3385 = vpop.f32.mrf.mxu0
        %v3386 = vadd.f32 %v738, %v3385
        %3387 = vmatmul.bf16.gmra.mxu0 %v856
        %v3388 = vpop.f32.mrf.mxu0
        %v3389 = vadd.f32 %v738, %v3388
        %v3390 = vpop.f32.mrf.mxu0
        %v3391 = vadd.f32 %v738, %v3390
        %3392 = vmatmul.bf16.gmra.mxu0 %v860
        %v3393 = vpop.f32.mrf.mxu0
        %v3394 = vadd.f32 %v738, %v3393
        %v3395 = vpop.f32.mrf.mxu0
        %v3396 = vadd.f32 %v738, %v3395
        %3397 = vmatmul.bf16.gmra.mxu0 %v864
        %v3398 = vpop.f32.mrf.mxu0
        %v3399 = vadd.f32 %v738, %v3398
        %v3400 = vpop.f32.mrf.mxu0
        %v3401 = vadd.f32 %v738, %v3400
        %3402 = vmatmul.bf16.gmra.mxu0 %v868
        %v3403 = vpop.f32.mrf.mxu0
        %v3404 = vadd.f32 %v738, %v3403
        %v3405 = vpop.f32.mrf.mxu0
        %v3406 = vadd.f32 %v738, %v3405
        %3407 = vmatmul.bf16.gmra.mxu0 %v872
        %v3408 = vpop.f32.mrf.mxu0
        %v3409 = vadd.f32 %v738, %v3408
        %v3410 = vpop.f32.mrf.mxu0
        %v3411 = vadd.f32 %v738, %v3410
        %3412 = vdwg.mxu0
        %3413 = vmatpush.bf16.msra.mxu0 %v1802
        %3414 = vmatpush.bf16.msra.mxu0 %v1794
        %3415 = vmatpush.bf16.msra.mxu0 %v1786
        %3416 = vmatpush.bf16.msra.mxu0 %v1778
        %3417 = vmatpush.bf16.msra.mxu0 %v1770
        %3418 = vmatpush.bf16.msra.mxu0 %v1762
        %3419 = vmatpush.bf16.msra.mxu0 %v1754
        %3420 = vmatpush.bf16.msra.mxu0 %v1746
        %3421 = vmatmul.bf16.gmra.mxu0 %v845
        %v3422 = vpop.f32.mrf.mxu0
        %v3423 = vadd.f32 %v3374, %v3422
        %v3424 = vpop.f32.mrf.mxu0
        %v3425 = vadd.f32 %v3376, %v3424
        %3426 = vmatmul.bf16.gmra.mxu0 %v849
        %v3427 = vpop.f32.mrf.mxu0
        %v3428 = vadd.f32 %v3379, %v3427
        %v3429 = vpop.f32.mrf.mxu0
        %v3430 = vadd.f32 %v3381, %v3429
        %3431 = vmatmul.bf16.gmra.mxu0 %v853
        %v3432 = vpop.f32.mrf.mxu0
        %v3433 = vadd.f32 %v3384, %v3432
        %v3434 = vpop.f32.mrf.mxu0
        %v3435 = vadd.f32 %v3386, %v3434
        %3436 = vmatmul.bf16.gmra.mxu0 %v857
        %v3437 = vpop.f32.mrf.mxu0
        %v3438 = vadd.f32 %v3389, %v3437
        %v3439 = vpop.f32.mrf.mxu0
        %v3440 = vadd.f32 %v3391, %v3439
        %3441 = vmatmul.bf16.gmra.mxu0 %v861
        %v3442 = vpop.f32.mrf.mxu0
        %v3443 = vadd.f32 %v3394, %v3442
        %v3444 = vpop.f32.mrf.mxu0
        %v3445 = vadd.f32 %v3396, %v3444
        %3446 = vmatmul.bf16.gmra.mxu0 %v865
        %v3447 = vpop.f32.mrf.mxu0
        %v3448 = vadd.f32 %v3399, %v3447
        %v3449 = vpop.f32.mrf.mxu0
        %v3450 = vadd.f32 %v3401, %v3449
        %3451 = vmatmul.bf16.gmra.mxu0 %v869
        %v3452 = vpop.f32.mrf.mxu0
        %v3453 = vadd.f32 %v3404, %v3452
        %v3454 = vpop.f32.mrf.mxu0
        %v3455 = vadd.f32 %v3406, %v3454
        %3456 = vmatmul.bf16.gmra.mxu0 %v873
        %v3457 = vpop.f32.mrf.mxu0
        %v3458 = vadd.f32 %v3409, %v3457
        %v3459 = vpop.f32.mrf.mxu0
        %v3460 = vadd.f32 %v3411, %v3459
        %3461 = vdwg.mxu0
        %3462 = vmatpush.bf16.msra.mxu0 %v1866
        %3463 = vmatpush.bf16.msra.mxu0 %v1858
        %3464 = vmatpush.bf16.msra.mxu0 %v1850
        %3465 = vmatpush.bf16.msra.mxu0 %v1842
        %3466 = vmatpush.bf16.msra.mxu0 %v1834
        %3467 = vmatpush.bf16.msra.mxu0 %v1826
        %3468 = vmatpush.bf16.msra.mxu0 %v1818
        %3469 = vmatpush.bf16.msra.mxu0 %v1810
        %3470 = vmatmul.bf16.gmra.mxu0 %v846
        %v3471 = vpop.f32.mrf.mxu0
        %v3472 = vadd.f32 %v3423, %v3471
        %v3473 = vpop.f32.mrf.mxu0
        %v3474 = vadd.f32 %v3425, %v3473
        %3475 = vmatmul.bf16.gmra.mxu0 %v850
        %v3476 = vpop.f32.mrf.mxu0
        %v3477 = vadd.f32 %v3428, %v3476
        %v3478 = vpop.f32.mrf.mxu0
        %v3479 = vadd.f32 %v3430, %v3478
        %3480 = vmatmul.bf16.gmra.mxu0 %v854
        %v3481 = vpop.f32.mrf.mxu0
        %v3482 = vadd.f32 %v3433, %v3481
        %v3483 = vpop.f32.mrf.mxu0
        %v3484 = vadd.f32 %v3435, %v3483
        %3485 = vmatmul.bf16.gmra.mxu0 %v858
        %v3486 = vpop.f32.mrf.mxu0
        %v3487 = vadd.f32 %v3438, %v3486
        %v3488 = vpop.f32.mrf.mxu0
        %v3489 = vadd.f32 %v3440, %v3488
        %3490 = vmatmul.bf16.gmra.mxu0 %v862
        %v3491 = vpop.f32.mrf.mxu0
        %v3492 = vadd.f32 %v3443, %v3491
        %v3493 = vpop.f32.mrf.mxu0
        %v3494 = vadd.f32 %v3445, %v3493
        %3495 = vmatmul.bf16.gmra.mxu0 %v866
        %v3496 = vpop.f32.mrf.mxu0
        %v3497 = vadd.f32 %v3448, %v3496
        %v3498 = vpop.f32.mrf.mxu0
        %v3499 = vadd.f32 %v3450, %v3498
        %3500 = vmatmul.bf16.gmra.mxu0 %v870
        %v3501 = vpop.f32.mrf.mxu0
        %v3502 = vadd.f32 %v3453, %v3501
        %v3503 = vpop.f32.mrf.mxu0
        %v3504 = vadd.f32 %v3455, %v3503
        %3505 = vmatmul.bf16.gmra.mxu0 %v874
        %v3506 = vpop.f32.mrf.mxu0
        %v3507 = vadd.f32 %v3458, %v3506
        %v3508 = vpop.f32.mrf.mxu0
        %v3509 = vadd.f32 %v3460, %v3508
        %3510 = vdwg.mxu0
        %3511 = vmatpush.bf16.msra.mxu0 %v1930
        %3512 = vmatpush.bf16.msra.mxu0 %v1922
        %3513 = vmatpush.bf16.msra.mxu0 %v1914
        %3514 = vmatpush.bf16.msra.mxu0 %v1906
        %3515 = vmatpush.bf16.msra.mxu0 %v1898
        %3516 = vmatpush.bf16.msra.mxu0 %v1890
        %3517 = vmatpush.bf16.msra.mxu0 %v1882
        %3518 = vmatpush.bf16.msra.mxu0 %v1874
        %3519 = vmatmul.bf16.gmra.mxu0 %v847
        %v3520 = vpop.f32.mrf.mxu0
        %v3521 = vadd.f32 %v3472, %v3520
        %v3522 = vpop.f32.mrf.mxu0
        %v3523 = vadd.f32 %v3474, %v3522
        %3524 = vmatmul.bf16.gmra.mxu0 %v851
        %v3525 = vpop.f32.mrf.mxu0
        %v3526 = vadd.f32 %v3477, %v3525
        %v3527 = vpop.f32.mrf.mxu0
        %v3528 = vadd.f32 %v3479, %v3527
        %3529 = vmatmul.bf16.gmra.mxu0 %v855
        %v3530 = vpop.f32.mrf.mxu0
        %v3531 = vadd.f32 %v3482, %v3530
        %v3532 = vpop.f32.mrf.mxu0
        %v3533 = vadd.f32 %v3484, %v3532
        %3534 = vmatmul.bf16.gmra.mxu0 %v859
        %v3535 = vpop.f32.mrf.mxu0
        %v3536 = vadd.f32 %v3487, %v3535
        %v3537 = vpop.f32.mrf.mxu0
        %v3538 = vadd.f32 %v3489, %v3537
        %3539 = vmatmul.bf16.gmra.mxu0 %v863
        %v3540 = vpop.f32.mrf.mxu0
        %v3541 = vadd.f32 %v3492, %v3540
        %v3542 = vpop.f32.mrf.mxu0
        %v3543 = vadd.f32 %v3494, %v3542
        %3544 = vmatmul.bf16.gmra.mxu0 %v867
        %v3545 = vpop.f32.mrf.mxu0
        %v3546 = vadd.f32 %v3497, %v3545
        %v3547 = vpop.f32.mrf.mxu0
        %v3548 = vadd.f32 %v3499, %v3547
        %3549 = vmatmul.bf16.gmra.mxu0 %v871
        %v3550 = vpop.f32.mrf.mxu0
        %v3551 = vadd.f32 %v3502, %v3550
        %v3552 = vpop.f32.mrf.mxu0
        %v3553 = vadd.f32 %v3504, %v3552
        %3554 = vmatmul.bf16.gmra.mxu0 %v875
        %v3555 = vpop.f32.mrf.mxu0
        %v3556 = vadd.f32 %v3507, %v3555
        %v3557 = vpop.f32.mrf.mxu0
        %v3558 = vadd.f32 %v3509, %v3557
        %3559 = vdwg.mxu0
        %3560 = vmatpush.bf16.msra.mxu0 %v1739
        %3561 = vmatpush.bf16.msra.mxu0 %v1731
        %3562 = vmatpush.bf16.msra.mxu0 %v1723
        %3563 = vmatpush.bf16.msra.mxu0 %v1715
        %3564 = vmatpush.bf16.msra.mxu0 %v1707
        %3565 = vmatpush.bf16.msra.mxu0 %v1699
        %3566 = vmatpush.bf16.msra.mxu0 %v1691
        %3567 = vmatpush.bf16.msra.mxu0 %v1683
        %3568 = vmatmul.bf16.gmra.mxu0 %v844
        %v3569 = vpop.f32.mrf.mxu0
        %v3570 = vadd.f32 %v739, %v3569
        %v3571 = vpop.f32.mrf.mxu0
        %v3572 = vadd.f32 %v739, %v3571
        %3573 = vmatmul.bf16.gmra.mxu0 %v848
        %v3574 = vpop.f32.mrf.mxu0
        %v3575 = vadd.f32 %v739, %v3574
        %v3576 = vpop.f32.mrf.mxu0
        %v3577 = vadd.f32 %v739, %v3576
        %3578 = vmatmul.bf16.gmra.mxu0 %v852
        %v3579 = vpop.f32.mrf.mxu0
        %v3580 = vadd.f32 %v739, %v3579
        %v3581 = vpop.f32.mrf.mxu0
        %v3582 = vadd.f32 %v739, %v3581
        %3583 = vmatmul.bf16.gmra.mxu0 %v856
        %v3584 = vpop.f32.mrf.mxu0
        %v3585 = vadd.f32 %v739, %v3584
        %v3586 = vpop.f32.mrf.mxu0
        %v3587 = vadd.f32 %v739, %v3586
        %3588 = vmatmul.bf16.gmra.mxu0 %v860
        %v3589 = vpop.f32.mrf.mxu0
        %v3590 = vadd.f32 %v739, %v3589
        %v3591 = vpop.f32.mrf.mxu0
        %v3592 = vadd.f32 %v739, %v3591
        %3593 = vmatmul.bf16.gmra.mxu0 %v864
        %v3594 = vpop.f32.mrf.mxu0
        %v3595 = vadd.f32 %v739, %v3594
        %v3596 = vpop.f32.mrf.mxu0
        %v3597 = vadd.f32 %v739, %v3596
        %3598 = vmatmul.bf16.gmra.mxu0 %v868
        %v3599 = vpop.f32.mrf.mxu0
        %v3600 = vadd.f32 %v739, %v3599
        %v3601 = vpop.f32.mrf.mxu0
        %v3602 = vadd.f32 %v739, %v3601
        %3603 = vmatmul.bf16.gmra.mxu0 %v872
        %v3604 = vpop.f32.mrf.mxu0
        %v3605 = vadd.f32 %v739, %v3604
        %v3606 = vpop.f32.mrf.mxu0
        %v3607 = vadd.f32 %v739, %v3606
        %3608 = vdwg.mxu0
        %3609 = vmatpush.bf16.msra.mxu0 %v1803
        %3610 = vmatpush.bf16.msra.mxu0 %v1795
        %3611 = vmatpush.bf16.msra.mxu0 %v1787
        %3612 = vmatpush.bf16.msra.mxu0 %v1779
        %3613 = vmatpush.bf16.msra.mxu0 %v1771
        %3614 = vmatpush.bf16.msra.mxu0 %v1763
        %3615 = vmatpush.bf16.msra.mxu0 %v1755
        %3616 = vmatpush.bf16.msra.mxu0 %v1747
        %3617 = vmatmul.bf16.gmra.mxu0 %v845
        %v3618 = vpop.f32.mrf.mxu0
        %v3619 = vadd.f32 %v3570, %v3618
        %v3620 = vpop.f32.mrf.mxu0
        %v3621 = vadd.f32 %v3572, %v3620
        %3622 = vmatmul.bf16.gmra.mxu0 %v849
        %v3623 = vpop.f32.mrf.mxu0
        %v3624 = vadd.f32 %v3575, %v3623
        %v3625 = vpop.f32.mrf.mxu0
        %v3626 = vadd.f32 %v3577, %v3625
        %3627 = vmatmul.bf16.gmra.mxu0 %v853
        %v3628 = vpop.f32.mrf.mxu0
        %v3629 = vadd.f32 %v3580, %v3628
        %v3630 = vpop.f32.mrf.mxu0
        %v3631 = vadd.f32 %v3582, %v3630
        %3632 = vmatmul.bf16.gmra.mxu0 %v857
        %v3633 = vpop.f32.mrf.mxu0
        %v3634 = vadd.f32 %v3585, %v3633
        %v3635 = vpop.f32.mrf.mxu0
        %v3636 = vadd.f32 %v3587, %v3635
        %3637 = vmatmul.bf16.gmra.mxu0 %v861
        %v3638 = vpop.f32.mrf.mxu0
        %v3639 = vadd.f32 %v3590, %v3638
        %v3640 = vpop.f32.mrf.mxu0
        %v3641 = vadd.f32 %v3592, %v3640
        %3642 = vmatmul.bf16.gmra.mxu0 %v865
        %v3643 = vpop.f32.mrf.mxu0
        %v3644 = vadd.f32 %v3595, %v3643
        %v3645 = vpop.f32.mrf.mxu0
        %v3646 = vadd.f32 %v3597, %v3645
        %3647 = vmatmul.bf16.gmra.mxu0 %v869
        %v3648 = vpop.f32.mrf.mxu0
        %v3649 = vadd.f32 %v3600, %v3648
        %v3650 = vpop.f32.mrf.mxu0
        %v3651 = vadd.f32 %v3602, %v3650
        %3652 = vmatmul.bf16.gmra.mxu0 %v873
        %v3653 = vpop.f32.mrf.mxu0
        %v3654 = vadd.f32 %v3605, %v3653
        %v3655 = vpop.f32.mrf.mxu0
        %v3656 = vadd.f32 %v3607, %v3655
        %3657 = vdwg.mxu0
        %3658 = vmatpush.bf16.msra.mxu0 %v1867
        %3659 = vmatpush.bf16.msra.mxu0 %v1859
        %3660 = vmatpush.bf16.msra.mxu0 %v1851
        %3661 = vmatpush.bf16.msra.mxu0 %v1843
        %3662 = vmatpush.bf16.msra.mxu0 %v1835
        %3663 = vmatpush.bf16.msra.mxu0 %v1827
        %3664 = vmatpush.bf16.msra.mxu0 %v1819
        %3665 = vmatpush.bf16.msra.mxu0 %v1811
        %3666 = vmatmul.bf16.gmra.mxu0 %v846
        %v3667 = vpop.f32.mrf.mxu0
        %v3668 = vadd.f32 %v3619, %v3667
        %v3669 = vpop.f32.mrf.mxu0
        %v3670 = vadd.f32 %v3621, %v3669
        %3671 = vmatmul.bf16.gmra.mxu0 %v850
        %v3672 = vpop.f32.mrf.mxu0
        %v3673 = vadd.f32 %v3624, %v3672
        %v3674 = vpop.f32.mrf.mxu0
        %v3675 = vadd.f32 %v3626, %v3674
        %3676 = vmatmul.bf16.gmra.mxu0 %v854
        %v3677 = vpop.f32.mrf.mxu0
        %v3678 = vadd.f32 %v3629, %v3677
        %v3679 = vpop.f32.mrf.mxu0
        %v3680 = vadd.f32 %v3631, %v3679
        %3681 = vmatmul.bf16.gmra.mxu0 %v858
        %v3682 = vpop.f32.mrf.mxu0
        %v3683 = vadd.f32 %v3634, %v3682
        %v3684 = vpop.f32.mrf.mxu0
        %v3685 = vadd.f32 %v3636, %v3684
        %3686 = vmatmul.bf16.gmra.mxu0 %v862
        %v3687 = vpop.f32.mrf.mxu0
        %v3688 = vadd.f32 %v3639, %v3687
        %v3689 = vpop.f32.mrf.mxu0
        %v3690 = vadd.f32 %v3641, %v3689
        %3691 = vmatmul.bf16.gmra.mxu0 %v866
        %v3692 = vpop.f32.mrf.mxu0
        %v3693 = vadd.f32 %v3644, %v3692
        %v3694 = vpop.f32.mrf.mxu0
        %v3695 = vadd.f32 %v3646, %v3694
        %3696 = vmatmul.bf16.gmra.mxu0 %v870
        %v3697 = vpop.f32.mrf.mxu0
        %v3698 = vadd.f32 %v3649, %v3697
        %v3699 = vpop.f32.mrf.mxu0
        %v3700 = vadd.f32 %v3651, %v3699
        %3701 = vmatmul.bf16.gmra.mxu0 %v874
        %v3702 = vpop.f32.mrf.mxu0
        %v3703 = vadd.f32 %v3654, %v3702
        %v3704 = vpop.f32.mrf.mxu0
        %v3705 = vadd.f32 %v3656, %v3704
        %3706 = vdwg.mxu0
        %3707 = vmatpush.bf16.msra.mxu0 %v1931
        %3708 = vmatpush.bf16.msra.mxu0 %v1923
        %3709 = vmatpush.bf16.msra.mxu0 %v1915
        %3710 = vmatpush.bf16.msra.mxu0 %v1907
        %3711 = vmatpush.bf16.msra.mxu0 %v1899
        %3712 = vmatpush.bf16.msra.mxu0 %v1891
        %3713 = vmatpush.bf16.msra.mxu0 %v1883
        %3714 = vmatpush.bf16.msra.mxu0 %v1875
        %3715 = vmatmul.bf16.gmra.mxu0 %v847
        %v3716 = vpop.f32.mrf.mxu0
        %v3717 = vadd.f32 %v3668, %v3716
        %v3718 = vpop.f32.mrf.mxu0
        %v3719 = vadd.f32 %v3670, %v3718
        %3720 = vmatmul.bf16.gmra.mxu0 %v851
        %v3721 = vpop.f32.mrf.mxu0
        %v3722 = vadd.f32 %v3673, %v3721
        %v3723 = vpop.f32.mrf.mxu0
        %v3724 = vadd.f32 %v3675, %v3723
        %3725 = vmatmul.bf16.gmra.mxu0 %v855
        %v3726 = vpop.f32.mrf.mxu0
        %v3727 = vadd.f32 %v3678, %v3726
        %v3728 = vpop.f32.mrf.mxu0
        %v3729 = vadd.f32 %v3680, %v3728
        %3730 = vmatmul.bf16.gmra.mxu0 %v859
        %v3731 = vpop.f32.mrf.mxu0
        %v3732 = vadd.f32 %v3683, %v3731
        %v3733 = vpop.f32.mrf.mxu0
        %v3734 = vadd.f32 %v3685, %v3733
        %3735 = vmatmul.bf16.gmra.mxu0 %v863
        %v3736 = vpop.f32.mrf.mxu0
        %v3737 = vadd.f32 %v3688, %v3736
        %v3738 = vpop.f32.mrf.mxu0
        %v3739 = vadd.f32 %v3690, %v3738
        %3740 = vmatmul.bf16.gmra.mxu0 %v867
        %v3741 = vpop.f32.mrf.mxu0
        %v3742 = vadd.f32 %v3693, %v3741
        %v3743 = vpop.f32.mrf.mxu0
        %v3744 = vadd.f32 %v3695, %v3743
        %3745 = vmatmul.bf16.gmra.mxu0 %v871
        %v3746 = vpop.f32.mrf.mxu0
        %v3747 = vadd.f32 %v3698, %v3746
        %v3748 = vpop.f32.mrf.mxu0
        %v3749 = vadd.f32 %v3700, %v3748
        %3750 = vmatmul.bf16.gmra.mxu0 %v875
        %v3751 = vpop.f32.mrf.mxu0
        %v3752 = vadd.f32 %v3703, %v3751
        %v3753 = vpop.f32.mrf.mxu0
        %v3754 = vadd.f32 %v3705, %v3753
        %3755 = vdwg.mxu0
        %v3756 = vxor.u32 %v2345, 2147483648
        %v3757 = vxor.u32 %v2541, 2147483648
        %v3758 = vxor.u32 %v2737, 2147483648
        %v3759 = vxor.u32 %v2933, 2147483648
        %v3760 = vxor.u32 %v3129, 2147483648
        %v3761 = vxor.u32 %v3325, 2147483648
        %v3762 = vxor.u32 %v3521, 2147483648
        %v3763 = vxor.u32 %v3717, 2147483648
        %v3764 = vxor.u32 %v2347, 2147483648
        %v3765 = vxor.u32 %v2543, 2147483648
        %v3766 = vxor.u32 %v2739, 2147483648
        %v3767 = vxor.u32 %v2935, 2147483648
        %v3768 = vxor.u32 %v3131, 2147483648
        %v3769 = vxor.u32 %v3327, 2147483648
        %v3770 = vxor.u32 %v3523, 2147483648
        %v3771 = vxor.u32 %v3719, 2147483648
        %v3772 = vxor.u32 %v2350, 2147483648
        %v3773 = vxor.u32 %v2546, 2147483648
        %v3774 = vxor.u32 %v2742, 2147483648
        %v3775 = vxor.u32 %v2938, 2147483648
        %v3776 = vxor.u32 %v3134, 2147483648
        %v3777 = vxor.u32 %v3330, 2147483648
        %v3778 = vxor.u32 %v3526, 2147483648
        %v3779 = vxor.u32 %v3722, 2147483648
        %v3780 = vxor.u32 %v2352, 2147483648
        %v3781 = vxor.u32 %v2548, 2147483648
        %v3782 = vxor.u32 %v2744, 2147483648
        %v3783 = vxor.u32 %v2940, 2147483648
        %v3784 = vxor.u32 %v3136, 2147483648
        %v3785 = vxor.u32 %v3332, 2147483648
        %v3786 = vxor.u32 %v3528, 2147483648
        %v3787 = vxor.u32 %v3724, 2147483648
        %v3788 = vxor.u32 %v2355, 2147483648
        %v3789 = vxor.u32 %v2551, 2147483648
        %v3790 = vxor.u32 %v2747, 2147483648
        %v3791 = vxor.u32 %v2943, 2147483648
        %v3792 = vxor.u32 %v3139, 2147483648
        %v3793 = vxor.u32 %v3335, 2147483648
        %v3794 = vxor.u32 %v3531, 2147483648
        %v3795 = vxor.u32 %v3727, 2147483648
        %v3796 = vxor.u32 %v2357, 2147483648
        %v3797 = vxor.u32 %v2553, 2147483648
        %v3798 = vxor.u32 %v2749, 2147483648
        %v3799 = vxor.u32 %v2945, 2147483648
        %v3800 = vxor.u32 %v3141, 2147483648
        %v3801 = vxor.u32 %v3337, 2147483648
        %v3802 = vxor.u32 %v3533, 2147483648
        %v3803 = vxor.u32 %v3729, 2147483648
        %v3804 = vxor.u32 %v2360, 2147483648
        %v3805 = vxor.u32 %v2556, 2147483648
        %v3806 = vxor.u32 %v2752, 2147483648
        %v3807 = vxor.u32 %v2948, 2147483648
        %v3808 = vxor.u32 %v3144, 2147483648
        %v3809 = vxor.u32 %v3340, 2147483648
        %v3810 = vxor.u32 %v3536, 2147483648
        %v3811 = vxor.u32 %v3732, 2147483648
        %v3812 = vxor.u32 %v2362, 2147483648
        %v3813 = vxor.u32 %v2558, 2147483648
        %v3814 = vxor.u32 %v2754, 2147483648
        %v3815 = vxor.u32 %v2950, 2147483648
        %v3816 = vxor.u32 %v3146, 2147483648
        %v3817 = vxor.u32 %v3342, 2147483648
        %v3818 = vxor.u32 %v3538, 2147483648
        %v3819 = vxor.u32 %v3734, 2147483648
        %v3820 = vxor.u32 %v2365, 2147483648
        %v3821 = vxor.u32 %v2561, 2147483648
        %v3822 = vxor.u32 %v2757, 2147483648
        %v3823 = vxor.u32 %v2953, 2147483648
        %v3824 = vxor.u32 %v3149, 2147483648
        %v3825 = vxor.u32 %v3345, 2147483648
        %v3826 = vxor.u32 %v3541, 2147483648
        %v3827 = vxor.u32 %v3737, 2147483648
        %v3828 = vxor.u32 %v2367, 2147483648
        %v3829 = vxor.u32 %v2563, 2147483648
        %v3830 = vxor.u32 %v2759, 2147483648
        %v3831 = vxor.u32 %v2955, 2147483648
        %v3832 = vxor.u32 %v3151, 2147483648
        %v3833 = vxor.u32 %v3347, 2147483648
        %v3834 = vxor.u32 %v3543, 2147483648
        %v3835 = vxor.u32 %v3739, 2147483648
        %v3836 = vxor.u32 %v2370, 2147483648
        %v3837 = vxor.u32 %v2566, 2147483648
        %v3838 = vxor.u32 %v2762, 2147483648
        %v3839 = vxor.u32 %v2958, 2147483648
        %v3840 = vxor.u32 %v3154, 2147483648
        %v3841 = vxor.u32 %v3350, 2147483648
        %v3842 = vxor.u32 %v3546, 2147483648
        %v3843 = vxor.u32 %v3742, 2147483648
        %v3844 = vxor.u32 %v2372, 2147483648
        %v3845 = vxor.u32 %v2568, 2147483648
        %v3846 = vxor.u32 %v2764, 2147483648
        %v3847 = vxor.u32 %v2960, 2147483648
        %v3848 = vxor.u32 %v3156, 2147483648
        %v3849 = vxor.u32 %v3352, 2147483648
        %v3850 = vxor.u32 %v3548, 2147483648
        %v3851 = vxor.u32 %v3744, 2147483648
        %v3852 = vxor.u32 %v2375, 2147483648
        %v3853 = vxor.u32 %v2571, 2147483648
        %v3854 = vxor.u32 %v2767, 2147483648
        %v3855 = vxor.u32 %v2963, 2147483648
        %v3856 = vxor.u32 %v3159, 2147483648
        %v3857 = vxor.u32 %v3355, 2147483648
        %v3858 = vxor.u32 %v3551, 2147483648
        %v3859 = vxor.u32 %v3747, 2147483648
        %v3860 = vxor.u32 %v2377, 2147483648
        %v3861 = vxor.u32 %v2573, 2147483648
        %v3862 = vxor.u32 %v2769, 2147483648
        %v3863 = vxor.u32 %v2965, 2147483648
        %v3864 = vxor.u32 %v3161, 2147483648
        %v3865 = vxor.u32 %v3357, 2147483648
        %v3866 = vxor.u32 %v3553, 2147483648
        %v3867 = vxor.u32 %v3749, 2147483648
        %v3868 = vxor.u32 %v2380, 2147483648
        %v3869 = vxor.u32 %v2576, 2147483648
        %v3870 = vxor.u32 %v2772, 2147483648
        %v3871 = vxor.u32 %v2968, 2147483648
        %v3872 = vxor.u32 %v3164, 2147483648
        %v3873 = vxor.u32 %v3360, 2147483648
        %v3874 = vxor.u32 %v3556, 2147483648
        %v3875 = vxor.u32 %v3752, 2147483648
        %v3876 = vxor.u32 %v2382, 2147483648
        %v3877 = vxor.u32 %v2578, 2147483648
        %v3878 = vxor.u32 %v2774, 2147483648
        %v3879 = vxor.u32 %v2970, 2147483648
        %v3880 = vxor.u32 %v3166, 2147483648
        %v3881 = vxor.u32 %v3362, 2147483648
        %v3882 = vxor.u32 %v3558, 2147483648
        %v3883 = vxor.u32 %v3754, 2147483648
        %v3884 = vmul.f32 %v3756, 1.442695
        %v3885 = vpow.pop %v3884
        %v3886 = vmul.f32 %v3757, 1.442695
        %v3887 = vpow.pop %v3886
        %v3888 = vmul.f32 %v3758, 1.442695
        %v3889 = vpow.pop %v3888
        %v3890 = vmul.f32 %v3759, 1.442695
        %v3891 = vpow.pop %v3890
        %v3892 = vmul.f32 %v3760, 1.442695
        %v3893 = vpow.pop %v3892
        %v3894 = vmul.f32 %v3761, 1.442695
        %v3895 = vpow.pop %v3894
        %v3896 = vmul.f32 %v3762, 1.442695
        %v3897 = vpow.pop %v3896
        %v3898 = vmul.f32 %v3763, 1.442695
        %v3899 = vpow.pop %v3898
        %v3900 = vmul.f32 %v3764, 1.442695
        %v3901 = vpow.pop %v3900
        %v3902 = vmul.f32 %v3765, 1.442695
        %v3903 = vpow.pop %v3902
        %v3904 = vmul.f32 %v3766, 1.442695
        %v3905 = vpow.pop %v3904
        %v3906 = vmul.f32 %v3767, 1.442695
        %v3907 = vpow.pop %v3906
        %v3908 = vmul.f32 %v3768, 1.442695
        %v3909 = vpow.pop %v3908
        %v3910 = vmul.f32 %v3769, 1.442695
        %v3911 = vpow.pop %v3910
        %v3912 = vmul.f32 %v3770, 1.442695
        %v3913 = vpow.pop %v3912
        %v3914 = vmul.f32 %v3771, 1.442695
        %v3915 = vpow.pop %v3914
        %v3916 = vmul.f32 %v3772, 1.442695
        %v3917 = vpow.pop %v3916
        %v3918 = vmul.f32 %v3773, 1.442695
        %v3919 = vpow.pop %v3918
        %v3920 = vmul.f32 %v3774, 1.442695
        %v3921 = vpow.pop %v3920
        %v3922 = vmul.f32 %v3775, 1.442695
        %v3923 = vpow.pop %v3922
        %v3924 = vmul.f32 %v3776, 1.442695
        %v3925 = vpow.pop %v3924
        %v3926 = vmul.f32 %v3777, 1.442695
        %v3927 = vpow.pop %v3926
        %v3928 = vmul.f32 %v3778, 1.442695
        %v3929 = vpow.pop %v3928
        %v3930 = vmul.f32 %v3779, 1.442695
        %v3931 = vpow.pop %v3930
        %v3932 = vmul.f32 %v3780, 1.442695
        %v3933 = vpow.pop %v3932
        %v3934 = vmul.f32 %v3781, 1.442695
        %v3935 = vpow.pop %v3934
        %v3936 = vmul.f32 %v3782, 1.442695
        %v3937 = vpow.pop %v3936
        %v3938 = vmul.f32 %v3783, 1.442695
        %v3939 = vpow.pop %v3938
        %v3940 = vmul.f32 %v3784, 1.442695
        %v3941 = vpow.pop %v3940
        %v3942 = vmul.f32 %v3785, 1.442695
        %v3943 = vpow.pop %v3942
        %v3944 = vmul.f32 %v3786, 1.442695
        %v3945 = vpow.pop %v3944
        %v3946 = vmul.f32 %v3787, 1.442695
        %v3947 = vpow.pop %v3946
        %v3948 = vmul.f32 %v3788, 1.442695
        %v3949 = vpow.pop %v3948
        %v3950 = vmul.f32 %v3789, 1.442695
        %v3951 = vpow.pop %v3950
        %v3952 = vmul.f32 %v3790, 1.442695
        %v3953 = vpow.pop %v3952
        %v3954 = vmul.f32 %v3791, 1.442695
        %v3955 = vpow.pop %v3954
        %v3956 = vmul.f32 %v3792, 1.442695
        %v3957 = vpow.pop %v3956
        %v3958 = vmul.f32 %v3793, 1.442695
        %v3959 = vpow.pop %v3958
        %v3960 = vmul.f32 %v3794, 1.442695
        %v3961 = vpow.pop %v3960
        %v3962 = vmul.f32 %v3795, 1.442695
        %v3963 = vpow.pop %v3962
        %v3964 = vmul.f32 %v3796, 1.442695
        %v3965 = vpow.pop %v3964
        %v3966 = vmul.f32 %v3797, 1.442695
        %v3967 = vpow.pop %v3966
        %v3968 = vmul.f32 %v3798, 1.442695
        %v3969 = vpow.pop %v3968
        %v3970 = vmul.f32 %v3799, 1.442695
        %v3971 = vpow.pop %v3970
        %v3972 = vmul.f32 %v3800, 1.442695
        %v3973 = vpow.pop %v3972
        %v3974 = vmul.f32 %v3801, 1.442695
        %v3975 = vpow.pop %v3974
        %v3976 = vmul.f32 %v3802, 1.442695
        %v3977 = vpow.pop %v3976
        %v3978 = vmul.f32 %v3803, 1.442695
        %v3979 = vpow.pop %v3978
        %v3980 = vmul.f32 %v3804, 1.442695
        %v3981 = vpow.pop %v3980
        %v3982 = vmul.f32 %v3805, 1.442695
        %v3983 = vpow.pop %v3982
        %v3984 = vmul.f32 %v3806, 1.442695
        %v3985 = vpow.pop %v3984
        %v3986 = vmul.f32 %v3807, 1.442695
        %v3987 = vpow.pop %v3986
        %v3988 = vmul.f32 %v3808, 1.442695
        %v3989 = vpow.pop %v3988
        %v3990 = vmul.f32 %v3809, 1.442695
        %v3991 = vpow.pop %v3990
        %v3992 = vmul.f32 %v3810, 1.442695
        %v3993 = vpow.pop %v3992
        %v3994 = vmul.f32 %v3811, 1.442695
        %v3995 = vpow.pop %v3994
        %v3996 = vmul.f32 %v3812, 1.442695
        %v3997 = vpow.pop %v3996
        %v3998 = vmul.f32 %v3813, 1.442695
        %v3999 = vpow.pop %v3998
        %v4000 = vmul.f32 %v3814, 1.442695
        %v4001 = vpow.pop %v4000
        %v4002 = vmul.f32 %v3815, 1.442695
        %v4003 = vpow.pop %v4002
        %v4004 = vmul.f32 %v3816, 1.442695
        %v4005 = vpow.pop %v4004
        %v4006 = vmul.f32 %v3817, 1.442695
        %v4007 = vpow.pop %v4006
        %v4008 = vmul.f32 %v3818, 1.442695
        %v4009 = vpow.pop %v4008
        %v4010 = vmul.f32 %v3819, 1.442695
        %v4011 = vpow.pop %v4010
        %v4012 = vmul.f32 %v3820, 1.442695
        %v4013 = vpow.pop %v4012
        %v4014 = vmul.f32 %v3821, 1.442695
        %v4015 = vpow.pop %v4014
        %v4016 = vmul.f32 %v3822, 1.442695
        %v4017 = vpow.pop %v4016
        %v4018 = vmul.f32 %v3823, 1.442695
        %v4019 = vpow.pop %v4018
        %v4020 = vmul.f32 %v3824, 1.442695
        %v4021 = vpow.pop %v4020
        %v4022 = vmul.f32 %v3825, 1.442695
        %v4023 = vpow.pop %v4022
        %v4024 = vmul.f32 %v3826, 1.442695
        %v4025 = vpow.pop %v4024
        %v4026 = vmul.f32 %v3827, 1.442695
        %v4027 = vpow.pop %v4026
        %v4028 = vmul.f32 %v3828, 1.442695
        %v4029 = vpow.pop %v4028
        %v4030 = vmul.f32 %v3829, 1.442695
        %v4031 = vpow.pop %v4030
        %v4032 = vmul.f32 %v3830, 1.442695
        %v4033 = vpow.pop %v4032
        %v4034 = vmul.f32 %v3831, 1.442695
        %v4035 = vpow.pop %v4034
        %v4036 = vmul.f32 %v3832, 1.442695
        %v4037 = vpow.pop %v4036
        %v4038 = vmul.f32 %v3833, 1.442695
        %v4039 = vpow.pop %v4038
        %v4040 = vmul.f32 %v3834, 1.442695
        %v4041 = vpow.pop %v4040
        %v4042 = vmul.f32 %v3835, 1.442695
        %v4043 = vpow.pop %v4042
        %v4044 = vmul.f32 %v3836, 1.442695
        %v4045 = vpow.pop %v4044
        %v4046 = vmul.f32 %v3837, 1.442695
        %v4047 = vpow.pop %v4046
        %v4048 = vmul.f32 %v3838, 1.442695
        %v4049 = vpow.pop %v4048
        %v4050 = vmul.f32 %v3839, 1.442695
        %v4051 = vpow.pop %v4050
        %v4052 = vmul.f32 %v3840, 1.442695
        %v4053 = vpow.pop %v4052
        %v4054 = vmul.f32 %v3841, 1.442695
        %v4055 = vpow.pop %v4054
        %v4056 = vmul.f32 %v3842, 1.442695
        %v4057 = vpow.pop %v4056
        %v4058 = vmul.f32 %v3843, 1.442695
        %v4059 = vpow.pop %v4058
        %v4060 = vmul.f32 %v3844, 1.442695
        %v4061 = vpow.pop %v4060
        %v4062 = vmul.f32 %v3845, 1.442695
        %v4063 = vpow.pop %v4062
        %v4064 = vmul.f32 %v3846, 1.442695
        %v4065 = vpow.pop %v4064
        %v4066 = vmul.f32 %v3847, 1.442695
        %v4067 = vpow.pop %v4066
        %v4068 = vmul.f32 %v3848, 1.442695
        %v4069 = vpow.pop %v4068
        %v4070 = vmul.f32 %v3849, 1.442695
        %v4071 = vpow.pop %v4070
        %v4072 = vmul.f32 %v3850, 1.442695
        %v4073 = vpow.pop %v4072
        %v4074 = vmul.f32 %v3851, 1.442695
        %v4075 = vpow.pop %v4074
        %v4076 = vmul.f32 %v3852, 1.442695
        %v4077 = vpow.pop %v4076
        %v4078 = vmul.f32 %v3853, 1.442695
        %v4079 = vpow.pop %v4078
        %v4080 = vmul.f32 %v3854, 1.442695
        %v4081 = vpow.pop %v4080
        %v4082 = vmul.f32 %v3855, 1.442695
        %v4083 = vpow.pop %v4082
        %v4084 = vmul.f32 %v3856, 1.442695
        %v4085 = vpow.pop %v4084
        %v4086 = vmul.f32 %v3857, 1.442695
        %v4087 = vpow.pop %v4086
        %v4088 = vmul.f32 %v3858, 1.442695
        %v4089 = vpow.pop %v4088
        %v4090 = vmul.f32 %v3859, 1.442695
        %v4091 = vpow.pop %v4090
        %v4092 = vmul.f32 %v3860, 1.442695
        %v4093 = vpow.pop %v4092
        %v4094 = vmul.f32 %v3861, 1.442695
        %v4095 = vpow.pop %v4094
        %v4096 = vmul.f32 %v3862, 1.442695
        %v4097 = vpow.pop %v4096
        %v4098 = vmul.f32 %v3863, 1.442695
        %v4099 = vpow.pop %v4098
        %v4100 = vmul.f32 %v3864, 1.442695
        %v4101 = vpow.pop %v4100
        %v4102 = vmul.f32 %v3865, 1.442695
        %v4103 = vpow.pop %v4102
        %v4104 = vmul.f32 %v3866, 1.442695
        %v4105 = vpow.pop %v4104
        %v4106 = vmul.f32 %v3867, 1.442695
        %v4107 = vpow.pop %v4106
        %v4108 = vmul.f32 %v3868, 1.442695
        %v4109 = vpow.pop %v4108
        %v4110 = vmul.f32 %v3869, 1.442695
        %v4111 = vpow.pop %v4110
        %v4112 = vmul.f32 %v3870, 1.442695
        %v4113 = vpow.pop %v4112
        %v4114 = vmul.f32 %v3871, 1.442695
        %v4115 = vpow.pop %v4114
        %v4116 = vmul.f32 %v3872, 1.442695
        %v4117 = vpow.pop %v4116
        %v4118 = vmul.f32 %v3873, 1.442695
        %v4119 = vpow.pop %v4118
        %v4120 = vmul.f32 %v3874, 1.442695
        %v4121 = vpow.pop %v4120
        %v4122 = vmul.f32 %v3875, 1.442695
        %v4123 = vpow.pop %v4122
        %v4124 = vmul.f32 %v3876, 1.442695
        %v4125 = vpow.pop %v4124
        %v4126 = vmul.f32 %v3877, 1.442695
        %v4127 = vpow.pop %v4126
        %v4128 = vmul.f32 %v3878, 1.442695
        %v4129 = vpow.pop %v4128
        %v4130 = vmul.f32 %v3879, 1.442695
        %v4131 = vpow.pop %v4130
        %v4132 = vmul.f32 %v3880, 1.442695
        %v4133 = vpow.pop %v4132
        %v4134 = vmul.f32 %v3881, 1.442695
        %v4135 = vpow.pop %v4134
        %v4136 = vmul.f32 %v3882, 1.442695
        %v4137 = vpow.pop %v4136
        %v4138 = vmul.f32 %v3883, 1.442695
        %v4139 = vpow.pop %v4138
        %v4140 = vadd.f32 %v3885, 1.0
        %v4141 = vadd.f32 %v3887, 1.0
        %v4142 = vadd.f32 %v3889, 1.0
        %v4143 = vadd.f32 %v3891, 1.0
        %v4144 = vadd.f32 %v3893, 1.0
        %v4145 = vadd.f32 %v3895, 1.0
        %v4146 = vadd.f32 %v3897, 1.0
        %v4147 = vadd.f32 %v3899, 1.0
        %v4148 = vadd.f32 %v3901, 1.0
        %v4149 = vadd.f32 %v3903, 1.0
        %v4150 = vadd.f32 %v3905, 1.0
        %v4151 = vadd.f32 %v3907, 1.0
        %v4152 = vadd.f32 %v3909, 1.0
        %v4153 = vadd.f32 %v3911, 1.0
        %v4154 = vadd.f32 %v3913, 1.0
        %v4155 = vadd.f32 %v3915, 1.0
        %v4156 = vadd.f32 %v3917, 1.0
        %v4157 = vadd.f32 %v3919, 1.0
        %v4158 = vadd.f32 %v3921, 1.0
        %v4159 = vadd.f32 %v3923, 1.0
        %v4160 = vadd.f32 %v3925, 1.0
        %v4161 = vadd.f32 %v3927, 1.0
        %v4162 = vadd.f32 %v3929, 1.0
        %v4163 = vadd.f32 %v3931, 1.0
        %v4164 = vadd.f32 %v3933, 1.0
        %v4165 = vadd.f32 %v3935, 1.0
        %v4166 = vadd.f32 %v3937, 1.0
        %v4167 = vadd.f32 %v3939, 1.0
        %v4168 = vadd.f32 %v3941, 1.0
        %v4169 = vadd.f32 %v3943, 1.0
        %v4170 = vadd.f32 %v3945, 1.0
        %v4171 = vadd.f32 %v3947, 1.0
        %v4172 = vadd.f32 %v3949, 1.0
        %v4173 = vadd.f32 %v3951, 1.0
        %v4174 = vadd.f32 %v3953, 1.0
        %v4175 = vadd.f32 %v3955, 1.0
        %v4176 = vadd.f32 %v3957, 1.0
        %v4177 = vadd.f32 %v3959, 1.0
        %v4178 = vadd.f32 %v3961, 1.0
        %v4179 = vadd.f32 %v3963, 1.0
        %v4180 = vadd.f32 %v3965, 1.0
        %v4181 = vadd.f32 %v3967, 1.0
        %v4182 = vadd.f32 %v3969, 1.0
        %v4183 = vadd.f32 %v3971, 1.0
        %v4184 = vadd.f32 %v3973, 1.0
        %v4185 = vadd.f32 %v3975, 1.0
        %v4186 = vadd.f32 %v3977, 1.0
        %v4187 = vadd.f32 %v3979, 1.0
        %v4188 = vadd.f32 %v3981, 1.0
        %v4189 = vadd.f32 %v3983, 1.0
        %v4190 = vadd.f32 %v3985, 1.0
        %v4191 = vadd.f32 %v3987, 1.0
        %v4192 = vadd.f32 %v3989, 1.0
        %v4193 = vadd.f32 %v3991, 1.0
        %v4194 = vadd.f32 %v3993, 1.0
        %v4195 = vadd.f32 %v3995, 1.0
        %v4196 = vadd.f32 %v3997, 1.0
        %v4197 = vadd.f32 %v3999, 1.0
        %v4198 = vadd.f32 %v4001, 1.0
        %v4199 = vadd.f32 %v4003, 1.0
        %v4200 = vadd.f32 %v4005, 1.0
        %v4201 = vadd.f32 %v4007, 1.0
        %v4202 = vadd.f32 %v4009, 1.0
        %v4203 = vadd.f32 %v4011, 1.0
        %v4204 = vadd.f32 %v4013, 1.0
        %v4205 = vadd.f32 %v4015, 1.0
        %v4206 = vadd.f32 %v4017, 1.0
        %v4207 = vadd.f32 %v4019, 1.0
        %v4208 = vadd.f32 %v4021, 1.0
        %v4209 = vadd.f32 %v4023, 1.0
        %v4210 = vadd.f32 %v4025, 1.0
        %v4211 = vadd.f32 %v4027, 1.0
        %v4212 = vadd.f32 %v4029, 1.0
        %v4213 = vadd.f32 %v4031, 1.0
        %v4214 = vadd.f32 %v4033, 1.0
        %v4215 = vadd.f32 %v4035, 1.0
        %v4216 = vadd.f32 %v4037, 1.0
        %v4217 = vadd.f32 %v4039, 1.0
        %v4218 = vadd.f32 %v4041, 1.0
        %v4219 = vadd.f32 %v4043, 1.0
        %v4220 = vadd.f32 %v4045, 1.0
        %v4221 = vadd.f32 %v4047, 1.0
        %v4222 = vadd.f32 %v4049, 1.0
        %v4223 = vadd.f32 %v4051, 1.0
        %v4224 = vadd.f32 %v4053, 1.0
        %v4225 = vadd.f32 %v4055, 1.0
        %v4226 = vadd.f32 %v4057, 1.0
        %v4227 = vadd.f32 %v4059, 1.0
        %v4228 = vadd.f32 %v4061, 1.0
        %v4229 = vadd.f32 %v4063, 1.0
        %v4230 = vadd.f32 %v4065, 1.0
        %v4231 = vadd.f32 %v4067, 1.0
        %v4232 = vadd.f32 %v4069, 1.0
        %v4233 = vadd.f32 %v4071, 1.0
        %v4234 = vadd.f32 %v4073, 1.0
        %v4235 = vadd.f32 %v4075, 1.0
        %v4236 = vadd.f32 %v4077, 1.0
        %v4237 = vadd.f32 %v4079, 1.0
        %v4238 = vadd.f32 %v4081, 1.0
        %v4239 = vadd.f32 %v4083, 1.0
        %v4240 = vadd.f32 %v4085, 1.0
        %v4241 = vadd.f32 %v4087, 1.0
        %v4242 = vadd.f32 %v4089, 1.0
        %v4243 = vadd.f32 %v4091, 1.0
        %v4244 = vadd.f32 %v4093, 1.0
        %v4245 = vadd.f32 %v4095, 1.0
        %v4246 = vadd.f32 %v4097, 1.0
        %v4247 = vadd.f32 %v4099, 1.0
        %v4248 = vadd.f32 %v4101, 1.0
        %v4249 = vadd.f32 %v4103, 1.0
        %v4250 = vadd.f32 %v4105, 1.0
        %v4251 = vadd.f32 %v4107, 1.0
        %v4252 = vadd.f32 %v4109, 1.0
        %v4253 = vadd.f32 %v4111, 1.0
        %v4254 = vadd.f32 %v4113, 1.0
        %v4255 = vadd.f32 %v4115, 1.0
        %v4256 = vadd.f32 %v4117, 1.0
        %v4257 = vadd.f32 %v4119, 1.0
        %v4258 = vadd.f32 %v4121, 1.0
        %v4259 = vadd.f32 %v4123, 1.0
        %v4260 = vadd.f32 %v4125, 1.0
        %v4261 = vadd.f32 %v4127, 1.0
        %v4262 = vadd.f32 %v4129, 1.0
        %v4263 = vadd.f32 %v4131, 1.0
        %v4264 = vadd.f32 %v4133, 1.0
        %v4265 = vadd.f32 %v4135, 1.0
        %v4266 = vadd.f32 %v4137, 1.0
        %v4267 = vadd.f32 %v4139, 1.0
        %v4268 = vrcp.pop %v4140
        %v4269 = vmul.f32 %v4140, %v4268
        %v4270 = vsub.f32 1.0, %v4269
        %v4271 = vmul.f32 %v4268, %v4270
        %v4272 = vadd.f32 %v4268, %v4271
        %vm4273 = vweird.f32 %v4140
        %vm4274 = vweird.f32 %v4268
        %vm4275 = vmor %vm4273, %vm4274
        %v4276 = vsel %vm4275, %v4268, %v4272
        %v4277 = vand.u32 2147483647, %v4140
        %vm4278 = vcmp.eq.f32.partialorder %v4277, 8.507059e+37
        %v4279 = vand.u32 %v4140, 2147483648
        %v4280 = vor.u32 1.1754944e-38, %v4279
        %v4281 = vsel %vm4278, %v4280, %v4276
        %v4282 = vmul.f32 1.0, %v4281
        %v4283 = vrcp.pop %v4141
        %v4284 = vmul.f32 %v4141, %v4283
        %v4285 = vsub.f32 1.0, %v4284
        %v4286 = vmul.f32 %v4283, %v4285
        %v4287 = vadd.f32 %v4283, %v4286
        %vm4288 = vweird.f32 %v4141
        %vm4289 = vweird.f32 %v4283
        %vm4290 = vmor %vm4288, %vm4289
        %v4291 = vsel %vm4290, %v4283, %v4287
        %v4292 = vand.u32 2147483647, %v4141
        %vm4293 = vcmp.eq.f32.partialorder %v4292, 8.507059e+37
        %v4294 = vand.u32 %v4141, 2147483648
        %v4295 = vor.u32 1.1754944e-38, %v4294
        %v4296 = vsel %vm4293, %v4295, %v4291
        %v4297 = vmul.f32 1.0, %v4296
        %v4298 = vrcp.pop %v4142
        %v4299 = vmul.f32 %v4142, %v4298
        %v4300 = vsub.f32 1.0, %v4299
        %v4301 = vmul.f32 %v4298, %v4300
        %v4302 = vadd.f32 %v4298, %v4301
        %vm4303 = vweird.f32 %v4142
        %vm4304 = vweird.f32 %v4298
        %vm4305 = vmor %vm4303, %vm4304
        %v4306 = vsel %vm4305, %v4298, %v4302
        %v4307 = vand.u32 2147483647, %v4142
        %vm4308 = vcmp.eq.f32.partialorder %v4307, 8.507059e+37
        %v4309 = vand.u32 %v4142, 2147483648
        %v4310 = vor.u32 1.1754944e-38, %v4309
        %v4311 = vsel %vm4308, %v4310, %v4306
        %v4312 = vmul.f32 1.0, %v4311
        %v4313 = vrcp.pop %v4143
        %v4314 = vmul.f32 %v4143, %v4313
        %v4315 = vsub.f32 1.0, %v4314
        %v4316 = vmul.f32 %v4313, %v4315
        %v4317 = vadd.f32 %v4313, %v4316
        %vm4318 = vweird.f32 %v4143
        %vm4319 = vweird.f32 %v4313
        %vm4320 = vmor %vm4318, %vm4319
        %v4321 = vsel %vm4320, %v4313, %v4317
        %v4322 = vand.u32 2147483647, %v4143
        %vm4323 = vcmp.eq.f32.partialorder %v4322, 8.507059e+37
        %v4324 = vand.u32 %v4143, 2147483648
        %v4325 = vor.u32 1.1754944e-38, %v4324
        %v4326 = vsel %vm4323, %v4325, %v4321
        %v4327 = vmul.f32 1.0, %v4326
        %v4328 = vrcp.pop %v4144
        %v4329 = vmul.f32 %v4144, %v4328
        %v4330 = vsub.f32 1.0, %v4329
        %v4331 = vmul.f32 %v4328, %v4330
        %v4332 = vadd.f32 %v4328, %v4331
        %vm4333 = vweird.f32 %v4144
        %vm4334 = vweird.f32 %v4328
        %vm4335 = vmor %vm4333, %vm4334
        %v4336 = vsel %vm4335, %v4328, %v4332
        %v4337 = vand.u32 2147483647, %v4144
        %vm4338 = vcmp.eq.f32.partialorder %v4337, 8.507059e+37
        %v4339 = vand.u32 %v4144, 2147483648
        %v4340 = vor.u32 1.1754944e-38, %v4339
        %v4341 = vsel %vm4338, %v4340, %v4336
        %v4342 = vmul.f32 1.0, %v4341
        %v4343 = vrcp.pop %v4145
        %v4344 = vmul.f32 %v4145, %v4343
        %v4345 = vsub.f32 1.0, %v4344
        %v4346 = vmul.f32 %v4343, %v4345
        %v4347 = vadd.f32 %v4343, %v4346
        %vm4348 = vweird.f32 %v4145
        %vm4349 = vweird.f32 %v4343
        %vm4350 = vmor %vm4348, %vm4349
        %v4351 = vsel %vm4350, %v4343, %v4347
        %v4352 = vand.u32 2147483647, %v4145
        %vm4353 = vcmp.eq.f32.partialorder %v4352, 8.507059e+37
        %v4354 = vand.u32 %v4145, 2147483648
        %v4355 = vor.u32 1.1754944e-38, %v4354
        %v4356 = vsel %vm4353, %v4355, %v4351
        %v4357 = vmul.f32 1.0, %v4356
        %v4358 = vrcp.pop %v4146
        %v4359 = vmul.f32 %v4146, %v4358
        %v4360 = vsub.f32 1.0, %v4359
        %v4361 = vmul.f32 %v4358, %v4360
        %v4362 = vadd.f32 %v4358, %v4361
        %vm4363 = vweird.f32 %v4146
        %vm4364 = vweird.f32 %v4358
        %vm4365 = vmor %vm4363, %vm4364
        %v4366 = vsel %vm4365, %v4358, %v4362
        %v4367 = vand.u32 2147483647, %v4146
        %vm4368 = vcmp.eq.f32.partialorder %v4367, 8.507059e+37
        %v4369 = vand.u32 %v4146, 2147483648
        %v4370 = vor.u32 1.1754944e-38, %v4369
        %v4371 = vsel %vm4368, %v4370, %v4366
        %v4372 = vmul.f32 1.0, %v4371
        %v4373 = vrcp.pop %v4147
        %v4374 = vmul.f32 %v4147, %v4373
        %v4375 = vsub.f32 1.0, %v4374
        %v4376 = vmul.f32 %v4373, %v4375
        %v4377 = vadd.f32 %v4373, %v4376
        %vm4378 = vweird.f32 %v4147
        %vm4379 = vweird.f32 %v4373
        %vm4380 = vmor %vm4378, %vm4379
        %v4381 = vsel %vm4380, %v4373, %v4377
        %v4382 = vand.u32 2147483647, %v4147
        %vm4383 = vcmp.eq.f32.partialorder %v4382, 8.507059e+37
        %v4384 = vand.u32 %v4147, 2147483648
        %v4385 = vor.u32 1.1754944e-38, %v4384
        %v4386 = vsel %vm4383, %v4385, %v4381
        %v4387 = vmul.f32 1.0, %v4386
        %v4388 = vrcp.pop %v4148
        %v4389 = vmul.f32 %v4148, %v4388
        %v4390 = vsub.f32 1.0, %v4389
        %v4391 = vmul.f32 %v4388, %v4390
        %v4392 = vadd.f32 %v4388, %v4391
        %vm4393 = vweird.f32 %v4148
        %vm4394 = vweird.f32 %v4388
        %vm4395 = vmor %vm4393, %vm4394
        %v4396 = vsel %vm4395, %v4388, %v4392
        %v4397 = vand.u32 2147483647, %v4148
        %vm4398 = vcmp.eq.f32.partialorder %v4397, 8.507059e+37
        %v4399 = vand.u32 %v4148, 2147483648
        %v4400 = vor.u32 1.1754944e-38, %v4399
        %v4401 = vsel %vm4398, %v4400, %v4396
        %v4402 = vmul.f32 1.0, %v4401
        %v4403 = vrcp.pop %v4149
        %v4404 = vmul.f32 %v4149, %v4403
        %v4405 = vsub.f32 1.0, %v4404
        %v4406 = vmul.f32 %v4403, %v4405
        %v4407 = vadd.f32 %v4403, %v4406
        %vm4408 = vweird.f32 %v4149
        %vm4409 = vweird.f32 %v4403
        %vm4410 = vmor %vm4408, %vm4409
        %v4411 = vsel %vm4410, %v4403, %v4407
        %v4412 = vand.u32 2147483647, %v4149
        %vm4413 = vcmp.eq.f32.partialorder %v4412, 8.507059e+37
        %v4414 = vand.u32 %v4149, 2147483648
        %v4415 = vor.u32 1.1754944e-38, %v4414
        %v4416 = vsel %vm4413, %v4415, %v4411
        %v4417 = vmul.f32 1.0, %v4416
        %v4418 = vrcp.pop %v4150
        %v4419 = vmul.f32 %v4150, %v4418
        %v4420 = vsub.f32 1.0, %v4419
        %v4421 = vmul.f32 %v4418, %v4420
        %v4422 = vadd.f32 %v4418, %v4421
        %vm4423 = vweird.f32 %v4150
        %vm4424 = vweird.f32 %v4418
        %vm4425 = vmor %vm4423, %vm4424
        %v4426 = vsel %vm4425, %v4418, %v4422
        %v4427 = vand.u32 2147483647, %v4150
        %vm4428 = vcmp.eq.f32.partialorder %v4427, 8.507059e+37
        %v4429 = vand.u32 %v4150, 2147483648
        %v4430 = vor.u32 1.1754944e-38, %v4429
        %v4431 = vsel %vm4428, %v4430, %v4426
        %v4432 = vmul.f32 1.0, %v4431
        %v4433 = vrcp.pop %v4151
        %v4434 = vmul.f32 %v4151, %v4433
        %v4435 = vsub.f32 1.0, %v4434
        %v4436 = vmul.f32 %v4433, %v4435
        %v4437 = vadd.f32 %v4433, %v4436
        %vm4438 = vweird.f32 %v4151
        %vm4439 = vweird.f32 %v4433
        %vm4440 = vmor %vm4438, %vm4439
        %v4441 = vsel %vm4440, %v4433, %v4437
        %v4442 = vand.u32 2147483647, %v4151
        %vm4443 = vcmp.eq.f32.partialorder %v4442, 8.507059e+37
        %v4444 = vand.u32 %v4151, 2147483648
        %v4445 = vor.u32 1.1754944e-38, %v4444
        %v4446 = vsel %vm4443, %v4445, %v4441
        %v4447 = vmul.f32 1.0, %v4446
        %v4448 = vrcp.pop %v4152
        %v4449 = vmul.f32 %v4152, %v4448
        %v4450 = vsub.f32 1.0, %v4449
        %v4451 = vmul.f32 %v4448, %v4450
        %v4452 = vadd.f32 %v4448, %v4451
        %vm4453 = vweird.f32 %v4152
        %vm4454 = vweird.f32 %v4448
        %vm4455 = vmor %vm4453, %vm4454
        %v4456 = vsel %vm4455, %v4448, %v4452
        %v4457 = vand.u32 2147483647, %v4152
        %vm4458 = vcmp.eq.f32.partialorder %v4457, 8.507059e+37
        %v4459 = vand.u32 %v4152, 2147483648
        %v4460 = vor.u32 1.1754944e-38, %v4459
        %v4461 = vsel %vm4458, %v4460, %v4456
        %v4462 = vmul.f32 1.0, %v4461
        %v4463 = vrcp.pop %v4153
        %v4464 = vmul.f32 %v4153, %v4463
        %v4465 = vsub.f32 1.0, %v4464
        %v4466 = vmul.f32 %v4463, %v4465
        %v4467 = vadd.f32 %v4463, %v4466
        %vm4468 = vweird.f32 %v4153
        %vm4469 = vweird.f32 %v4463
        %vm4470 = vmor %vm4468, %vm4469
        %v4471 = vsel %vm4470, %v4463, %v4467
        %v4472 = vand.u32 2147483647, %v4153
        %vm4473 = vcmp.eq.f32.partialorder %v4472, 8.507059e+37
        %v4474 = vand.u32 %v4153, 2147483648
        %v4475 = vor.u32 1.1754944e-38, %v4474
        %v4476 = vsel %vm4473, %v4475, %v4471
        %v4477 = vmul.f32 1.0, %v4476
        %v4478 = vrcp.pop %v4154
        %v4479 = vmul.f32 %v4154, %v4478
        %v4480 = vsub.f32 1.0, %v4479
        %v4481 = vmul.f32 %v4478, %v4480
        %v4482 = vadd.f32 %v4478, %v4481
        %vm4483 = vweird.f32 %v4154
        %vm4484 = vweird.f32 %v4478
        %vm4485 = vmor %vm4483, %vm4484
        %v4486 = vsel %vm4485, %v4478, %v4482
        %v4487 = vand.u32 2147483647, %v4154
        %vm4488 = vcmp.eq.f32.partialorder %v4487, 8.507059e+37
        %v4489 = vand.u32 %v4154, 2147483648
        %v4490 = vor.u32 1.1754944e-38, %v4489
        %v4491 = vsel %vm4488, %v4490, %v4486
        %v4492 = vmul.f32 1.0, %v4491
        %v4493 = vrcp.pop %v4155
        %v4494 = vmul.f32 %v4155, %v4493
        %v4495 = vsub.f32 1.0, %v4494
        %v4496 = vmul.f32 %v4493, %v4495
        %v4497 = vadd.f32 %v4493, %v4496
        %vm4498 = vweird.f32 %v4155
        %vm4499 = vweird.f32 %v4493
        %vm4500 = vmor %vm4498, %vm4499
        %v4501 = vsel %vm4500, %v4493, %v4497
        %v4502 = vand.u32 2147483647, %v4155
        %vm4503 = vcmp.eq.f32.partialorder %v4502, 8.507059e+37
        %v4504 = vand.u32 %v4155, 2147483648
        %v4505 = vor.u32 1.1754944e-38, %v4504
        %v4506 = vsel %vm4503, %v4505, %v4501
        %v4507 = vmul.f32 1.0, %v4506
        %v4508 = vrcp.pop %v4156
        %v4509 = vmul.f32 %v4156, %v4508
        %v4510 = vsub.f32 1.0, %v4509
        %v4511 = vmul.f32 %v4508, %v4510
        %v4512 = vadd.f32 %v4508, %v4511
        %vm4513 = vweird.f32 %v4156
        %vm4514 = vweird.f32 %v4508
        %vm4515 = vmor %vm4513, %vm4514
        %v4516 = vsel %vm4515, %v4508, %v4512
        %v4517 = vand.u32 2147483647, %v4156
        %vm4518 = vcmp.eq.f32.partialorder %v4517, 8.507059e+37
        %v4519 = vand.u32 %v4156, 2147483648
        %v4520 = vor.u32 1.1754944e-38, %v4519
        %v4521 = vsel %vm4518, %v4520, %v4516
        %v4522 = vmul.f32 1.0, %v4521
        %v4523 = vrcp.pop %v4157
        %v4524 = vmul.f32 %v4157, %v4523
        %v4525 = vsub.f32 1.0, %v4524
        %v4526 = vmul.f32 %v4523, %v4525
        %v4527 = vadd.f32 %v4523, %v4526
        %vm4528 = vweird.f32 %v4157
        %vm4529 = vweird.f32 %v4523
        %vm4530 = vmor %vm4528, %vm4529
        %v4531 = vsel %vm4530, %v4523, %v4527
        %v4532 = vand.u32 2147483647, %v4157
        %vm4533 = vcmp.eq.f32.partialorder %v4532, 8.507059e+37
        %v4534 = vand.u32 %v4157, 2147483648
        %v4535 = vor.u32 1.1754944e-38, %v4534
        %v4536 = vsel %vm4533, %v4535, %v4531
        %v4537 = vmul.f32 1.0, %v4536
        %v4538 = vrcp.pop %v4158
        %v4539 = vmul.f32 %v4158, %v4538
        %v4540 = vsub.f32 1.0, %v4539
        %v4541 = vmul.f32 %v4538, %v4540
        %v4542 = vadd.f32 %v4538, %v4541
        %vm4543 = vweird.f32 %v4158
        %vm4544 = vweird.f32 %v4538
        %vm4545 = vmor %vm4543, %vm4544
        %v4546 = vsel %vm4545, %v4538, %v4542
        %v4547 = vand.u32 2147483647, %v4158
        %vm4548 = vcmp.eq.f32.partialorder %v4547, 8.507059e+37
        %v4549 = vand.u32 %v4158, 2147483648
        %v4550 = vor.u32 1.1754944e-38, %v4549
        %v4551 = vsel %vm4548, %v4550, %v4546
        %v4552 = vmul.f32 1.0, %v4551
        %v4553 = vrcp.pop %v4159
        %v4554 = vmul.f32 %v4159, %v4553
        %v4555 = vsub.f32 1.0, %v4554
        %v4556 = vmul.f32 %v4553, %v4555
        %v4557 = vadd.f32 %v4553, %v4556
        %vm4558 = vweird.f32 %v4159
        %vm4559 = vweird.f32 %v4553
        %vm4560 = vmor %vm4558, %vm4559
        %v4561 = vsel %vm4560, %v4553, %v4557
        %v4562 = vand.u32 2147483647, %v4159
        %vm4563 = vcmp.eq.f32.partialorder %v4562, 8.507059e+37
        %v4564 = vand.u32 %v4159, 2147483648
        %v4565 = vor.u32 1.1754944e-38, %v4564
        %v4566 = vsel %vm4563, %v4565, %v4561
        %v4567 = vmul.f32 1.0, %v4566
        %v4568 = vrcp.pop %v4160
        %v4569 = vmul.f32 %v4160, %v4568
        %v4570 = vsub.f32 1.0, %v4569
        %v4571 = vmul.f32 %v4568, %v4570
        %v4572 = vadd.f32 %v4568, %v4571
        %vm4573 = vweird.f32 %v4160
        %vm4574 = vweird.f32 %v4568
        %vm4575 = vmor %vm4573, %vm4574
        %v4576 = vsel %vm4575, %v4568, %v4572
        %v4577 = vand.u32 2147483647, %v4160
        %vm4578 = vcmp.eq.f32.partialorder %v4577, 8.507059e+37
        %v4579 = vand.u32 %v4160, 2147483648
        %v4580 = vor.u32 1.1754944e-38, %v4579
        %v4581 = vsel %vm4578, %v4580, %v4576
        %v4582 = vmul.f32 1.0, %v4581
        %v4583 = vrcp.pop %v4161
        %v4584 = vmul.f32 %v4161, %v4583
        %v4585 = vsub.f32 1.0, %v4584
        %v4586 = vmul.f32 %v4583, %v4585
        %v4587 = vadd.f32 %v4583, %v4586
        %vm4588 = vweird.f32 %v4161
        %vm4589 = vweird.f32 %v4583
        %vm4590 = vmor %vm4588, %vm4589
        %v4591 = vsel %vm4590, %v4583, %v4587
        %v4592 = vand.u32 2147483647, %v4161
        %vm4593 = vcmp.eq.f32.partialorder %v4592, 8.507059e+37
        %v4594 = vand.u32 %v4161, 2147483648
        %v4595 = vor.u32 1.1754944e-38, %v4594
        %v4596 = vsel %vm4593, %v4595, %v4591
        %v4597 = vmul.f32 1.0, %v4596
        %v4598 = vrcp.pop %v4162
        %v4599 = vmul.f32 %v4162, %v4598
        %v4600 = vsub.f32 1.0, %v4599
        %v4601 = vmul.f32 %v4598, %v4600
        %v4602 = vadd.f32 %v4598, %v4601
        %vm4603 = vweird.f32 %v4162
        %vm4604 = vweird.f32 %v4598
        %vm4605 = vmor %vm4603, %vm4604
        %v4606 = vsel %vm4605, %v4598, %v4602
        %v4607 = vand.u32 2147483647, %v4162
        %vm4608 = vcmp.eq.f32.partialorder %v4607, 8.507059e+37
        %v4609 = vand.u32 %v4162, 2147483648
        %v4610 = vor.u32 1.1754944e-38, %v4609
        %v4611 = vsel %vm4608, %v4610, %v4606
        %v4612 = vmul.f32 1.0, %v4611
        %v4613 = vrcp.pop %v4163
        %v4614 = vmul.f32 %v4163, %v4613
        %v4615 = vsub.f32 1.0, %v4614
        %v4616 = vmul.f32 %v4613, %v4615
        %v4617 = vadd.f32 %v4613, %v4616
        %vm4618 = vweird.f32 %v4163
        %vm4619 = vweird.f32 %v4613
        %vm4620 = vmor %vm4618, %vm4619
        %v4621 = vsel %vm4620, %v4613, %v4617
        %v4622 = vand.u32 2147483647, %v4163
        %vm4623 = vcmp.eq.f32.partialorder %v4622, 8.507059e+37
        %v4624 = vand.u32 %v4163, 2147483648
        %v4625 = vor.u32 1.1754944e-38, %v4624
        %v4626 = vsel %vm4623, %v4625, %v4621
        %v4627 = vmul.f32 1.0, %v4626
        %v4628 = vrcp.pop %v4164
        %v4629 = vmul.f32 %v4164, %v4628
        %v4630 = vsub.f32 1.0, %v4629
        %v4631 = vmul.f32 %v4628, %v4630
        %v4632 = vadd.f32 %v4628, %v4631
        %vm4633 = vweird.f32 %v4164
        %vm4634 = vweird.f32 %v4628
        %vm4635 = vmor %vm4633, %vm4634
        %v4636 = vsel %vm4635, %v4628, %v4632
        %v4637 = vand.u32 2147483647, %v4164
        %vm4638 = vcmp.eq.f32.partialorder %v4637, 8.507059e+37
        %v4639 = vand.u32 %v4164, 2147483648
        %v4640 = vor.u32 1.1754944e-38, %v4639
        %v4641 = vsel %vm4638, %v4640, %v4636
        %v4642 = vmul.f32 1.0, %v4641
        %v4643 = vrcp.pop %v4165
        %v4644 = vmul.f32 %v4165, %v4643
        %v4645 = vsub.f32 1.0, %v4644
        %v4646 = vmul.f32 %v4643, %v4645
        %v4647 = vadd.f32 %v4643, %v4646
        %vm4648 = vweird.f32 %v4165
        %vm4649 = vweird.f32 %v4643
        %vm4650 = vmor %vm4648, %vm4649
        %v4651 = vsel %vm4650, %v4643, %v4647
        %v4652 = vand.u32 2147483647, %v4165
        %vm4653 = vcmp.eq.f32.partialorder %v4652, 8.507059e+37
        %v4654 = vand.u32 %v4165, 2147483648
        %v4655 = vor.u32 1.1754944e-38, %v4654
        %v4656 = vsel %vm4653, %v4655, %v4651
        %v4657 = vmul.f32 1.0, %v4656
        %v4658 = vrcp.pop %v4166
        %v4659 = vmul.f32 %v4166, %v4658
        %v4660 = vsub.f32 1.0, %v4659
        %v4661 = vmul.f32 %v4658, %v4660
        %v4662 = vadd.f32 %v4658, %v4661
        %vm4663 = vweird.f32 %v4166
        %vm4664 = vweird.f32 %v4658
        %vm4665 = vmor %vm4663, %vm4664
        %v4666 = vsel %vm4665, %v4658, %v4662
        %v4667 = vand.u32 2147483647, %v4166
        %vm4668 = vcmp.eq.f32.partialorder %v4667, 8.507059e+37
        %v4669 = vand.u32 %v4166, 2147483648
        %v4670 = vor.u32 1.1754944e-38, %v4669
        %v4671 = vsel %vm4668, %v4670, %v4666
        %v4672 = vmul.f32 1.0, %v4671
        %v4673 = vrcp.pop %v4167
        %v4674 = vmul.f32 %v4167, %v4673
        %v4675 = vsub.f32 1.0, %v4674
        %v4676 = vmul.f32 %v4673, %v4675
        %v4677 = vadd.f32 %v4673, %v4676
        %vm4678 = vweird.f32 %v4167
        %vm4679 = vweird.f32 %v4673
        %vm4680 = vmor %vm4678, %vm4679
        %v4681 = vsel %vm4680, %v4673, %v4677
        %v4682 = vand.u32 2147483647, %v4167
        %vm4683 = vcmp.eq.f32.partialorder %v4682, 8.507059e+37
        %v4684 = vand.u32 %v4167, 2147483648
        %v4685 = vor.u32 1.1754944e-38, %v4684
        %v4686 = vsel %vm4683, %v4685, %v4681
        %v4687 = vmul.f32 1.0, %v4686
        %v4688 = vrcp.pop %v4168
        %v4689 = vmul.f32 %v4168, %v4688
        %v4690 = vsub.f32 1.0, %v4689
        %v4691 = vmul.f32 %v4688, %v4690
        %v4692 = vadd.f32 %v4688, %v4691
        %vm4693 = vweird.f32 %v4168
        %vm4694 = vweird.f32 %v4688
        %vm4695 = vmor %vm4693, %vm4694
        %v4696 = vsel %vm4695, %v4688, %v4692
        %v4697 = vand.u32 2147483647, %v4168
        %vm4698 = vcmp.eq.f32.partialorder %v4697, 8.507059e+37
        %v4699 = vand.u32 %v4168, 2147483648
        %v4700 = vor.u32 1.1754944e-38, %v4699
        %v4701 = vsel %vm4698, %v4700, %v4696
        %v4702 = vmul.f32 1.0, %v4701
        %v4703 = vrcp.pop %v4169
        %v4704 = vmul.f32 %v4169, %v4703
        %v4705 = vsub.f32 1.0, %v4704
        %v4706 = vmul.f32 %v4703, %v4705
        %v4707 = vadd.f32 %v4703, %v4706
        %vm4708 = vweird.f32 %v4169
        %vm4709 = vweird.f32 %v4703
        %vm4710 = vmor %vm4708, %vm4709
        %v4711 = vsel %vm4710, %v4703, %v4707
        %v4712 = vand.u32 2147483647, %v4169
        %vm4713 = vcmp.eq.f32.partialorder %v4712, 8.507059e+37
        %v4714 = vand.u32 %v4169, 2147483648
        %v4715 = vor.u32 1.1754944e-38, %v4714
        %v4716 = vsel %vm4713, %v4715, %v4711
        %v4717 = vmul.f32 1.0, %v4716
        %v4718 = vrcp.pop %v4170
        %v4719 = vmul.f32 %v4170, %v4718
        %v4720 = vsub.f32 1.0, %v4719
        %v4721 = vmul.f32 %v4718, %v4720
        %v4722 = vadd.f32 %v4718, %v4721
        %vm4723 = vweird.f32 %v4170
        %vm4724 = vweird.f32 %v4718
        %vm4725 = vmor %vm4723, %vm4724
        %v4726 = vsel %vm4725, %v4718, %v4722
        %v4727 = vand.u32 2147483647, %v4170
        %vm4728 = vcmp.eq.f32.partialorder %v4727, 8.507059e+37
        %v4729 = vand.u32 %v4170, 2147483648
        %v4730 = vor.u32 1.1754944e-38, %v4729
        %v4731 = vsel %vm4728, %v4730, %v4726
        %v4732 = vmul.f32 1.0, %v4731
        %v4733 = vrcp.pop %v4171
        %v4734 = vmul.f32 %v4171, %v4733
        %v4735 = vsub.f32 1.0, %v4734
        %v4736 = vmul.f32 %v4733, %v4735
        %v4737 = vadd.f32 %v4733, %v4736
        %vm4738 = vweird.f32 %v4171
        %vm4739 = vweird.f32 %v4733
        %vm4740 = vmor %vm4738, %vm4739
        %v4741 = vsel %vm4740, %v4733, %v4737
        %v4742 = vand.u32 2147483647, %v4171
        %vm4743 = vcmp.eq.f32.partialorder %v4742, 8.507059e+37
        %v4744 = vand.u32 %v4171, 2147483648
        %v4745 = vor.u32 1.1754944e-38, %v4744
        %v4746 = vsel %vm4743, %v4745, %v4741
        %v4747 = vmul.f32 1.0, %v4746
        %v4748 = vrcp.pop %v4172
        %v4749 = vmul.f32 %v4172, %v4748
        %v4750 = vsub.f32 1.0, %v4749
        %v4751 = vmul.f32 %v4748, %v4750
        %v4752 = vadd.f32 %v4748, %v4751
        %vm4753 = vweird.f32 %v4172
        %vm4754 = vweird.f32 %v4748
        %vm4755 = vmor %vm4753, %vm4754
        %v4756 = vsel %vm4755, %v4748, %v4752
        %v4757 = vand.u32 2147483647, %v4172
        %vm4758 = vcmp.eq.f32.partialorder %v4757, 8.507059e+37
        %v4759 = vand.u32 %v4172, 2147483648
        %v4760 = vor.u32 1.1754944e-38, %v4759
        %v4761 = vsel %vm4758, %v4760, %v4756
        %v4762 = vmul.f32 1.0, %v4761
        %v4763 = vrcp.pop %v4173
        %v4764 = vmul.f32 %v4173, %v4763
        %v4765 = vsub.f32 1.0, %v4764
        %v4766 = vmul.f32 %v4763, %v4765
        %v4767 = vadd.f32 %v4763, %v4766
        %vm4768 = vweird.f32 %v4173
        %vm4769 = vweird.f32 %v4763
        %vm4770 = vmor %vm4768, %vm4769
        %v4771 = vsel %vm4770, %v4763, %v4767
        %v4772 = vand.u32 2147483647, %v4173
        %vm4773 = vcmp.eq.f32.partialorder %v4772, 8.507059e+37
        %v4774 = vand.u32 %v4173, 2147483648
        %v4775 = vor.u32 1.1754944e-38, %v4774
        %v4776 = vsel %vm4773, %v4775, %v4771
        %v4777 = vmul.f32 1.0, %v4776
        %v4778 = vrcp.pop %v4174
        %v4779 = vmul.f32 %v4174, %v4778
        %v4780 = vsub.f32 1.0, %v4779
        %v4781 = vmul.f32 %v4778, %v4780
        %v4782 = vadd.f32 %v4778, %v4781
        %vm4783 = vweird.f32 %v4174
        %vm4784 = vweird.f32 %v4778
        %vm4785 = vmor %vm4783, %vm4784
        %v4786 = vsel %vm4785, %v4778, %v4782
        %v4787 = vand.u32 2147483647, %v4174
        %vm4788 = vcmp.eq.f32.partialorder %v4787, 8.507059e+37
        %v4789 = vand.u32 %v4174, 2147483648
        %v4790 = vor.u32 1.1754944e-38, %v4789
        %v4791 = vsel %vm4788, %v4790, %v4786
        %v4792 = vmul.f32 1.0, %v4791
        %v4793 = vrcp.pop %v4175
        %v4794 = vmul.f32 %v4175, %v4793
        %v4795 = vsub.f32 1.0, %v4794
        %v4796 = vmul.f32 %v4793, %v4795
        %v4797 = vadd.f32 %v4793, %v4796
        %vm4798 = vweird.f32 %v4175
        %vm4799 = vweird.f32 %v4793
        %vm4800 = vmor %vm4798, %vm4799
        %v4801 = vsel %vm4800, %v4793, %v4797
        %v4802 = vand.u32 2147483647, %v4175
        %vm4803 = vcmp.eq.f32.partialorder %v4802, 8.507059e+37
        %v4804 = vand.u32 %v4175, 2147483648
        %v4805 = vor.u32 1.1754944e-38, %v4804
        %v4806 = vsel %vm4803, %v4805, %v4801
        %v4807 = vmul.f32 1.0, %v4806
        %v4808 = vrcp.pop %v4176
        %v4809 = vmul.f32 %v4176, %v4808
        %v4810 = vsub.f32 1.0, %v4809
        %v4811 = vmul.f32 %v4808, %v4810
        %v4812 = vadd.f32 %v4808, %v4811
        %vm4813 = vweird.f32 %v4176
        %vm4814 = vweird.f32 %v4808
        %vm4815 = vmor %vm4813, %vm4814
        %v4816 = vsel %vm4815, %v4808, %v4812
        %v4817 = vand.u32 2147483647, %v4176
        %vm4818 = vcmp.eq.f32.partialorder %v4817, 8.507059e+37
        %v4819 = vand.u32 %v4176, 2147483648
        %v4820 = vor.u32 1.1754944e-38, %v4819
        %v4821 = vsel %vm4818, %v4820, %v4816
        %v4822 = vmul.f32 1.0, %v4821
        %v4823 = vrcp.pop %v4177
        %v4824 = vmul.f32 %v4177, %v4823
        %v4825 = vsub.f32 1.0, %v4824
        %v4826 = vmul.f32 %v4823, %v4825
        %v4827 = vadd.f32 %v4823, %v4826
        %vm4828 = vweird.f32 %v4177
        %vm4829 = vweird.f32 %v4823
        %vm4830 = vmor %vm4828, %vm4829
        %v4831 = vsel %vm4830, %v4823, %v4827
        %v4832 = vand.u32 2147483647, %v4177
        %vm4833 = vcmp.eq.f32.partialorder %v4832, 8.507059e+37
        %v4834 = vand.u32 %v4177, 2147483648
        %v4835 = vor.u32 1.1754944e-38, %v4834
        %v4836 = vsel %vm4833, %v4835, %v4831
        %v4837 = vmul.f32 1.0, %v4836
        %v4838 = vrcp.pop %v4178
        %v4839 = vmul.f32 %v4178, %v4838
        %v4840 = vsub.f32 1.0, %v4839
        %v4841 = vmul.f32 %v4838, %v4840
        %v4842 = vadd.f32 %v4838, %v4841
        %vm4843 = vweird.f32 %v4178
        %vm4844 = vweird.f32 %v4838
        %vm4845 = vmor %vm4843, %vm4844
        %v4846 = vsel %vm4845, %v4838, %v4842
        %v4847 = vand.u32 2147483647, %v4178
        %vm4848 = vcmp.eq.f32.partialorder %v4847, 8.507059e+37
        %v4849 = vand.u32 %v4178, 2147483648
        %v4850 = vor.u32 1.1754944e-38, %v4849
        %v4851 = vsel %vm4848, %v4850, %v4846
        %v4852 = vmul.f32 1.0, %v4851
        %v4853 = vrcp.pop %v4179
        %v4854 = vmul.f32 %v4179, %v4853
        %v4855 = vsub.f32 1.0, %v4854
        %v4856 = vmul.f32 %v4853, %v4855
        %v4857 = vadd.f32 %v4853, %v4856
        %vm4858 = vweird.f32 %v4179
        %vm4859 = vweird.f32 %v4853
        %vm4860 = vmor %vm4858, %vm4859
        %v4861 = vsel %vm4860, %v4853, %v4857
        %v4862 = vand.u32 2147483647, %v4179
        %vm4863 = vcmp.eq.f32.partialorder %v4862, 8.507059e+37
        %v4864 = vand.u32 %v4179, 2147483648
        %v4865 = vor.u32 1.1754944e-38, %v4864
        %v4866 = vsel %vm4863, %v4865, %v4861
        %v4867 = vmul.f32 1.0, %v4866
        %v4868 = vrcp.pop %v4180
        %v4869 = vmul.f32 %v4180, %v4868
        %v4870 = vsub.f32 1.0, %v4869
        %v4871 = vmul.f32 %v4868, %v4870
        %v4872 = vadd.f32 %v4868, %v4871
        %vm4873 = vweird.f32 %v4180
        %vm4874 = vweird.f32 %v4868
        %vm4875 = vmor %vm4873, %vm4874
        %v4876 = vsel %vm4875, %v4868, %v4872
        %v4877 = vand.u32 2147483647, %v4180
        %vm4878 = vcmp.eq.f32.partialorder %v4877, 8.507059e+37
        %v4879 = vand.u32 %v4180, 2147483648
        %v4880 = vor.u32 1.1754944e-38, %v4879
        %v4881 = vsel %vm4878, %v4880, %v4876
        %v4882 = vmul.f32 1.0, %v4881
        %v4883 = vrcp.pop %v4181
        %v4884 = vmul.f32 %v4181, %v4883
        %v4885 = vsub.f32 1.0, %v4884
        %v4886 = vmul.f32 %v4883, %v4885
        %v4887 = vadd.f32 %v4883, %v4886
        %vm4888 = vweird.f32 %v4181
        %vm4889 = vweird.f32 %v4883
        %vm4890 = vmor %vm4888, %vm4889
        %v4891 = vsel %vm4890, %v4883, %v4887
        %v4892 = vand.u32 2147483647, %v4181
        %vm4893 = vcmp.eq.f32.partialorder %v4892, 8.507059e+37
        %v4894 = vand.u32 %v4181, 2147483648
        %v4895 = vor.u32 1.1754944e-38, %v4894
        %v4896 = vsel %vm4893, %v4895, %v4891
        %v4897 = vmul.f32 1.0, %v4896
        %v4898 = vrcp.pop %v4182
        %v4899 = vmul.f32 %v4182, %v4898
        %v4900 = vsub.f32 1.0, %v4899
        %v4901 = vmul.f32 %v4898, %v4900
        %v4902 = vadd.f32 %v4898, %v4901
        %vm4903 = vweird.f32 %v4182
        %vm4904 = vweird.f32 %v4898
        %vm4905 = vmor %vm4903, %vm4904
        %v4906 = vsel %vm4905, %v4898, %v4902
        %v4907 = vand.u32 2147483647, %v4182
        %vm4908 = vcmp.eq.f32.partialorder %v4907, 8.507059e+37
        %v4909 = vand.u32 %v4182, 2147483648
        %v4910 = vor.u32 1.1754944e-38, %v4909
        %v4911 = vsel %vm4908, %v4910, %v4906
        %v4912 = vmul.f32 1.0, %v4911
        %v4913 = vrcp.pop %v4183
        %v4914 = vmul.f32 %v4183, %v4913
        %v4915 = vsub.f32 1.0, %v4914
        %v4916 = vmul.f32 %v4913, %v4915
        %v4917 = vadd.f32 %v4913, %v4916
        %vm4918 = vweird.f32 %v4183
        %vm4919 = vweird.f32 %v4913
        %vm4920 = vmor %vm4918, %vm4919
        %v4921 = vsel %vm4920, %v4913, %v4917
        %v4922 = vand.u32 2147483647, %v4183
        %vm4923 = vcmp.eq.f32.partialorder %v4922, 8.507059e+37
        %v4924 = vand.u32 %v4183, 2147483648
        %v4925 = vor.u32 1.1754944e-38, %v4924
        %v4926 = vsel %vm4923, %v4925, %v4921
        %v4927 = vmul.f32 1.0, %v4926
        %v4928 = vrcp.pop %v4184
        %v4929 = vmul.f32 %v4184, %v4928
        %v4930 = vsub.f32 1.0, %v4929
        %v4931 = vmul.f32 %v4928, %v4930
        %v4932 = vadd.f32 %v4928, %v4931
        %vm4933 = vweird.f32 %v4184
        %vm4934 = vweird.f32 %v4928
        %vm4935 = vmor %vm4933, %vm4934
        %v4936 = vsel %vm4935, %v4928, %v4932
        %v4937 = vand.u32 2147483647, %v4184
        %vm4938 = vcmp.eq.f32.partialorder %v4937, 8.507059e+37
        %v4939 = vand.u32 %v4184, 2147483648
        %v4940 = vor.u32 1.1754944e-38, %v4939
        %v4941 = vsel %vm4938, %v4940, %v4936
        %v4942 = vmul.f32 1.0, %v4941
        %v4943 = vrcp.pop %v4185
        %v4944 = vmul.f32 %v4185, %v4943
        %v4945 = vsub.f32 1.0, %v4944
        %v4946 = vmul.f32 %v4943, %v4945
        %v4947 = vadd.f32 %v4943, %v4946
        %vm4948 = vweird.f32 %v4185
        %vm4949 = vweird.f32 %v4943
        %vm4950 = vmor %vm4948, %vm4949
        %v4951 = vsel %vm4950, %v4943, %v4947
        %v4952 = vand.u32 2147483647, %v4185
        %vm4953 = vcmp.eq.f32.partialorder %v4952, 8.507059e+37
        %v4954 = vand.u32 %v4185, 2147483648
        %v4955 = vor.u32 1.1754944e-38, %v4954
        %v4956 = vsel %vm4953, %v4955, %v4951
        %v4957 = vmul.f32 1.0, %v4956
        %v4958 = vrcp.pop %v4186
        %v4959 = vmul.f32 %v4186, %v4958
        %v4960 = vsub.f32 1.0, %v4959
        %v4961 = vmul.f32 %v4958, %v4960
        %v4962 = vadd.f32 %v4958, %v4961
        %vm4963 = vweird.f32 %v4186
        %vm4964 = vweird.f32 %v4958
        %vm4965 = vmor %vm4963, %vm4964
        %v4966 = vsel %vm4965, %v4958, %v4962
        %v4967 = vand.u32 2147483647, %v4186
        %vm4968 = vcmp.eq.f32.partialorder %v4967, 8.507059e+37
        %v4969 = vand.u32 %v4186, 2147483648
        %v4970 = vor.u32 1.1754944e-38, %v4969
        %v4971 = vsel %vm4968, %v4970, %v4966
        %v4972 = vmul.f32 1.0, %v4971
        %v4973 = vrcp.pop %v4187
        %v4974 = vmul.f32 %v4187, %v4973
        %v4975 = vsub.f32 1.0, %v4974
        %v4976 = vmul.f32 %v4973, %v4975
        %v4977 = vadd.f32 %v4973, %v4976
        %vm4978 = vweird.f32 %v4187
        %vm4979 = vweird.f32 %v4973
        %vm4980 = vmor %vm4978, %vm4979
        %v4981 = vsel %vm4980, %v4973, %v4977
        %v4982 = vand.u32 2147483647, %v4187
        %vm4983 = vcmp.eq.f32.partialorder %v4982, 8.507059e+37
        %v4984 = vand.u32 %v4187, 2147483648
        %v4985 = vor.u32 1.1754944e-38, %v4984
        %v4986 = vsel %vm4983, %v4985, %v4981
        %v4987 = vmul.f32 1.0, %v4986
        %v4988 = vrcp.pop %v4188
        %v4989 = vmul.f32 %v4188, %v4988
        %v4990 = vsub.f32 1.0, %v4989
        %v4991 = vmul.f32 %v4988, %v4990
        %v4992 = vadd.f32 %v4988, %v4991
        %vm4993 = vweird.f32 %v4188
        %vm4994 = vweird.f32 %v4988
        %vm4995 = vmor %vm4993, %vm4994
        %v4996 = vsel %vm4995, %v4988, %v4992
        %v4997 = vand.u32 2147483647, %v4188
        %vm4998 = vcmp.eq.f32.partialorder %v4997, 8.507059e+37
        %v4999 = vand.u32 %v4188, 2147483648
        %v5000 = vor.u32 1.1754944e-38, %v4999
        %v5001 = vsel %vm4998, %v5000, %v4996
        %v5002 = vmul.f32 1.0, %v5001
        %v5003 = vrcp.pop %v4189
        %v5004 = vmul.f32 %v4189, %v5003
        %v5005 = vsub.f32 1.0, %v5004
        %v5006 = vmul.f32 %v5003, %v5005
        %v5007 = vadd.f32 %v5003, %v5006
        %vm5008 = vweird.f32 %v4189
        %vm5009 = vweird.f32 %v5003
        %vm5010 = vmor %vm5008, %vm5009
        %v5011 = vsel %vm5010, %v5003, %v5007
        %v5012 = vand.u32 2147483647, %v4189
        %vm5013 = vcmp.eq.f32.partialorder %v5012, 8.507059e+37
        %v5014 = vand.u32 %v4189, 2147483648
        %v5015 = vor.u32 1.1754944e-38, %v5014
        %v5016 = vsel %vm5013, %v5015, %v5011
        %v5017 = vmul.f32 1.0, %v5016
        %v5018 = vrcp.pop %v4190
        %v5019 = vmul.f32 %v4190, %v5018
        %v5020 = vsub.f32 1.0, %v5019
        %v5021 = vmul.f32 %v5018, %v5020
        %v5022 = vadd.f32 %v5018, %v5021
        %vm5023 = vweird.f32 %v4190
        %vm5024 = vweird.f32 %v5018
        %vm5025 = vmor %vm5023, %vm5024
        %v5026 = vsel %vm5025, %v5018, %v5022
        %v5027 = vand.u32 2147483647, %v4190
        %vm5028 = vcmp.eq.f32.partialorder %v5027, 8.507059e+37
        %v5029 = vand.u32 %v4190, 2147483648
        %v5030 = vor.u32 1.1754944e-38, %v5029
        %v5031 = vsel %vm5028, %v5030, %v5026
        %v5032 = vmul.f32 1.0, %v5031
        %v5033 = vrcp.pop %v4191
        %v5034 = vmul.f32 %v4191, %v5033
        %v5035 = vsub.f32 1.0, %v5034
        %v5036 = vmul.f32 %v5033, %v5035
        %v5037 = vadd.f32 %v5033, %v5036
        %vm5038 = vweird.f32 %v4191
        %vm5039 = vweird.f32 %v5033
        %vm5040 = vmor %vm5038, %vm5039
        %v5041 = vsel %vm5040, %v5033, %v5037
        %v5042 = vand.u32 2147483647, %v4191
        %vm5043 = vcmp.eq.f32.partialorder %v5042, 8.507059e+37
        %v5044 = vand.u32 %v4191, 2147483648
        %v5045 = vor.u32 1.1754944e-38, %v5044
        %v5046 = vsel %vm5043, %v5045, %v5041
        %v5047 = vmul.f32 1.0, %v5046
        %v5048 = vrcp.pop %v4192
        %v5049 = vmul.f32 %v4192, %v5048
        %v5050 = vsub.f32 1.0, %v5049
        %v5051 = vmul.f32 %v5048, %v5050
        %v5052 = vadd.f32 %v5048, %v5051
        %vm5053 = vweird.f32 %v4192
        %vm5054 = vweird.f32 %v5048
        %vm5055 = vmor %vm5053, %vm5054
        %v5056 = vsel %vm5055, %v5048, %v5052
        %v5057 = vand.u32 2147483647, %v4192
        %vm5058 = vcmp.eq.f32.partialorder %v5057, 8.507059e+37
        %v5059 = vand.u32 %v4192, 2147483648
        %v5060 = vor.u32 1.1754944e-38, %v5059
        %v5061 = vsel %vm5058, %v5060, %v5056
        %v5062 = vmul.f32 1.0, %v5061
        %v5063 = vrcp.pop %v4193
        %v5064 = vmul.f32 %v4193, %v5063
        %v5065 = vsub.f32 1.0, %v5064
        %v5066 = vmul.f32 %v5063, %v5065
        %v5067 = vadd.f32 %v5063, %v5066
        %vm5068 = vweird.f32 %v4193
        %vm5069 = vweird.f32 %v5063
        %vm5070 = vmor %vm5068, %vm5069
        %v5071 = vsel %vm5070, %v5063, %v5067
        %v5072 = vand.u32 2147483647, %v4193
        %vm5073 = vcmp.eq.f32.partialorder %v5072, 8.507059e+37
        %v5074 = vand.u32 %v4193, 2147483648
        %v5075 = vor.u32 1.1754944e-38, %v5074
        %v5076 = vsel %vm5073, %v5075, %v5071
        %v5077 = vmul.f32 1.0, %v5076
        %v5078 = vrcp.pop %v4194
        %v5079 = vmul.f32 %v4194, %v5078
        %v5080 = vsub.f32 1.0, %v5079
        %v5081 = vmul.f32 %v5078, %v5080
        %v5082 = vadd.f32 %v5078, %v5081
        %vm5083 = vweird.f32 %v4194
        %vm5084 = vweird.f32 %v5078
        %vm5085 = vmor %vm5083, %vm5084
        %v5086 = vsel %vm5085, %v5078, %v5082
        %v5087 = vand.u32 2147483647, %v4194
        %vm5088 = vcmp.eq.f32.partialorder %v5087, 8.507059e+37
        %v5089 = vand.u32 %v4194, 2147483648
        %v5090 = vor.u32 1.1754944e-38, %v5089
        %v5091 = vsel %vm5088, %v5090, %v5086
        %v5092 = vmul.f32 1.0, %v5091
        %v5093 = vrcp.pop %v4195
        %v5094 = vmul.f32 %v4195, %v5093
        %v5095 = vsub.f32 1.0, %v5094
        %v5096 = vmul.f32 %v5093, %v5095
        %v5097 = vadd.f32 %v5093, %v5096
        %vm5098 = vweird.f32 %v4195
        %vm5099 = vweird.f32 %v5093
        %vm5100 = vmor %vm5098, %vm5099
        %v5101 = vsel %vm5100, %v5093, %v5097
        %v5102 = vand.u32 2147483647, %v4195
        %vm5103 = vcmp.eq.f32.partialorder %v5102, 8.507059e+37
        %v5104 = vand.u32 %v4195, 2147483648
        %v5105 = vor.u32 1.1754944e-38, %v5104
        %v5106 = vsel %vm5103, %v5105, %v5101
        %v5107 = vmul.f32 1.0, %v5106
        %v5108 = vrcp.pop %v4196
        %v5109 = vmul.f32 %v4196, %v5108
        %v5110 = vsub.f32 1.0, %v5109
        %v5111 = vmul.f32 %v5108, %v5110
        %v5112 = vadd.f32 %v5108, %v5111
        %vm5113 = vweird.f32 %v4196
        %vm5114 = vweird.f32 %v5108
        %vm5115 = vmor %vm5113, %vm5114
        %v5116 = vsel %vm5115, %v5108, %v5112
        %v5117 = vand.u32 2147483647, %v4196
        %vm5118 = vcmp.eq.f32.partialorder %v5117, 8.507059e+37
        %v5119 = vand.u32 %v4196, 2147483648
        %v5120 = vor.u32 1.1754944e-38, %v5119
        %v5121 = vsel %vm5118, %v5120, %v5116
        %v5122 = vmul.f32 1.0, %v5121
        %v5123 = vrcp.pop %v4197
        %v5124 = vmul.f32 %v4197, %v5123
        %v5125 = vsub.f32 1.0, %v5124
        %v5126 = vmul.f32 %v5123, %v5125
        %v5127 = vadd.f32 %v5123, %v5126
        %vm5128 = vweird.f32 %v4197
        %vm5129 = vweird.f32 %v5123
        %vm5130 = vmor %vm5128, %vm5129
        %v5131 = vsel %vm5130, %v5123, %v5127
        %v5132 = vand.u32 2147483647, %v4197
        %vm5133 = vcmp.eq.f32.partialorder %v5132, 8.507059e+37
        %v5134 = vand.u32 %v4197, 2147483648
        %v5135 = vor.u32 1.1754944e-38, %v5134
        %v5136 = vsel %vm5133, %v5135, %v5131
        %v5137 = vmul.f32 1.0, %v5136
        %v5138 = vrcp.pop %v4198
        %v5139 = vmul.f32 %v4198, %v5138
        %v5140 = vsub.f32 1.0, %v5139
        %v5141 = vmul.f32 %v5138, %v5140
        %v5142 = vadd.f32 %v5138, %v5141
        %vm5143 = vweird.f32 %v4198
        %vm5144 = vweird.f32 %v5138
        %vm5145 = vmor %vm5143, %vm5144
        %v5146 = vsel %vm5145, %v5138, %v5142
        %v5147 = vand.u32 2147483647, %v4198
        %vm5148 = vcmp.eq.f32.partialorder %v5147, 8.507059e+37
        %v5149 = vand.u32 %v4198, 2147483648
        %v5150 = vor.u32 1.1754944e-38, %v5149
        %v5151 = vsel %vm5148, %v5150, %v5146
        %v5152 = vmul.f32 1.0, %v5151
        %v5153 = vrcp.pop %v4199
        %v5154 = vmul.f32 %v4199, %v5153
        %v5155 = vsub.f32 1.0, %v5154
        %v5156 = vmul.f32 %v5153, %v5155
        %v5157 = vadd.f32 %v5153, %v5156
        %vm5158 = vweird.f32 %v4199
        %vm5159 = vweird.f32 %v5153
        %vm5160 = vmor %vm5158, %vm5159
        %v5161 = vsel %vm5160, %v5153, %v5157
        %v5162 = vand.u32 2147483647, %v4199
        %vm5163 = vcmp.eq.f32.partialorder %v5162, 8.507059e+37
        %v5164 = vand.u32 %v4199, 2147483648
        %v5165 = vor.u32 1.1754944e-38, %v5164
        %v5166 = vsel %vm5163, %v5165, %v5161
        %v5167 = vmul.f32 1.0, %v5166
        %v5168 = vrcp.pop %v4200
        %v5169 = vmul.f32 %v4200, %v5168
        %v5170 = vsub.f32 1.0, %v5169
        %v5171 = vmul.f32 %v5168, %v5170
        %v5172 = vadd.f32 %v5168, %v5171
        %vm5173 = vweird.f32 %v4200
        %vm5174 = vweird.f32 %v5168
        %vm5175 = vmor %vm5173, %vm5174
        %v5176 = vsel %vm5175, %v5168, %v5172
        %v5177 = vand.u32 2147483647, %v4200
        %vm5178 = vcmp.eq.f32.partialorder %v5177, 8.507059e+37
        %v5179 = vand.u32 %v4200, 2147483648
        %v5180 = vor.u32 1.1754944e-38, %v5179
        %v5181 = vsel %vm5178, %v5180, %v5176
        %v5182 = vmul.f32 1.0, %v5181
        %v5183 = vrcp.pop %v4201
        %v5184 = vmul.f32 %v4201, %v5183
        %v5185 = vsub.f32 1.0, %v5184
        %v5186 = vmul.f32 %v5183, %v5185
        %v5187 = vadd.f32 %v5183, %v5186
        %vm5188 = vweird.f32 %v4201
        %vm5189 = vweird.f32 %v5183
        %vm5190 = vmor %vm5188, %vm5189
        %v5191 = vsel %vm5190, %v5183, %v5187
        %v5192 = vand.u32 2147483647, %v4201
        %vm5193 = vcmp.eq.f32.partialorder %v5192, 8.507059e+37
        %v5194 = vand.u32 %v4201, 2147483648
        %v5195 = vor.u32 1.1754944e-38, %v5194
        %v5196 = vsel %vm5193, %v5195, %v5191
        %v5197 = vmul.f32 1.0, %v5196
        %v5198 = vrcp.pop %v4202
        %v5199 = vmul.f32 %v4202, %v5198
        %v5200 = vsub.f32 1.0, %v5199
        %v5201 = vmul.f32 %v5198, %v5200
        %v5202 = vadd.f32 %v5198, %v5201
        %vm5203 = vweird.f32 %v4202
        %vm5204 = vweird.f32 %v5198
        %vm5205 = vmor %vm5203, %vm5204
        %v5206 = vsel %vm5205, %v5198, %v5202
        %v5207 = vand.u32 2147483647, %v4202
        %vm5208 = vcmp.eq.f32.partialorder %v5207, 8.507059e+37
        %v5209 = vand.u32 %v4202, 2147483648
        %v5210 = vor.u32 1.1754944e-38, %v5209
        %v5211 = vsel %vm5208, %v5210, %v5206
        %v5212 = vmul.f32 1.0, %v5211
        %v5213 = vrcp.pop %v4203
        %v5214 = vmul.f32 %v4203, %v5213
        %v5215 = vsub.f32 1.0, %v5214
        %v5216 = vmul.f32 %v5213, %v5215
        %v5217 = vadd.f32 %v5213, %v5216
        %vm5218 = vweird.f32 %v4203
        %vm5219 = vweird.f32 %v5213
        %vm5220 = vmor %vm5218, %vm5219
        %v5221 = vsel %vm5220, %v5213, %v5217
        %v5222 = vand.u32 2147483647, %v4203
        %vm5223 = vcmp.eq.f32.partialorder %v5222, 8.507059e+37
        %v5224 = vand.u32 %v4203, 2147483648
        %v5225 = vor.u32 1.1754944e-38, %v5224
        %v5226 = vsel %vm5223, %v5225, %v5221
        %v5227 = vmul.f32 1.0, %v5226
        %v5228 = vrcp.pop %v4204
        %v5229 = vmul.f32 %v4204, %v5228
        %v5230 = vsub.f32 1.0, %v5229
        %v5231 = vmul.f32 %v5228, %v5230
        %v5232 = vadd.f32 %v5228, %v5231
        %vm5233 = vweird.f32 %v4204
        %vm5234 = vweird.f32 %v5228
        %vm5235 = vmor %vm5233, %vm5234
        %v5236 = vsel %vm5235, %v5228, %v5232
        %v5237 = vand.u32 2147483647, %v4204
        %vm5238 = vcmp.eq.f32.partialorder %v5237, 8.507059e+37
        %v5239 = vand.u32 %v4204, 2147483648
        %v5240 = vor.u32 1.1754944e-38, %v5239
        %v5241 = vsel %vm5238, %v5240, %v5236
        %v5242 = vmul.f32 1.0, %v5241
        %v5243 = vrcp.pop %v4205
        %v5244 = vmul.f32 %v4205, %v5243
        %v5245 = vsub.f32 1.0, %v5244
        %v5246 = vmul.f32 %v5243, %v5245
        %v5247 = vadd.f32 %v5243, %v5246
        %vm5248 = vweird.f32 %v4205
        %vm5249 = vweird.f32 %v5243
        %vm5250 = vmor %vm5248, %vm5249
        %v5251 = vsel %vm5250, %v5243, %v5247
        %v5252 = vand.u32 2147483647, %v4205
        %vm5253 = vcmp.eq.f32.partialorder %v5252, 8.507059e+37
        %v5254 = vand.u32 %v4205, 2147483648
        %v5255 = vor.u32 1.1754944e-38, %v5254
        %v5256 = vsel %vm5253, %v5255, %v5251
        %v5257 = vmul.f32 1.0, %v5256
        %v5258 = vrcp.pop %v4206
        %v5259 = vmul.f32 %v4206, %v5258
        %v5260 = vsub.f32 1.0, %v5259
        %v5261 = vmul.f32 %v5258, %v5260
        %v5262 = vadd.f32 %v5258, %v5261
        %vm5263 = vweird.f32 %v4206
        %vm5264 = vweird.f32 %v5258
        %vm5265 = vmor %vm5263, %vm5264
        %v5266 = vsel %vm5265, %v5258, %v5262
        %v5267 = vand.u32 2147483647, %v4206
        %vm5268 = vcmp.eq.f32.partialorder %v5267, 8.507059e+37
        %v5269 = vand.u32 %v4206, 2147483648
        %v5270 = vor.u32 1.1754944e-38, %v5269
        %v5271 = vsel %vm5268, %v5270, %v5266
        %v5272 = vmul.f32 1.0, %v5271
        %v5273 = vrcp.pop %v4207
        %v5274 = vmul.f32 %v4207, %v5273
        %v5275 = vsub.f32 1.0, %v5274
        %v5276 = vmul.f32 %v5273, %v5275
        %v5277 = vadd.f32 %v5273, %v5276
        %vm5278 = vweird.f32 %v4207
        %vm5279 = vweird.f32 %v5273
        %vm5280 = vmor %vm5278, %vm5279
        %v5281 = vsel %vm5280, %v5273, %v5277
        %v5282 = vand.u32 2147483647, %v4207
        %vm5283 = vcmp.eq.f32.partialorder %v5282, 8.507059e+37
        %v5284 = vand.u32 %v4207, 2147483648
        %v5285 = vor.u32 1.1754944e-38, %v5284
        %v5286 = vsel %vm5283, %v5285, %v5281
        %v5287 = vmul.f32 1.0, %v5286
        %v5288 = vrcp.pop %v4208
        %v5289 = vmul.f32 %v4208, %v5288
        %v5290 = vsub.f32 1.0, %v5289
        %v5291 = vmul.f32 %v5288, %v5290
        %v5292 = vadd.f32 %v5288, %v5291
        %vm5293 = vweird.f32 %v4208
        %vm5294 = vweird.f32 %v5288
        %vm5295 = vmor %vm5293, %vm5294
        %v5296 = vsel %vm5295, %v5288, %v5292
        %v5297 = vand.u32 2147483647, %v4208
        %vm5298 = vcmp.eq.f32.partialorder %v5297, 8.507059e+37
        %v5299 = vand.u32 %v4208, 2147483648
        %v5300 = vor.u32 1.1754944e-38, %v5299
        %v5301 = vsel %vm5298, %v5300, %v5296
        %v5302 = vmul.f32 1.0, %v5301
        %v5303 = vrcp.pop %v4209
        %v5304 = vmul.f32 %v4209, %v5303
        %v5305 = vsub.f32 1.0, %v5304
        %v5306 = vmul.f32 %v5303, %v5305
        %v5307 = vadd.f32 %v5303, %v5306
        %vm5308 = vweird.f32 %v4209
        %vm5309 = vweird.f32 %v5303
        %vm5310 = vmor %vm5308, %vm5309
        %v5311 = vsel %vm5310, %v5303, %v5307
        %v5312 = vand.u32 2147483647, %v4209
        %vm5313 = vcmp.eq.f32.partialorder %v5312, 8.507059e+37
        %v5314 = vand.u32 %v4209, 2147483648
        %v5315 = vor.u32 1.1754944e-38, %v5314
        %v5316 = vsel %vm5313, %v5315, %v5311
        %v5317 = vmul.f32 1.0, %v5316
        %v5318 = vrcp.pop %v4210
        %v5319 = vmul.f32 %v4210, %v5318
        %v5320 = vsub.f32 1.0, %v5319
        %v5321 = vmul.f32 %v5318, %v5320
        %v5322 = vadd.f32 %v5318, %v5321
        %vm5323 = vweird.f32 %v4210
        %vm5324 = vweird.f32 %v5318
        %vm5325 = vmor %vm5323, %vm5324
        %v5326 = vsel %vm5325, %v5318, %v5322
        %v5327 = vand.u32 2147483647, %v4210
        %vm5328 = vcmp.eq.f32.partialorder %v5327, 8.507059e+37
        %v5329 = vand.u32 %v4210, 2147483648
        %v5330 = vor.u32 1.1754944e-38, %v5329
        %v5331 = vsel %vm5328, %v5330, %v5326
        %v5332 = vmul.f32 1.0, %v5331
        %v5333 = vrcp.pop %v4211
        %v5334 = vmul.f32 %v4211, %v5333
        %v5335 = vsub.f32 1.0, %v5334
        %v5336 = vmul.f32 %v5333, %v5335
        %v5337 = vadd.f32 %v5333, %v5336
        %vm5338 = vweird.f32 %v4211
        %vm5339 = vweird.f32 %v5333
        %vm5340 = vmor %vm5338, %vm5339
        %v5341 = vsel %vm5340, %v5333, %v5337
        %v5342 = vand.u32 2147483647, %v4211
        %vm5343 = vcmp.eq.f32.partialorder %v5342, 8.507059e+37
        %v5344 = vand.u32 %v4211, 2147483648
        %v5345 = vor.u32 1.1754944e-38, %v5344
        %v5346 = vsel %vm5343, %v5345, %v5341
        %v5347 = vmul.f32 1.0, %v5346
        %v5348 = vrcp.pop %v4212
        %v5349 = vmul.f32 %v4212, %v5348
        %v5350 = vsub.f32 1.0, %v5349
        %v5351 = vmul.f32 %v5348, %v5350
        %v5352 = vadd.f32 %v5348, %v5351
        %vm5353 = vweird.f32 %v4212
        %vm5354 = vweird.f32 %v5348
        %vm5355 = vmor %vm5353, %vm5354
        %v5356 = vsel %vm5355, %v5348, %v5352
        %v5357 = vand.u32 2147483647, %v4212
        %vm5358 = vcmp.eq.f32.partialorder %v5357, 8.507059e+37
        %v5359 = vand.u32 %v4212, 2147483648
        %v5360 = vor.u32 1.1754944e-38, %v5359
        %v5361 = vsel %vm5358, %v5360, %v5356
        %v5362 = vmul.f32 1.0, %v5361
        %v5363 = vrcp.pop %v4213
        %v5364 = vmul.f32 %v4213, %v5363
        %v5365 = vsub.f32 1.0, %v5364
        %v5366 = vmul.f32 %v5363, %v5365
        %v5367 = vadd.f32 %v5363, %v5366
        %vm5368 = vweird.f32 %v4213
        %vm5369 = vweird.f32 %v5363
        %vm5370 = vmor %vm5368, %vm5369
        %v5371 = vsel %vm5370, %v5363, %v5367
        %v5372 = vand.u32 2147483647, %v4213
        %vm5373 = vcmp.eq.f32.partialorder %v5372, 8.507059e+37
        %v5374 = vand.u32 %v4213, 2147483648
        %v5375 = vor.u32 1.1754944e-38, %v5374
        %v5376 = vsel %vm5373, %v5375, %v5371
        %v5377 = vmul.f32 1.0, %v5376
        %v5378 = vrcp.pop %v4214
        %v5379 = vmul.f32 %v4214, %v5378
        %v5380 = vsub.f32 1.0, %v5379
        %v5381 = vmul.f32 %v5378, %v5380
        %v5382 = vadd.f32 %v5378, %v5381
        %vm5383 = vweird.f32 %v4214
        %vm5384 = vweird.f32 %v5378
        %vm5385 = vmor %vm5383, %vm5384
        %v5386 = vsel %vm5385, %v5378, %v5382
        %v5387 = vand.u32 2147483647, %v4214
        %vm5388 = vcmp.eq.f32.partialorder %v5387, 8.507059e+37
        %v5389 = vand.u32 %v4214, 2147483648
        %v5390 = vor.u32 1.1754944e-38, %v5389
        %v5391 = vsel %vm5388, %v5390, %v5386
        %v5392 = vmul.f32 1.0, %v5391
        %v5393 = vrcp.pop %v4215
        %v5394 = vmul.f32 %v4215, %v5393
        %v5395 = vsub.f32 1.0, %v5394
        %v5396 = vmul.f32 %v5393, %v5395
        %v5397 = vadd.f32 %v5393, %v5396
        %vm5398 = vweird.f32 %v4215
        %vm5399 = vweird.f32 %v5393
        %vm5400 = vmor %vm5398, %vm5399
        %v5401 = vsel %vm5400, %v5393, %v5397
        %v5402 = vand.u32 2147483647, %v4215
        %vm5403 = vcmp.eq.f32.partialorder %v5402, 8.507059e+37
        %v5404 = vand.u32 %v4215, 2147483648
        %v5405 = vor.u32 1.1754944e-38, %v5404
        %v5406 = vsel %vm5403, %v5405, %v5401
        %v5407 = vmul.f32 1.0, %v5406
        %v5408 = vrcp.pop %v4216
        %v5409 = vmul.f32 %v4216, %v5408
        %v5410 = vsub.f32 1.0, %v5409
        %v5411 = vmul.f32 %v5408, %v5410
        %v5412 = vadd.f32 %v5408, %v5411
        %vm5413 = vweird.f32 %v4216
        %vm5414 = vweird.f32 %v5408
        %vm5415 = vmor %vm5413, %vm5414
        %v5416 = vsel %vm5415, %v5408, %v5412
        %v5417 = vand.u32 2147483647, %v4216
        %vm5418 = vcmp.eq.f32.partialorder %v5417, 8.507059e+37
        %v5419 = vand.u32 %v4216, 2147483648
        %v5420 = vor.u32 1.1754944e-38, %v5419
        %v5421 = vsel %vm5418, %v5420, %v5416
        %v5422 = vmul.f32 1.0, %v5421
        %v5423 = vrcp.pop %v4217
        %v5424 = vmul.f32 %v4217, %v5423
        %v5425 = vsub.f32 1.0, %v5424
        %v5426 = vmul.f32 %v5423, %v5425
        %v5427 = vadd.f32 %v5423, %v5426
        %vm5428 = vweird.f32 %v4217
        %vm5429 = vweird.f32 %v5423
        %vm5430 = vmor %vm5428, %vm5429
        %v5431 = vsel %vm5430, %v5423, %v5427
        %v5432 = vand.u32 2147483647, %v4217
        %vm5433 = vcmp.eq.f32.partialorder %v5432, 8.507059e+37
        %v5434 = vand.u32 %v4217, 2147483648
        %v5435 = vor.u32 1.1754944e-38, %v5434
        %v5436 = vsel %vm5433, %v5435, %v5431
        %v5437 = vmul.f32 1.0, %v5436
        %v5438 = vrcp.pop %v4218
        %v5439 = vmul.f32 %v4218, %v5438
        %v5440 = vsub.f32 1.0, %v5439
        %v5441 = vmul.f32 %v5438, %v5440
        %v5442 = vadd.f32 %v5438, %v5441
        %vm5443 = vweird.f32 %v4218
        %vm5444 = vweird.f32 %v5438
        %vm5445 = vmor %vm5443, %vm5444
        %v5446 = vsel %vm5445, %v5438, %v5442
        %v5447 = vand.u32 2147483647, %v4218
        %vm5448 = vcmp.eq.f32.partialorder %v5447, 8.507059e+37
        %v5449 = vand.u32 %v4218, 2147483648
        %v5450 = vor.u32 1.1754944e-38, %v5449
        %v5451 = vsel %vm5448, %v5450, %v5446
        %v5452 = vmul.f32 1.0, %v5451
        %v5453 = vrcp.pop %v4219
        %v5454 = vmul.f32 %v4219, %v5453
        %v5455 = vsub.f32 1.0, %v5454
        %v5456 = vmul.f32 %v5453, %v5455
        %v5457 = vadd.f32 %v5453, %v5456
        %vm5458 = vweird.f32 %v4219
        %vm5459 = vweird.f32 %v5453
        %vm5460 = vmor %vm5458, %vm5459
        %v5461 = vsel %vm5460, %v5453, %v5457
        %v5462 = vand.u32 2147483647, %v4219
        %vm5463 = vcmp.eq.f32.partialorder %v5462, 8.507059e+37
        %v5464 = vand.u32 %v4219, 2147483648
        %v5465 = vor.u32 1.1754944e-38, %v5464
        %v5466 = vsel %vm5463, %v5465, %v5461
        %v5467 = vmul.f32 1.0, %v5466
        %v5468 = vrcp.pop %v4220
        %v5469 = vmul.f32 %v4220, %v5468
        %v5470 = vsub.f32 1.0, %v5469
        %v5471 = vmul.f32 %v5468, %v5470
        %v5472 = vadd.f32 %v5468, %v5471
        %vm5473 = vweird.f32 %v4220
        %vm5474 = vweird.f32 %v5468
        %vm5475 = vmor %vm5473, %vm5474
        %v5476 = vsel %vm5475, %v5468, %v5472
        %v5477 = vand.u32 2147483647, %v4220
        %vm5478 = vcmp.eq.f32.partialorder %v5477, 8.507059e+37
        %v5479 = vand.u32 %v4220, 2147483648
        %v5480 = vor.u32 1.1754944e-38, %v5479
        %v5481 = vsel %vm5478, %v5480, %v5476
        %v5482 = vmul.f32 1.0, %v5481
        %v5483 = vrcp.pop %v4221
        %v5484 = vmul.f32 %v4221, %v5483
        %v5485 = vsub.f32 1.0, %v5484
        %v5486 = vmul.f32 %v5483, %v5485
        %v5487 = vadd.f32 %v5483, %v5486
        %vm5488 = vweird.f32 %v4221
        %vm5489 = vweird.f32 %v5483
        %vm5490 = vmor %vm5488, %vm5489
        %v5491 = vsel %vm5490, %v5483, %v5487
        %v5492 = vand.u32 2147483647, %v4221
        %vm5493 = vcmp.eq.f32.partialorder %v5492, 8.507059e+37
        %v5494 = vand.u32 %v4221, 2147483648
        %v5495 = vor.u32 1.1754944e-38, %v5494
        %v5496 = vsel %vm5493, %v5495, %v5491
        %v5497 = vmul.f32 1.0, %v5496
        %v5498 = vrcp.pop %v4222
        %v5499 = vmul.f32 %v4222, %v5498
        %v5500 = vsub.f32 1.0, %v5499
        %v5501 = vmul.f32 %v5498, %v5500
        %v5502 = vadd.f32 %v5498, %v5501
        %vm5503 = vweird.f32 %v4222
        %vm5504 = vweird.f32 %v5498
        %vm5505 = vmor %vm5503, %vm5504
        %v5506 = vsel %vm5505, %v5498, %v5502
        %v5507 = vand.u32 2147483647, %v4222
        %vm5508 = vcmp.eq.f32.partialorder %v5507, 8.507059e+37
        %v5509 = vand.u32 %v4222, 2147483648
        %v5510 = vor.u32 1.1754944e-38, %v5509
        %v5511 = vsel %vm5508, %v5510, %v5506
        %v5512 = vmul.f32 1.0, %v5511
        %v5513 = vrcp.pop %v4223
        %v5514 = vmul.f32 %v4223, %v5513
        %v5515 = vsub.f32 1.0, %v5514
        %v5516 = vmul.f32 %v5513, %v5515
        %v5517 = vadd.f32 %v5513, %v5516
        %vm5518 = vweird.f32 %v4223
        %vm5519 = vweird.f32 %v5513
        %vm5520 = vmor %vm5518, %vm5519
        %v5521 = vsel %vm5520, %v5513, %v5517
        %v5522 = vand.u32 2147483647, %v4223
        %vm5523 = vcmp.eq.f32.partialorder %v5522, 8.507059e+37
        %v5524 = vand.u32 %v4223, 2147483648
        %v5525 = vor.u32 1.1754944e-38, %v5524
        %v5526 = vsel %vm5523, %v5525, %v5521
        %v5527 = vmul.f32 1.0, %v5526
        %v5528 = vrcp.pop %v4224
        %v5529 = vmul.f32 %v4224, %v5528
        %v5530 = vsub.f32 1.0, %v5529
        %v5531 = vmul.f32 %v5528, %v5530
        %v5532 = vadd.f32 %v5528, %v5531
        %vm5533 = vweird.f32 %v4224
        %vm5534 = vweird.f32 %v5528
        %vm5535 = vmor %vm5533, %vm5534
        %v5536 = vsel %vm5535, %v5528, %v5532
        %v5537 = vand.u32 2147483647, %v4224
        %vm5538 = vcmp.eq.f32.partialorder %v5537, 8.507059e+37
        %v5539 = vand.u32 %v4224, 2147483648
        %v5540 = vor.u32 1.1754944e-38, %v5539
        %v5541 = vsel %vm5538, %v5540, %v5536
        %v5542 = vmul.f32 1.0, %v5541
        %v5543 = vrcp.pop %v4225
        %v5544 = vmul.f32 %v4225, %v5543
        %v5545 = vsub.f32 1.0, %v5544
        %v5546 = vmul.f32 %v5543, %v5545
        %v5547 = vadd.f32 %v5543, %v5546
        %vm5548 = vweird.f32 %v4225
        %vm5549 = vweird.f32 %v5543
        %vm5550 = vmor %vm5548, %vm5549
        %v5551 = vsel %vm5550, %v5543, %v5547
        %v5552 = vand.u32 2147483647, %v4225
        %vm5553 = vcmp.eq.f32.partialorder %v5552, 8.507059e+37
        %v5554 = vand.u32 %v4225, 2147483648
        %v5555 = vor.u32 1.1754944e-38, %v5554
        %v5556 = vsel %vm5553, %v5555, %v5551
        %v5557 = vmul.f32 1.0, %v5556
        %v5558 = vrcp.pop %v4226
        %v5559 = vmul.f32 %v4226, %v5558
        %v5560 = vsub.f32 1.0, %v5559
        %v5561 = vmul.f32 %v5558, %v5560
        %v5562 = vadd.f32 %v5558, %v5561
        %vm5563 = vweird.f32 %v4226
        %vm5564 = vweird.f32 %v5558
        %vm5565 = vmor %vm5563, %vm5564
        %v5566 = vsel %vm5565, %v5558, %v5562
        %v5567 = vand.u32 2147483647, %v4226
        %vm5568 = vcmp.eq.f32.partialorder %v5567, 8.507059e+37
        %v5569 = vand.u32 %v4226, 2147483648
        %v5570 = vor.u32 1.1754944e-38, %v5569
        %v5571 = vsel %vm5568, %v5570, %v5566
        %v5572 = vmul.f32 1.0, %v5571
        %v5573 = vrcp.pop %v4227
        %v5574 = vmul.f32 %v4227, %v5573
        %v5575 = vsub.f32 1.0, %v5574
        %v5576 = vmul.f32 %v5573, %v5575
        %v5577 = vadd.f32 %v5573, %v5576
        %vm5578 = vweird.f32 %v4227
        %vm5579 = vweird.f32 %v5573
        %vm5580 = vmor %vm5578, %vm5579
        %v5581 = vsel %vm5580, %v5573, %v5577
        %v5582 = vand.u32 2147483647, %v4227
        %vm5583 = vcmp.eq.f32.partialorder %v5582, 8.507059e+37
        %v5584 = vand.u32 %v4227, 2147483648
        %v5585 = vor.u32 1.1754944e-38, %v5584
        %v5586 = vsel %vm5583, %v5585, %v5581
        %v5587 = vmul.f32 1.0, %v5586
        %v5588 = vrcp.pop %v4228
        %v5589 = vmul.f32 %v4228, %v5588
        %v5590 = vsub.f32 1.0, %v5589
        %v5591 = vmul.f32 %v5588, %v5590
        %v5592 = vadd.f32 %v5588, %v5591
        %vm5593 = vweird.f32 %v4228
        %vm5594 = vweird.f32 %v5588
        %vm5595 = vmor %vm5593, %vm5594
        %v5596 = vsel %vm5595, %v5588, %v5592
        %v5597 = vand.u32 2147483647, %v4228
        %vm5598 = vcmp.eq.f32.partialorder %v5597, 8.507059e+37
        %v5599 = vand.u32 %v4228, 2147483648
        %v5600 = vor.u32 1.1754944e-38, %v5599
        %v5601 = vsel %vm5598, %v5600, %v5596
        %v5602 = vmul.f32 1.0, %v5601
        %v5603 = vrcp.pop %v4229
        %v5604 = vmul.f32 %v4229, %v5603
        %v5605 = vsub.f32 1.0, %v5604
        %v5606 = vmul.f32 %v5603, %v5605
        %v5607 = vadd.f32 %v5603, %v5606
        %vm5608 = vweird.f32 %v4229
        %vm5609 = vweird.f32 %v5603
        %vm5610 = vmor %vm5608, %vm5609
        %v5611 = vsel %vm5610, %v5603, %v5607
        %v5612 = vand.u32 2147483647, %v4229
        %vm5613 = vcmp.eq.f32.partialorder %v5612, 8.507059e+37
        %v5614 = vand.u32 %v4229, 2147483648
        %v5615 = vor.u32 1.1754944e-38, %v5614
        %v5616 = vsel %vm5613, %v5615, %v5611
        %v5617 = vmul.f32 1.0, %v5616
        %v5618 = vrcp.pop %v4230
        %v5619 = vmul.f32 %v4230, %v5618
        %v5620 = vsub.f32 1.0, %v5619
        %v5621 = vmul.f32 %v5618, %v5620
        %v5622 = vadd.f32 %v5618, %v5621
        %vm5623 = vweird.f32 %v4230
        %vm5624 = vweird.f32 %v5618
        %vm5625 = vmor %vm5623, %vm5624
        %v5626 = vsel %vm5625, %v5618, %v5622
        %v5627 = vand.u32 2147483647, %v4230
        %vm5628 = vcmp.eq.f32.partialorder %v5627, 8.507059e+37
        %v5629 = vand.u32 %v4230, 2147483648
        %v5630 = vor.u32 1.1754944e-38, %v5629
        %v5631 = vsel %vm5628, %v5630, %v5626
        %v5632 = vmul.f32 1.0, %v5631
        %v5633 = vrcp.pop %v4231
        %v5634 = vmul.f32 %v4231, %v5633
        %v5635 = vsub.f32 1.0, %v5634
        %v5636 = vmul.f32 %v5633, %v5635
        %v5637 = vadd.f32 %v5633, %v5636
        %vm5638 = vweird.f32 %v4231
        %vm5639 = vweird.f32 %v5633
        %vm5640 = vmor %vm5638, %vm5639
        %v5641 = vsel %vm5640, %v5633, %v5637
        %v5642 = vand.u32 2147483647, %v4231
        %vm5643 = vcmp.eq.f32.partialorder %v5642, 8.507059e+37
        %v5644 = vand.u32 %v4231, 2147483648
        %v5645 = vor.u32 1.1754944e-38, %v5644
        %v5646 = vsel %vm5643, %v5645, %v5641
        %v5647 = vmul.f32 1.0, %v5646
        %v5648 = vrcp.pop %v4232
        %v5649 = vmul.f32 %v4232, %v5648
        %v5650 = vsub.f32 1.0, %v5649
        %v5651 = vmul.f32 %v5648, %v5650
        %v5652 = vadd.f32 %v5648, %v5651
        %vm5653 = vweird.f32 %v4232
        %vm5654 = vweird.f32 %v5648
        %vm5655 = vmor %vm5653, %vm5654
        %v5656 = vsel %vm5655, %v5648, %v5652
        %v5657 = vand.u32 2147483647, %v4232
        %vm5658 = vcmp.eq.f32.partialorder %v5657, 8.507059e+37
        %v5659 = vand.u32 %v4232, 2147483648
        %v5660 = vor.u32 1.1754944e-38, %v5659
        %v5661 = vsel %vm5658, %v5660, %v5656
        %v5662 = vmul.f32 1.0, %v5661
        %v5663 = vrcp.pop %v4233
        %v5664 = vmul.f32 %v4233, %v5663
        %v5665 = vsub.f32 1.0, %v5664
        %v5666 = vmul.f32 %v5663, %v5665
        %v5667 = vadd.f32 %v5663, %v5666
        %vm5668 = vweird.f32 %v4233
        %vm5669 = vweird.f32 %v5663
        %vm5670 = vmor %vm5668, %vm5669
        %v5671 = vsel %vm5670, %v5663, %v5667
        %v5672 = vand.u32 2147483647, %v4233
        %vm5673 = vcmp.eq.f32.partialorder %v5672, 8.507059e+37
        %v5674 = vand.u32 %v4233, 2147483648
        %v5675 = vor.u32 1.1754944e-38, %v5674
        %v5676 = vsel %vm5673, %v5675, %v5671
        %v5677 = vmul.f32 1.0, %v5676
        %v5678 = vrcp.pop %v4234
        %v5679 = vmul.f32 %v4234, %v5678
        %v5680 = vsub.f32 1.0, %v5679
        %v5681 = vmul.f32 %v5678, %v5680
        %v5682 = vadd.f32 %v5678, %v5681
        %vm5683 = vweird.f32 %v4234
        %vm5684 = vweird.f32 %v5678
        %vm5685 = vmor %vm5683, %vm5684
        %v5686 = vsel %vm5685, %v5678, %v5682
        %v5687 = vand.u32 2147483647, %v4234
        %vm5688 = vcmp.eq.f32.partialorder %v5687, 8.507059e+37
        %v5689 = vand.u32 %v4234, 2147483648
        %v5690 = vor.u32 1.1754944e-38, %v5689
        %v5691 = vsel %vm5688, %v5690, %v5686
        %v5692 = vmul.f32 1.0, %v5691
        %v5693 = vrcp.pop %v4235
        %v5694 = vmul.f32 %v4235, %v5693
        %v5695 = vsub.f32 1.0, %v5694
        %v5696 = vmul.f32 %v5693, %v5695
        %v5697 = vadd.f32 %v5693, %v5696
        %vm5698 = vweird.f32 %v4235
        %vm5699 = vweird.f32 %v5693
        %vm5700 = vmor %vm5698, %vm5699
        %v5701 = vsel %vm5700, %v5693, %v5697
        %v5702 = vand.u32 2147483647, %v4235
        %vm5703 = vcmp.eq.f32.partialorder %v5702, 8.507059e+37
        %v5704 = vand.u32 %v4235, 2147483648
        %v5705 = vor.u32 1.1754944e-38, %v5704
        %v5706 = vsel %vm5703, %v5705, %v5701
        %v5707 = vmul.f32 1.0, %v5706
        %v5708 = vrcp.pop %v4236
        %v5709 = vmul.f32 %v4236, %v5708
        %v5710 = vsub.f32 1.0, %v5709
        %v5711 = vmul.f32 %v5708, %v5710
        %v5712 = vadd.f32 %v5708, %v5711
        %vm5713 = vweird.f32 %v4236
        %vm5714 = vweird.f32 %v5708
        %vm5715 = vmor %vm5713, %vm5714
        %v5716 = vsel %vm5715, %v5708, %v5712
        %v5717 = vand.u32 2147483647, %v4236
        %vm5718 = vcmp.eq.f32.partialorder %v5717, 8.507059e+37
        %v5719 = vand.u32 %v4236, 2147483648
        %v5720 = vor.u32 1.1754944e-38, %v5719
        %v5721 = vsel %vm5718, %v5720, %v5716
        %v5722 = vmul.f32 1.0, %v5721
        %v5723 = vrcp.pop %v4237
        %v5724 = vmul.f32 %v4237, %v5723
        %v5725 = vsub.f32 1.0, %v5724
        %v5726 = vmul.f32 %v5723, %v5725
        %v5727 = vadd.f32 %v5723, %v5726
        %vm5728 = vweird.f32 %v4237
        %vm5729 = vweird.f32 %v5723
        %vm5730 = vmor %vm5728, %vm5729
        %v5731 = vsel %vm5730, %v5723, %v5727
        %v5732 = vand.u32 2147483647, %v4237
        %vm5733 = vcmp.eq.f32.partialorder %v5732, 8.507059e+37
        %v5734 = vand.u32 %v4237, 2147483648
        %v5735 = vor.u32 1.1754944e-38, %v5734
        %v5736 = vsel %vm5733, %v5735, %v5731
        %v5737 = vmul.f32 1.0, %v5736
        %v5738 = vrcp.pop %v4238
        %v5739 = vmul.f32 %v4238, %v5738
        %v5740 = vsub.f32 1.0, %v5739
        %v5741 = vmul.f32 %v5738, %v5740
        %v5742 = vadd.f32 %v5738, %v5741
        %vm5743 = vweird.f32 %v4238
        %vm5744 = vweird.f32 %v5738
        %vm5745 = vmor %vm5743, %vm5744
        %v5746 = vsel %vm5745, %v5738, %v5742
        %v5747 = vand.u32 2147483647, %v4238
        %vm5748 = vcmp.eq.f32.partialorder %v5747, 8.507059e+37
        %v5749 = vand.u32 %v4238, 2147483648
        %v5750 = vor.u32 1.1754944e-38, %v5749
        %v5751 = vsel %vm5748, %v5750, %v5746
        %v5752 = vmul.f32 1.0, %v5751
        %v5753 = vrcp.pop %v4239
        %v5754 = vmul.f32 %v4239, %v5753
        %v5755 = vsub.f32 1.0, %v5754
        %v5756 = vmul.f32 %v5753, %v5755
        %v5757 = vadd.f32 %v5753, %v5756
        %vm5758 = vweird.f32 %v4239
        %vm5759 = vweird.f32 %v5753
        %vm5760 = vmor %vm5758, %vm5759
        %v5761 = vsel %vm5760, %v5753, %v5757
        %v5762 = vand.u32 2147483647, %v4239
        %vm5763 = vcmp.eq.f32.partialorder %v5762, 8.507059e+37
        %v5764 = vand.u32 %v4239, 2147483648
        %v5765 = vor.u32 1.1754944e-38, %v5764
        %v5766 = vsel %vm5763, %v5765, %v5761
        %v5767 = vmul.f32 1.0, %v5766
        %v5768 = vrcp.pop %v4240
        %v5769 = vmul.f32 %v4240, %v5768
        %v5770 = vsub.f32 1.0, %v5769
        %v5771 = vmul.f32 %v5768, %v5770
        %v5772 = vadd.f32 %v5768, %v5771
        %vm5773 = vweird.f32 %v4240
        %vm5774 = vweird.f32 %v5768
        %vm5775 = vmor %vm5773, %vm5774
        %v5776 = vsel %vm5775, %v5768, %v5772
        %v5777 = vand.u32 2147483647, %v4240
        %vm5778 = vcmp.eq.f32.partialorder %v5777, 8.507059e+37
        %v5779 = vand.u32 %v4240, 2147483648
        %v5780 = vor.u32 1.1754944e-38, %v5779
        %v5781 = vsel %vm5778, %v5780, %v5776
        %v5782 = vmul.f32 1.0, %v5781
        %v5783 = vrcp.pop %v4241
        %v5784 = vmul.f32 %v4241, %v5783
        %v5785 = vsub.f32 1.0, %v5784
        %v5786 = vmul.f32 %v5783, %v5785
        %v5787 = vadd.f32 %v5783, %v5786
        %vm5788 = vweird.f32 %v4241
        %vm5789 = vweird.f32 %v5783
        %vm5790 = vmor %vm5788, %vm5789
        %v5791 = vsel %vm5790, %v5783, %v5787
        %v5792 = vand.u32 2147483647, %v4241
        %vm5793 = vcmp.eq.f32.partialorder %v5792, 8.507059e+37
        %v5794 = vand.u32 %v4241, 2147483648
        %v5795 = vor.u32 1.1754944e-38, %v5794
        %v5796 = vsel %vm5793, %v5795, %v5791
        %v5797 = vmul.f32 1.0, %v5796
        %v5798 = vrcp.pop %v4242
        %v5799 = vmul.f32 %v4242, %v5798
        %v5800 = vsub.f32 1.0, %v5799
        %v5801 = vmul.f32 %v5798, %v5800
        %v5802 = vadd.f32 %v5798, %v5801
        %vm5803 = vweird.f32 %v4242
        %vm5804 = vweird.f32 %v5798
        %vm5805 = vmor %vm5803, %vm5804
        %v5806 = vsel %vm5805, %v5798, %v5802
        %v5807 = vand.u32 2147483647, %v4242
        %vm5808 = vcmp.eq.f32.partialorder %v5807, 8.507059e+37
        %v5809 = vand.u32 %v4242, 2147483648
        %v5810 = vor.u32 1.1754944e-38, %v5809
        %v5811 = vsel %vm5808, %v5810, %v5806
        %v5812 = vmul.f32 1.0, %v5811
        %v5813 = vrcp.pop %v4243
        %v5814 = vmul.f32 %v4243, %v5813
        %v5815 = vsub.f32 1.0, %v5814
        %v5816 = vmul.f32 %v5813, %v5815
        %v5817 = vadd.f32 %v5813, %v5816
        %vm5818 = vweird.f32 %v4243
        %vm5819 = vweird.f32 %v5813
        %vm5820 = vmor %vm5818, %vm5819
        %v5821 = vsel %vm5820, %v5813, %v5817
        %v5822 = vand.u32 2147483647, %v4243
        %vm5823 = vcmp.eq.f32.partialorder %v5822, 8.507059e+37
        %v5824 = vand.u32 %v4243, 2147483648
        %v5825 = vor.u32 1.1754944e-38, %v5824
        %v5826 = vsel %vm5823, %v5825, %v5821
        %v5827 = vmul.f32 1.0, %v5826
        %v5828 = vrcp.pop %v4244
        %v5829 = vmul.f32 %v4244, %v5828
        %v5830 = vsub.f32 1.0, %v5829
        %v5831 = vmul.f32 %v5828, %v5830
        %v5832 = vadd.f32 %v5828, %v5831
        %vm5833 = vweird.f32 %v4244
        %vm5834 = vweird.f32 %v5828
        %vm5835 = vmor %vm5833, %vm5834
        %v5836 = vsel %vm5835, %v5828, %v5832
        %v5837 = vand.u32 2147483647, %v4244
        %vm5838 = vcmp.eq.f32.partialorder %v5837, 8.507059e+37
        %v5839 = vand.u32 %v4244, 2147483648
        %v5840 = vor.u32 1.1754944e-38, %v5839
        %v5841 = vsel %vm5838, %v5840, %v5836
        %v5842 = vmul.f32 1.0, %v5841
        %v5843 = vrcp.pop %v4245
        %v5844 = vmul.f32 %v4245, %v5843
        %v5845 = vsub.f32 1.0, %v5844
        %v5846 = vmul.f32 %v5843, %v5845
        %v5847 = vadd.f32 %v5843, %v5846
        %vm5848 = vweird.f32 %v4245
        %vm5849 = vweird.f32 %v5843
        %vm5850 = vmor %vm5848, %vm5849
        %v5851 = vsel %vm5850, %v5843, %v5847
        %v5852 = vand.u32 2147483647, %v4245
        %vm5853 = vcmp.eq.f32.partialorder %v5852, 8.507059e+37
        %v5854 = vand.u32 %v4245, 2147483648
        %v5855 = vor.u32 1.1754944e-38, %v5854
        %v5856 = vsel %vm5853, %v5855, %v5851
        %v5857 = vmul.f32 1.0, %v5856
        %v5858 = vrcp.pop %v4246
        %v5859 = vmul.f32 %v4246, %v5858
        %v5860 = vsub.f32 1.0, %v5859
        %v5861 = vmul.f32 %v5858, %v5860
        %v5862 = vadd.f32 %v5858, %v5861
        %vm5863 = vweird.f32 %v4246
        %vm5864 = vweird.f32 %v5858
        %vm5865 = vmor %vm5863, %vm5864
        %v5866 = vsel %vm5865, %v5858, %v5862
        %v5867 = vand.u32 2147483647, %v4246
        %vm5868 = vcmp.eq.f32.partialorder %v5867, 8.507059e+37
        %v5869 = vand.u32 %v4246, 2147483648
        %v5870 = vor.u32 1.1754944e-38, %v5869
        %v5871 = vsel %vm5868, %v5870, %v5866
        %v5872 = vmul.f32 1.0, %v5871
        %v5873 = vrcp.pop %v4247
        %v5874 = vmul.f32 %v4247, %v5873
        %v5875 = vsub.f32 1.0, %v5874
        %v5876 = vmul.f32 %v5873, %v5875
        %v5877 = vadd.f32 %v5873, %v5876
        %vm5878 = vweird.f32 %v4247
        %vm5879 = vweird.f32 %v5873
        %vm5880 = vmor %vm5878, %vm5879
        %v5881 = vsel %vm5880, %v5873, %v5877
        %v5882 = vand.u32 2147483647, %v4247
        %vm5883 = vcmp.eq.f32.partialorder %v5882, 8.507059e+37
        %v5884 = vand.u32 %v4247, 2147483648
        %v5885 = vor.u32 1.1754944e-38, %v5884
        %v5886 = vsel %vm5883, %v5885, %v5881
        %v5887 = vmul.f32 1.0, %v5886
        %v5888 = vrcp.pop %v4248
        %v5889 = vmul.f32 %v4248, %v5888
        %v5890 = vsub.f32 1.0, %v5889
        %v5891 = vmul.f32 %v5888, %v5890
        %v5892 = vadd.f32 %v5888, %v5891
        %vm5893 = vweird.f32 %v4248
        %vm5894 = vweird.f32 %v5888
        %vm5895 = vmor %vm5893, %vm5894
        %v5896 = vsel %vm5895, %v5888, %v5892
        %v5897 = vand.u32 2147483647, %v4248
        %vm5898 = vcmp.eq.f32.partialorder %v5897, 8.507059e+37
        %v5899 = vand.u32 %v4248, 2147483648
        %v5900 = vor.u32 1.1754944e-38, %v5899
        %v5901 = vsel %vm5898, %v5900, %v5896
        %v5902 = vmul.f32 1.0, %v5901
        %v5903 = vrcp.pop %v4249
        %v5904 = vmul.f32 %v4249, %v5903
        %v5905 = vsub.f32 1.0, %v5904
        %v5906 = vmul.f32 %v5903, %v5905
        %v5907 = vadd.f32 %v5903, %v5906
        %vm5908 = vweird.f32 %v4249
        %vm5909 = vweird.f32 %v5903
        %vm5910 = vmor %vm5908, %vm5909
        %v5911 = vsel %vm5910, %v5903, %v5907
        %v5912 = vand.u32 2147483647, %v4249
        %vm5913 = vcmp.eq.f32.partialorder %v5912, 8.507059e+37
        %v5914 = vand.u32 %v4249, 2147483648
        %v5915 = vor.u32 1.1754944e-38, %v5914
        %v5916 = vsel %vm5913, %v5915, %v5911
        %v5917 = vmul.f32 1.0, %v5916
        %v5918 = vrcp.pop %v4250
        %v5919 = vmul.f32 %v4250, %v5918
        %v5920 = vsub.f32 1.0, %v5919
        %v5921 = vmul.f32 %v5918, %v5920
        %v5922 = vadd.f32 %v5918, %v5921
        %vm5923 = vweird.f32 %v4250
        %vm5924 = vweird.f32 %v5918
        %vm5925 = vmor %vm5923, %vm5924
        %v5926 = vsel %vm5925, %v5918, %v5922
        %v5927 = vand.u32 2147483647, %v4250
        %vm5928 = vcmp.eq.f32.partialorder %v5927, 8.507059e+37
        %v5929 = vand.u32 %v4250, 2147483648
        %v5930 = vor.u32 1.1754944e-38, %v5929
        %v5931 = vsel %vm5928, %v5930, %v5926
        %v5932 = vmul.f32 1.0, %v5931
        %v5933 = vrcp.pop %v4251
        %v5934 = vmul.f32 %v4251, %v5933
        %v5935 = vsub.f32 1.0, %v5934
        %v5936 = vmul.f32 %v5933, %v5935
        %v5937 = vadd.f32 %v5933, %v5936
        %vm5938 = vweird.f32 %v4251
        %vm5939 = vweird.f32 %v5933
        %vm5940 = vmor %vm5938, %vm5939
        %v5941 = vsel %vm5940, %v5933, %v5937
        %v5942 = vand.u32 2147483647, %v4251
        %vm5943 = vcmp.eq.f32.partialorder %v5942, 8.507059e+37
        %v5944 = vand.u32 %v4251, 2147483648
        %v5945 = vor.u32 1.1754944e-38, %v5944
        %v5946 = vsel %vm5943, %v5945, %v5941
        %v5947 = vmul.f32 1.0, %v5946
        %v5948 = vrcp.pop %v4252
        %v5949 = vmul.f32 %v4252, %v5948
        %v5950 = vsub.f32 1.0, %v5949
        %v5951 = vmul.f32 %v5948, %v5950
        %v5952 = vadd.f32 %v5948, %v5951
        %vm5953 = vweird.f32 %v4252
        %vm5954 = vweird.f32 %v5948
        %vm5955 = vmor %vm5953, %vm5954
        %v5956 = vsel %vm5955, %v5948, %v5952
        %v5957 = vand.u32 2147483647, %v4252
        %vm5958 = vcmp.eq.f32.partialorder %v5957, 8.507059e+37
        %v5959 = vand.u32 %v4252, 2147483648
        %v5960 = vor.u32 1.1754944e-38, %v5959
        %v5961 = vsel %vm5958, %v5960, %v5956
        %v5962 = vmul.f32 1.0, %v5961
        %v5963 = vrcp.pop %v4253
        %v5964 = vmul.f32 %v4253, %v5963
        %v5965 = vsub.f32 1.0, %v5964
        %v5966 = vmul.f32 %v5963, %v5965
        %v5967 = vadd.f32 %v5963, %v5966
        %vm5968 = vweird.f32 %v4253
        %vm5969 = vweird.f32 %v5963
        %vm5970 = vmor %vm5968, %vm5969
        %v5971 = vsel %vm5970, %v5963, %v5967
        %v5972 = vand.u32 2147483647, %v4253
        %vm5973 = vcmp.eq.f32.partialorder %v5972, 8.507059e+37
        %v5974 = vand.u32 %v4253, 2147483648
        %v5975 = vor.u32 1.1754944e-38, %v5974
        %v5976 = vsel %vm5973, %v5975, %v5971
        %v5977 = vmul.f32 1.0, %v5976
        %v5978 = vrcp.pop %v4254
        %v5979 = vmul.f32 %v4254, %v5978
        %v5980 = vsub.f32 1.0, %v5979
        %v5981 = vmul.f32 %v5978, %v5980
        %v5982 = vadd.f32 %v5978, %v5981
        %vm5983 = vweird.f32 %v4254
        %vm5984 = vweird.f32 %v5978
        %vm5985 = vmor %vm5983, %vm5984
        %v5986 = vsel %vm5985, %v5978, %v5982
        %v5987 = vand.u32 2147483647, %v4254
        %vm5988 = vcmp.eq.f32.partialorder %v5987, 8.507059e+37
        %v5989 = vand.u32 %v4254, 2147483648
        %v5990 = vor.u32 1.1754944e-38, %v5989
        %v5991 = vsel %vm5988, %v5990, %v5986
        %v5992 = vmul.f32 1.0, %v5991
        %v5993 = vrcp.pop %v4255
        %v5994 = vmul.f32 %v4255, %v5993
        %v5995 = vsub.f32 1.0, %v5994
        %v5996 = vmul.f32 %v5993, %v5995
        %v5997 = vadd.f32 %v5993, %v5996
        %vm5998 = vweird.f32 %v4255
        %vm5999 = vweird.f32 %v5993
        %vm6000 = vmor %vm5998, %vm5999
        %v6001 = vsel %vm6000, %v5993, %v5997
        %v6002 = vand.u32 2147483647, %v4255
        %vm6003 = vcmp.eq.f32.partialorder %v6002, 8.507059e+37
        %v6004 = vand.u32 %v4255, 2147483648
        %v6005 = vor.u32 1.1754944e-38, %v6004
        %v6006 = vsel %vm6003, %v6005, %v6001
        %v6007 = vmul.f32 1.0, %v6006
        %v6008 = vrcp.pop %v4256
        %v6009 = vmul.f32 %v4256, %v6008
        %v6010 = vsub.f32 1.0, %v6009
        %v6011 = vmul.f32 %v6008, %v6010
        %v6012 = vadd.f32 %v6008, %v6011
        %vm6013 = vweird.f32 %v4256
        %vm6014 = vweird.f32 %v6008
        %vm6015 = vmor %vm6013, %vm6014
        %v6016 = vsel %vm6015, %v6008, %v6012
        %v6017 = vand.u32 2147483647, %v4256
        %vm6018 = vcmp.eq.f32.partialorder %v6017, 8.507059e+37
        %v6019 = vand.u32 %v4256, 2147483648
        %v6020 = vor.u32 1.1754944e-38, %v6019
        %v6021 = vsel %vm6018, %v6020, %v6016
        %v6022 = vmul.f32 1.0, %v6021
        %v6023 = vrcp.pop %v4257
        %v6024 = vmul.f32 %v4257, %v6023
        %v6025 = vsub.f32 1.0, %v6024
        %v6026 = vmul.f32 %v6023, %v6025
        %v6027 = vadd.f32 %v6023, %v6026
        %vm6028 = vweird.f32 %v4257
        %vm6029 = vweird.f32 %v6023
        %vm6030 = vmor %vm6028, %vm6029
        %v6031 = vsel %vm6030, %v6023, %v6027
        %v6032 = vand.u32 2147483647, %v4257
        %vm6033 = vcmp.eq.f32.partialorder %v6032, 8.507059e+37
        %v6034 = vand.u32 %v4257, 2147483648
        %v6035 = vor.u32 1.1754944e-38, %v6034
        %v6036 = vsel %vm6033, %v6035, %v6031
        %v6037 = vmul.f32 1.0, %v6036
        %v6038 = vrcp.pop %v4258
        %v6039 = vmul.f32 %v4258, %v6038
        %v6040 = vsub.f32 1.0, %v6039
        %v6041 = vmul.f32 %v6038, %v6040
        %v6042 = vadd.f32 %v6038, %v6041
        %vm6043 = vweird.f32 %v4258
        %vm6044 = vweird.f32 %v6038
        %vm6045 = vmor %vm6043, %vm6044
        %v6046 = vsel %vm6045, %v6038, %v6042
        %v6047 = vand.u32 2147483647, %v4258
        %vm6048 = vcmp.eq.f32.partialorder %v6047, 8.507059e+37
        %v6049 = vand.u32 %v4258, 2147483648
        %v6050 = vor.u32 1.1754944e-38, %v6049
        %v6051 = vsel %vm6048, %v6050, %v6046
        %v6052 = vmul.f32 1.0, %v6051
        %v6053 = vrcp.pop %v4259
        %v6054 = vmul.f32 %v4259, %v6053
        %v6055 = vsub.f32 1.0, %v6054
        %v6056 = vmul.f32 %v6053, %v6055
        %v6057 = vadd.f32 %v6053, %v6056
        %vm6058 = vweird.f32 %v4259
        %vm6059 = vweird.f32 %v6053
        %vm6060 = vmor %vm6058, %vm6059
        %v6061 = vsel %vm6060, %v6053, %v6057
        %v6062 = vand.u32 2147483647, %v4259
        %vm6063 = vcmp.eq.f32.partialorder %v6062, 8.507059e+37
        %v6064 = vand.u32 %v4259, 2147483648
        %v6065 = vor.u32 1.1754944e-38, %v6064
        %v6066 = vsel %vm6063, %v6065, %v6061
        %v6067 = vmul.f32 1.0, %v6066
        %v6068 = vrcp.pop %v4260
        %v6069 = vmul.f32 %v4260, %v6068
        %v6070 = vsub.f32 1.0, %v6069
        %v6071 = vmul.f32 %v6068, %v6070
        %v6072 = vadd.f32 %v6068, %v6071
        %vm6073 = vweird.f32 %v4260
        %vm6074 = vweird.f32 %v6068
        %vm6075 = vmor %vm6073, %vm6074
        %v6076 = vsel %vm6075, %v6068, %v6072
        %v6077 = vand.u32 2147483647, %v4260
        %vm6078 = vcmp.eq.f32.partialorder %v6077, 8.507059e+37
        %v6079 = vand.u32 %v4260, 2147483648
        %v6080 = vor.u32 1.1754944e-38, %v6079
        %v6081 = vsel %vm6078, %v6080, %v6076
        %v6082 = vmul.f32 1.0, %v6081
        %v6083 = vrcp.pop %v4261
        %v6084 = vmul.f32 %v4261, %v6083
        %v6085 = vsub.f32 1.0, %v6084
        %v6086 = vmul.f32 %v6083, %v6085
        %v6087 = vadd.f32 %v6083, %v6086
        %vm6088 = vweird.f32 %v4261
        %vm6089 = vweird.f32 %v6083
        %vm6090 = vmor %vm6088, %vm6089
        %v6091 = vsel %vm6090, %v6083, %v6087
        %v6092 = vand.u32 2147483647, %v4261
        %vm6093 = vcmp.eq.f32.partialorder %v6092, 8.507059e+37
        %v6094 = vand.u32 %v4261, 2147483648
        %v6095 = vor.u32 1.1754944e-38, %v6094
        %v6096 = vsel %vm6093, %v6095, %v6091
        %v6097 = vmul.f32 1.0, %v6096
        %v6098 = vrcp.pop %v4262
        %v6099 = vmul.f32 %v4262, %v6098
        %v6100 = vsub.f32 1.0, %v6099
        %v6101 = vmul.f32 %v6098, %v6100
        %v6102 = vadd.f32 %v6098, %v6101
        %vm6103 = vweird.f32 %v4262
        %vm6104 = vweird.f32 %v6098
        %vm6105 = vmor %vm6103, %vm6104
        %v6106 = vsel %vm6105, %v6098, %v6102
        %v6107 = vand.u32 2147483647, %v4262
        %vm6108 = vcmp.eq.f32.partialorder %v6107, 8.507059e+37
        %v6109 = vand.u32 %v4262, 2147483648
        %v6110 = vor.u32 1.1754944e-38, %v6109
        %v6111 = vsel %vm6108, %v6110, %v6106
        %v6112 = vmul.f32 1.0, %v6111
        %v6113 = vrcp.pop %v4263
        %v6114 = vmul.f32 %v4263, %v6113
        %v6115 = vsub.f32 1.0, %v6114
        %v6116 = vmul.f32 %v6113, %v6115
        %v6117 = vadd.f32 %v6113, %v6116
        %vm6118 = vweird.f32 %v4263
        %vm6119 = vweird.f32 %v6113
        %vm6120 = vmor %vm6118, %vm6119
        %v6121 = vsel %vm6120, %v6113, %v6117
        %v6122 = vand.u32 2147483647, %v4263
        %vm6123 = vcmp.eq.f32.partialorder %v6122, 8.507059e+37
        %v6124 = vand.u32 %v4263, 2147483648
        %v6125 = vor.u32 1.1754944e-38, %v6124
        %v6126 = vsel %vm6123, %v6125, %v6121
        %v6127 = vmul.f32 1.0, %v6126
        %v6128 = vrcp.pop %v4264
        %v6129 = vmul.f32 %v4264, %v6128
        %v6130 = vsub.f32 1.0, %v6129
        %v6131 = vmul.f32 %v6128, %v6130
        %v6132 = vadd.f32 %v6128, %v6131
        %vm6133 = vweird.f32 %v4264
        %vm6134 = vweird.f32 %v6128
        %vm6135 = vmor %vm6133, %vm6134
        %v6136 = vsel %vm6135, %v6128, %v6132
        %v6137 = vand.u32 2147483647, %v4264
        %vm6138 = vcmp.eq.f32.partialorder %v6137, 8.507059e+37
        %v6139 = vand.u32 %v4264, 2147483648
        %v6140 = vor.u32 1.1754944e-38, %v6139
        %v6141 = vsel %vm6138, %v6140, %v6136
        %v6142 = vmul.f32 1.0, %v6141
        %v6143 = vrcp.pop %v4265
        %v6144 = vmul.f32 %v4265, %v6143
        %v6145 = vsub.f32 1.0, %v6144
        %v6146 = vmul.f32 %v6143, %v6145
        %v6147 = vadd.f32 %v6143, %v6146
        %vm6148 = vweird.f32 %v4265
        %vm6149 = vweird.f32 %v6143
        %vm6150 = vmor %vm6148, %vm6149
        %v6151 = vsel %vm6150, %v6143, %v6147
        %v6152 = vand.u32 2147483647, %v4265
        %vm6153 = vcmp.eq.f32.partialorder %v6152, 8.507059e+37
        %v6154 = vand.u32 %v4265, 2147483648
        %v6155 = vor.u32 1.1754944e-38, %v6154
        %v6156 = vsel %vm6153, %v6155, %v6151
        %v6157 = vmul.f32 1.0, %v6156
        %v6158 = vrcp.pop %v4266
        %v6159 = vmul.f32 %v4266, %v6158
        %v6160 = vsub.f32 1.0, %v6159
        %v6161 = vmul.f32 %v6158, %v6160
        %v6162 = vadd.f32 %v6158, %v6161
        %vm6163 = vweird.f32 %v4266
        %vm6164 = vweird.f32 %v6158
        %vm6165 = vmor %vm6163, %vm6164
        %v6166 = vsel %vm6165, %v6158, %v6162
        %v6167 = vand.u32 2147483647, %v4266
        %vm6168 = vcmp.eq.f32.partialorder %v6167, 8.507059e+37
        %v6169 = vand.u32 %v4266, 2147483648
        %v6170 = vor.u32 1.1754944e-38, %v6169
        %v6171 = vsel %vm6168, %v6170, %v6166
        %v6172 = vmul.f32 1.0, %v6171
        %v6173 = vrcp.pop %v4267
        %v6174 = vmul.f32 %v4267, %v6173
        %v6175 = vsub.f32 1.0, %v6174
        %v6176 = vmul.f32 %v6173, %v6175
        %v6177 = vadd.f32 %v6173, %v6176
        %vm6178 = vweird.f32 %v4267
        %vm6179 = vweird.f32 %v6173
        %vm6180 = vmor %vm6178, %vm6179
        %v6181 = vsel %vm6180, %v6173, %v6177
        %v6182 = vand.u32 2147483647, %v4267
        %vm6183 = vcmp.eq.f32.partialorder %v6182, 8.507059e+37
        %v6184 = vand.u32 %v4267, 2147483648
        %v6185 = vor.u32 1.1754944e-38, %v6184
        %v6186 = vsel %vm6183, %v6185, %v6181
        %v6187 = vmul.f32 1.0, %v6186
        %v6188 = vmul.f32 %v2345, %v4282
        %v6189 = vmul.f32 %v2541, %v4297
        %v6190 = vmul.f32 %v2737, %v4312
        %v6191 = vmul.f32 %v2933, %v4327
        %v6192 = vmul.f32 %v3129, %v4342
        %v6193 = vmul.f32 %v3325, %v4357
        %v6194 = vmul.f32 %v3521, %v4372
        %v6195 = vmul.f32 %v3717, %v4387
        %v6196 = vmul.f32 %v2347, %v4402
        %v6197 = vmul.f32 %v2543, %v4417
        %v6198 = vmul.f32 %v2739, %v4432
        %v6199 = vmul.f32 %v2935, %v4447
        %v6200 = vmul.f32 %v3131, %v4462
        %v6201 = vmul.f32 %v3327, %v4477
        %v6202 = vmul.f32 %v3523, %v4492
        %v6203 = vmul.f32 %v3719, %v4507
        %v6204 = vmul.f32 %v2350, %v4522
        %v6205 = vmul.f32 %v2546, %v4537
        %v6206 = vmul.f32 %v2742, %v4552
        %v6207 = vmul.f32 %v2938, %v4567
        %v6208 = vmul.f32 %v3134, %v4582
        %v6209 = vmul.f32 %v3330, %v4597
        %v6210 = vmul.f32 %v3526, %v4612
        %v6211 = vmul.f32 %v3722, %v4627
        %v6212 = vmul.f32 %v2352, %v4642
        %v6213 = vmul.f32 %v2548, %v4657
        %v6214 = vmul.f32 %v2744, %v4672
        %v6215 = vmul.f32 %v2940, %v4687
        %v6216 = vmul.f32 %v3136, %v4702
        %v6217 = vmul.f32 %v3332, %v4717
        %v6218 = vmul.f32 %v3528, %v4732
        %v6219 = vmul.f32 %v3724, %v4747
        %v6220 = vmul.f32 %v2355, %v4762
        %v6221 = vmul.f32 %v2551, %v4777
        %v6222 = vmul.f32 %v2747, %v4792
        %v6223 = vmul.f32 %v2943, %v4807
        %v6224 = vmul.f32 %v3139, %v4822
        %v6225 = vmul.f32 %v3335, %v4837
        %v6226 = vmul.f32 %v3531, %v4852
        %v6227 = vmul.f32 %v3727, %v4867
        %v6228 = vmul.f32 %v2357, %v4882
        %v6229 = vmul.f32 %v2553, %v4897
        %v6230 = vmul.f32 %v2749, %v4912
        %v6231 = vmul.f32 %v2945, %v4927
        %v6232 = vmul.f32 %v3141, %v4942
        %v6233 = vmul.f32 %v3337, %v4957
        %v6234 = vmul.f32 %v3533, %v4972
        %v6235 = vmul.f32 %v3729, %v4987
        %v6236 = vmul.f32 %v2360, %v5002
        %v6237 = vmul.f32 %v2556, %v5017
        %v6238 = vmul.f32 %v2752, %v5032
        %v6239 = vmul.f32 %v2948, %v5047
        %v6240 = vmul.f32 %v3144, %v5062
        %v6241 = vmul.f32 %v3340, %v5077
        %v6242 = vmul.f32 %v3536, %v5092
        %v6243 = vmul.f32 %v3732, %v5107
        %v6244 = vmul.f32 %v2362, %v5122
        %v6245 = vmul.f32 %v2558, %v5137
        %v6246 = vmul.f32 %v2754, %v5152
        %v6247 = vmul.f32 %v2950, %v5167
        %v6248 = vmul.f32 %v3146, %v5182
        %v6249 = vmul.f32 %v3342, %v5197
        %v6250 = vmul.f32 %v3538, %v5212
        %v6251 = vmul.f32 %v3734, %v5227
        %v6252 = vmul.f32 %v2365, %v5242
        %v6253 = vmul.f32 %v2561, %v5257
        %v6254 = vmul.f32 %v2757, %v5272
        %v6255 = vmul.f32 %v2953, %v5287
        %v6256 = vmul.f32 %v3149, %v5302
        %v6257 = vmul.f32 %v3345, %v5317
        %v6258 = vmul.f32 %v3541, %v5332
        %v6259 = vmul.f32 %v3737, %v5347
        %v6260 = vmul.f32 %v2367, %v5362
        %v6261 = vmul.f32 %v2563, %v5377
        %v6262 = vmul.f32 %v2759, %v5392
        %v6263 = vmul.f32 %v2955, %v5407
        %v6264 = vmul.f32 %v3151, %v5422
        %v6265 = vmul.f32 %v3347, %v5437
        %v6266 = vmul.f32 %v3543, %v5452
        %v6267 = vmul.f32 %v3739, %v5467
        %v6268 = vmul.f32 %v2370, %v5482
        %v6269 = vmul.f32 %v2566, %v5497
        %v6270 = vmul.f32 %v2762, %v5512
        %v6271 = vmul.f32 %v2958, %v5527
        %v6272 = vmul.f32 %v3154, %v5542
        %v6273 = vmul.f32 %v3350, %v5557
        %v6274 = vmul.f32 %v3546, %v5572
        %v6275 = vmul.f32 %v3742, %v5587
        %v6276 = vmul.f32 %v2372, %v5602
        %v6277 = vmul.f32 %v2568, %v5617
        %v6278 = vmul.f32 %v2764, %v5632
        %v6279 = vmul.f32 %v2960, %v5647
        %v6280 = vmul.f32 %v3156, %v5662
        %v6281 = vmul.f32 %v3352, %v5677
        %v6282 = vmul.f32 %v3548, %v5692
        %v6283 = vmul.f32 %v3744, %v5707
        %v6284 = vmul.f32 %v2375, %v5722
        %v6285 = vmul.f32 %v2571, %v5737
        %v6286 = vmul.f32 %v2767, %v5752
        %v6287 = vmul.f32 %v2963, %v5767
        %v6288 = vmul.f32 %v3159, %v5782
        %v6289 = vmul.f32 %v3355, %v5797
        %v6290 = vmul.f32 %v3551, %v5812
        %v6291 = vmul.f32 %v3747, %v5827
        %v6292 = vmul.f32 %v2377, %v5842
        %v6293 = vmul.f32 %v2573, %v5857
        %v6294 = vmul.f32 %v2769, %v5872
        %v6295 = vmul.f32 %v2965, %v5887
        %v6296 = vmul.f32 %v3161, %v5902
        %v6297 = vmul.f32 %v3357, %v5917
        %v6298 = vmul.f32 %v3553, %v5932
        %v6299 = vmul.f32 %v3749, %v5947
        %v6300 = vmul.f32 %v2380, %v5962
        %v6301 = vmul.f32 %v2576, %v5977
        %v6302 = vmul.f32 %v2772, %v5992
        %v6303 = vmul.f32 %v2968, %v6007
        %v6304 = vmul.f32 %v3164, %v6022
        %v6305 = vmul.f32 %v3360, %v6037
        %v6306 = vmul.f32 %v3556, %v6052
        %v6307 = vmul.f32 %v3752, %v6067
        %v6308 = vmul.f32 %v2382, %v6082
        %v6309 = vmul.f32 %v2578, %v6097
        %v6310 = vmul.f32 %v2774, %v6112
        %v6311 = vmul.f32 %v2970, %v6127
        %v6312 = vmul.f32 %v3166, %v6142
        %v6313 = vmul.f32 %v3362, %v6157
        %v6314 = vmul.f32 %v3558, %v6172
        %v6315 = vmul.f32 %v3754, %v6187
        %v6316 = vmul.f32 %v2345, %v6188
        %v6317 = vmul.f32 %v2541, %v6189
        %v6318 = vmul.f32 %v2737, %v6190
        %v6319 = vmul.f32 %v2933, %v6191
        %v6320 = vmul.f32 %v3129, %v6192
        %v6321 = vmul.f32 %v3325, %v6193
        %v6322 = vmul.f32 %v3521, %v6194
        %v6323 = vmul.f32 %v3717, %v6195
        %v6324 = vmul.f32 %v2347, %v6196
        %v6325 = vmul.f32 %v2543, %v6197
        %v6326 = vmul.f32 %v2739, %v6198
        %v6327 = vmul.f32 %v2935, %v6199
        %v6328 = vmul.f32 %v3131, %v6200
        %v6329 = vmul.f32 %v3327, %v6201
        %v6330 = vmul.f32 %v3523, %v6202
        %v6331 = vmul.f32 %v3719, %v6203
        %v6332 = vmul.f32 %v2350, %v6204
        %v6333 = vmul.f32 %v2546, %v6205
        %v6334 = vmul.f32 %v2742, %v6206
        %v6335 = vmul.f32 %v2938, %v6207
        %v6336 = vmul.f32 %v3134, %v6208
        %v6337 = vmul.f32 %v3330, %v6209
        %v6338 = vmul.f32 %v3526, %v6210
        %v6339 = vmul.f32 %v3722, %v6211
        %v6340 = vmul.f32 %v2352, %v6212
        %v6341 = vmul.f32 %v2548, %v6213
        %v6342 = vmul.f32 %v2744, %v6214
        %v6343 = vmul.f32 %v2940, %v6215
        %v6344 = vmul.f32 %v3136, %v6216
        %v6345 = vmul.f32 %v3332, %v6217
        %v6346 = vmul.f32 %v3528, %v6218
        %v6347 = vmul.f32 %v3724, %v6219
        %v6348 = vmul.f32 %v2355, %v6220
        %v6349 = vmul.f32 %v2551, %v6221
        %v6350 = vmul.f32 %v2747, %v6222
        %v6351 = vmul.f32 %v2943, %v6223
        %v6352 = vmul.f32 %v3139, %v6224
        %v6353 = vmul.f32 %v3335, %v6225
        %v6354 = vmul.f32 %v3531, %v6226
        %v6355 = vmul.f32 %v3727, %v6227
        %v6356 = vmul.f32 %v2357, %v6228
        %v6357 = vmul.f32 %v2553, %v6229
        %v6358 = vmul.f32 %v2749, %v6230
        %v6359 = vmul.f32 %v2945, %v6231
        %v6360 = vmul.f32 %v3141, %v6232
        %v6361 = vmul.f32 %v3337, %v6233
        %v6362 = vmul.f32 %v3533, %v6234
        %v6363 = vmul.f32 %v3729, %v6235
        %v6364 = vmul.f32 %v2360, %v6236
        %v6365 = vmul.f32 %v2556, %v6237
        %v6366 = vmul.f32 %v2752, %v6238
        %v6367 = vmul.f32 %v2948, %v6239
        %v6368 = vmul.f32 %v3144, %v6240
        %v6369 = vmul.f32 %v3340, %v6241
        %v6370 = vmul.f32 %v3536, %v6242
        %v6371 = vmul.f32 %v3732, %v6243
        %v6372 = vmul.f32 %v2362, %v6244
        %v6373 = vmul.f32 %v2558, %v6245
        %v6374 = vmul.f32 %v2754, %v6246
        %v6375 = vmul.f32 %v2950, %v6247
        %v6376 = vmul.f32 %v3146, %v6248
        %v6377 = vmul.f32 %v3342, %v6249
        %v6378 = vmul.f32 %v3538, %v6250
        %v6379 = vmul.f32 %v3734, %v6251
        %v6380 = vmul.f32 %v2365, %v6252
        %v6381 = vmul.f32 %v2561, %v6253
        %v6382 = vmul.f32 %v2757, %v6254
        %v6383 = vmul.f32 %v2953, %v6255
        %v6384 = vmul.f32 %v3149, %v6256
        %v6385 = vmul.f32 %v3345, %v6257
        %v6386 = vmul.f32 %v3541, %v6258
        %v6387 = vmul.f32 %v3737, %v6259
        %v6388 = vmul.f32 %v2367, %v6260
        %v6389 = vmul.f32 %v2563, %v6261
        %v6390 = vmul.f32 %v2759, %v6262
        %v6391 = vmul.f32 %v2955, %v6263
        %v6392 = vmul.f32 %v3151, %v6264
        %v6393 = vmul.f32 %v3347, %v6265
        %v6394 = vmul.f32 %v3543, %v6266
        %v6395 = vmul.f32 %v3739, %v6267
        %v6396 = vmul.f32 %v2370, %v6268
        %v6397 = vmul.f32 %v2566, %v6269
        %v6398 = vmul.f32 %v2762, %v6270
        %v6399 = vmul.f32 %v2958, %v6271
        %v6400 = vmul.f32 %v3154, %v6272
        %v6401 = vmul.f32 %v3350, %v6273
        %v6402 = vmul.f32 %v3546, %v6274
        %v6403 = vmul.f32 %v3742, %v6275
        %v6404 = vmul.f32 %v2372, %v6276
        %v6405 = vmul.f32 %v2568, %v6277
        %v6406 = vmul.f32 %v2764, %v6278
        %v6407 = vmul.f32 %v2960, %v6279
        %v6408 = vmul.f32 %v3156, %v6280
        %v6409 = vmul.f32 %v3352, %v6281
        %v6410 = vmul.f32 %v3548, %v6282
        %v6411 = vmul.f32 %v3744, %v6283
        %v6412 = vmul.f32 %v2375, %v6284
        %v6413 = vmul.f32 %v2571, %v6285
        %v6414 = vmul.f32 %v2767, %v6286
        %v6415 = vmul.f32 %v2963, %v6287
        %v6416 = vmul.f32 %v3159, %v6288
        %v6417 = vmul.f32 %v3355, %v6289
        %v6418 = vmul.f32 %v3551, %v6290
        %v6419 = vmul.f32 %v3747, %v6291
        %v6420 = vmul.f32 %v2377, %v6292
        %v6421 = vmul.f32 %v2573, %v6293
        %v6422 = vmul.f32 %v2769, %v6294
        %v6423 = vmul.f32 %v2965, %v6295
        %v6424 = vmul.f32 %v3161, %v6296
        %v6425 = vmul.f32 %v3357, %v6297
        %v6426 = vmul.f32 %v3553, %v6298
        %v6427 = vmul.f32 %v3749, %v6299
        %v6428 = vmul.f32 %v2380, %v6300
        %v6429 = vmul.f32 %v2576, %v6301
        %v6430 = vmul.f32 %v2772, %v6302
        %v6431 = vmul.f32 %v2968, %v6303
        %v6432 = vmul.f32 %v3164, %v6304
        %v6433 = vmul.f32 %v3360, %v6305
        %v6434 = vmul.f32 %v3556, %v6306
        %v6435 = vmul.f32 %v3752, %v6307
        %v6436 = vmul.f32 %v2382, %v6308
        %v6437 = vmul.f32 %v2578, %v6309
        %v6438 = vmul.f32 %v2774, %v6310
        %v6439 = vmul.f32 %v2970, %v6311
        %v6440 = vmul.f32 %v3166, %v6312
        %v6441 = vmul.f32 %v3362, %v6313
        %v6442 = vmul.f32 %v3558, %v6314
        %v6443 = vmul.f32 %v3754, %v6315
        %v6444 = vld [vmem:[#allocation2] sm:$0xff]
        %v6445 = vld [vmem:[#allocation2 + $0x8] sm:$0xff]
        %v6446 = vld [vmem:[#allocation2 + $0x10] sm:$0xff]
        %v6447 = vld [vmem:[#allocation2 + $0x18] sm:$0xff]
        %v6448 = vld [vmem:[#allocation2 + $0x20] sm:$0xff]
        %v6449 = vld [vmem:[#allocation2 + $0x28] sm:$0xff]
        %v6450 = vld [vmem:[#allocation2 + $0x30] sm:$0xff]
        %v6451 = vld [vmem:[#allocation2 + $0x38] sm:$0xff]
        %v6452 = vld [vmem:[#allocation2 + $0x40] sm:$0xff]
        %v6453 = vld [vmem:[#allocation2 + $0x48] sm:$0xff]
        %v6454 = vld [vmem:[#allocation2 + $0x50] sm:$0xff]
        %v6455 = vld [vmem:[#allocation2 + $0x58] sm:$0xff]
        %v6456 = vld [vmem:[#allocation2 + $0x60] sm:$0xff]
        %v6457 = vld [vmem:[#allocation2 + $0x68] sm:$0xff]
        %v6458 = vld [vmem:[#allocation2 + $0x70] sm:$0xff]
        %v6459 = vld [vmem:[#allocation2 + $0x78] sm:$0xff]
        %v6460 = vld [vmem:[#allocation2 + $0x80] sm:$0xff]
        %v6461 = vld [vmem:[#allocation2 + $0x88] sm:$0xff]
        %v6462 = vld [vmem:[#allocation2 + $0x90] sm:$0xff]
        %v6463 = vld [vmem:[#allocation2 + $0x98] sm:$0xff]
        %v6464 = vld [vmem:[#allocation2 + $0xa0] sm:$0xff]
        %v6465 = vld [vmem:[#allocation2 + $0xa8] sm:$0xff]
        %v6466 = vld [vmem:[#allocation2 + $0xb0] sm:$0xff]
        %v6467 = vld [vmem:[#allocation2 + $0xb8] sm:$0xff]
        %v6468 = vld [vmem:[#allocation2 + $0xc0] sm:$0xff]
        %v6469 = vld [vmem:[#allocation2 + $0xc8] sm:$0xff]
        %v6470 = vld [vmem:[#allocation2 + $0xd0] sm:$0xff]
        %v6471 = vld [vmem:[#allocation2 + $0xd8] sm:$0xff]
        %v6472 = vld [vmem:[#allocation2 + $0xe0] sm:$0xff]
        %v6473 = vld [vmem:[#allocation2 + $0xe8] sm:$0xff]
        %v6474 = vld [vmem:[#allocation2 + $0xf0] sm:$0xff]
        %v6475 = vld [vmem:[#allocation2 + $0xf8] sm:$0xff]
        %v6476 = vld [vmem:[#allocation2 + $0x100] sm:$0xff]
        %v6477 = vld [vmem:[#allocation2 + $0x108] sm:$0xff]
        %v6478 = vld [vmem:[#allocation2 + $0x110] sm:$0xff]
        %v6479 = vld [vmem:[#allocation2 + $0x118] sm:$0xff]
        %v6480 = vld [vmem:[#allocation2 + $0x120] sm:$0xff]
        %v6481 = vld [vmem:[#allocation2 + $0x128] sm:$0xff]
        %v6482 = vld [vmem:[#allocation2 + $0x130] sm:$0xff]
        %v6483 = vld [vmem:[#allocation2 + $0x138] sm:$0xff]
        %v6484 = vld [vmem:[#allocation2 + $0x140] sm:$0xff]
        %v6485 = vld [vmem:[#allocation2 + $0x148] sm:$0xff]
        %v6486 = vld [vmem:[#allocation2 + $0x150] sm:$0xff]
        %v6487 = vld [vmem:[#allocation2 + $0x158] sm:$0xff]
        %v6488 = vld [vmem:[#allocation2 + $0x160] sm:$0xff]
        %v6489 = vld [vmem:[#allocation2 + $0x168] sm:$0xff]
        %v6490 = vld [vmem:[#allocation2 + $0x170] sm:$0xff]
        %v6491 = vld [vmem:[#allocation2 + $0x178] sm:$0xff]
        %v6492 = vld [vmem:[#allocation2 + $0x180] sm:$0xff]
        %v6493 = vld [vmem:[#allocation2 + $0x188] sm:$0xff]
        %v6494 = vld [vmem:[#allocation2 + $0x190] sm:$0xff]
        %v6495 = vld [vmem:[#allocation2 + $0x198] sm:$0xff]
        %v6496 = vld [vmem:[#allocation2 + $0x1a0] sm:$0xff]
        %v6497 = vld [vmem:[#allocation2 + $0x1a8] sm:$0xff]
        %v6498 = vld [vmem:[#allocation2 + $0x1b0] sm:$0xff]
        %v6499 = vld [vmem:[#allocation2 + $0x1b8] sm:$0xff]
        %v6500 = vld [vmem:[#allocation2 + $0x1c0] sm:$0xff]
        %v6501 = vld [vmem:[#allocation2 + $0x1c8] sm:$0xff]
        %v6502 = vld [vmem:[#allocation2 + $0x1d0] sm:$0xff]
        %v6503 = vld [vmem:[#allocation2 + $0x1d8] sm:$0xff]
        %v6504 = vld [vmem:[#allocation2 + $0x1e0] sm:$0xff]
        %v6505 = vld [vmem:[#allocation2 + $0x1e8] sm:$0xff]
        %v6506 = vld [vmem:[#allocation2 + $0x1f0] sm:$0xff]
        %v6507 = vld [vmem:[#allocation2 + $0x1f8] sm:$0xff]
        %v6508 = vpack.c.bf16 %v6324, %v6316
        %v6509 = vpack.c.bf16 %v6325, %v6317
        %v6510 = vpack.c.bf16 %v6326, %v6318
        %v6511 = vpack.c.bf16 %v6327, %v6319
        %v6512 = vpack.c.bf16 %v6328, %v6320
        %v6513 = vpack.c.bf16 %v6329, %v6321
        %v6514 = vpack.c.bf16 %v6330, %v6322
        %v6515 = vpack.c.bf16 %v6331, %v6323
        %v6516 = vpack.c.bf16 %v6340, %v6332
        %v6517 = vpack.c.bf16 %v6341, %v6333
        %v6518 = vpack.c.bf16 %v6342, %v6334
        %v6519 = vpack.c.bf16 %v6343, %v6335
        %v6520 = vpack.c.bf16 %v6344, %v6336
        %v6521 = vpack.c.bf16 %v6345, %v6337
        %v6522 = vpack.c.bf16 %v6346, %v6338
        %v6523 = vpack.c.bf16 %v6347, %v6339
        %v6524 = vpack.c.bf16 %v6356, %v6348
        %v6525 = vpack.c.bf16 %v6357, %v6349
        %v6526 = vpack.c.bf16 %v6358, %v6350
        %v6527 = vpack.c.bf16 %v6359, %v6351
        %v6528 = vpack.c.bf16 %v6360, %v6352
        %v6529 = vpack.c.bf16 %v6361, %v6353
        %v6530 = vpack.c.bf16 %v6362, %v6354
        %v6531 = vpack.c.bf16 %v6363, %v6355
        %v6532 = vpack.c.bf16 %v6372, %v6364
        %v6533 = vpack.c.bf16 %v6373, %v6365
        %v6534 = vpack.c.bf16 %v6374, %v6366
        %v6535 = vpack.c.bf16 %v6375, %v6367
        %v6536 = vpack.c.bf16 %v6376, %v6368
        %v6537 = vpack.c.bf16 %v6377, %v6369
        %v6538 = vpack.c.bf16 %v6378, %v6370
        %v6539 = vpack.c.bf16 %v6379, %v6371
        %v6540 = vpack.c.bf16 %v6388, %v6380
        %v6541 = vpack.c.bf16 %v6389, %v6381
        %v6542 = vpack.c.bf16 %v6390, %v6382
        %v6543 = vpack.c.bf16 %v6391, %v6383
        %v6544 = vpack.c.bf16 %v6392, %v6384
        %v6545 = vpack.c.bf16 %v6393, %v6385
        %v6546 = vpack.c.bf16 %v6394, %v6386
        %v6547 = vpack.c.bf16 %v6395, %v6387
        %v6548 = vpack.c.bf16 %v6404, %v6396
        %v6549 = vpack.c.bf16 %v6405, %v6397
        %v6550 = vpack.c.bf16 %v6406, %v6398
        %v6551 = vpack.c.bf16 %v6407, %v6399
        %v6552 = vpack.c.bf16 %v6408, %v6400
        %v6553 = vpack.c.bf16 %v6409, %v6401
        %v6554 = vpack.c.bf16 %v6410, %v6402
        %v6555 = vpack.c.bf16 %v6411, %v6403
        %v6556 = vpack.c.bf16 %v6420, %v6412
        %v6557 = vpack.c.bf16 %v6421, %v6413
        %v6558 = vpack.c.bf16 %v6422, %v6414
        %v6559 = vpack.c.bf16 %v6423, %v6415
        %v6560 = vpack.c.bf16 %v6424, %v6416
        %v6561 = vpack.c.bf16 %v6425, %v6417
        %v6562 = vpack.c.bf16 %v6426, %v6418
        %v6563 = vpack.c.bf16 %v6427, %v6419
        %v6564 = vpack.c.bf16 %v6436, %v6428
        %v6565 = vpack.c.bf16 %v6437, %v6429
        %v6566 = vpack.c.bf16 %v6438, %v6430
        %v6567 = vpack.c.bf16 %v6439, %v6431
        %v6568 = vpack.c.bf16 %v6440, %v6432
        %v6569 = vpack.c.bf16 %v6441, %v6433
        %v6570 = vpack.c.bf16 %v6442, %v6434
        %v6571 = vpack.c.bf16 %v6443, %v6435
        %v6572 = vld [vmem:[%s331] sm:$0xff]
        %v6573 = vld [vmem:[%s331 + $0x8] sm:$0xff]
        %v6574 = vld [vmem:[%s331 + $0x10] sm:$0xff]
        %v6575 = vld [vmem:[%s331 + $0x18] sm:$0xff]
        %v6576 = vld [vmem:[%s331 + $0x20] sm:$0xff]
        %v6577 = vld [vmem:[%s331 + $0x28] sm:$0xff]
        %v6578 = vld [vmem:[%s331 + $0x30] sm:$0xff]
        %v6579 = vld [vmem:[%s331 + $0x38] sm:$0xff]
        %v6580 = vld [vmem:[%s331 + $0x40] sm:$0xff]
        %v6581 = vld [vmem:[%s331 + $0x48] sm:$0xff]
        %v6582 = vld [vmem:[%s331 + $0x50] sm:$0xff]
        %v6583 = vld [vmem:[%s331 + $0x58] sm:$0xff]
        %v6584 = vld [vmem:[%s331 + $0x60] sm:$0xff]
        %v6585 = vld [vmem:[%s331 + $0x68] sm:$0xff]
        %v6586 = vld [vmem:[%s331 + $0x70] sm:$0xff]
        %v6587 = vld [vmem:[%s331 + $0x78] sm:$0xff]
        %v6588 = vld [vmem:[%s331 + $0x80] sm:$0xff]
        %v6589 = vld [vmem:[%s331 + $0x88] sm:$0xff]
        %v6590 = vld [vmem:[%s331 + $0x90] sm:$0xff]
        %v6591 = vld [vmem:[%s331 + $0x98] sm:$0xff]
        %v6592 = vld [vmem:[%s331 + $0xa0] sm:$0xff]
        %v6593 = vld [vmem:[%s331 + $0xa8] sm:$0xff]
        %v6594 = vld [vmem:[%s331 + $0xb0] sm:$0xff]
        %v6595 = vld [vmem:[%s331 + $0xb8] sm:$0xff]
        %v6596 = vld [vmem:[%s331 + $0xc0] sm:$0xff]
        %v6597 = vld [vmem:[%s331 + $0xc8] sm:$0xff]
        %v6598 = vld [vmem:[%s331 + $0xd0] sm:$0xff]
        %v6599 = vld [vmem:[%s331 + $0xd8] sm:$0xff]
        %v6600 = vld [vmem:[%s331 + $0xe0] sm:$0xff]
        %v6601 = vld [vmem:[%s331 + $0xe8] sm:$0xff]
        %v6602 = vld [vmem:[%s331 + $0xf0] sm:$0xff]
        %v6603 = vld [vmem:[%s331 + $0xf8] sm:$0xff]
        %v6604 = vld [vmem:[%s331 + $0x100] sm:$0xff]
        %v6605 = vld [vmem:[%s331 + $0x108] sm:$0xff]
        %v6606 = vld [vmem:[%s331 + $0x110] sm:$0xff]
        %v6607 = vld [vmem:[%s331 + $0x118] sm:$0xff]
        %v6608 = vld [vmem:[%s331 + $0x120] sm:$0xff]
        %v6609 = vld [vmem:[%s331 + $0x128] sm:$0xff]
        %v6610 = vld [vmem:[%s331 + $0x130] sm:$0xff]
        %v6611 = vld [vmem:[%s331 + $0x138] sm:$0xff]
        %v6612 = vld [vmem:[%s331 + $0x140] sm:$0xff]
        %v6613 = vld [vmem:[%s331 + $0x148] sm:$0xff]
        %v6614 = vld [vmem:[%s331 + $0x150] sm:$0xff]
        %v6615 = vld [vmem:[%s331 + $0x158] sm:$0xff]
        %v6616 = vld [vmem:[%s331 + $0x160] sm:$0xff]
        %v6617 = vld [vmem:[%s331 + $0x168] sm:$0xff]
        %v6618 = vld [vmem:[%s331 + $0x170] sm:$0xff]
        %v6619 = vld [vmem:[%s331 + $0x178] sm:$0xff]
        %v6620 = vld [vmem:[%s331 + $0x180] sm:$0xff]
        %v6621 = vld [vmem:[%s331 + $0x188] sm:$0xff]
        %v6622 = vld [vmem:[%s331 + $0x190] sm:$0xff]
        %v6623 = vld [vmem:[%s331 + $0x198] sm:$0xff]
        %v6624 = vld [vmem:[%s331 + $0x1a0] sm:$0xff]
        %v6625 = vld [vmem:[%s331 + $0x1a8] sm:$0xff]
        %v6626 = vld [vmem:[%s331 + $0x1b0] sm:$0xff]
        %v6627 = vld [vmem:[%s331 + $0x1b8] sm:$0xff]
        %v6628 = vld [vmem:[%s331 + $0x1c0] sm:$0xff]
        %v6629 = vld [vmem:[%s331 + $0x1c8] sm:$0xff]
        %v6630 = vld [vmem:[%s331 + $0x1d0] sm:$0xff]
        %v6631 = vld [vmem:[%s331 + $0x1d8] sm:$0xff]
        %v6632 = vld [vmem:[%s331 + $0x1e0] sm:$0xff]
        %v6633 = vld [vmem:[%s331 + $0x1e8] sm:$0xff]
        %v6634 = vld [vmem:[%s331 + $0x1f0] sm:$0xff]
        %v6635 = vld [vmem:[%s331 + $0x1f8] sm:$0xff]
        %v6636 = vld [vmem:[%s331 + $0x200] sm:$0xff]
        %v6637 = vld [vmem:[%s331 + $0x208] sm:$0xff]
        %v6638 = vld [vmem:[%s331 + $0x210] sm:$0xff]
        %v6639 = vld [vmem:[%s331 + $0x218] sm:$0xff]
        %v6640 = vld [vmem:[%s331 + $0x220] sm:$0xff]
        %v6641 = vld [vmem:[%s331 + $0x228] sm:$0xff]
        %v6642 = vld [vmem:[%s331 + $0x230] sm:$0xff]
        %v6643 = vld [vmem:[%s331 + $0x238] sm:$0xff]
        %v6644 = vld [vmem:[%s331 + $0x240] sm:$0xff]
        %v6645 = vld [vmem:[%s331 + $0x248] sm:$0xff]
        %v6646 = vld [vmem:[%s331 + $0x250] sm:$0xff]
        %v6647 = vld [vmem:[%s331 + $0x258] sm:$0xff]
        %v6648 = vld [vmem:[%s331 + $0x260] sm:$0xff]
        %v6649 = vld [vmem:[%s331 + $0x268] sm:$0xff]
        %v6650 = vld [vmem:[%s331 + $0x270] sm:$0xff]
        %v6651 = vld [vmem:[%s331 + $0x278] sm:$0xff]
        %v6652 = vld [vmem:[%s331 + $0x280] sm:$0xff]
        %v6653 = vld [vmem:[%s331 + $0x288] sm:$0xff]
        %v6654 = vld [vmem:[%s331 + $0x290] sm:$0xff]
        %v6655 = vld [vmem:[%s331 + $0x298] sm:$0xff]
        %v6656 = vld [vmem:[%s331 + $0x2a0] sm:$0xff]
        %v6657 = vld [vmem:[%s331 + $0x2a8] sm:$0xff]
        %v6658 = vld [vmem:[%s331 + $0x2b0] sm:$0xff]
        %v6659 = vld [vmem:[%s331 + $0x2b8] sm:$0xff]
        %v6660 = vld [vmem:[%s331 + $0x2c0] sm:$0xff]
        %v6661 = vld [vmem:[%s331 + $0x2c8] sm:$0xff]
        %v6662 = vld [vmem:[%s331 + $0x2d0] sm:$0xff]
        %v6663 = vld [vmem:[%s331 + $0x2d8] sm:$0xff]
        %v6664 = vld [vmem:[%s331 + $0x2e0] sm:$0xff]
        %v6665 = vld [vmem:[%s331 + $0x2e8] sm:$0xff]
        %v6666 = vld [vmem:[%s331 + $0x2f0] sm:$0xff]
        %v6667 = vld [vmem:[%s331 + $0x2f8] sm:$0xff]
        %v6668 = vld [vmem:[%s331 + $0x300] sm:$0xff]
        %v6669 = vld [vmem:[%s331 + $0x308] sm:$0xff]
        %v6670 = vld [vmem:[%s331 + $0x310] sm:$0xff]
        %v6671 = vld [vmem:[%s331 + $0x318] sm:$0xff]
        %v6672 = vld [vmem:[%s331 + $0x320] sm:$0xff]
        %v6673 = vld [vmem:[%s331 + $0x328] sm:$0xff]
        %v6674 = vld [vmem:[%s331 + $0x330] sm:$0xff]
        %v6675 = vld [vmem:[%s331 + $0x338] sm:$0xff]
        %v6676 = vld [vmem:[%s331 + $0x340] sm:$0xff]
        %v6677 = vld [vmem:[%s331 + $0x348] sm:$0xff]
        %v6678 = vld [vmem:[%s331 + $0x350] sm:$0xff]
        %v6679 = vld [vmem:[%s331 + $0x358] sm:$0xff]
        %v6680 = vld [vmem:[%s331 + $0x360] sm:$0xff]
        %v6681 = vld [vmem:[%s331 + $0x368] sm:$0xff]
        %v6682 = vld [vmem:[%s331 + $0x370] sm:$0xff]
        %v6683 = vld [vmem:[%s331 + $0x378] sm:$0xff]
        %v6684 = vld [vmem:[%s331 + $0x380] sm:$0xff]
        %v6685 = vld [vmem:[%s331 + $0x388] sm:$0xff]
        %v6686 = vld [vmem:[%s331 + $0x390] sm:$0xff]
        %v6687 = vld [vmem:[%s331 + $0x398] sm:$0xff]
        %v6688 = vld [vmem:[%s331 + $0x3a0] sm:$0xff]
        %v6689 = vld [vmem:[%s331 + $0x3a8] sm:$0xff]
        %v6690 = vld [vmem:[%s331 + $0x3b0] sm:$0xff]
        %v6691 = vld [vmem:[%s331 + $0x3b8] sm:$0xff]
        %v6692 = vld [vmem:[%s331 + $0x3c0] sm:$0xff]
        %v6693 = vld [vmem:[%s331 + $0x3c8] sm:$0xff]
        %v6694 = vld [vmem:[%s331 + $0x3d0] sm:$0xff]
        %v6695 = vld [vmem:[%s331 + $0x3d8] sm:$0xff]
        %v6696 = vld [vmem:[%s331 + $0x3e0] sm:$0xff]
        %v6697 = vld [vmem:[%s331 + $0x3e8] sm:$0xff]
        %v6698 = vld [vmem:[%s331 + $0x3f0] sm:$0xff]
        %v6699 = vld [vmem:[%s331 + $0x3f8] sm:$0xff]
        %v6700 = vld [vmem:[%s331 + $0x400] sm:$0xff]
        %v6701 = vld [vmem:[%s331 + $0x408] sm:$0xff]
        %v6702 = vld [vmem:[%s331 + $0x410] sm:$0xff]
        %v6703 = vld [vmem:[%s331 + $0x418] sm:$0xff]
        %v6704 = vld [vmem:[%s331 + $0x420] sm:$0xff]
        %v6705 = vld [vmem:[%s331 + $0x428] sm:$0xff]
        %v6706 = vld [vmem:[%s331 + $0x430] sm:$0xff]
        %v6707 = vld [vmem:[%s331 + $0x438] sm:$0xff]
        %v6708 = vld [vmem:[%s331 + $0x440] sm:$0xff]
        %v6709 = vld [vmem:[%s331 + $0x448] sm:$0xff]
        %v6710 = vld [vmem:[%s331 + $0x450] sm:$0xff]
        %v6711 = vld [vmem:[%s331 + $0x458] sm:$0xff]
        %v6712 = vld [vmem:[%s331 + $0x460] sm:$0xff]
        %v6713 = vld [vmem:[%s331 + $0x468] sm:$0xff]
        %v6714 = vld [vmem:[%s331 + $0x470] sm:$0xff]
        %v6715 = vld [vmem:[%s331 + $0x478] sm:$0xff]
        %v6716 = vld [vmem:[%s331 + $0x480] sm:$0xff]
        %v6717 = vld [vmem:[%s331 + $0x488] sm:$0xff]
        %v6718 = vld [vmem:[%s331 + $0x490] sm:$0xff]
        %v6719 = vld [vmem:[%s331 + $0x498] sm:$0xff]
        %v6720 = vld [vmem:[%s331 + $0x4a0] sm:$0xff]
        %v6721 = vld [vmem:[%s331 + $0x4a8] sm:$0xff]
        %v6722 = vld [vmem:[%s331 + $0x4b0] sm:$0xff]
        %v6723 = vld [vmem:[%s331 + $0x4b8] sm:$0xff]
        %v6724 = vld [vmem:[%s331 + $0x4c0] sm:$0xff]
        %v6725 = vld [vmem:[%s331 + $0x4c8] sm:$0xff]
        %v6726 = vld [vmem:[%s331 + $0x4d0] sm:$0xff]
        %v6727 = vld [vmem:[%s331 + $0x4d8] sm:$0xff]
        %v6728 = vld [vmem:[%s331 + $0x4e0] sm:$0xff]
        %v6729 = vld [vmem:[%s331 + $0x4e8] sm:$0xff]
        %v6730 = vld [vmem:[%s331 + $0x4f0] sm:$0xff]
        %v6731 = vld [vmem:[%s331 + $0x4f8] sm:$0xff]
        %v6732 = vld [vmem:[%s331 + $0x500] sm:$0xff]
        %v6733 = vld [vmem:[%s331 + $0x508] sm:$0xff]
        %v6734 = vld [vmem:[%s331 + $0x510] sm:$0xff]
        %v6735 = vld [vmem:[%s331 + $0x518] sm:$0xff]
        %v6736 = vld [vmem:[%s331 + $0x520] sm:$0xff]
        %v6737 = vld [vmem:[%s331 + $0x528] sm:$0xff]
        %v6738 = vld [vmem:[%s331 + $0x530] sm:$0xff]
        %v6739 = vld [vmem:[%s331 + $0x538] sm:$0xff]
        %v6740 = vld [vmem:[%s331 + $0x540] sm:$0xff]
        %v6741 = vld [vmem:[%s331 + $0x548] sm:$0xff]
        %v6742 = vld [vmem:[%s331 + $0x550] sm:$0xff]
        %v6743 = vld [vmem:[%s331 + $0x558] sm:$0xff]
        %v6744 = vld [vmem:[%s331 + $0x560] sm:$0xff]
        %v6745 = vld [vmem:[%s331 + $0x568] sm:$0xff]
        %v6746 = vld [vmem:[%s331 + $0x570] sm:$0xff]
        %v6747 = vld [vmem:[%s331 + $0x578] sm:$0xff]
        %v6748 = vld [vmem:[%s331 + $0x580] sm:$0xff]
        %v6749 = vld [vmem:[%s331 + $0x588] sm:$0xff]
        %v6750 = vld [vmem:[%s331 + $0x590] sm:$0xff]
        %v6751 = vld [vmem:[%s331 + $0x598] sm:$0xff]
        %v6752 = vld [vmem:[%s331 + $0x5a0] sm:$0xff]
        %v6753 = vld [vmem:[%s331 + $0x5a8] sm:$0xff]
        %v6754 = vld [vmem:[%s331 + $0x5b0] sm:$0xff]
        %v6755 = vld [vmem:[%s331 + $0x5b8] sm:$0xff]
        %v6756 = vld [vmem:[%s331 + $0x5c0] sm:$0xff]
        %v6757 = vld [vmem:[%s331 + $0x5c8] sm:$0xff]
        %v6758 = vld [vmem:[%s331 + $0x5d0] sm:$0xff]
        %v6759 = vld [vmem:[%s331 + $0x5d8] sm:$0xff]
        %v6760 = vld [vmem:[%s331 + $0x5e0] sm:$0xff]
        %v6761 = vld [vmem:[%s331 + $0x5e8] sm:$0xff]
        %v6762 = vld [vmem:[%s331 + $0x5f0] sm:$0xff]
        %v6763 = vld [vmem:[%s331 + $0x5f8] sm:$0xff]
        %v6764 = vld [vmem:[%s331 + $0x600] sm:$0xff]
        %v6765 = vld [vmem:[%s331 + $0x608] sm:$0xff]
        %v6766 = vld [vmem:[%s331 + $0x610] sm:$0xff]
        %v6767 = vld [vmem:[%s331 + $0x618] sm:$0xff]
        %v6768 = vld [vmem:[%s331 + $0x620] sm:$0xff]
        %v6769 = vld [vmem:[%s331 + $0x628] sm:$0xff]
        %v6770 = vld [vmem:[%s331 + $0x630] sm:$0xff]
        %v6771 = vld [vmem:[%s331 + $0x638] sm:$0xff]
        %v6772 = vld [vmem:[%s331 + $0x640] sm:$0xff]
        %v6773 = vld [vmem:[%s331 + $0x648] sm:$0xff]
        %v6774 = vld [vmem:[%s331 + $0x650] sm:$0xff]
        %v6775 = vld [vmem:[%s331 + $0x658] sm:$0xff]
        %v6776 = vld [vmem:[%s331 + $0x660] sm:$0xff]
        %v6777 = vld [vmem:[%s331 + $0x668] sm:$0xff]
        %v6778 = vld [vmem:[%s331 + $0x670] sm:$0xff]
        %v6779 = vld [vmem:[%s331 + $0x678] sm:$0xff]
        %v6780 = vld [vmem:[%s331 + $0x680] sm:$0xff]
        %v6781 = vld [vmem:[%s331 + $0x688] sm:$0xff]
        %v6782 = vld [vmem:[%s331 + $0x690] sm:$0xff]
        %v6783 = vld [vmem:[%s331 + $0x698] sm:$0xff]
        %v6784 = vld [vmem:[%s331 + $0x6a0] sm:$0xff]
        %v6785 = vld [vmem:[%s331 + $0x6a8] sm:$0xff]
        %v6786 = vld [vmem:[%s331 + $0x6b0] sm:$0xff]
        %v6787 = vld [vmem:[%s331 + $0x6b8] sm:$0xff]
        %v6788 = vld [vmem:[%s331 + $0x6c0] sm:$0xff]
        %v6789 = vld [vmem:[%s331 + $0x6c8] sm:$0xff]
        %v6790 = vld [vmem:[%s331 + $0x6d0] sm:$0xff]
        %v6791 = vld [vmem:[%s331 + $0x6d8] sm:$0xff]
        %v6792 = vld [vmem:[%s331 + $0x6e0] sm:$0xff]
        %v6793 = vld [vmem:[%s331 + $0x6e8] sm:$0xff]
        %v6794 = vld [vmem:[%s331 + $0x6f0] sm:$0xff]
        %v6795 = vld [vmem:[%s331 + $0x6f8] sm:$0xff]
        %v6796 = vld [vmem:[%s331 + $0x700] sm:$0xff]
        %v6797 = vld [vmem:[%s331 + $0x708] sm:$0xff]
        %v6798 = vld [vmem:[%s331 + $0x710] sm:$0xff]
        %v6799 = vld [vmem:[%s331 + $0x718] sm:$0xff]
        %v6800 = vld [vmem:[%s331 + $0x720] sm:$0xff]
        %v6801 = vld [vmem:[%s331 + $0x728] sm:$0xff]
        %v6802 = vld [vmem:[%s331 + $0x730] sm:$0xff]
        %v6803 = vld [vmem:[%s331 + $0x738] sm:$0xff]
        %v6804 = vld [vmem:[%s331 + $0x740] sm:$0xff]
        %v6805 = vld [vmem:[%s331 + $0x748] sm:$0xff]
        %v6806 = vld [vmem:[%s331 + $0x750] sm:$0xff]
        %v6807 = vld [vmem:[%s331 + $0x758] sm:$0xff]
        %v6808 = vld [vmem:[%s331 + $0x760] sm:$0xff]
        %v6809 = vld [vmem:[%s331 + $0x768] sm:$0xff]
        %v6810 = vld [vmem:[%s331 + $0x770] sm:$0xff]
        %v6811 = vld [vmem:[%s331 + $0x778] sm:$0xff]
        %v6812 = vld [vmem:[%s331 + $0x780] sm:$0xff]
        %v6813 = vld [vmem:[%s331 + $0x788] sm:$0xff]
        %v6814 = vld [vmem:[%s331 + $0x790] sm:$0xff]
        %v6815 = vld [vmem:[%s331 + $0x798] sm:$0xff]
        %v6816 = vld [vmem:[%s331 + $0x7a0] sm:$0xff]
        %v6817 = vld [vmem:[%s331 + $0x7a8] sm:$0xff]
        %v6818 = vld [vmem:[%s331 + $0x7b0] sm:$0xff]
        %v6819 = vld [vmem:[%s331 + $0x7b8] sm:$0xff]
        %v6820 = vld [vmem:[%s331 + $0x7c0] sm:$0xff]
        %v6821 = vld [vmem:[%s331 + $0x7c8] sm:$0xff]
        %v6822 = vld [vmem:[%s331 + $0x7d0] sm:$0xff]
        %v6823 = vld [vmem:[%s331 + $0x7d8] sm:$0xff]
        %v6824 = vld [vmem:[%s331 + $0x7e0] sm:$0xff]
        %v6825 = vld [vmem:[%s331 + $0x7e8] sm:$0xff]
        %v6826 = vld [vmem:[%s331 + $0x7f0] sm:$0xff]
        %v6827 = vld [vmem:[%s331 + $0x7f8] sm:$0xff]
        %v7084 = vunpack.c.l.b16 %v6572
        %v7085 = vunpack.c.h.b16 %v6572
        %v7086 = vunpack.c.l.b16 %v6573
        %v7087 = vunpack.c.h.b16 %v6573
        %v7088 = vunpack.c.l.b16 %v6574
        %v7089 = vunpack.c.h.b16 %v6574
        %v7090 = vunpack.c.l.b16 %v6575
        %v7091 = vunpack.c.h.b16 %v6575
        %v7092 = vunpack.c.l.b16 %v6576
        %v7093 = vunpack.c.h.b16 %v6576
        %v7094 = vunpack.c.l.b16 %v6577
        %v7095 = vunpack.c.h.b16 %v6577
        %v7096 = vunpack.c.l.b16 %v6578
        %v7097 = vunpack.c.h.b16 %v6578
        %v7098 = vunpack.c.l.b16 %v6579
        %v7099 = vunpack.c.h.b16 %v6579
        %v7100 = vunpack.c.l.b16 %v6580
        %v7101 = vunpack.c.h.b16 %v6580
        %v7102 = vunpack.c.l.b16 %v6581
        %v7103 = vunpack.c.h.b16 %v6581
        %v7104 = vunpack.c.l.b16 %v6582
        %v7105 = vunpack.c.h.b16 %v6582
        %v7106 = vunpack.c.l.b16 %v6583
        %v7107 = vunpack.c.h.b16 %v6583
        %v7108 = vunpack.c.l.b16 %v6584
        %v7109 = vunpack.c.h.b16 %v6584
        %v7110 = vunpack.c.l.b16 %v6585
        %v7111 = vunpack.c.h.b16 %v6585
        %v7112 = vunpack.c.l.b16 %v6586
        %v7113 = vunpack.c.h.b16 %v6586
        %v7114 = vunpack.c.l.b16 %v6587
        %v7115 = vunpack.c.h.b16 %v6587
        %v7116 = vunpack.c.l.b16 %v6588
        %v7117 = vunpack.c.h.b16 %v6588
        %v7118 = vunpack.c.l.b16 %v6589
        %v7119 = vunpack.c.h.b16 %v6589
        %v7120 = vunpack.c.l.b16 %v6590
        %v7121 = vunpack.c.h.b16 %v6590
        %v7122 = vunpack.c.l.b16 %v6591
        %v7123 = vunpack.c.h.b16 %v6591
        %v7124 = vunpack.c.l.b16 %v6592
        %v7125 = vunpack.c.h.b16 %v6592
        %v7126 = vunpack.c.l.b16 %v6593
        %v7127 = vunpack.c.h.b16 %v6593
        %v7128 = vunpack.c.l.b16 %v6594
        %v7129 = vunpack.c.h.b16 %v6594
        %v7130 = vunpack.c.l.b16 %v6595
        %v7131 = vunpack.c.h.b16 %v6595
        %v7132 = vunpack.c.l.b16 %v6596
        %v7133 = vunpack.c.h.b16 %v6596
        %v7134 = vunpack.c.l.b16 %v6597
        %v7135 = vunpack.c.h.b16 %v6597
        %v7136 = vunpack.c.l.b16 %v6598
        %v7137 = vunpack.c.h.b16 %v6598
        %v7138 = vunpack.c.l.b16 %v6599
        %v7139 = vunpack.c.h.b16 %v6599
        %v7140 = vunpack.c.l.b16 %v6600
        %v7141 = vunpack.c.h.b16 %v6600
        %v7142 = vunpack.c.l.b16 %v6601
        %v7143 = vunpack.c.h.b16 %v6601
        %v7144 = vunpack.c.l.b16 %v6602
        %v7145 = vunpack.c.h.b16 %v6602
        %v7146 = vunpack.c.l.b16 %v6603
        %v7147 = vunpack.c.h.b16 %v6603
        %v7148 = vunpack.c.l.b16 %v6604
        %v7149 = vunpack.c.h.b16 %v6604
        %v7150 = vunpack.c.l.b16 %v6605
        %v7151 = vunpack.c.h.b16 %v6605
        %v7152 = vunpack.c.l.b16 %v6606
        %v7153 = vunpack.c.h.b16 %v6606
        %v7154 = vunpack.c.l.b16 %v6607
        %v7155 = vunpack.c.h.b16 %v6607
        %v7156 = vunpack.c.l.b16 %v6608
        %v7157 = vunpack.c.h.b16 %v6608
        %v7158 = vunpack.c.l.b16 %v6609
        %v7159 = vunpack.c.h.b16 %v6609
        %v7160 = vunpack.c.l.b16 %v6610
        %v7161 = vunpack.c.h.b16 %v6610
        %v7162 = vunpack.c.l.b16 %v6611
        %v7163 = vunpack.c.h.b16 %v6611
        %v7164 = vunpack.c.l.b16 %v6612
        %v7165 = vunpack.c.h.b16 %v6612
        %v7166 = vunpack.c.l.b16 %v6613
        %v7167 = vunpack.c.h.b16 %v6613
        %v7168 = vunpack.c.l.b16 %v6614
        %v7169 = vunpack.c.h.b16 %v6614
        %v7170 = vunpack.c.l.b16 %v6615
        %v7171 = vunpack.c.h.b16 %v6615
        %v7172 = vunpack.c.l.b16 %v6616
        %v7173 = vunpack.c.h.b16 %v6616
        %v7174 = vunpack.c.l.b16 %v6617
        %v7175 = vunpack.c.h.b16 %v6617
        %v7176 = vunpack.c.l.b16 %v6618
        %v7177 = vunpack.c.h.b16 %v6618
        %v7178 = vunpack.c.l.b16 %v6619
        %v7179 = vunpack.c.h.b16 %v6619
        %v7180 = vunpack.c.l.b16 %v6620
        %v7181 = vunpack.c.h.b16 %v6620
        %v7182 = vunpack.c.l.b16 %v6621
        %v7183 = vunpack.c.h.b16 %v6621
        %v7184 = vunpack.c.l.b16 %v6622
        %v7185 = vunpack.c.h.b16 %v6622
        %v7186 = vunpack.c.l.b16 %v6623
        %v7187 = vunpack.c.h.b16 %v6623
        %v7188 = vunpack.c.l.b16 %v6624
        %v7189 = vunpack.c.h.b16 %v6624
        %v7190 = vunpack.c.l.b16 %v6625
        %v7191 = vunpack.c.h.b16 %v6625
        %v7192 = vunpack.c.l.b16 %v6626
        %v7193 = vunpack.c.h.b16 %v6626
        %v7194 = vunpack.c.l.b16 %v6627
        %v7195 = vunpack.c.h.b16 %v6627
        %v7196 = vunpack.c.l.b16 %v6628
        %v7197 = vunpack.c.h.b16 %v6628
        %v7198 = vunpack.c.l.b16 %v6629
        %v7199 = vunpack.c.h.b16 %v6629
        %v7200 = vunpack.c.l.b16 %v6630
        %v7201 = vunpack.c.h.b16 %v6630
        %v7202 = vunpack.c.l.b16 %v6631
        %v7203 = vunpack.c.h.b16 %v6631
        %v7204 = vunpack.c.l.b16 %v6632
        %v7205 = vunpack.c.h.b16 %v6632
        %v7206 = vunpack.c.l.b16 %v6633
        %v7207 = vunpack.c.h.b16 %v6633
        %v7208 = vunpack.c.l.b16 %v6634
        %v7209 = vunpack.c.h.b16 %v6634
        %v7210 = vunpack.c.l.b16 %v6635
        %v7211 = vunpack.c.h.b16 %v6635
        %v7212 = vunpack.c.l.b16 %v6636
        %v7213 = vunpack.c.h.b16 %v6636
        %v7214 = vunpack.c.l.b16 %v6637
        %v7215 = vunpack.c.h.b16 %v6637
        %v7216 = vunpack.c.l.b16 %v6638
        %v7217 = vunpack.c.h.b16 %v6638
        %v7218 = vunpack.c.l.b16 %v6639
        %v7219 = vunpack.c.h.b16 %v6639
        %v7220 = vunpack.c.l.b16 %v6640
        %v7221 = vunpack.c.h.b16 %v6640
        %v7222 = vunpack.c.l.b16 %v6641
        %v7223 = vunpack.c.h.b16 %v6641
        %v7224 = vunpack.c.l.b16 %v6642
        %v7225 = vunpack.c.h.b16 %v6642
        %v7226 = vunpack.c.l.b16 %v6643
        %v7227 = vunpack.c.h.b16 %v6643
        %v7228 = vunpack.c.l.b16 %v6644
        %v7229 = vunpack.c.h.b16 %v6644
        %v7230 = vunpack.c.l.b16 %v6645
        %v7231 = vunpack.c.h.b16 %v6645
        %v7232 = vunpack.c.l.b16 %v6646
        %v7233 = vunpack.c.h.b16 %v6646
        %v7234 = vunpack.c.l.b16 %v6647
        %v7235 = vunpack.c.h.b16 %v6647
        %v7236 = vunpack.c.l.b16 %v6648
        %v7237 = vunpack.c.h.b16 %v6648
        %v7238 = vunpack.c.l.b16 %v6649
        %v7239 = vunpack.c.h.b16 %v6649
        %v7240 = vunpack.c.l.b16 %v6650
        %v7241 = vunpack.c.h.b16 %v6650
        %v7242 = vunpack.c.l.b16 %v6651
        %v7243 = vunpack.c.h.b16 %v6651
        %v7244 = vunpack.c.l.b16 %v6652
        %v7245 = vunpack.c.h.b16 %v6652
        %v7246 = vunpack.c.l.b16 %v6653
        %v7247 = vunpack.c.h.b16 %v6653
        %v7248 = vunpack.c.l.b16 %v6654
        %v7249 = vunpack.c.h.b16 %v6654
        %v7250 = vunpack.c.l.b16 %v6655
        %v7251 = vunpack.c.h.b16 %v6655
        %v7252 = vunpack.c.l.b16 %v6656
        %v7253 = vunpack.c.h.b16 %v6656
        %v7254 = vunpack.c.l.b16 %v6657
        %v7255 = vunpack.c.h.b16 %v6657
        %v7256 = vunpack.c.l.b16 %v6658
        %v7257 = vunpack.c.h.b16 %v6658
        %v7258 = vunpack.c.l.b16 %v6659
        %v7259 = vunpack.c.h.b16 %v6659
        %v7260 = vunpack.c.l.b16 %v6660
        %v7261 = vunpack.c.h.b16 %v6660
        %v7262 = vunpack.c.l.b16 %v6661
        %v7263 = vunpack.c.h.b16 %v6661
        %v7264 = vunpack.c.l.b16 %v6662
        %v7265 = vunpack.c.h.b16 %v6662
        %v7266 = vunpack.c.l.b16 %v6663
        %v7267 = vunpack.c.h.b16 %v6663
        %v7268 = vunpack.c.l.b16 %v6664
        %v7269 = vunpack.c.h.b16 %v6664
        %v7270 = vunpack.c.l.b16 %v6665
        %v7271 = vunpack.c.h.b16 %v6665
        %v7272 = vunpack.c.l.b16 %v6666
        %v7273 = vunpack.c.h.b16 %v6666
        %v7274 = vunpack.c.l.b16 %v6667
        %v7275 = vunpack.c.h.b16 %v6667
        %v7276 = vunpack.c.l.b16 %v6668
        %v7277 = vunpack.c.h.b16 %v6668
        %v7278 = vunpack.c.l.b16 %v6669
        %v7279 = vunpack.c.h.b16 %v6669
        %v7280 = vunpack.c.l.b16 %v6670
        %v7281 = vunpack.c.h.b16 %v6670
        %v7282 = vunpack.c.l.b16 %v6671
        %v7283 = vunpack.c.h.b16 %v6671
        %v7284 = vunpack.c.l.b16 %v6672
        %v7285 = vunpack.c.h.b16 %v6672
        %v7286 = vunpack.c.l.b16 %v6673
        %v7287 = vunpack.c.h.b16 %v6673
        %v7288 = vunpack.c.l.b16 %v6674
        %v7289 = vunpack.c.h.b16 %v6674
        %v7290 = vunpack.c.l.b16 %v6675
        %v7291 = vunpack.c.h.b16 %v6675
        %v7292 = vunpack.c.l.b16 %v6676
        %v7293 = vunpack.c.h.b16 %v6676
        %v7294 = vunpack.c.l.b16 %v6677
        %v7295 = vunpack.c.h.b16 %v6677
        %v7296 = vunpack.c.l.b16 %v6678
        %v7297 = vunpack.c.h.b16 %v6678
        %v7298 = vunpack.c.l.b16 %v6679
        %v7299 = vunpack.c.h.b16 %v6679
        %v7300 = vunpack.c.l.b16 %v6680
        %v7301 = vunpack.c.h.b16 %v6680
        %v7302 = vunpack.c.l.b16 %v6681
        %v7303 = vunpack.c.h.b16 %v6681
        %v7304 = vunpack.c.l.b16 %v6682
        %v7305 = vunpack.c.h.b16 %v6682
        %v7306 = vunpack.c.l.b16 %v6683
        %v7307 = vunpack.c.h.b16 %v6683
        %v7308 = vunpack.c.l.b16 %v6684
        %v7309 = vunpack.c.h.b16 %v6684
        %v7310 = vunpack.c.l.b16 %v6685
        %v7311 = vunpack.c.h.b16 %v6685
        %v7312 = vunpack.c.l.b16 %v6686
        %v7313 = vunpack.c.h.b16 %v6686
        %v7314 = vunpack.c.l.b16 %v6687
        %v7315 = vunpack.c.h.b16 %v6687
        %v7316 = vunpack.c.l.b16 %v6688
        %v7317 = vunpack.c.h.b16 %v6688
        %v7318 = vunpack.c.l.b16 %v6689
        %v7319 = vunpack.c.h.b16 %v6689
        %v7320 = vunpack.c.l.b16 %v6690
        %v7321 = vunpack.c.h.b16 %v6690
        %v7322 = vunpack.c.l.b16 %v6691
        %v7323 = vunpack.c.h.b16 %v6691
        %v7324 = vunpack.c.l.b16 %v6692
        %v7325 = vunpack.c.h.b16 %v6692
        %v7326 = vunpack.c.l.b16 %v6693
        %v7327 = vunpack.c.h.b16 %v6693
        %v7328 = vunpack.c.l.b16 %v6694
        %v7329 = vunpack.c.h.b16 %v6694
        %v7330 = vunpack.c.l.b16 %v6695
        %v7331 = vunpack.c.h.b16 %v6695
        %v7332 = vunpack.c.l.b16 %v6696
        %v7333 = vunpack.c.h.b16 %v6696
        %v7334 = vunpack.c.l.b16 %v6697
        %v7335 = vunpack.c.h.b16 %v6697
        %v7336 = vunpack.c.l.b16 %v6698
        %v7337 = vunpack.c.h.b16 %v6698
        %v7338 = vunpack.c.l.b16 %v6699
        %v7339 = vunpack.c.h.b16 %v6699
        %v7340 = vunpack.c.l.b16 %v6700
        %v7341 = vunpack.c.h.b16 %v6700
        %v7342 = vunpack.c.l.b16 %v6701
        %v7343 = vunpack.c.h.b16 %v6701
        %v7344 = vunpack.c.l.b16 %v6702
        %v7345 = vunpack.c.h.b16 %v6702
        %v7346 = vunpack.c.l.b16 %v6703
        %v7347 = vunpack.c.h.b16 %v6703
        %v7348 = vunpack.c.l.b16 %v6704
        %v7349 = vunpack.c.h.b16 %v6704
        %v7350 = vunpack.c.l.b16 %v6705
        %v7351 = vunpack.c.h.b16 %v6705
        %v7352 = vunpack.c.l.b16 %v6706
        %v7353 = vunpack.c.h.b16 %v6706
        %v7354 = vunpack.c.l.b16 %v6707
        %v7355 = vunpack.c.h.b16 %v6707
        %v7356 = vunpack.c.l.b16 %v6708
        %v7357 = vunpack.c.h.b16 %v6708
        %v7358 = vunpack.c.l.b16 %v6709
        %v7359 = vunpack.c.h.b16 %v6709
        %v7360 = vunpack.c.l.b16 %v6710
        %v7361 = vunpack.c.h.b16 %v6710
        %v7362 = vunpack.c.l.b16 %v6711
        %v7363 = vunpack.c.h.b16 %v6711
        %v7364 = vunpack.c.l.b16 %v6712
        %v7365 = vunpack.c.h.b16 %v6712
        %v7366 = vunpack.c.l.b16 %v6713
        %v7367 = vunpack.c.h.b16 %v6713
        %v7368 = vunpack.c.l.b16 %v6714
        %v7369 = vunpack.c.h.b16 %v6714
        %v7370 = vunpack.c.l.b16 %v6715
        %v7371 = vunpack.c.h.b16 %v6715
        %v7372 = vunpack.c.l.b16 %v6716
        %v7373 = vunpack.c.h.b16 %v6716
        %v7374 = vunpack.c.l.b16 %v6717
        %v7375 = vunpack.c.h.b16 %v6717
        %v7376 = vunpack.c.l.b16 %v6718
        %v7377 = vunpack.c.h.b16 %v6718
        %v7378 = vunpack.c.l.b16 %v6719
        %v7379 = vunpack.c.h.b16 %v6719
        %v7380 = vunpack.c.l.b16 %v6720
        %v7381 = vunpack.c.h.b16 %v6720
        %v7382 = vunpack.c.l.b16 %v6721
        %v7383 = vunpack.c.h.b16 %v6721
        %v7384 = vunpack.c.l.b16 %v6722
        %v7385 = vunpack.c.h.b16 %v6722
        %v7386 = vunpack.c.l.b16 %v6723
        %v7387 = vunpack.c.h.b16 %v6723
        %v7388 = vunpack.c.l.b16 %v6724
        %v7389 = vunpack.c.h.b16 %v6724
        %v7390 = vunpack.c.l.b16 %v6725
        %v7391 = vunpack.c.h.b16 %v6725
        %v7392 = vunpack.c.l.b16 %v6726
        %v7393 = vunpack.c.h.b16 %v6726
        %v7394 = vunpack.c.l.b16 %v6727
        %v7395 = vunpack.c.h.b16 %v6727
        %v7396 = vunpack.c.l.b16 %v6728
        %v7397 = vunpack.c.h.b16 %v6728
        %v7398 = vunpack.c.l.b16 %v6729
        %v7399 = vunpack.c.h.b16 %v6729
        %v7400 = vunpack.c.l.b16 %v6730
        %v7401 = vunpack.c.h.b16 %v6730
        %v7402 = vunpack.c.l.b16 %v6731
        %v7403 = vunpack.c.h.b16 %v6731
        %v7404 = vunpack.c.l.b16 %v6732
        %v7405 = vunpack.c.h.b16 %v6732
        %v7406 = vunpack.c.l.b16 %v6733
        %v7407 = vunpack.c.h.b16 %v6733
        %v7408 = vunpack.c.l.b16 %v6734
        %v7409 = vunpack.c.h.b16 %v6734
        %v7410 = vunpack.c.l.b16 %v6735
        %v7411 = vunpack.c.h.b16 %v6735
        %v7412 = vunpack.c.l.b16 %v6736
        %v7413 = vunpack.c.h.b16 %v6736
        %v7414 = vunpack.c.l.b16 %v6737
        %v7415 = vunpack.c.h.b16 %v6737
        %v7416 = vunpack.c.l.b16 %v6738
        %v7417 = vunpack.c.h.b16 %v6738
        %v7418 = vunpack.c.l.b16 %v6739
        %v7419 = vunpack.c.h.b16 %v6739
        %v7420 = vunpack.c.l.b16 %v6740
        %v7421 = vunpack.c.h.b16 %v6740
        %v7422 = vunpack.c.l.b16 %v6741
        %v7423 = vunpack.c.h.b16 %v6741
        %v7424 = vunpack.c.l.b16 %v6742
        %v7425 = vunpack.c.h.b16 %v6742
        %v7426 = vunpack.c.l.b16 %v6743
        %v7427 = vunpack.c.h.b16 %v6743
        %v7428 = vunpack.c.l.b16 %v6744
        %v7429 = vunpack.c.h.b16 %v6744
        %v7430 = vunpack.c.l.b16 %v6745
        %v7431 = vunpack.c.h.b16 %v6745
        %v7432 = vunpack.c.l.b16 %v6746
        %v7433 = vunpack.c.h.b16 %v6746
        %v7434 = vunpack.c.l.b16 %v6747
        %v7435 = vunpack.c.h.b16 %v6747
        %v7436 = vunpack.c.l.b16 %v6748
        %v7437 = vunpack.c.h.b16 %v6748
        %v7438 = vunpack.c.l.b16 %v6749
        %v7439 = vunpack.c.h.b16 %v6749
        %v7440 = vunpack.c.l.b16 %v6750
        %v7441 = vunpack.c.h.b16 %v6750
        %v7442 = vunpack.c.l.b16 %v6751
        %v7443 = vunpack.c.h.b16 %v6751
        %v7444 = vunpack.c.l.b16 %v6752
        %v7445 = vunpack.c.h.b16 %v6752
        %v7446 = vunpack.c.l.b16 %v6753
        %v7447 = vunpack.c.h.b16 %v6753
        %v7448 = vunpack.c.l.b16 %v6754
        %v7449 = vunpack.c.h.b16 %v6754
        %v7450 = vunpack.c.l.b16 %v6755
        %v7451 = vunpack.c.h.b16 %v6755
        %v7452 = vunpack.c.l.b16 %v6756
        %v7453 = vunpack.c.h.b16 %v6756
        %v7454 = vunpack.c.l.b16 %v6757
        %v7455 = vunpack.c.h.b16 %v6757
        %v7456 = vunpack.c.l.b16 %v6758
        %v7457 = vunpack.c.h.b16 %v6758
        %v7458 = vunpack.c.l.b16 %v6759
        %v7459 = vunpack.c.h.b16 %v6759
        %v7460 = vunpack.c.l.b16 %v6760
        %v7461 = vunpack.c.h.b16 %v6760
        %v7462 = vunpack.c.l.b16 %v6761
        %v7463 = vunpack.c.h.b16 %v6761
        %v7464 = vunpack.c.l.b16 %v6762
        %v7465 = vunpack.c.h.b16 %v6762
        %v7466 = vunpack.c.l.b16 %v6763
        %v7467 = vunpack.c.h.b16 %v6763
        %v7468 = vunpack.c.l.b16 %v6764
        %v7469 = vunpack.c.h.b16 %v6764
        %v7470 = vunpack.c.l.b16 %v6765
        %v7471 = vunpack.c.h.b16 %v6765
        %v7472 = vunpack.c.l.b16 %v6766
        %v7473 = vunpack.c.h.b16 %v6766
        %v7474 = vunpack.c.l.b16 %v6767
        %v7475 = vunpack.c.h.b16 %v6767
        %v7476 = vunpack.c.l.b16 %v6768
        %v7477 = vunpack.c.h.b16 %v6768
        %v7478 = vunpack.c.l.b16 %v6769
        %v7479 = vunpack.c.h.b16 %v6769
        %v7480 = vunpack.c.l.b16 %v6770
        %v7481 = vunpack.c.h.b16 %v6770
        %v7482 = vunpack.c.l.b16 %v6771
        %v7483 = vunpack.c.h.b16 %v6771
        %v7484 = vunpack.c.l.b16 %v6772
        %v7485 = vunpack.c.h.b16 %v6772
        %v7486 = vunpack.c.l.b16 %v6773
        %v7487 = vunpack.c.h.b16 %v6773
        %v7488 = vunpack.c.l.b16 %v6774
        %v7489 = vunpack.c.h.b16 %v6774
        %v7490 = vunpack.c.l.b16 %v6775
        %v7491 = vunpack.c.h.b16 %v6775
        %v7492 = vunpack.c.l.b16 %v6776
        %v7493 = vunpack.c.h.b16 %v6776
        %v7494 = vunpack.c.l.b16 %v6777
        %v7495 = vunpack.c.h.b16 %v6777
        %v7496 = vunpack.c.l.b16 %v6778
        %v7497 = vunpack.c.h.b16 %v6778
        %v7498 = vunpack.c.l.b16 %v6779
        %v7499 = vunpack.c.h.b16 %v6779
        %v7500 = vunpack.c.l.b16 %v6780
        %v7501 = vunpack.c.h.b16 %v6780
        %v7502 = vunpack.c.l.b16 %v6781
        %v7503 = vunpack.c.h.b16 %v6781
        %v7504 = vunpack.c.l.b16 %v6782
        %v7505 = vunpack.c.h.b16 %v6782
        %v7506 = vunpack.c.l.b16 %v6783
        %v7507 = vunpack.c.h.b16 %v6783
        %v7508 = vunpack.c.l.b16 %v6784
        %v7509 = vunpack.c.h.b16 %v6784
        %v7510 = vunpack.c.l.b16 %v6785
        %v7511 = vunpack.c.h.b16 %v6785
        %v7512 = vunpack.c.l.b16 %v6786
        %v7513 = vunpack.c.h.b16 %v6786
        %v7514 = vunpack.c.l.b16 %v6787
        %v7515 = vunpack.c.h.b16 %v6787
        %v7516 = vunpack.c.l.b16 %v6788
        %v7517 = vunpack.c.h.b16 %v6788
        %v7518 = vunpack.c.l.b16 %v6789
        %v7519 = vunpack.c.h.b16 %v6789
        %v7520 = vunpack.c.l.b16 %v6790
        %v7521 = vunpack.c.h.b16 %v6790
        %v7522 = vunpack.c.l.b16 %v6791
        %v7523 = vunpack.c.h.b16 %v6791
        %v7524 = vunpack.c.l.b16 %v6792
        %v7525 = vunpack.c.h.b16 %v6792
        %v7526 = vunpack.c.l.b16 %v6793
        %v7527 = vunpack.c.h.b16 %v6793
        %v7528 = vunpack.c.l.b16 %v6794
        %v7529 = vunpack.c.h.b16 %v6794
        %v7530 = vunpack.c.l.b16 %v6795
        %v7531 = vunpack.c.h.b16 %v6795
        %v7532 = vunpack.c.l.b16 %v6796
        %v7533 = vunpack.c.h.b16 %v6796
        %v7534 = vunpack.c.l.b16 %v6797
        %v7535 = vunpack.c.h.b16 %v6797
        %v7536 = vunpack.c.l.b16 %v6798
        %v7537 = vunpack.c.h.b16 %v6798
        %v7538 = vunpack.c.l.b16 %v6799
        %v7539 = vunpack.c.h.b16 %v6799
        %v7540 = vunpack.c.l.b16 %v6800
        %v7541 = vunpack.c.h.b16 %v6800
        %v7542 = vunpack.c.l.b16 %v6801
        %v7543 = vunpack.c.h.b16 %v6801
        %v7544 = vunpack.c.l.b16 %v6802
        %v7545 = vunpack.c.h.b16 %v6802
        %v7546 = vunpack.c.l.b16 %v6803
        %v7547 = vunpack.c.h.b16 %v6803
        %v7548 = vunpack.c.l.b16 %v6804
        %v7549 = vunpack.c.h.b16 %v6804
        %v7550 = vunpack.c.l.b16 %v6805
        %v7551 = vunpack.c.h.b16 %v6805
        %v7552 = vunpack.c.l.b16 %v6806
        %v7553 = vunpack.c.h.b16 %v6806
        %v7554 = vunpack.c.l.b16 %v6807
        %v7555 = vunpack.c.h.b16 %v6807
        %v7556 = vunpack.c.l.b16 %v6808
        %v7557 = vunpack.c.h.b16 %v6808
        %v7558 = vunpack.c.l.b16 %v6809
        %v7559 = vunpack.c.h.b16 %v6809
        %v7560 = vunpack.c.l.b16 %v6810
        %v7561 = vunpack.c.h.b16 %v6810
        %v7562 = vunpack.c.l.b16 %v6811
        %v7563 = vunpack.c.h.b16 %v6811
        %v7564 = vunpack.c.l.b16 %v6812
        %v7565 = vunpack.c.h.b16 %v6812
        %v7566 = vunpack.c.l.b16 %v6813
        %v7567 = vunpack.c.h.b16 %v6813
        %v7568 = vunpack.c.l.b16 %v6814
        %v7569 = vunpack.c.h.b16 %v6814
        %v7570 = vunpack.c.l.b16 %v6815
        %v7571 = vunpack.c.h.b16 %v6815
        %v7572 = vunpack.c.l.b16 %v6816
        %v7573 = vunpack.c.h.b16 %v6816
        %v7574 = vunpack.c.l.b16 %v6817
        %v7575 = vunpack.c.h.b16 %v6817
        %v7576 = vunpack.c.l.b16 %v6818
        %v7577 = vunpack.c.h.b16 %v6818
        %v7578 = vunpack.c.l.b16 %v6819
        %v7579 = vunpack.c.h.b16 %v6819
        %v7580 = vunpack.c.l.b16 %v6820
        %v7581 = vunpack.c.h.b16 %v6820
        %v7582 = vunpack.c.l.b16 %v6821
        %v7583 = vunpack.c.h.b16 %v6821
        %v7584 = vunpack.c.l.b16 %v6822
        %v7585 = vunpack.c.h.b16 %v6822
        %v7586 = vunpack.c.l.b16 %v6823
        %v7587 = vunpack.c.h.b16 %v6823
        %v7588 = vunpack.c.l.b16 %v6824
        %v7589 = vunpack.c.h.b16 %v6824
        %v7590 = vunpack.c.l.b16 %v6825
        %v7591 = vunpack.c.h.b16 %v6825
        %v7592 = vunpack.c.l.b16 %v6826
        %v7593 = vunpack.c.h.b16 %v6826
        %v7594 = vunpack.c.l.b16 %v6827
        %v7595 = vunpack.c.h.b16 %v6827
        %v7596 = vpack.c.b16 %v7088, %v7084
        %v7597 = vpack.c.b16 %v7089, %v7085
        %v7598 = vpack.c.b16 %v7090, %v7086
        %v7599 = vpack.c.b16 %v7091, %v7087
        %v7600 = vpack.c.b16 %v7096, %v7092
        %v7601 = vpack.c.b16 %v7097, %v7093
        %v7602 = vpack.c.b16 %v7098, %v7094
        %v7603 = vpack.c.b16 %v7099, %v7095
        %v7604 = vpack.c.b16 %v7104, %v7100
        %v7605 = vpack.c.b16 %v7105, %v7101
        %v7606 = vpack.c.b16 %v7106, %v7102
        %v7607 = vpack.c.b16 %v7107, %v7103
        %v7608 = vpack.c.b16 %v7112, %v7108
        %v7609 = vpack.c.b16 %v7113, %v7109
        %v7610 = vpack.c.b16 %v7114, %v7110
        %v7611 = vpack.c.b16 %v7115, %v7111
        %v7612 = vpack.c.b16 %v7120, %v7116
        %v7613 = vpack.c.b16 %v7121, %v7117
        %v7614 = vpack.c.b16 %v7122, %v7118
        %v7615 = vpack.c.b16 %v7123, %v7119
        %v7616 = vpack.c.b16 %v7128, %v7124
        %v7617 = vpack.c.b16 %v7129, %v7125
        %v7618 = vpack.c.b16 %v7130, %v7126
        %v7619 = vpack.c.b16 %v7131, %v7127
        %v7620 = vpack.c.b16 %v7136, %v7132
        %v7621 = vpack.c.b16 %v7137, %v7133
        %v7622 = vpack.c.b16 %v7138, %v7134
        %v7623 = vpack.c.b16 %v7139, %v7135
        %v7624 = vpack.c.b16 %v7144, %v7140
        %v7625 = vpack.c.b16 %v7145, %v7141
        %v7626 = vpack.c.b16 %v7146, %v7142
        %v7627 = vpack.c.b16 %v7147, %v7143
        %v7628 = vpack.c.b16 %v7152, %v7148
        %v7629 = vpack.c.b16 %v7153, %v7149
        %v7630 = vpack.c.b16 %v7154, %v7150
        %v7631 = vpack.c.b16 %v7155, %v7151
        %v7632 = vpack.c.b16 %v7160, %v7156
        %v7633 = vpack.c.b16 %v7161, %v7157
        %v7634 = vpack.c.b16 %v7162, %v7158
        %v7635 = vpack.c.b16 %v7163, %v7159
        %v7636 = vpack.c.b16 %v7168, %v7164
        %v7637 = vpack.c.b16 %v7169, %v7165
        %v7638 = vpack.c.b16 %v7170, %v7166
        %v7639 = vpack.c.b16 %v7171, %v7167
        %v7640 = vpack.c.b16 %v7176, %v7172
        %v7641 = vpack.c.b16 %v7177, %v7173
        %v7642 = vpack.c.b16 %v7178, %v7174
        %v7643 = vpack.c.b16 %v7179, %v7175
        %v7644 = vpack.c.b16 %v7184, %v7180
        %v7645 = vpack.c.b16 %v7185, %v7181
        %v7646 = vpack.c.b16 %v7186, %v7182
        %v7647 = vpack.c.b16 %v7187, %v7183
        %v7648 = vpack.c.b16 %v7192, %v7188
        %v7649 = vpack.c.b16 %v7193, %v7189
        %v7650 = vpack.c.b16 %v7194, %v7190
        %v7651 = vpack.c.b16 %v7195, %v7191
        %v7652 = vpack.c.b16 %v7200, %v7196
        %v7653 = vpack.c.b16 %v7201, %v7197
        %v7654 = vpack.c.b16 %v7202, %v7198
        %v7655 = vpack.c.b16 %v7203, %v7199
        %v7656 = vpack.c.b16 %v7208, %v7204
        %v7657 = vpack.c.b16 %v7209, %v7205
        %v7658 = vpack.c.b16 %v7210, %v7206
        %v7659 = vpack.c.b16 %v7211, %v7207
        %v7660 = vpack.c.b16 %v7216, %v7212
        %v7661 = vpack.c.b16 %v7217, %v7213
        %v7662 = vpack.c.b16 %v7218, %v7214
        %v7663 = vpack.c.b16 %v7219, %v7215
        %v7664 = vpack.c.b16 %v7224, %v7220
        %v7665 = vpack.c.b16 %v7225, %v7221
        %v7666 = vpack.c.b16 %v7226, %v7222
        %v7667 = vpack.c.b16 %v7227, %v7223
        %v7668 = vpack.c.b16 %v7232, %v7228
        %v7669 = vpack.c.b16 %v7233, %v7229
        %v7670 = vpack.c.b16 %v7234, %v7230
        %v7671 = vpack.c.b16 %v7235, %v7231
        %v7672 = vpack.c.b16 %v7240, %v7236
        %v7673 = vpack.c.b16 %v7241, %v7237
        %v7674 = vpack.c.b16 %v7242, %v7238
        %v7675 = vpack.c.b16 %v7243, %v7239
        %v7676 = vpack.c.b16 %v7248, %v7244
        %v7677 = vpack.c.b16 %v7249, %v7245
        %v7678 = vpack.c.b16 %v7250, %v7246
        %v7679 = vpack.c.b16 %v7251, %v7247
        %v7680 = vpack.c.b16 %v7256, %v7252
        %v7681 = vpack.c.b16 %v7257, %v7253
        %v7682 = vpack.c.b16 %v7258, %v7254
        %v7683 = vpack.c.b16 %v7259, %v7255
        %v7684 = vpack.c.b16 %v7264, %v7260
        %v7685 = vpack.c.b16 %v7265, %v7261
        %v7686 = vpack.c.b16 %v7266, %v7262
        %v7687 = vpack.c.b16 %v7267, %v7263
        %v7688 = vpack.c.b16 %v7272, %v7268
        %v7689 = vpack.c.b16 %v7273, %v7269
        %v7690 = vpack.c.b16 %v7274, %v7270
        %v7691 = vpack.c.b16 %v7275, %v7271
        %v7692 = vpack.c.b16 %v7280, %v7276
        %v7693 = vpack.c.b16 %v7281, %v7277
        %v7694 = vpack.c.b16 %v7282, %v7278
        %v7695 = vpack.c.b16 %v7283, %v7279
        %v7696 = vpack.c.b16 %v7288, %v7284
        %v7697 = vpack.c.b16 %v7289, %v7285
        %v7698 = vpack.c.b16 %v7290, %v7286
        %v7699 = vpack.c.b16 %v7291, %v7287
        %v7700 = vpack.c.b16 %v7296, %v7292
        %v7701 = vpack.c.b16 %v7297, %v7293
        %v7702 = vpack.c.b16 %v7298, %v7294
        %v7703 = vpack.c.b16 %v7299, %v7295
        %v7704 = vpack.c.b16 %v7304, %v7300
        %v7705 = vpack.c.b16 %v7305, %v7301
        %v7706 = vpack.c.b16 %v7306, %v7302
        %v7707 = vpack.c.b16 %v7307, %v7303
        %v7708 = vpack.c.b16 %v7312, %v7308
        %v7709 = vpack.c.b16 %v7313, %v7309
        %v7710 = vpack.c.b16 %v7314, %v7310
        %v7711 = vpack.c.b16 %v7315, %v7311
        %v7712 = vpack.c.b16 %v7320, %v7316
        %v7713 = vpack.c.b16 %v7321, %v7317
        %v7714 = vpack.c.b16 %v7322, %v7318
        %v7715 = vpack.c.b16 %v7323, %v7319
        %v7716 = vpack.c.b16 %v7328, %v7324
        %v7717 = vpack.c.b16 %v7329, %v7325
        %v7718 = vpack.c.b16 %v7330, %v7326
        %v7719 = vpack.c.b16 %v7331, %v7327
        %v7720 = vpack.c.b16 %v7336, %v7332
        %v7721 = vpack.c.b16 %v7337, %v7333
        %v7722 = vpack.c.b16 %v7338, %v7334
        %v7723 = vpack.c.b16 %v7339, %v7335
        %v7724 = vpack.c.b16 %v7344, %v7340
        %v7725 = vpack.c.b16 %v7345, %v7341
        %v7726 = vpack.c.b16 %v7346, %v7342
        %v7727 = vpack.c.b16 %v7347, %v7343
        %v7728 = vpack.c.b16 %v7352, %v7348
        %v7729 = vpack.c.b16 %v7353, %v7349
        %v7730 = vpack.c.b16 %v7354, %v7350
        %v7731 = vpack.c.b16 %v7355, %v7351
        %v7732 = vpack.c.b16 %v7360, %v7356
        %v7733 = vpack.c.b16 %v7361, %v7357
        %v7734 = vpack.c.b16 %v7362, %v7358
        %v7735 = vpack.c.b16 %v7363, %v7359
        %v7736 = vpack.c.b16 %v7368, %v7364
        %v7737 = vpack.c.b16 %v7369, %v7365
        %v7738 = vpack.c.b16 %v7370, %v7366
        %v7739 = vpack.c.b16 %v7371, %v7367
        %v7740 = vpack.c.b16 %v7376, %v7372
        %v7741 = vpack.c.b16 %v7377, %v7373
        %v7742 = vpack.c.b16 %v7378, %v7374
        %v7743 = vpack.c.b16 %v7379, %v7375
        %v7744 = vpack.c.b16 %v7384, %v7380
        %v7745 = vpack.c.b16 %v7385, %v7381
        %v7746 = vpack.c.b16 %v7386, %v7382
        %v7747 = vpack.c.b16 %v7387, %v7383
        %v7748 = vpack.c.b16 %v7392, %v7388
        %v7749 = vpack.c.b16 %v7393, %v7389
        %v7750 = vpack.c.b16 %v7394, %v7390
        %v7751 = vpack.c.b16 %v7395, %v7391
        %v7752 = vpack.c.b16 %v7400, %v7396
        %v7753 = vpack.c.b16 %v7401, %v7397
        %v7754 = vpack.c.b16 %v7402, %v7398
        %v7755 = vpack.c.b16 %v7403, %v7399
        %v7756 = vpack.c.b16 %v7408, %v7404
        %v7757 = vpack.c.b16 %v7409, %v7405
        %v7758 = vpack.c.b16 %v7410, %v7406
        %v7759 = vpack.c.b16 %v7411, %v7407
        %v7760 = vpack.c.b16 %v7416, %v7412
        %v7761 = vpack.c.b16 %v7417, %v7413
        %v7762 = vpack.c.b16 %v7418, %v7414
        %v7763 = vpack.c.b16 %v7419, %v7415
        %v7764 = vpack.c.b16 %v7424, %v7420
        %v7765 = vpack.c.b16 %v7425, %v7421
        %v7766 = vpack.c.b16 %v7426, %v7422
        %v7767 = vpack.c.b16 %v7427, %v7423
        %v7768 = vpack.c.b16 %v7432, %v7428
        %v7769 = vpack.c.b16 %v7433, %v7429
        %v7770 = vpack.c.b16 %v7434, %v7430
        %v7771 = vpack.c.b16 %v7435, %v7431
        %v7772 = vpack.c.b16 %v7440, %v7436
        %v7773 = vpack.c.b16 %v7441, %v7437
        %v7774 = vpack.c.b16 %v7442, %v7438
        %v7775 = vpack.c.b16 %v7443, %v7439
        %v7776 = vpack.c.b16 %v7448, %v7444
        %v7777 = vpack.c.b16 %v7449, %v7445
        %v7778 = vpack.c.b16 %v7450, %v7446
        %v7779 = vpack.c.b16 %v7451, %v7447
        %v7780 = vpack.c.b16 %v7456, %v7452
        %v7781 = vpack.c.b16 %v7457, %v7453
        %v7782 = vpack.c.b16 %v7458, %v7454
        %v7783 = vpack.c.b16 %v7459, %v7455
        %v7784 = vpack.c.b16 %v7464, %v7460
        %v7785 = vpack.c.b16 %v7465, %v7461
        %v7786 = vpack.c.b16 %v7466, %v7462
        %v7787 = vpack.c.b16 %v7467, %v7463
        %v7788 = vpack.c.b16 %v7472, %v7468
        %v7789 = vpack.c.b16 %v7473, %v7469
        %v7790 = vpack.c.b16 %v7474, %v7470
        %v7791 = vpack.c.b16 %v7475, %v7471
        %v7792 = vpack.c.b16 %v7480, %v7476
        %v7793 = vpack.c.b16 %v7481, %v7477
        %v7794 = vpack.c.b16 %v7482, %v7478
        %v7795 = vpack.c.b16 %v7483, %v7479
        %v7796 = vpack.c.b16 %v7488, %v7484
        %v7797 = vpack.c.b16 %v7489, %v7485
        %v7798 = vpack.c.b16 %v7490, %v7486
        %v7799 = vpack.c.b16 %v7491, %v7487
        %v7800 = vpack.c.b16 %v7496, %v7492
        %v7801 = vpack.c.b16 %v7497, %v7493
        %v7802 = vpack.c.b16 %v7498, %v7494
        %v7803 = vpack.c.b16 %v7499, %v7495
        %v7804 = vpack.c.b16 %v7504, %v7500
        %v7805 = vpack.c.b16 %v7505, %v7501
        %v7806 = vpack.c.b16 %v7506, %v7502
        %v7807 = vpack.c.b16 %v7507, %v7503
        %v7808 = vpack.c.b16 %v7512, %v7508
        %v7809 = vpack.c.b16 %v7513, %v7509
        %v7810 = vpack.c.b16 %v7514, %v7510
        %v7811 = vpack.c.b16 %v7515, %v7511
        %v7812 = vpack.c.b16 %v7520, %v7516
        %v7813 = vpack.c.b16 %v7521, %v7517
        %v7814 = vpack.c.b16 %v7522, %v7518
        %v7815 = vpack.c.b16 %v7523, %v7519
        %v7816 = vpack.c.b16 %v7528, %v7524
        %v7817 = vpack.c.b16 %v7529, %v7525
        %v7818 = vpack.c.b16 %v7530, %v7526
        %v7819 = vpack.c.b16 %v7531, %v7527
        %v7820 = vpack.c.b16 %v7536, %v7532
        %v7821 = vpack.c.b16 %v7537, %v7533
        %v7822 = vpack.c.b16 %v7538, %v7534
        %v7823 = vpack.c.b16 %v7539, %v7535
        %v7824 = vpack.c.b16 %v7544, %v7540
        %v7825 = vpack.c.b16 %v7545, %v7541
        %v7826 = vpack.c.b16 %v7546, %v7542
        %v7827 = vpack.c.b16 %v7547, %v7543
        %v7828 = vpack.c.b16 %v7552, %v7548
        %v7829 = vpack.c.b16 %v7553, %v7549
        %v7830 = vpack.c.b16 %v7554, %v7550
        %v7831 = vpack.c.b16 %v7555, %v7551
        %v7832 = vpack.c.b16 %v7560, %v7556
        %v7833 = vpack.c.b16 %v7561, %v7557
        %v7834 = vpack.c.b16 %v7562, %v7558
        %v7835 = vpack.c.b16 %v7563, %v7559
        %v7836 = vpack.c.b16 %v7568, %v7564
        %v7837 = vpack.c.b16 %v7569, %v7565
        %v7838 = vpack.c.b16 %v7570, %v7566
        %v7839 = vpack.c.b16 %v7571, %v7567
        %v7840 = vpack.c.b16 %v7576, %v7572
        %v7841 = vpack.c.b16 %v7577, %v7573
        %v7842 = vpack.c.b16 %v7578, %v7574
        %v7843 = vpack.c.b16 %v7579, %v7575
        %v7844 = vpack.c.b16 %v7584, %v7580
        %v7845 = vpack.c.b16 %v7585, %v7581
        %v7846 = vpack.c.b16 %v7586, %v7582
        %v7847 = vpack.c.b16 %v7587, %v7583
        %v7848 = vpack.c.b16 %v7592, %v7588
        %v7849 = vpack.c.b16 %v7593, %v7589
        %v7850 = vpack.c.b16 %v7594, %v7590
        %v7851 = vpack.c.b16 %v7595, %v7591
        %8108 = vmatpush.bf16.msra.mxu0 %v7624
        %8109 = vmatpush.bf16.msra.mxu0 %v7620
        %8110 = vmatpush.bf16.msra.mxu0 %v7616
        %8111 = vmatpush.bf16.msra.mxu0 %v7612
        %8112 = vmatpush.bf16.msra.mxu0 %v7608
        %8113 = vmatpush.bf16.msra.mxu0 %v7604
        %8114 = vmatpush.bf16.msra.mxu0 %v7600
        %8115 = vmatpush.bf16.msra.mxu0 %v7596
        %8116 = vmatmul.bf16.gmra.mxu0 %v6508
        %v8117 = vpop.f32.mrf.mxu0
        %v8118 = vadd.f32 0.0, %v8117
        %v8119 = vpop.f32.mrf.mxu0
        %v8120 = vadd.f32 0.0, %v8119
        %8121 = vmatmul.bf16.gmra.mxu0 %v6516
        %v8122 = vpop.f32.mrf.mxu0
        %v8123 = vadd.f32 0.0, %v8122
        %v8124 = vpop.f32.mrf.mxu0
        %v8125 = vadd.f32 0.0, %v8124
        %8126 = vmatmul.bf16.gmra.mxu0 %v6524
        %v8127 = vpop.f32.mrf.mxu0
        %v8128 = vadd.f32 0.0, %v8127
        %v8129 = vpop.f32.mrf.mxu0
        %v8130 = vadd.f32 0.0, %v8129
        %8131 = vmatmul.bf16.gmra.mxu0 %v6532
        %v8132 = vpop.f32.mrf.mxu0
        %v8133 = vadd.f32 0.0, %v8132
        %v8134 = vpop.f32.mrf.mxu0
        %v8135 = vadd.f32 0.0, %v8134
        %8136 = vmatmul.bf16.gmra.mxu0 %v6540
        %v8137 = vpop.f32.mrf.mxu0
        %v8138 = vadd.f32 0.0, %v8137
        %v8139 = vpop.f32.mrf.mxu0
        %v8140 = vadd.f32 0.0, %v8139
        %8141 = vmatmul.bf16.gmra.mxu0 %v6548
        %v8142 = vpop.f32.mrf.mxu0
        %v8143 = vadd.f32 0.0, %v8142
        %v8144 = vpop.f32.mrf.mxu0
        %v8145 = vadd.f32 0.0, %v8144
        %8146 = vmatmul.bf16.gmra.mxu0 %v6556
        %v8147 = vpop.f32.mrf.mxu0
        %v8148 = vadd.f32 0.0, %v8147
        %v8149 = vpop.f32.mrf.mxu0
        %v8150 = vadd.f32 0.0, %v8149
        %8151 = vmatmul.bf16.gmra.mxu0 %v6564
        %v8152 = vpop.f32.mrf.mxu0
        %v8153 = vadd.f32 0.0, %v8152
        %v8154 = vpop.f32.mrf.mxu0
        %v8155 = vadd.f32 0.0, %v8154
        %8156 = vdwg.mxu0
        %8157 = vmatpush.bf16.msra.mxu0 %v7656
        %8158 = vmatpush.bf16.msra.mxu0 %v7652
        %8159 = vmatpush.bf16.msra.mxu0 %v7648
        %8160 = vmatpush.bf16.msra.mxu0 %v7644
        %8161 = vmatpush.bf16.msra.mxu0 %v7640
        %8162 = vmatpush.bf16.msra.mxu0 %v7636
        %8163 = vmatpush.bf16.msra.mxu0 %v7632
        %8164 = vmatpush.bf16.msra.mxu0 %v7628
        %8165 = vmatmul.bf16.gmra.mxu0 %v6509
        %v8166 = vpop.f32.mrf.mxu0
        %v8167 = vadd.f32 %v8118, %v8166
        %v8168 = vpop.f32.mrf.mxu0
        %v8169 = vadd.f32 %v8120, %v8168
        %8170 = vmatmul.bf16.gmra.mxu0 %v6517
        %v8171 = vpop.f32.mrf.mxu0
        %v8172 = vadd.f32 %v8123, %v8171
        %v8173 = vpop.f32.mrf.mxu0
        %v8174 = vadd.f32 %v8125, %v8173
        %8175 = vmatmul.bf16.gmra.mxu0 %v6525
        %v8176 = vpop.f32.mrf.mxu0
        %v8177 = vadd.f32 %v8128, %v8176
        %v8178 = vpop.f32.mrf.mxu0
        %v8179 = vadd.f32 %v8130, %v8178
        %8180 = vmatmul.bf16.gmra.mxu0 %v6533
        %v8181 = vpop.f32.mrf.mxu0
        %v8182 = vadd.f32 %v8133, %v8181
        %v8183 = vpop.f32.mrf.mxu0
        %v8184 = vadd.f32 %v8135, %v8183
        %8185 = vmatmul.bf16.gmra.mxu0 %v6541
        %v8186 = vpop.f32.mrf.mxu0
        %v8187 = vadd.f32 %v8138, %v8186
        %v8188 = vpop.f32.mrf.mxu0
        %v8189 = vadd.f32 %v8140, %v8188
        %8190 = vmatmul.bf16.gmra.mxu0 %v6549
        %v8191 = vpop.f32.mrf.mxu0
        %v8192 = vadd.f32 %v8143, %v8191
        %v8193 = vpop.f32.mrf.mxu0
        %v8194 = vadd.f32 %v8145, %v8193
        %8195 = vmatmul.bf16.gmra.mxu0 %v6557
        %v8196 = vpop.f32.mrf.mxu0
        %v8197 = vadd.f32 %v8148, %v8196
        %v8198 = vpop.f32.mrf.mxu0
        %v8199 = vadd.f32 %v8150, %v8198
        %8200 = vmatmul.bf16.gmra.mxu0 %v6565
        %v8201 = vpop.f32.mrf.mxu0
        %v8202 = vadd.f32 %v8153, %v8201
        %v8203 = vpop.f32.mrf.mxu0
        %v8204 = vadd.f32 %v8155, %v8203
        %8205 = vdwg.mxu0
        %8206 = vmatpush.bf16.msra.mxu0 %v7688
        %8207 = vmatpush.bf16.msra.mxu0 %v7684
        %8208 = vmatpush.bf16.msra.mxu0 %v7680
        %8209 = vmatpush.bf16.msra.mxu0 %v7676
        %8210 = vmatpush.bf16.msra.mxu0 %v7672
        %8211 = vmatpush.bf16.msra.mxu0 %v7668
        %8212 = vmatpush.bf16.msra.mxu0 %v7664
        %8213 = vmatpush.bf16.msra.mxu0 %v7660
        %8214 = vmatmul.bf16.gmra.mxu0 %v6510
        %v8215 = vpop.f32.mrf.mxu0
        %v8216 = vadd.f32 %v8167, %v8215
        %v8217 = vpop.f32.mrf.mxu0
        %v8218 = vadd.f32 %v8169, %v8217
        %8219 = vmatmul.bf16.gmra.mxu0 %v6518
        %v8220 = vpop.f32.mrf.mxu0
        %v8221 = vadd.f32 %v8172, %v8220
        %v8222 = vpop.f32.mrf.mxu0
        %v8223 = vadd.f32 %v8174, %v8222
        %8224 = vmatmul.bf16.gmra.mxu0 %v6526
        %v8225 = vpop.f32.mrf.mxu0
        %v8226 = vadd.f32 %v8177, %v8225
        %v8227 = vpop.f32.mrf.mxu0
        %v8228 = vadd.f32 %v8179, %v8227
        %8229 = vmatmul.bf16.gmra.mxu0 %v6534
        %v8230 = vpop.f32.mrf.mxu0
        %v8231 = vadd.f32 %v8182, %v8230
        %v8232 = vpop.f32.mrf.mxu0
        %v8233 = vadd.f32 %v8184, %v8232
        %8234 = vmatmul.bf16.gmra.mxu0 %v6542
        %v8235 = vpop.f32.mrf.mxu0
        %v8236 = vadd.f32 %v8187, %v8235
        %v8237 = vpop.f32.mrf.mxu0
        %v8238 = vadd.f32 %v8189, %v8237
        %8239 = vmatmul.bf16.gmra.mxu0 %v6550
        %v8240 = vpop.f32.mrf.mxu0
        %v8241 = vadd.f32 %v8192, %v8240
        %v8242 = vpop.f32.mrf.mxu0
        %v8243 = vadd.f32 %v8194, %v8242
        %8244 = vmatmul.bf16.gmra.mxu0 %v6558
        %v8245 = vpop.f32.mrf.mxu0
        %v8246 = vadd.f32 %v8197, %v8245
        %v8247 = vpop.f32.mrf.mxu0
        %v8248 = vadd.f32 %v8199, %v8247
        %8249 = vmatmul.bf16.gmra.mxu0 %v6566
        %v8250 = vpop.f32.mrf.mxu0
        %v8251 = vadd.f32 %v8202, %v8250
        %v8252 = vpop.f32.mrf.mxu0
        %v8253 = vadd.f32 %v8204, %v8252
        %8254 = vdwg.mxu0
        %8255 = vmatpush.bf16.msra.mxu0 %v7720
        %8256 = vmatpush.bf16.msra.mxu0 %v7716
        %8257 = vmatpush.bf16.msra.mxu0 %v7712
        %8258 = vmatpush.bf16.msra.mxu0 %v7708
        %8259 = vmatpush.bf16.msra.mxu0 %v7704
        %8260 = vmatpush.bf16.msra.mxu0 %v7700
        %8261 = vmatpush.bf16.msra.mxu0 %v7696
        %8262 = vmatpush.bf16.msra.mxu0 %v7692
        %8263 = vmatmul.bf16.gmra.mxu0 %v6511
        %v8264 = vpop.f32.mrf.mxu0
        %v8265 = vadd.f32 %v8216, %v8264
        %v8266 = vpop.f32.mrf.mxu0
        %v8267 = vadd.f32 %v8218, %v8266
        %8268 = vmatmul.bf16.gmra.mxu0 %v6519
        %v8269 = vpop.f32.mrf.mxu0
        %v8270 = vadd.f32 %v8221, %v8269
        %v8271 = vpop.f32.mrf.mxu0
        %v8272 = vadd.f32 %v8223, %v8271
        %8273 = vmatmul.bf16.gmra.mxu0 %v6527
        %v8274 = vpop.f32.mrf.mxu0
        %v8275 = vadd.f32 %v8226, %v8274
        %v8276 = vpop.f32.mrf.mxu0
        %v8277 = vadd.f32 %v8228, %v8276
        %8278 = vmatmul.bf16.gmra.mxu0 %v6535
        %v8279 = vpop.f32.mrf.mxu0
        %v8280 = vadd.f32 %v8231, %v8279
        %v8281 = vpop.f32.mrf.mxu0
        %v8282 = vadd.f32 %v8233, %v8281
        %8283 = vmatmul.bf16.gmra.mxu0 %v6543
        %v8284 = vpop.f32.mrf.mxu0
        %v8285 = vadd.f32 %v8236, %v8284
        %v8286 = vpop.f32.mrf.mxu0
        %v8287 = vadd.f32 %v8238, %v8286
        %8288 = vmatmul.bf16.gmra.mxu0 %v6551
        %v8289 = vpop.f32.mrf.mxu0
        %v8290 = vadd.f32 %v8241, %v8289
        %v8291 = vpop.f32.mrf.mxu0
        %v8292 = vadd.f32 %v8243, %v8291
        %8293 = vmatmul.bf16.gmra.mxu0 %v6559
        %v8294 = vpop.f32.mrf.mxu0
        %v8295 = vadd.f32 %v8246, %v8294
        %v8296 = vpop.f32.mrf.mxu0
        %v8297 = vadd.f32 %v8248, %v8296
        %8298 = vmatmul.bf16.gmra.mxu0 %v6567
        %v8299 = vpop.f32.mrf.mxu0
        %v8300 = vadd.f32 %v8251, %v8299
        %v8301 = vpop.f32.mrf.mxu0
        %v8302 = vadd.f32 %v8253, %v8301
        %8303 = vdwg.mxu0
        %8304 = vmatpush.bf16.msra.mxu0 %v7752
        %8305 = vmatpush.bf16.msra.mxu0 %v7748
        %8306 = vmatpush.bf16.msra.mxu0 %v7744
        %8307 = vmatpush.bf16.msra.mxu0 %v7740
        %8308 = vmatpush.bf16.msra.mxu0 %v7736
        %8309 = vmatpush.bf16.msra.mxu0 %v7732
        %8310 = vmatpush.bf16.msra.mxu0 %v7728
        %8311 = vmatpush.bf16.msra.mxu0 %v7724
        %8312 = vmatmul.bf16.gmra.mxu0 %v6512
        %v8313 = vpop.f32.mrf.mxu0
        %v8314 = vadd.f32 %v8265, %v8313
        %v8315 = vpop.f32.mrf.mxu0
        %v8316 = vadd.f32 %v8267, %v8315
        %8317 = vmatmul.bf16.gmra.mxu0 %v6520
        %v8318 = vpop.f32.mrf.mxu0
        %v8319 = vadd.f32 %v8270, %v8318
        %v8320 = vpop.f32.mrf.mxu0
        %v8321 = vadd.f32 %v8272, %v8320
        %8322 = vmatmul.bf16.gmra.mxu0 %v6528
        %v8323 = vpop.f32.mrf.mxu0
        %v8324 = vadd.f32 %v8275, %v8323
        %v8325 = vpop.f32.mrf.mxu0
        %v8326 = vadd.f32 %v8277, %v8325
        %8327 = vmatmul.bf16.gmra.mxu0 %v6536
        %v8328 = vpop.f32.mrf.mxu0
        %v8329 = vadd.f32 %v8280, %v8328
        %v8330 = vpop.f32.mrf.mxu0
        %v8331 = vadd.f32 %v8282, %v8330
        %8332 = vmatmul.bf16.gmra.mxu0 %v6544
        %v8333 = vpop.f32.mrf.mxu0
        %v8334 = vadd.f32 %v8285, %v8333
        %v8335 = vpop.f32.mrf.mxu0
        %v8336 = vadd.f32 %v8287, %v8335
        %8337 = vmatmul.bf16.gmra.mxu0 %v6552
        %v8338 = vpop.f32.mrf.mxu0
        %v8339 = vadd.f32 %v8290, %v8338
        %v8340 = vpop.f32.mrf.mxu0
        %v8341 = vadd.f32 %v8292, %v8340
        %8342 = vmatmul.bf16.gmra.mxu0 %v6560
        %v8343 = vpop.f32.mrf.mxu0
        %v8344 = vadd.f32 %v8295, %v8343
        %v8345 = vpop.f32.mrf.mxu0
        %v8346 = vadd.f32 %v8297, %v8345
        %8347 = vmatmul.bf16.gmra.mxu0 %v6568
        %v8348 = vpop.f32.mrf.mxu0
        %v8349 = vadd.f32 %v8300, %v8348
        %v8350 = vpop.f32.mrf.mxu0
        %v8351 = vadd.f32 %v8302, %v8350
        %8352 = vdwg.mxu0
        %8353 = vmatpush.bf16.msra.mxu0 %v7784
        %8354 = vmatpush.bf16.msra.mxu0 %v7780
        %8355 = vmatpush.bf16.msra.mxu0 %v7776
        %8356 = vmatpush.bf16.msra.mxu0 %v7772
        %8357 = vmatpush.bf16.msra.mxu0 %v7768
        %8358 = vmatpush.bf16.msra.mxu0 %v7764
        %8359 = vmatpush.bf16.msra.mxu0 %v7760
        %8360 = vmatpush.bf16.msra.mxu0 %v7756
        %8361 = vmatmul.bf16.gmra.mxu0 %v6513
        %v8362 = vpop.f32.mrf.mxu0
        %v8363 = vadd.f32 %v8314, %v8362
        %v8364 = vpop.f32.mrf.mxu0
        %v8365 = vadd.f32 %v8316, %v8364
        %8366 = vmatmul.bf16.gmra.mxu0 %v6521
        %v8367 = vpop.f32.mrf.mxu0
        %v8368 = vadd.f32 %v8319, %v8367
        %v8369 = vpop.f32.mrf.mxu0
        %v8370 = vadd.f32 %v8321, %v8369
        %8371 = vmatmul.bf16.gmra.mxu0 %v6529
        %v8372 = vpop.f32.mrf.mxu0
        %v8373 = vadd.f32 %v8324, %v8372
        %v8374 = vpop.f32.mrf.mxu0
        %v8375 = vadd.f32 %v8326, %v8374
        %8376 = vmatmul.bf16.gmra.mxu0 %v6537
        %v8377 = vpop.f32.mrf.mxu0
        %v8378 = vadd.f32 %v8329, %v8377
        %v8379 = vpop.f32.mrf.mxu0
        %v8380 = vadd.f32 %v8331, %v8379
        %8381 = vmatmul.bf16.gmra.mxu0 %v6545
        %v8382 = vpop.f32.mrf.mxu0
        %v8383 = vadd.f32 %v8334, %v8382
        %v8384 = vpop.f32.mrf.mxu0
        %v8385 = vadd.f32 %v8336, %v8384
        %8386 = vmatmul.bf16.gmra.mxu0 %v6553
        %v8387 = vpop.f32.mrf.mxu0
        %v8388 = vadd.f32 %v8339, %v8387
        %v8389 = vpop.f32.mrf.mxu0
        %v8390 = vadd.f32 %v8341, %v8389
        %8391 = vmatmul.bf16.gmra.mxu0 %v6561
        %v8392 = vpop.f32.mrf.mxu0
        %v8393 = vadd.f32 %v8344, %v8392
        %v8394 = vpop.f32.mrf.mxu0
        %v8395 = vadd.f32 %v8346, %v8394
        %8396 = vmatmul.bf16.gmra.mxu0 %v6569
        %v8397 = vpop.f32.mrf.mxu0
        %v8398 = vadd.f32 %v8349, %v8397
        %v8399 = vpop.f32.mrf.mxu0
        %v8400 = vadd.f32 %v8351, %v8399
        %8401 = vdwg.mxu0
        %8402 = vmatpush.bf16.msra.mxu0 %v7816
        %8403 = vmatpush.bf16.msra.mxu0 %v7812
        %8404 = vmatpush.bf16.msra.mxu0 %v7808
        %8405 = vmatpush.bf16.msra.mxu0 %v7804
        %8406 = vmatpush.bf16.msra.mxu0 %v7800
        %8407 = vmatpush.bf16.msra.mxu0 %v7796
        %8408 = vmatpush.bf16.msra.mxu0 %v7792
        %8409 = vmatpush.bf16.msra.mxu0 %v7788
        %8410 = vmatmul.bf16.gmra.mxu0 %v6514
        %v8411 = vpop.f32.mrf.mxu0
        %v8412 = vadd.f32 %v8363, %v8411
        %v8413 = vpop.f32.mrf.mxu0
        %v8414 = vadd.f32 %v8365, %v8413
        %8415 = vmatmul.bf16.gmra.mxu0 %v6522
        %v8416 = vpop.f32.mrf.mxu0
        %v8417 = vadd.f32 %v8368, %v8416
        %v8418 = vpop.f32.mrf.mxu0
        %v8419 = vadd.f32 %v8370, %v8418
        %8420 = vmatmul.bf16.gmra.mxu0 %v6530
        %v8421 = vpop.f32.mrf.mxu0
        %v8422 = vadd.f32 %v8373, %v8421
        %v8423 = vpop.f32.mrf.mxu0
        %v8424 = vadd.f32 %v8375, %v8423
        %8425 = vmatmul.bf16.gmra.mxu0 %v6538
        %v8426 = vpop.f32.mrf.mxu0
        %v8427 = vadd.f32 %v8378, %v8426
        %v8428 = vpop.f32.mrf.mxu0
        %v8429 = vadd.f32 %v8380, %v8428
        %8430 = vmatmul.bf16.gmra.mxu0 %v6546
        %v8431 = vpop.f32.mrf.mxu0
        %v8432 = vadd.f32 %v8383, %v8431
        %v8433 = vpop.f32.mrf.mxu0
        %v8434 = vadd.f32 %v8385, %v8433
        %8435 = vmatmul.bf16.gmra.mxu0 %v6554
        %v8436 = vpop.f32.mrf.mxu0
        %v8437 = vadd.f32 %v8388, %v8436
        %v8438 = vpop.f32.mrf.mxu0
        %v8439 = vadd.f32 %v8390, %v8438
        %8440 = vmatmul.bf16.gmra.mxu0 %v6562
        %v8441 = vpop.f32.mrf.mxu0
        %v8442 = vadd.f32 %v8393, %v8441
        %v8443 = vpop.f32.mrf.mxu0
        %v8444 = vadd.f32 %v8395, %v8443
        %8445 = vmatmul.bf16.gmra.mxu0 %v6570
        %v8446 = vpop.f32.mrf.mxu0
        %v8447 = vadd.f32 %v8398, %v8446
        %v8448 = vpop.f32.mrf.mxu0
        %v8449 = vadd.f32 %v8400, %v8448
        %8450 = vdwg.mxu0
        %8451 = vmatpush.bf16.msra.mxu0 %v7848
        %8452 = vmatpush.bf16.msra.mxu0 %v7844
        %8453 = vmatpush.bf16.msra.mxu0 %v7840
        %8454 = vmatpush.bf16.msra.mxu0 %v7836
        %8455 = vmatpush.bf16.msra.mxu0 %v7832
        %8456 = vmatpush.bf16.msra.mxu0 %v7828
        %8457 = vmatpush.bf16.msra.mxu0 %v7824
        %8458 = vmatpush.bf16.msra.mxu0 %v7820
        %8459 = vmatmul.bf16.gmra.mxu0 %v6515
        %v8460 = vpop.f32.mrf.mxu0
        %v8461 = vadd.f32 %v8412, %v8460
        %v8462 = vpop.f32.mrf.mxu0
        %v8463 = vadd.f32 %v8414, %v8462
        %8464 = vmatmul.bf16.gmra.mxu0 %v6523
        %v8465 = vpop.f32.mrf.mxu0
        %v8466 = vadd.f32 %v8417, %v8465
        %v8467 = vpop.f32.mrf.mxu0
        %v8468 = vadd.f32 %v8419, %v8467
        %8469 = vmatmul.bf16.gmra.mxu0 %v6531
        %v8470 = vpop.f32.mrf.mxu0
        %v8471 = vadd.f32 %v8422, %v8470
        %v8472 = vpop.f32.mrf.mxu0
        %v8473 = vadd.f32 %v8424, %v8472
        %8474 = vmatmul.bf16.gmra.mxu0 %v6539
        %v8475 = vpop.f32.mrf.mxu0
        %v8476 = vadd.f32 %v8427, %v8475
        %v8477 = vpop.f32.mrf.mxu0
        %v8478 = vadd.f32 %v8429, %v8477
        %8479 = vmatmul.bf16.gmra.mxu0 %v6547
        %v8480 = vpop.f32.mrf.mxu0
        %v8481 = vadd.f32 %v8432, %v8480
        %v8482 = vpop.f32.mrf.mxu0
        %v8483 = vadd.f32 %v8434, %v8482
        %8484 = vmatmul.bf16.gmra.mxu0 %v6555
        %v8485 = vpop.f32.mrf.mxu0
        %v8486 = vadd.f32 %v8437, %v8485
        %v8487 = vpop.f32.mrf.mxu0
        %v8488 = vadd.f32 %v8439, %v8487
        %8489 = vmatmul.bf16.gmra.mxu0 %v6563
        %v8490 = vpop.f32.mrf.mxu0
        %v8491 = vadd.f32 %v8442, %v8490
        %v8492 = vpop.f32.mrf.mxu0
        %v8493 = vadd.f32 %v8444, %v8492
        %8494 = vmatmul.bf16.gmra.mxu0 %v6571
        %v8495 = vpop.f32.mrf.mxu0
        %v8496 = vadd.f32 %v8447, %v8495
        %v8497 = vpop.f32.mrf.mxu0
        %v8498 = vadd.f32 %v8449, %v8497
        %8499 = vdwg.mxu0
        %8500 = vmatpush.bf16.msra.mxu0 %v7625
        %8501 = vmatpush.bf16.msra.mxu0 %v7621
        %8502 = vmatpush.bf16.msra.mxu0 %v7617
        %8503 = vmatpush.bf16.msra.mxu0 %v7613
        %8504 = vmatpush.bf16.msra.mxu0 %v7609
        %8505 = vmatpush.bf16.msra.mxu0 %v7605
        %8506 = vmatpush.bf16.msra.mxu0 %v7601
        %8507 = vmatpush.bf16.msra.mxu0 %v7597
        %8508 = vmatmul.bf16.gmra.mxu0 %v6508
        %v8509 = vpop.f32.mrf.mxu0
        %v8510 = vadd.f32 0.0, %v8509
        %v8511 = vpop.f32.mrf.mxu0
        %v8512 = vadd.f32 0.0, %v8511
        %8513 = vmatmul.bf16.gmra.mxu0 %v6516
        %v8514 = vpop.f32.mrf.mxu0
        %v8515 = vadd.f32 0.0, %v8514
        %v8516 = vpop.f32.mrf.mxu0
        %v8517 = vadd.f32 0.0, %v8516
        %8518 = vmatmul.bf16.gmra.mxu0 %v6524
        %v8519 = vpop.f32.mrf.mxu0
        %v8520 = vadd.f32 0.0, %v8519
        %v8521 = vpop.f32.mrf.mxu0
        %v8522 = vadd.f32 0.0, %v8521
        %8523 = vmatmul.bf16.gmra.mxu0 %v6532
        %v8524 = vpop.f32.mrf.mxu0
        %v8525 = vadd.f32 0.0, %v8524
        %v8526 = vpop.f32.mrf.mxu0
        %v8527 = vadd.f32 0.0, %v8526
        %8528 = vmatmul.bf16.gmra.mxu0 %v6540
        %v8529 = vpop.f32.mrf.mxu0
        %v8530 = vadd.f32 0.0, %v8529
        %v8531 = vpop.f32.mrf.mxu0
        %v8532 = vadd.f32 0.0, %v8531
        %8533 = vmatmul.bf16.gmra.mxu0 %v6548
        %v8534 = vpop.f32.mrf.mxu0
        %v8535 = vadd.f32 0.0, %v8534
        %v8536 = vpop.f32.mrf.mxu0
        %v8537 = vadd.f32 0.0, %v8536
        %8538 = vmatmul.bf16.gmra.mxu0 %v6556
        %v8539 = vpop.f32.mrf.mxu0
        %v8540 = vadd.f32 0.0, %v8539
        %v8541 = vpop.f32.mrf.mxu0
        %v8542 = vadd.f32 0.0, %v8541
        %8543 = vmatmul.bf16.gmra.mxu0 %v6564
        %v8544 = vpop.f32.mrf.mxu0
        %v8545 = vadd.f32 0.0, %v8544
        %v8546 = vpop.f32.mrf.mxu0
        %v8547 = vadd.f32 0.0, %v8546
        %8548 = vdwg.mxu0
        %8549 = vmatpush.bf16.msra.mxu0 %v7657
        %8550 = vmatpush.bf16.msra.mxu0 %v7653
        %8551 = vmatpush.bf16.msra.mxu0 %v7649
        %8552 = vmatpush.bf16.msra.mxu0 %v7645
        %8553 = vmatpush.bf16.msra.mxu0 %v7641
        %8554 = vmatpush.bf16.msra.mxu0 %v7637
        %8555 = vmatpush.bf16.msra.mxu0 %v7633
        %8556 = vmatpush.bf16.msra.mxu0 %v7629
        %8557 = vmatmul.bf16.gmra.mxu0 %v6509
        %v8558 = vpop.f32.mrf.mxu0
        %v8559 = vadd.f32 %v8510, %v8558
        %v8560 = vpop.f32.mrf.mxu0
        %v8561 = vadd.f32 %v8512, %v8560
        %8562 = vmatmul.bf16.gmra.mxu0 %v6517
        %v8563 = vpop.f32.mrf.mxu0
        %v8564 = vadd.f32 %v8515, %v8563
        %v8565 = vpop.f32.mrf.mxu0
        %v8566 = vadd.f32 %v8517, %v8565
        %8567 = vmatmul.bf16.gmra.mxu0 %v6525
        %v8568 = vpop.f32.mrf.mxu0
        %v8569 = vadd.f32 %v8520, %v8568
        %v8570 = vpop.f32.mrf.mxu0
        %v8571 = vadd.f32 %v8522, %v8570
        %8572 = vmatmul.bf16.gmra.mxu0 %v6533
        %v8573 = vpop.f32.mrf.mxu0
        %v8574 = vadd.f32 %v8525, %v8573
        %v8575 = vpop.f32.mrf.mxu0
        %v8576 = vadd.f32 %v8527, %v8575
        %8577 = vmatmul.bf16.gmra.mxu0 %v6541
        %v8578 = vpop.f32.mrf.mxu0
        %v8579 = vadd.f32 %v8530, %v8578
        %v8580 = vpop.f32.mrf.mxu0
        %v8581 = vadd.f32 %v8532, %v8580
        %8582 = vmatmul.bf16.gmra.mxu0 %v6549
        %v8583 = vpop.f32.mrf.mxu0
        %v8584 = vadd.f32 %v8535, %v8583
        %v8585 = vpop.f32.mrf.mxu0
        %v8586 = vadd.f32 %v8537, %v8585
        %8587 = vmatmul.bf16.gmra.mxu0 %v6557
        %v8588 = vpop.f32.mrf.mxu0
        %v8589 = vadd.f32 %v8540, %v8588
        %v8590 = vpop.f32.mrf.mxu0
        %v8591 = vadd.f32 %v8542, %v8590
        %8592 = vmatmul.bf16.gmra.mxu0 %v6565
        %v8593 = vpop.f32.mrf.mxu0
        %v8594 = vadd.f32 %v8545, %v8593
        %v8595 = vpop.f32.mrf.mxu0
        %v8596 = vadd.f32 %v8547, %v8595
        %8597 = vdwg.mxu0
        %8598 = vmatpush.bf16.msra.mxu0 %v7689
        %8599 = vmatpush.bf16.msra.mxu0 %v7685
        %8600 = vmatpush.bf16.msra.mxu0 %v7681
        %8601 = vmatpush.bf16.msra.mxu0 %v7677
        %8602 = vmatpush.bf16.msra.mxu0 %v7673
        %8603 = vmatpush.bf16.msra.mxu0 %v7669
        %8604 = vmatpush.bf16.msra.mxu0 %v7665
        %8605 = vmatpush.bf16.msra.mxu0 %v7661
        %8606 = vmatmul.bf16.gmra.mxu0 %v6510
        %v8607 = vpop.f32.mrf.mxu0
        %v8608 = vadd.f32 %v8559, %v8607
        %v8609 = vpop.f32.mrf.mxu0
        %v8610 = vadd.f32 %v8561, %v8609
        %8611 = vmatmul.bf16.gmra.mxu0 %v6518
        %v8612 = vpop.f32.mrf.mxu0
        %v8613 = vadd.f32 %v8564, %v8612
        %v8614 = vpop.f32.mrf.mxu0
        %v8615 = vadd.f32 %v8566, %v8614
        %8616 = vmatmul.bf16.gmra.mxu0 %v6526
        %v8617 = vpop.f32.mrf.mxu0
        %v8618 = vadd.f32 %v8569, %v8617
        %v8619 = vpop.f32.mrf.mxu0
        %v8620 = vadd.f32 %v8571, %v8619
        %8621 = vmatmul.bf16.gmra.mxu0 %v6534
        %v8622 = vpop.f32.mrf.mxu0
        %v8623 = vadd.f32 %v8574, %v8622
        %v8624 = vpop.f32.mrf.mxu0
        %v8625 = vadd.f32 %v8576, %v8624
        %8626 = vmatmul.bf16.gmra.mxu0 %v6542
        %v8627 = vpop.f32.mrf.mxu0
        %v8628 = vadd.f32 %v8579, %v8627
        %v8629 = vpop.f32.mrf.mxu0
        %v8630 = vadd.f32 %v8581, %v8629
        %8631 = vmatmul.bf16.gmra.mxu0 %v6550
        %v8632 = vpop.f32.mrf.mxu0
        %v8633 = vadd.f32 %v8584, %v8632
        %v8634 = vpop.f32.mrf.mxu0
        %v8635 = vadd.f32 %v8586, %v8634
        %8636 = vmatmul.bf16.gmra.mxu0 %v6558
        %v8637 = vpop.f32.mrf.mxu0
        %v8638 = vadd.f32 %v8589, %v8637
        %v8639 = vpop.f32.mrf.mxu0
        %v8640 = vadd.f32 %v8591, %v8639
        %8641 = vmatmul.bf16.gmra.mxu0 %v6566
        %v8642 = vpop.f32.mrf.mxu0
        %v8643 = vadd.f32 %v8594, %v8642
        %v8644 = vpop.f32.mrf.mxu0
        %v8645 = vadd.f32 %v8596, %v8644
        %8646 = vdwg.mxu0
        %8647 = vmatpush.bf16.msra.mxu0 %v7721
        %8648 = vmatpush.bf16.msra.mxu0 %v7717
        %8649 = vmatpush.bf16.msra.mxu0 %v7713
        %8650 = vmatpush.bf16.msra.mxu0 %v7709
        %8651 = vmatpush.bf16.msra.mxu0 %v7705
        %8652 = vmatpush.bf16.msra.mxu0 %v7701
        %8653 = vmatpush.bf16.msra.mxu0 %v7697
        %8654 = vmatpush.bf16.msra.mxu0 %v7693
        %8655 = vmatmul.bf16.gmra.mxu0 %v6511
        %v8656 = vpop.f32.mrf.mxu0
        %v8657 = vadd.f32 %v8608, %v8656
        %v8658 = vpop.f32.mrf.mxu0
        %v8659 = vadd.f32 %v8610, %v8658
        %8660 = vmatmul.bf16.gmra.mxu0 %v6519
        %v8661 = vpop.f32.mrf.mxu0
        %v8662 = vadd.f32 %v8613, %v8661
        %v8663 = vpop.f32.mrf.mxu0
        %v8664 = vadd.f32 %v8615, %v8663
        %8665 = vmatmul.bf16.gmra.mxu0 %v6527
        %v8666 = vpop.f32.mrf.mxu0
        %v8667 = vadd.f32 %v8618, %v8666
        %v8668 = vpop.f32.mrf.mxu0
        %v8669 = vadd.f32 %v8620, %v8668
        %8670 = vmatmul.bf16.gmra.mxu0 %v6535
        %v8671 = vpop.f32.mrf.mxu0
        %v8672 = vadd.f32 %v8623, %v8671
        %v8673 = vpop.f32.mrf.mxu0
        %v8674 = vadd.f32 %v8625, %v8673
        %8675 = vmatmul.bf16.gmra.mxu0 %v6543
        %v8676 = vpop.f32.mrf.mxu0
        %v8677 = vadd.f32 %v8628, %v8676
        %v8678 = vpop.f32.mrf.mxu0
        %v8679 = vadd.f32 %v8630, %v8678
        %8680 = vmatmul.bf16.gmra.mxu0 %v6551
        %v8681 = vpop.f32.mrf.mxu0
        %v8682 = vadd.f32 %v8633, %v8681
        %v8683 = vpop.f32.mrf.mxu0
        %v8684 = vadd.f32 %v8635, %v8683
        %8685 = vmatmul.bf16.gmra.mxu0 %v6559
        %v8686 = vpop.f32.mrf.mxu0
        %v8687 = vadd.f32 %v8638, %v8686
        %v8688 = vpop.f32.mrf.mxu0
        %v8689 = vadd.f32 %v8640, %v8688
        %8690 = vmatmul.bf16.gmra.mxu0 %v6567
        %v8691 = vpop.f32.mrf.mxu0
        %v8692 = vadd.f32 %v8643, %v8691
        %v8693 = vpop.f32.mrf.mxu0
        %v8694 = vadd.f32 %v8645, %v8693
        %8695 = vdwg.mxu0
        %8696 = vmatpush.bf16.msra.mxu0 %v7753
        %8697 = vmatpush.bf16.msra.mxu0 %v7749
        %8698 = vmatpush.bf16.msra.mxu0 %v7745
        %8699 = vmatpush.bf16.msra.mxu0 %v7741
        %8700 = vmatpush.bf16.msra.mxu0 %v7737
        %8701 = vmatpush.bf16.msra.mxu0 %v7733
        %8702 = vmatpush.bf16.msra.mxu0 %v7729
        %8703 = vmatpush.bf16.msra.mxu0 %v7725
        %8704 = vmatmul.bf16.gmra.mxu0 %v6512
        %v8705 = vpop.f32.mrf.mxu0
        %v8706 = vadd.f32 %v8657, %v8705
        %v8707 = vpop.f32.mrf.mxu0
        %v8708 = vadd.f32 %v8659, %v8707
        %8709 = vmatmul.bf16.gmra.mxu0 %v6520
        %v8710 = vpop.f32.mrf.mxu0
        %v8711 = vadd.f32 %v8662, %v8710
        %v8712 = vpop.f32.mrf.mxu0
        %v8713 = vadd.f32 %v8664, %v8712
        %8714 = vmatmul.bf16.gmra.mxu0 %v6528
        %v8715 = vpop.f32.mrf.mxu0
        %v8716 = vadd.f32 %v8667, %v8715
        %v8717 = vpop.f32.mrf.mxu0
        %v8718 = vadd.f32 %v8669, %v8717
        %8719 = vmatmul.bf16.gmra.mxu0 %v6536
        %v8720 = vpop.f32.mrf.mxu0
        %v8721 = vadd.f32 %v8672, %v8720
        %v8722 = vpop.f32.mrf.mxu0
        %v8723 = vadd.f32 %v8674, %v8722
        %8724 = vmatmul.bf16.gmra.mxu0 %v6544
        %v8725 = vpop.f32.mrf.mxu0
        %v8726 = vadd.f32 %v8677, %v8725
        %v8727 = vpop.f32.mrf.mxu0
        %v8728 = vadd.f32 %v8679, %v8727
        %8729 = vmatmul.bf16.gmra.mxu0 %v6552
        %v8730 = vpop.f32.mrf.mxu0
        %v8731 = vadd.f32 %v8682, %v8730
        %v8732 = vpop.f32.mrf.mxu0
        %v8733 = vadd.f32 %v8684, %v8732
        %8734 = vmatmul.bf16.gmra.mxu0 %v6560
        %v8735 = vpop.f32.mrf.mxu0
        %v8736 = vadd.f32 %v8687, %v8735
        %v8737 = vpop.f32.mrf.mxu0
        %v8738 = vadd.f32 %v8689, %v8737
        %8739 = vmatmul.bf16.gmra.mxu0 %v6568
        %v8740 = vpop.f32.mrf.mxu0
        %v8741 = vadd.f32 %v8692, %v8740
        %v8742 = vpop.f32.mrf.mxu0
        %v8743 = vadd.f32 %v8694, %v8742
        %8744 = vdwg.mxu0
        %8745 = vmatpush.bf16.msra.mxu0 %v7785
        %8746 = vmatpush.bf16.msra.mxu0 %v7781
        %8747 = vmatpush.bf16.msra.mxu0 %v7777
        %8748 = vmatpush.bf16.msra.mxu0 %v7773
        %8749 = vmatpush.bf16.msra.mxu0 %v7769
        %8750 = vmatpush.bf16.msra.mxu0 %v7765
        %8751 = vmatpush.bf16.msra.mxu0 %v7761
        %8752 = vmatpush.bf16.msra.mxu0 %v7757
        %8753 = vmatmul.bf16.gmra.mxu0 %v6513
        %v8754 = vpop.f32.mrf.mxu0
        %v8755 = vadd.f32 %v8706, %v8754
        %v8756 = vpop.f32.mrf.mxu0
        %v8757 = vadd.f32 %v8708, %v8756
        %8758 = vmatmul.bf16.gmra.mxu0 %v6521
        %v8759 = vpop.f32.mrf.mxu0
        %v8760 = vadd.f32 %v8711, %v8759
        %v8761 = vpop.f32.mrf.mxu0
        %v8762 = vadd.f32 %v8713, %v8761
        %8763 = vmatmul.bf16.gmra.mxu0 %v6529
        %v8764 = vpop.f32.mrf.mxu0
        %v8765 = vadd.f32 %v8716, %v8764
        %v8766 = vpop.f32.mrf.mxu0
        %v8767 = vadd.f32 %v8718, %v8766
        %8768 = vmatmul.bf16.gmra.mxu0 %v6537
        %v8769 = vpop.f32.mrf.mxu0
        %v8770 = vadd.f32 %v8721, %v8769
        %v8771 = vpop.f32.mrf.mxu0
        %v8772 = vadd.f32 %v8723, %v8771
        %8773 = vmatmul.bf16.gmra.mxu0 %v6545
        %v8774 = vpop.f32.mrf.mxu0
        %v8775 = vadd.f32 %v8726, %v8774
        %v8776 = vpop.f32.mrf.mxu0
        %v8777 = vadd.f32 %v8728, %v8776
        %8778 = vmatmul.bf16.gmra.mxu0 %v6553
        %v8779 = vpop.f32.mrf.mxu0
        %v8780 = vadd.f32 %v8731, %v8779
        %v8781 = vpop.f32.mrf.mxu0
        %v8782 = vadd.f32 %v8733, %v8781
        %8783 = vmatmul.bf16.gmra.mxu0 %v6561
        %v8784 = vpop.f32.mrf.mxu0
        %v8785 = vadd.f32 %v8736, %v8784
        %v8786 = vpop.f32.mrf.mxu0
        %v8787 = vadd.f32 %v8738, %v8786
        %8788 = vmatmul.bf16.gmra.mxu0 %v6569
        %v8789 = vpop.f32.mrf.mxu0
        %v8790 = vadd.f32 %v8741, %v8789
        %v8791 = vpop.f32.mrf.mxu0
        %v8792 = vadd.f32 %v8743, %v8791
        %8793 = vdwg.mxu0
        %8794 = vmatpush.bf16.msra.mxu0 %v7817
        %8795 = vmatpush.bf16.msra.mxu0 %v7813
        %8796 = vmatpush.bf16.msra.mxu0 %v7809
        %8797 = vmatpush.bf16.msra.mxu0 %v7805
        %8798 = vmatpush.bf16.msra.mxu0 %v7801
        %8799 = vmatpush.bf16.msra.mxu0 %v7797
        %8800 = vmatpush.bf16.msra.mxu0 %v7793
        %8801 = vmatpush.bf16.msra.mxu0 %v7789
        %8802 = vmatmul.bf16.gmra.mxu0 %v6514
        %v8803 = vpop.f32.mrf.mxu0
        %v8804 = vadd.f32 %v8755, %v8803
        %v8805 = vpop.f32.mrf.mxu0
        %v8806 = vadd.f32 %v8757, %v8805
        %8807 = vmatmul.bf16.gmra.mxu0 %v6522
        %v8808 = vpop.f32.mrf.mxu0
        %v8809 = vadd.f32 %v8760, %v8808
        %v8810 = vpop.f32.mrf.mxu0
        %v8811 = vadd.f32 %v8762, %v8810
        %8812 = vmatmul.bf16.gmra.mxu0 %v6530
        %v8813 = vpop.f32.mrf.mxu0
        %v8814 = vadd.f32 %v8765, %v8813
        %v8815 = vpop.f32.mrf.mxu0
        %v8816 = vadd.f32 %v8767, %v8815
        %8817 = vmatmul.bf16.gmra.mxu0 %v6538
        %v8818 = vpop.f32.mrf.mxu0
        %v8819 = vadd.f32 %v8770, %v8818
        %v8820 = vpop.f32.mrf.mxu0
        %v8821 = vadd.f32 %v8772, %v8820
        %8822 = vmatmul.bf16.gmra.mxu0 %v6546
        %v8823 = vpop.f32.mrf.mxu0
        %v8824 = vadd.f32 %v8775, %v8823
        %v8825 = vpop.f32.mrf.mxu0
        %v8826 = vadd.f32 %v8777, %v8825
        %8827 = vmatmul.bf16.gmra.mxu0 %v6554
        %v8828 = vpop.f32.mrf.mxu0
        %v8829 = vadd.f32 %v8780, %v8828
        %v8830 = vpop.f32.mrf.mxu0
        %v8831 = vadd.f32 %v8782, %v8830
        %8832 = vmatmul.bf16.gmra.mxu0 %v6562
        %v8833 = vpop.f32.mrf.mxu0
        %v8834 = vadd.f32 %v8785, %v8833
        %v8835 = vpop.f32.mrf.mxu0
        %v8836 = vadd.f32 %v8787, %v8835
        %8837 = vmatmul.bf16.gmra.mxu0 %v6570
        %v8838 = vpop.f32.mrf.mxu0
        %v8839 = vadd.f32 %v8790, %v8838
        %v8840 = vpop.f32.mrf.mxu0
        %v8841 = vadd.f32 %v8792, %v8840
        %8842 = vdwg.mxu0
        %8843 = vmatpush.bf16.msra.mxu0 %v7849
        %8844 = vmatpush.bf16.msra.mxu0 %v7845
        %8845 = vmatpush.bf16.msra.mxu0 %v7841
        %8846 = vmatpush.bf16.msra.mxu0 %v7837
        %8847 = vmatpush.bf16.msra.mxu0 %v7833
        %8848 = vmatpush.bf16.msra.mxu0 %v7829
        %8849 = vmatpush.bf16.msra.mxu0 %v7825
        %8850 = vmatpush.bf16.msra.mxu0 %v7821
        %8851 = vmatmul.bf16.gmra.mxu0 %v6515
        %v8852 = vpop.f32.mrf.mxu0
        %v8853 = vadd.f32 %v8804, %v8852
        %v8854 = vpop.f32.mrf.mxu0
        %v8855 = vadd.f32 %v8806, %v8854
        %8856 = vmatmul.bf16.gmra.mxu0 %v6523
        %v8857 = vpop.f32.mrf.mxu0
        %v8858 = vadd.f32 %v8809, %v8857
        %v8859 = vpop.f32.mrf.mxu0
        %v8860 = vadd.f32 %v8811, %v8859
        %8861 = vmatmul.bf16.gmra.mxu0 %v6531
        %v8862 = vpop.f32.mrf.mxu0
        %v8863 = vadd.f32 %v8814, %v8862
        %v8864 = vpop.f32.mrf.mxu0
        %v8865 = vadd.f32 %v8816, %v8864
        %8866 = vmatmul.bf16.gmra.mxu0 %v6539
        %v8867 = vpop.f32.mrf.mxu0
        %v8868 = vadd.f32 %v8819, %v8867
        %v8869 = vpop.f32.mrf.mxu0
        %v8870 = vadd.f32 %v8821, %v8869
        %8871 = vmatmul.bf16.gmra.mxu0 %v6547
        %v8872 = vpop.f32.mrf.mxu0
        %v8873 = vadd.f32 %v8824, %v8872
        %v8874 = vpop.f32.mrf.mxu0
        %v8875 = vadd.f32 %v8826, %v8874
        %8876 = vmatmul.bf16.gmra.mxu0 %v6555
        %v8877 = vpop.f32.mrf.mxu0
        %v8878 = vadd.f32 %v8829, %v8877
        %v8879 = vpop.f32.mrf.mxu0
        %v8880 = vadd.f32 %v8831, %v8879
        %8881 = vmatmul.bf16.gmra.mxu0 %v6563
        %v8882 = vpop.f32.mrf.mxu0
        %v8883 = vadd.f32 %v8834, %v8882
        %v8884 = vpop.f32.mrf.mxu0
        %v8885 = vadd.f32 %v8836, %v8884
        %8886 = vmatmul.bf16.gmra.mxu0 %v6571
        %v8887 = vpop.f32.mrf.mxu0
        %v8888 = vadd.f32 %v8839, %v8887
        %v8889 = vpop.f32.mrf.mxu0
        %v8890 = vadd.f32 %v8841, %v8889
        %8891 = vdwg.mxu0
        %8892 = vmatpush.bf16.msra.mxu0 %v7626
        %8893 = vmatpush.bf16.msra.mxu0 %v7622
        %8894 = vmatpush.bf16.msra.mxu0 %v7618
        %8895 = vmatpush.bf16.msra.mxu0 %v7614
        %8896 = vmatpush.bf16.msra.mxu0 %v7610
        %8897 = vmatpush.bf16.msra.mxu0 %v7606
        %8898 = vmatpush.bf16.msra.mxu0 %v7602
        %8899 = vmatpush.bf16.msra.mxu0 %v7598
        %8900 = vmatmul.bf16.gmra.mxu0 %v6508
        %v8901 = vpop.f32.mrf.mxu0
        %v8902 = vadd.f32 0.0, %v8901
        %v8903 = vpop.f32.mrf.mxu0
        %v8904 = vadd.f32 0.0, %v8903
        %8905 = vmatmul.bf16.gmra.mxu0 %v6516
        %v8906 = vpop.f32.mrf.mxu0
        %v8907 = vadd.f32 0.0, %v8906
        %v8908 = vpop.f32.mrf.mxu0
        %v8909 = vadd.f32 0.0, %v8908
        %8910 = vmatmul.bf16.gmra.mxu0 %v6524
        %v8911 = vpop.f32.mrf.mxu0
        %v8912 = vadd.f32 0.0, %v8911
        %v8913 = vpop.f32.mrf.mxu0
        %v8914 = vadd.f32 0.0, %v8913
        %8915 = vmatmul.bf16.gmra.mxu0 %v6532
        %v8916 = vpop.f32.mrf.mxu0
        %v8917 = vadd.f32 0.0, %v8916
        %v8918 = vpop.f32.mrf.mxu0
        %v8919 = vadd.f32 0.0, %v8918
        %8920 = vmatmul.bf16.gmra.mxu0 %v6540
        %v8921 = vpop.f32.mrf.mxu0
        %v8922 = vadd.f32 0.0, %v8921
        %v8923 = vpop.f32.mrf.mxu0
        %v8924 = vadd.f32 0.0, %v8923
        %8925 = vmatmul.bf16.gmra.mxu0 %v6548
        %v8926 = vpop.f32.mrf.mxu0
        %v8927 = vadd.f32 0.0, %v8926
        %v8928 = vpop.f32.mrf.mxu0
        %v8929 = vadd.f32 0.0, %v8928
        %8930 = vmatmul.bf16.gmra.mxu0 %v6556
        %v8931 = vpop.f32.mrf.mxu0
        %v8932 = vadd.f32 0.0, %v8931
        %v8933 = vpop.f32.mrf.mxu0
        %v8934 = vadd.f32 0.0, %v8933
        %8935 = vmatmul.bf16.gmra.mxu0 %v6564
        %v8936 = vpop.f32.mrf.mxu0
        %v8937 = vadd.f32 0.0, %v8936
        %v8938 = vpop.f32.mrf.mxu0
        %v8939 = vadd.f32 0.0, %v8938
        %8940 = vdwg.mxu0
        %8941 = vmatpush.bf16.msra.mxu0 %v7658
        %8942 = vmatpush.bf16.msra.mxu0 %v7654
        %8943 = vmatpush.bf16.msra.mxu0 %v7650
        %8944 = vmatpush.bf16.msra.mxu0 %v7646
        %8945 = vmatpush.bf16.msra.mxu0 %v7642
        %8946 = vmatpush.bf16.msra.mxu0 %v7638
        %8947 = vmatpush.bf16.msra.mxu0 %v7634
        %8948 = vmatpush.bf16.msra.mxu0 %v7630
        %8949 = vmatmul.bf16.gmra.mxu0 %v6509
        %v8950 = vpop.f32.mrf.mxu0
        %v8951 = vadd.f32 %v8902, %v8950
        %v8952 = vpop.f32.mrf.mxu0
        %v8953 = vadd.f32 %v8904, %v8952
        %8954 = vmatmul.bf16.gmra.mxu0 %v6517
        %v8955 = vpop.f32.mrf.mxu0
        %v8956 = vadd.f32 %v8907, %v8955
        %v8957 = vpop.f32.mrf.mxu0
        %v8958 = vadd.f32 %v8909, %v8957
        %8959 = vmatmul.bf16.gmra.mxu0 %v6525
        %v8960 = vpop.f32.mrf.mxu0
        %v8961 = vadd.f32 %v8912, %v8960
        %v8962 = vpop.f32.mrf.mxu0
        %v8963 = vadd.f32 %v8914, %v8962
        %8964 = vmatmul.bf16.gmra.mxu0 %v6533
        %v8965 = vpop.f32.mrf.mxu0
        %v8966 = vadd.f32 %v8917, %v8965
        %v8967 = vpop.f32.mrf.mxu0
        %v8968 = vadd.f32 %v8919, %v8967
        %8969 = vmatmul.bf16.gmra.mxu0 %v6541
        %v8970 = vpop.f32.mrf.mxu0
        %v8971 = vadd.f32 %v8922, %v8970
        %v8972 = vpop.f32.mrf.mxu0
        %v8973 = vadd.f32 %v8924, %v8972
        %8974 = vmatmul.bf16.gmra.mxu0 %v6549
        %v8975 = vpop.f32.mrf.mxu0
        %v8976 = vadd.f32 %v8927, %v8975
        %v8977 = vpop.f32.mrf.mxu0
        %v8978 = vadd.f32 %v8929, %v8977
        %8979 = vmatmul.bf16.gmra.mxu0 %v6557
        %v8980 = vpop.f32.mrf.mxu0
        %v8981 = vadd.f32 %v8932, %v8980
        %v8982 = vpop.f32.mrf.mxu0
        %v8983 = vadd.f32 %v8934, %v8982
        %8984 = vmatmul.bf16.gmra.mxu0 %v6565
        %v8985 = vpop.f32.mrf.mxu0
        %v8986 = vadd.f32 %v8937, %v8985
        %v8987 = vpop.f32.mrf.mxu0
        %v8988 = vadd.f32 %v8939, %v8987
        %8989 = vdwg.mxu0
        %8990 = vmatpush.bf16.msra.mxu0 %v7690
        %8991 = vmatpush.bf16.msra.mxu0 %v7686
        %8992 = vmatpush.bf16.msra.mxu0 %v7682
        %8993 = vmatpush.bf16.msra.mxu0 %v7678
        %8994 = vmatpush.bf16.msra.mxu0 %v7674
        %8995 = vmatpush.bf16.msra.mxu0 %v7670
        %8996 = vmatpush.bf16.msra.mxu0 %v7666
        %8997 = vmatpush.bf16.msra.mxu0 %v7662
        %8998 = vmatmul.bf16.gmra.mxu0 %v6510
        %v8999 = vpop.f32.mrf.mxu0
        %v9000 = vadd.f32 %v8951, %v8999
        %v9001 = vpop.f32.mrf.mxu0
        %v9002 = vadd.f32 %v8953, %v9001
        %9003 = vmatmul.bf16.gmra.mxu0 %v6518
        %v9004 = vpop.f32.mrf.mxu0
        %v9005 = vadd.f32 %v8956, %v9004
        %v9006 = vpop.f32.mrf.mxu0
        %v9007 = vadd.f32 %v8958, %v9006
        %9008 = vmatmul.bf16.gmra.mxu0 %v6526
        %v9009 = vpop.f32.mrf.mxu0
        %v9010 = vadd.f32 %v8961, %v9009
        %v9011 = vpop.f32.mrf.mxu0
        %v9012 = vadd.f32 %v8963, %v9011
        %9013 = vmatmul.bf16.gmra.mxu0 %v6534
        %v9014 = vpop.f32.mrf.mxu0
        %v9015 = vadd.f32 %v8966, %v9014
        %v9016 = vpop.f32.mrf.mxu0
        %v9017 = vadd.f32 %v8968, %v9016
        %9018 = vmatmul.bf16.gmra.mxu0 %v6542
        %v9019 = vpop.f32.mrf.mxu0
        %v9020 = vadd.f32 %v8971, %v9019
        %v9021 = vpop.f32.mrf.mxu0
        %v9022 = vadd.f32 %v8973, %v9021
        %9023 = vmatmul.bf16.gmra.mxu0 %v6550
        %v9024 = vpop.f32.mrf.mxu0
        %v9025 = vadd.f32 %v8976, %v9024
        %v9026 = vpop.f32.mrf.mxu0
        %v9027 = vadd.f32 %v8978, %v9026
        %9028 = vmatmul.bf16.gmra.mxu0 %v6558
        %v9029 = vpop.f32.mrf.mxu0
        %v9030 = vadd.f32 %v8981, %v9029
        %v9031 = vpop.f32.mrf.mxu0
        %v9032 = vadd.f32 %v8983, %v9031
        %9033 = vmatmul.bf16.gmra.mxu0 %v6566
        %v9034 = vpop.f32.mrf.mxu0
        %v9035 = vadd.f32 %v8986, %v9034
        %v9036 = vpop.f32.mrf.mxu0
        %v9037 = vadd.f32 %v8988, %v9036
        %9038 = vdwg.mxu0
        %9039 = vmatpush.bf16.msra.mxu0 %v7722
        %9040 = vmatpush.bf16.msra.mxu0 %v7718
        %9041 = vmatpush.bf16.msra.mxu0 %v7714
        %9042 = vmatpush.bf16.msra.mxu0 %v7710
        %9043 = vmatpush.bf16.msra.mxu0 %v7706
        %9044 = vmatpush.bf16.msra.mxu0 %v7702
        %9045 = vmatpush.bf16.msra.mxu0 %v7698
        %9046 = vmatpush.bf16.msra.mxu0 %v7694
        %9047 = vmatmul.bf16.gmra.mxu0 %v6511
        %v9048 = vpop.f32.mrf.mxu0
        %v9049 = vadd.f32 %v9000, %v9048
        %v9050 = vpop.f32.mrf.mxu0
        %v9051 = vadd.f32 %v9002, %v9050
        %9052 = vmatmul.bf16.gmra.mxu0 %v6519
        %v9053 = vpop.f32.mrf.mxu0
        %v9054 = vadd.f32 %v9005, %v9053
        %v9055 = vpop.f32.mrf.mxu0
        %v9056 = vadd.f32 %v9007, %v9055
        %9057 = vmatmul.bf16.gmra.mxu0 %v6527
        %v9058 = vpop.f32.mrf.mxu0
        %v9059 = vadd.f32 %v9010, %v9058
        %v9060 = vpop.f32.mrf.mxu0
        %v9061 = vadd.f32 %v9012, %v9060
        %9062 = vmatmul.bf16.gmra.mxu0 %v6535
        %v9063 = vpop.f32.mrf.mxu0
        %v9064 = vadd.f32 %v9015, %v9063
        %v9065 = vpop.f32.mrf.mxu0
        %v9066 = vadd.f32 %v9017, %v9065
        %9067 = vmatmul.bf16.gmra.mxu0 %v6543
        %v9068 = vpop.f32.mrf.mxu0
        %v9069 = vadd.f32 %v9020, %v9068
        %v9070 = vpop.f32.mrf.mxu0
        %v9071 = vadd.f32 %v9022, %v9070
        %9072 = vmatmul.bf16.gmra.mxu0 %v6551
        %v9073 = vpop.f32.mrf.mxu0
        %v9074 = vadd.f32 %v9025, %v9073
        %v9075 = vpop.f32.mrf.mxu0
        %v9076 = vadd.f32 %v9027, %v9075
        %9077 = vmatmul.bf16.gmra.mxu0 %v6559
        %v9078 = vpop.f32.mrf.mxu0
        %v9079 = vadd.f32 %v9030, %v9078
        %v9080 = vpop.f32.mrf.mxu0
        %v9081 = vadd.f32 %v9032, %v9080
        %9082 = vmatmul.bf16.gmra.mxu0 %v6567
        %v9083 = vpop.f32.mrf.mxu0
        %v9084 = vadd.f32 %v9035, %v9083
        %v9085 = vpop.f32.mrf.mxu0
        %v9086 = vadd.f32 %v9037, %v9085
        %9087 = vdwg.mxu0
        %9088 = vmatpush.bf16.msra.mxu0 %v7754
        %9089 = vmatpush.bf16.msra.mxu0 %v7750
        %9090 = vmatpush.bf16.msra.mxu0 %v7746
        %9091 = vmatpush.bf16.msra.mxu0 %v7742
        %9092 = vmatpush.bf16.msra.mxu0 %v7738
        %9093 = vmatpush.bf16.msra.mxu0 %v7734
        %9094 = vmatpush.bf16.msra.mxu0 %v7730
        %9095 = vmatpush.bf16.msra.mxu0 %v7726
        %9096 = vmatmul.bf16.gmra.mxu0 %v6512
        %v9097 = vpop.f32.mrf.mxu0
        %v9098 = vadd.f32 %v9049, %v9097
        %v9099 = vpop.f32.mrf.mxu0
        %v9100 = vadd.f32 %v9051, %v9099
        %9101 = vmatmul.bf16.gmra.mxu0 %v6520
        %v9102 = vpop.f32.mrf.mxu0
        %v9103 = vadd.f32 %v9054, %v9102
        %v9104 = vpop.f32.mrf.mxu0
        %v9105 = vadd.f32 %v9056, %v9104
        %9106 = vmatmul.bf16.gmra.mxu0 %v6528
        %v9107 = vpop.f32.mrf.mxu0
        %v9108 = vadd.f32 %v9059, %v9107
        %v9109 = vpop.f32.mrf.mxu0
        %v9110 = vadd.f32 %v9061, %v9109
        %9111 = vmatmul.bf16.gmra.mxu0 %v6536
        %v9112 = vpop.f32.mrf.mxu0
        %v9113 = vadd.f32 %v9064, %v9112
        %v9114 = vpop.f32.mrf.mxu0
        %v9115 = vadd.f32 %v9066, %v9114
        %9116 = vmatmul.bf16.gmra.mxu0 %v6544
        %v9117 = vpop.f32.mrf.mxu0
        %v9118 = vadd.f32 %v9069, %v9117
        %v9119 = vpop.f32.mrf.mxu0
        %v9120 = vadd.f32 %v9071, %v9119
        %9121 = vmatmul.bf16.gmra.mxu0 %v6552
        %v9122 = vpop.f32.mrf.mxu0
        %v9123 = vadd.f32 %v9074, %v9122
        %v9124 = vpop.f32.mrf.mxu0
        %v9125 = vadd.f32 %v9076, %v9124
        %9126 = vmatmul.bf16.gmra.mxu0 %v6560
        %v9127 = vpop.f32.mrf.mxu0
        %v9128 = vadd.f32 %v9079, %v9127
        %v9129 = vpop.f32.mrf.mxu0
        %v9130 = vadd.f32 %v9081, %v9129
        %9131 = vmatmul.bf16.gmra.mxu0 %v6568
        %v9132 = vpop.f32.mrf.mxu0
        %v9133 = vadd.f32 %v9084, %v9132
        %v9134 = vpop.f32.mrf.mxu0
        %v9135 = vadd.f32 %v9086, %v9134
        %9136 = vdwg.mxu0
        %9137 = vmatpush.bf16.msra.mxu0 %v7786
        %9138 = vmatpush.bf16.msra.mxu0 %v7782
        %9139 = vmatpush.bf16.msra.mxu0 %v7778
        %9140 = vmatpush.bf16.msra.mxu0 %v7774
        %9141 = vmatpush.bf16.msra.mxu0 %v7770
        %9142 = vmatpush.bf16.msra.mxu0 %v7766
        %9143 = vmatpush.bf16.msra.mxu0 %v7762
        %9144 = vmatpush.bf16.msra.mxu0 %v7758
        %9145 = vmatmul.bf16.gmra.mxu0 %v6513
        %v9146 = vpop.f32.mrf.mxu0
        %v9147 = vadd.f32 %v9098, %v9146
        %v9148 = vpop.f32.mrf.mxu0
        %v9149 = vadd.f32 %v9100, %v9148
        %9150 = vmatmul.bf16.gmra.mxu0 %v6521
        %v9151 = vpop.f32.mrf.mxu0
        %v9152 = vadd.f32 %v9103, %v9151
        %v9153 = vpop.f32.mrf.mxu0
        %v9154 = vadd.f32 %v9105, %v9153
        %9155 = vmatmul.bf16.gmra.mxu0 %v6529
        %v9156 = vpop.f32.mrf.mxu0
        %v9157 = vadd.f32 %v9108, %v9156
        %v9158 = vpop.f32.mrf.mxu0
        %v9159 = vadd.f32 %v9110, %v9158
        %9160 = vmatmul.bf16.gmra.mxu0 %v6537
        %v9161 = vpop.f32.mrf.mxu0
        %v9162 = vadd.f32 %v9113, %v9161
        %v9163 = vpop.f32.mrf.mxu0
        %v9164 = vadd.f32 %v9115, %v9163
        %9165 = vmatmul.bf16.gmra.mxu0 %v6545
        %v9166 = vpop.f32.mrf.mxu0
        %v9167 = vadd.f32 %v9118, %v9166
        %v9168 = vpop.f32.mrf.mxu0
        %v9169 = vadd.f32 %v9120, %v9168
        %9170 = vmatmul.bf16.gmra.mxu0 %v6553
        %v9171 = vpop.f32.mrf.mxu0
        %v9172 = vadd.f32 %v9123, %v9171
        %v9173 = vpop.f32.mrf.mxu0
        %v9174 = vadd.f32 %v9125, %v9173
        %9175 = vmatmul.bf16.gmra.mxu0 %v6561
        %v9176 = vpop.f32.mrf.mxu0
        %v9177 = vadd.f32 %v9128, %v9176
        %v9178 = vpop.f32.mrf.mxu0
        %v9179 = vadd.f32 %v9130, %v9178
        %9180 = vmatmul.bf16.gmra.mxu0 %v6569
        %v9181 = vpop.f32.mrf.mxu0
        %v9182 = vadd.f32 %v9133, %v9181
        %v9183 = vpop.f32.mrf.mxu0
        %v9184 = vadd.f32 %v9135, %v9183
        %9185 = vdwg.mxu0
        %9186 = vmatpush.bf16.msra.mxu0 %v7818
        %9187 = vmatpush.bf16.msra.mxu0 %v7814
        %9188 = vmatpush.bf16.msra.mxu0 %v7810
        %9189 = vmatpush.bf16.msra.mxu0 %v7806
        %9190 = vmatpush.bf16.msra.mxu0 %v7802
        %9191 = vmatpush.bf16.msra.mxu0 %v7798
        %9192 = vmatpush.bf16.msra.mxu0 %v7794
        %9193 = vmatpush.bf16.msra.mxu0 %v7790
        %9194 = vmatmul.bf16.gmra.mxu0 %v6514
        %v9195 = vpop.f32.mrf.mxu0
        %v9196 = vadd.f32 %v9147, %v9195
        %v9197 = vpop.f32.mrf.mxu0
        %v9198 = vadd.f32 %v9149, %v9197
        %9199 = vmatmul.bf16.gmra.mxu0 %v6522
        %v9200 = vpop.f32.mrf.mxu0
        %v9201 = vadd.f32 %v9152, %v9200
        %v9202 = vpop.f32.mrf.mxu0
        %v9203 = vadd.f32 %v9154, %v9202
        %9204 = vmatmul.bf16.gmra.mxu0 %v6530
        %v9205 = vpop.f32.mrf.mxu0
        %v9206 = vadd.f32 %v9157, %v9205
        %v9207 = vpop.f32.mrf.mxu0
        %v9208 = vadd.f32 %v9159, %v9207
        %9209 = vmatmul.bf16.gmra.mxu0 %v6538
        %v9210 = vpop.f32.mrf.mxu0
        %v9211 = vadd.f32 %v9162, %v9210
        %v9212 = vpop.f32.mrf.mxu0
        %v9213 = vadd.f32 %v9164, %v9212
        %9214 = vmatmul.bf16.gmra.mxu0 %v6546
        %v9215 = vpop.f32.mrf.mxu0
        %v9216 = vadd.f32 %v9167, %v9215
        %v9217 = vpop.f32.mrf.mxu0
        %v9218 = vadd.f32 %v9169, %v9217
        %9219 = vmatmul.bf16.gmra.mxu0 %v6554
        %v9220 = vpop.f32.mrf.mxu0
        %v9221 = vadd.f32 %v9172, %v9220
        %v9222 = vpop.f32.mrf.mxu0
        %v9223 = vadd.f32 %v9174, %v9222
        %9224 = vmatmul.bf16.gmra.mxu0 %v6562
        %v9225 = vpop.f32.mrf.mxu0
        %v9226 = vadd.f32 %v9177, %v9225
        %v9227 = vpop.f32.mrf.mxu0
        %v9228 = vadd.f32 %v9179, %v9227
        %9229 = vmatmul.bf16.gmra.mxu0 %v6570
        %v9230 = vpop.f32.mrf.mxu0
        %v9231 = vadd.f32 %v9182, %v9230
        %v9232 = vpop.f32.mrf.mxu0
        %v9233 = vadd.f32 %v9184, %v9232
        %9234 = vdwg.mxu0
        %9235 = vmatpush.bf16.msra.mxu0 %v7850
        %9236 = vmatpush.bf16.msra.mxu0 %v7846
        %9237 = vmatpush.bf16.msra.mxu0 %v7842
        %9238 = vmatpush.bf16.msra.mxu0 %v7838
        %9239 = vmatpush.bf16.msra.mxu0 %v7834
        %9240 = vmatpush.bf16.msra.mxu0 %v7830
        %9241 = vmatpush.bf16.msra.mxu0 %v7826
        %9242 = vmatpush.bf16.msra.mxu0 %v7822
        %9243 = vmatmul.bf16.gmra.mxu0 %v6515
        %v9244 = vpop.f32.mrf.mxu0
        %v9245 = vadd.f32 %v9196, %v9244
        %v9246 = vpop.f32.mrf.mxu0
        %v9247 = vadd.f32 %v9198, %v9246
        %9248 = vmatmul.bf16.gmra.mxu0 %v6523
        %v9249 = vpop.f32.mrf.mxu0
        %v9250 = vadd.f32 %v9201, %v9249
        %v9251 = vpop.f32.mrf.mxu0
        %v9252 = vadd.f32 %v9203, %v9251
        %9253 = vmatmul.bf16.gmra.mxu0 %v6531
        %v9254 = vpop.f32.mrf.mxu0
        %v9255 = vadd.f32 %v9206, %v9254
        %v9256 = vpop.f32.mrf.mxu0
        %v9257 = vadd.f32 %v9208, %v9256
        %9258 = vmatmul.bf16.gmra.mxu0 %v6539
        %v9259 = vpop.f32.mrf.mxu0
        %v9260 = vadd.f32 %v9211, %v9259
        %v9261 = vpop.f32.mrf.mxu0
        %v9262 = vadd.f32 %v9213, %v9261
        %9263 = vmatmul.bf16.gmra.mxu0 %v6547
        %v9264 = vpop.f32.mrf.mxu0
        %v9265 = vadd.f32 %v9216, %v9264
        %v9266 = vpop.f32.mrf.mxu0
        %v9267 = vadd.f32 %v9218, %v9266
        %9268 = vmatmul.bf16.gmra.mxu0 %v6555
        %v9269 = vpop.f32.mrf.mxu0
        %v9270 = vadd.f32 %v9221, %v9269
        %v9271 = vpop.f32.mrf.mxu0
        %v9272 = vadd.f32 %v9223, %v9271
        %9273 = vmatmul.bf16.gmra.mxu0 %v6563
        %v9274 = vpop.f32.mrf.mxu0
        %v9275 = vadd.f32 %v9226, %v9274
        %v9276 = vpop.f32.mrf.mxu0
        %v9277 = vadd.f32 %v9228, %v9276
        %9278 = vmatmul.bf16.gmra.mxu0 %v6571
        %v9279 = vpop.f32.mrf.mxu0
        %v9280 = vadd.f32 %v9231, %v9279
        %v9281 = vpop.f32.mrf.mxu0
        %v9282 = vadd.f32 %v9233, %v9281
        %9283 = vdwg.mxu0
        %9284 = vmatpush.bf16.msra.mxu0 %v7627
        %9285 = vmatpush.bf16.msra.mxu0 %v7623
        %9286 = vmatpush.bf16.msra.mxu0 %v7619
        %9287 = vmatpush.bf16.msra.mxu0 %v7615
        %9288 = vmatpush.bf16.msra.mxu0 %v7611
        %9289 = vmatpush.bf16.msra.mxu0 %v7607
        %9290 = vmatpush.bf16.msra.mxu0 %v7603
        %9291 = vmatpush.bf16.msra.mxu0 %v7599
        %9292 = vmatmul.bf16.gmra.mxu0 %v6508
        %v9293 = vpop.f32.mrf.mxu0
        %v9294 = vadd.f32 0.0, %v9293
        %v9295 = vpop.f32.mrf.mxu0
        %v9296 = vadd.f32 0.0, %v9295
        %9297 = vmatmul.bf16.gmra.mxu0 %v6516
        %v9298 = vpop.f32.mrf.mxu0
        %v9299 = vadd.f32 0.0, %v9298
        %v9300 = vpop.f32.mrf.mxu0
        %v9301 = vadd.f32 0.0, %v9300
        %9302 = vmatmul.bf16.gmra.mxu0 %v6524
        %v9303 = vpop.f32.mrf.mxu0
        %v9304 = vadd.f32 0.0, %v9303
        %v9305 = vpop.f32.mrf.mxu0
        %v9306 = vadd.f32 0.0, %v9305
        %9307 = vmatmul.bf16.gmra.mxu0 %v6532
        %v9308 = vpop.f32.mrf.mxu0
        %v9309 = vadd.f32 0.0, %v9308
        %v9310 = vpop.f32.mrf.mxu0
        %v9311 = vadd.f32 0.0, %v9310
        %9312 = vmatmul.bf16.gmra.mxu0 %v6540
        %v9313 = vpop.f32.mrf.mxu0
        %v9314 = vadd.f32 0.0, %v9313
        %v9315 = vpop.f32.mrf.mxu0
        %v9316 = vadd.f32 0.0, %v9315
        %9317 = vmatmul.bf16.gmra.mxu0 %v6548
        %v9318 = vpop.f32.mrf.mxu0
        %v9319 = vadd.f32 0.0, %v9318
        %v9320 = vpop.f32.mrf.mxu0
        %v9321 = vadd.f32 0.0, %v9320
        %9322 = vmatmul.bf16.gmra.mxu0 %v6556
        %v9323 = vpop.f32.mrf.mxu0
        %v9324 = vadd.f32 0.0, %v9323
        %v9325 = vpop.f32.mrf.mxu0
        %v9326 = vadd.f32 0.0, %v9325
        %9327 = vmatmul.bf16.gmra.mxu0 %v6564
        %v9328 = vpop.f32.mrf.mxu0
        %v9329 = vadd.f32 0.0, %v9328
        %v9330 = vpop.f32.mrf.mxu0
        %v9331 = vadd.f32 0.0, %v9330
        %9332 = vdwg.mxu0
        %9333 = vmatpush.bf16.msra.mxu0 %v7659
        %9334 = vmatpush.bf16.msra.mxu0 %v7655
        %9335 = vmatpush.bf16.msra.mxu0 %v7651
        %9336 = vmatpush.bf16.msra.mxu0 %v7647
        %9337 = vmatpush.bf16.msra.mxu0 %v7643
        %9338 = vmatpush.bf16.msra.mxu0 %v7639
        %9339 = vmatpush.bf16.msra.mxu0 %v7635
        %9340 = vmatpush.bf16.msra.mxu0 %v7631
        %9341 = vmatmul.bf16.gmra.mxu0 %v6509
        %v9342 = vpop.f32.mrf.mxu0
        %v9343 = vadd.f32 %v9294, %v9342
        %v9344 = vpop.f32.mrf.mxu0
        %v9345 = vadd.f32 %v9296, %v9344
        %9346 = vmatmul.bf16.gmra.mxu0 %v6517
        %v9347 = vpop.f32.mrf.mxu0
        %v9348 = vadd.f32 %v9299, %v9347
        %v9349 = vpop.f32.mrf.mxu0
        %v9350 = vadd.f32 %v9301, %v9349
        %9351 = vmatmul.bf16.gmra.mxu0 %v6525
        %v9352 = vpop.f32.mrf.mxu0
        %v9353 = vadd.f32 %v9304, %v9352
        %v9354 = vpop.f32.mrf.mxu0
        %v9355 = vadd.f32 %v9306, %v9354
        %9356 = vmatmul.bf16.gmra.mxu0 %v6533
        %v9357 = vpop.f32.mrf.mxu0
        %v9358 = vadd.f32 %v9309, %v9357
        %v9359 = vpop.f32.mrf.mxu0
        %v9360 = vadd.f32 %v9311, %v9359
        %9361 = vmatmul.bf16.gmra.mxu0 %v6541
        %v9362 = vpop.f32.mrf.mxu0
        %v9363 = vadd.f32 %v9314, %v9362
        %v9364 = vpop.f32.mrf.mxu0
        %v9365 = vadd.f32 %v9316, %v9364
        %9366 = vmatmul.bf16.gmra.mxu0 %v6549
        %v9367 = vpop.f32.mrf.mxu0
        %v9368 = vadd.f32 %v9319, %v9367
        %v9369 = vpop.f32.mrf.mxu0
        %v9370 = vadd.f32 %v9321, %v9369
        %9371 = vmatmul.bf16.gmra.mxu0 %v6557
        %v9372 = vpop.f32.mrf.mxu0
        %v9373 = vadd.f32 %v9324, %v9372
        %v9374 = vpop.f32.mrf.mxu0
        %v9375 = vadd.f32 %v9326, %v9374
        %9376 = vmatmul.bf16.gmra.mxu0 %v6565
        %v9377 = vpop.f32.mrf.mxu0
        %v9378 = vadd.f32 %v9329, %v9377
        %v9379 = vpop.f32.mrf.mxu0
        %v9380 = vadd.f32 %v9331, %v9379
        %9381 = vdwg.mxu0
        %9382 = vmatpush.bf16.msra.mxu0 %v7691
        %9383 = vmatpush.bf16.msra.mxu0 %v7687
        %9384 = vmatpush.bf16.msra.mxu0 %v7683
        %9385 = vmatpush.bf16.msra.mxu0 %v7679
        %9386 = vmatpush.bf16.msra.mxu0 %v7675
        %9387 = vmatpush.bf16.msra.mxu0 %v7671
        %9388 = vmatpush.bf16.msra.mxu0 %v7667
        %9389 = vmatpush.bf16.msra.mxu0 %v7663
        %9390 = vmatmul.bf16.gmra.mxu0 %v6510
        %v9391 = vpop.f32.mrf.mxu0
        %v9392 = vadd.f32 %v9343, %v9391
        %v9393 = vpop.f32.mrf.mxu0
        %v9394 = vadd.f32 %v9345, %v9393
        %9395 = vmatmul.bf16.gmra.mxu0 %v6518
        %v9396 = vpop.f32.mrf.mxu0
        %v9397 = vadd.f32 %v9348, %v9396
        %v9398 = vpop.f32.mrf.mxu0
        %v9399 = vadd.f32 %v9350, %v9398
        %9400 = vmatmul.bf16.gmra.mxu0 %v6526
        %v9401 = vpop.f32.mrf.mxu0
        %v9402 = vadd.f32 %v9353, %v9401
        %v9403 = vpop.f32.mrf.mxu0
        %v9404 = vadd.f32 %v9355, %v9403
        %9405 = vmatmul.bf16.gmra.mxu0 %v6534
        %v9406 = vpop.f32.mrf.mxu0
        %v9407 = vadd.f32 %v9358, %v9406
        %v9408 = vpop.f32.mrf.mxu0
        %v9409 = vadd.f32 %v9360, %v9408
        %9410 = vmatmul.bf16.gmra.mxu0 %v6542
        %v9411 = vpop.f32.mrf.mxu0
        %v9412 = vadd.f32 %v9363, %v9411
        %v9413 = vpop.f32.mrf.mxu0
        %v9414 = vadd.f32 %v9365, %v9413
        %9415 = vmatmul.bf16.gmra.mxu0 %v6550
        %v9416 = vpop.f32.mrf.mxu0
        %v9417 = vadd.f32 %v9368, %v9416
        %v9418 = vpop.f32.mrf.mxu0
        %v9419 = vadd.f32 %v9370, %v9418
        %9420 = vmatmul.bf16.gmra.mxu0 %v6558
        %v9421 = vpop.f32.mrf.mxu0
        %v9422 = vadd.f32 %v9373, %v9421
        %v9423 = vpop.f32.mrf.mxu0
        %v9424 = vadd.f32 %v9375, %v9423
        %9425 = vmatmul.bf16.gmra.mxu0 %v6566
        %v9426 = vpop.f32.mrf.mxu0
        %v9427 = vadd.f32 %v9378, %v9426
        %v9428 = vpop.f32.mrf.mxu0
        %v9429 = vadd.f32 %v9380, %v9428
        %9430 = vdwg.mxu0
        %9431 = vmatpush.bf16.msra.mxu0 %v7723
        %9432 = vmatpush.bf16.msra.mxu0 %v7719
        %9433 = vmatpush.bf16.msra.mxu0 %v7715
        %9434 = vmatpush.bf16.msra.mxu0 %v7711
        %9435 = vmatpush.bf16.msra.mxu0 %v7707
        %9436 = vmatpush.bf16.msra.mxu0 %v7703
        %9437 = vmatpush.bf16.msra.mxu0 %v7699
        %9438 = vmatpush.bf16.msra.mxu0 %v7695
        %9439 = vmatmul.bf16.gmra.mxu0 %v6511
        %v9440 = vpop.f32.mrf.mxu0
        %v9441 = vadd.f32 %v9392, %v9440
        %v9442 = vpop.f32.mrf.mxu0
        %v9443 = vadd.f32 %v9394, %v9442
        %9444 = vmatmul.bf16.gmra.mxu0 %v6519
        %v9445 = vpop.f32.mrf.mxu0
        %v9446 = vadd.f32 %v9397, %v9445
        %v9447 = vpop.f32.mrf.mxu0
        %v9448 = vadd.f32 %v9399, %v9447
        %9449 = vmatmul.bf16.gmra.mxu0 %v6527
        %v9450 = vpop.f32.mrf.mxu0
        %v9451 = vadd.f32 %v9402, %v9450
        %v9452 = vpop.f32.mrf.mxu0
        %v9453 = vadd.f32 %v9404, %v9452
        %9454 = vmatmul.bf16.gmra.mxu0 %v6535
        %v9455 = vpop.f32.mrf.mxu0
        %v9456 = vadd.f32 %v9407, %v9455
        %v9457 = vpop.f32.mrf.mxu0
        %v9458 = vadd.f32 %v9409, %v9457
        %9459 = vmatmul.bf16.gmra.mxu0 %v6543
        %v9460 = vpop.f32.mrf.mxu0
        %v9461 = vadd.f32 %v9412, %v9460
        %v9462 = vpop.f32.mrf.mxu0
        %v9463 = vadd.f32 %v9414, %v9462
        %9464 = vmatmul.bf16.gmra.mxu0 %v6551
        %v9465 = vpop.f32.mrf.mxu0
        %v9466 = vadd.f32 %v9417, %v9465
        %v9467 = vpop.f32.mrf.mxu0
        %v9468 = vadd.f32 %v9419, %v9467
        %9469 = vmatmul.bf16.gmra.mxu0 %v6559
        %v9470 = vpop.f32.mrf.mxu0
        %v9471 = vadd.f32 %v9422, %v9470
        %v9472 = vpop.f32.mrf.mxu0
        %v9473 = vadd.f32 %v9424, %v9472
        %9474 = vmatmul.bf16.gmra.mxu0 %v6567
        %v9475 = vpop.f32.mrf.mxu0
        %v9476 = vadd.f32 %v9427, %v9475
        %v9477 = vpop.f32.mrf.mxu0
        %v9478 = vadd.f32 %v9429, %v9477
        %9479 = vdwg.mxu0
        %9480 = vmatpush.bf16.msra.mxu0 %v7755
        %9481 = vmatpush.bf16.msra.mxu0 %v7751
        %9482 = vmatpush.bf16.msra.mxu0 %v7747
        %9483 = vmatpush.bf16.msra.mxu0 %v7743
        %9484 = vmatpush.bf16.msra.mxu0 %v7739
        %9485 = vmatpush.bf16.msra.mxu0 %v7735
        %9486 = vmatpush.bf16.msra.mxu0 %v7731
        %9487 = vmatpush.bf16.msra.mxu0 %v7727
        %9488 = vmatmul.bf16.gmra.mxu0 %v6512
        %v9489 = vpop.f32.mrf.mxu0
        %v9490 = vadd.f32 %v9441, %v9489
        %v9491 = vpop.f32.mrf.mxu0
        %v9492 = vadd.f32 %v9443, %v9491
        %9493 = vmatmul.bf16.gmra.mxu0 %v6520
        %v9494 = vpop.f32.mrf.mxu0
        %v9495 = vadd.f32 %v9446, %v9494
        %v9496 = vpop.f32.mrf.mxu0
        %v9497 = vadd.f32 %v9448, %v9496
        %9498 = vmatmul.bf16.gmra.mxu0 %v6528
        %v9499 = vpop.f32.mrf.mxu0
        %v9500 = vadd.f32 %v9451, %v9499
        %v9501 = vpop.f32.mrf.mxu0
        %v9502 = vadd.f32 %v9453, %v9501
        %9503 = vmatmul.bf16.gmra.mxu0 %v6536
        %v9504 = vpop.f32.mrf.mxu0
        %v9505 = vadd.f32 %v9456, %v9504
        %v9506 = vpop.f32.mrf.mxu0
        %v9507 = vadd.f32 %v9458, %v9506
        %9508 = vmatmul.bf16.gmra.mxu0 %v6544
        %v9509 = vpop.f32.mrf.mxu0
        %v9510 = vadd.f32 %v9461, %v9509
        %v9511 = vpop.f32.mrf.mxu0
        %v9512 = vadd.f32 %v9463, %v9511
        %9513 = vmatmul.bf16.gmra.mxu0 %v6552
        %v9514 = vpop.f32.mrf.mxu0
        %v9515 = vadd.f32 %v9466, %v9514
        %v9516 = vpop.f32.mrf.mxu0
        %v9517 = vadd.f32 %v9468, %v9516
        %9518 = vmatmul.bf16.gmra.mxu0 %v6560
        %v9519 = vpop.f32.mrf.mxu0
        %v9520 = vadd.f32 %v9471, %v9519
        %v9521 = vpop.f32.mrf.mxu0
        %v9522 = vadd.f32 %v9473, %v9521
        %9523 = vmatmul.bf16.gmra.mxu0 %v6568
        %v9524 = vpop.f32.mrf.mxu0
        %v9525 = vadd.f32 %v9476, %v9524
        %v9526 = vpop.f32.mrf.mxu0
        %v9527 = vadd.f32 %v9478, %v9526
        %9528 = vdwg.mxu0
        %9529 = vmatpush.bf16.msra.mxu0 %v7787
        %9530 = vmatpush.bf16.msra.mxu0 %v7783
        %9531 = vmatpush.bf16.msra.mxu0 %v7779
        %9532 = vmatpush.bf16.msra.mxu0 %v7775
        %9533 = vmatpush.bf16.msra.mxu0 %v7771
        %9534 = vmatpush.bf16.msra.mxu0 %v7767
        %9535 = vmatpush.bf16.msra.mxu0 %v7763
        %9536 = vmatpush.bf16.msra.mxu0 %v7759
        %9537 = vmatmul.bf16.gmra.mxu0 %v6513
        %v9538 = vpop.f32.mrf.mxu0
        %v9539 = vadd.f32 %v9490, %v9538
        %v9540 = vpop.f32.mrf.mxu0
        %v9541 = vadd.f32 %v9492, %v9540
        %9542 = vmatmul.bf16.gmra.mxu0 %v6521
        %v9543 = vpop.f32.mrf.mxu0
        %v9544 = vadd.f32 %v9495, %v9543
        %v9545 = vpop.f32.mrf.mxu0
        %v9546 = vadd.f32 %v9497, %v9545
        %9547 = vmatmul.bf16.gmra.mxu0 %v6529
        %v9548 = vpop.f32.mrf.mxu0
        %v9549 = vadd.f32 %v9500, %v9548
        %v9550 = vpop.f32.mrf.mxu0
        %v9551 = vadd.f32 %v9502, %v9550
        %9552 = vmatmul.bf16.gmra.mxu0 %v6537
        %v9553 = vpop.f32.mrf.mxu0
        %v9554 = vadd.f32 %v9505, %v9553
        %v9555 = vpop.f32.mrf.mxu0
        %v9556 = vadd.f32 %v9507, %v9555
        %9557 = vmatmul.bf16.gmra.mxu0 %v6545
        %v9558 = vpop.f32.mrf.mxu0
        %v9559 = vadd.f32 %v9510, %v9558
        %v9560 = vpop.f32.mrf.mxu0
        %v9561 = vadd.f32 %v9512, %v9560
        %9562 = vmatmul.bf16.gmra.mxu0 %v6553
        %v9563 = vpop.f32.mrf.mxu0
        %v9564 = vadd.f32 %v9515, %v9563
        %v9565 = vpop.f32.mrf.mxu0
        %v9566 = vadd.f32 %v9517, %v9565
        %9567 = vmatmul.bf16.gmra.mxu0 %v6561
        %v9568 = vpop.f32.mrf.mxu0
        %v9569 = vadd.f32 %v9520, %v9568
        %v9570 = vpop.f32.mrf.mxu0
        %v9571 = vadd.f32 %v9522, %v9570
        %9572 = vmatmul.bf16.gmra.mxu0 %v6569
        %v9573 = vpop.f32.mrf.mxu0
        %v9574 = vadd.f32 %v9525, %v9573
        %v9575 = vpop.f32.mrf.mxu0
        %v9576 = vadd.f32 %v9527, %v9575
        %9577 = vdwg.mxu0
        %9578 = vmatpush.bf16.msra.mxu0 %v7819
        %9579 = vmatpush.bf16.msra.mxu0 %v7815
        %9580 = vmatpush.bf16.msra.mxu0 %v7811
        %9581 = vmatpush.bf16.msra.mxu0 %v7807
        %9582 = vmatpush.bf16.msra.mxu0 %v7803
        %9583 = vmatpush.bf16.msra.mxu0 %v7799
        %9584 = vmatpush.bf16.msra.mxu0 %v7795
        %9585 = vmatpush.bf16.msra.mxu0 %v7791
        %9586 = vmatmul.bf16.gmra.mxu0 %v6514
        %v9587 = vpop.f32.mrf.mxu0
        %v9588 = vadd.f32 %v9539, %v9587
        %v9589 = vpop.f32.mrf.mxu0
        %v9590 = vadd.f32 %v9541, %v9589
        %9591 = vmatmul.bf16.gmra.mxu0 %v6522
        %v9592 = vpop.f32.mrf.mxu0
        %v9593 = vadd.f32 %v9544, %v9592
        %v9594 = vpop.f32.mrf.mxu0
        %v9595 = vadd.f32 %v9546, %v9594
        %9596 = vmatmul.bf16.gmra.mxu0 %v6530
        %v9597 = vpop.f32.mrf.mxu0
        %v9598 = vadd.f32 %v9549, %v9597
        %v9599 = vpop.f32.mrf.mxu0
        %v9600 = vadd.f32 %v9551, %v9599
        %9601 = vmatmul.bf16.gmra.mxu0 %v6538
        %v9602 = vpop.f32.mrf.mxu0
        %v9603 = vadd.f32 %v9554, %v9602
        %v9604 = vpop.f32.mrf.mxu0
        %v9605 = vadd.f32 %v9556, %v9604
        %9606 = vmatmul.bf16.gmra.mxu0 %v6546
        %v9607 = vpop.f32.mrf.mxu0
        %v9608 = vadd.f32 %v9559, %v9607
        %v9609 = vpop.f32.mrf.mxu0
        %v9610 = vadd.f32 %v9561, %v9609
        %9611 = vmatmul.bf16.gmra.mxu0 %v6554
        %v9612 = vpop.f32.mrf.mxu0
        %v9613 = vadd.f32 %v9564, %v9612
        %v9614 = vpop.f32.mrf.mxu0
        %v9615 = vadd.f32 %v9566, %v9614
        %9616 = vmatmul.bf16.gmra.mxu0 %v6562
        %v9617 = vpop.f32.mrf.mxu0
        %v9618 = vadd.f32 %v9569, %v9617
        %v9619 = vpop.f32.mrf.mxu0
        %v9620 = vadd.f32 %v9571, %v9619
        %9621 = vmatmul.bf16.gmra.mxu0 %v6570
        %v9622 = vpop.f32.mrf.mxu0
        %v9623 = vadd.f32 %v9574, %v9622
        %v9624 = vpop.f32.mrf.mxu0
        %v9625 = vadd.f32 %v9576, %v9624
        %9626 = vdwg.mxu0
        %9627 = vmatpush.bf16.msra.mxu0 %v7851
        %9628 = vmatpush.bf16.msra.mxu0 %v7847
        %9629 = vmatpush.bf16.msra.mxu0 %v7843
        %9630 = vmatpush.bf16.msra.mxu0 %v7839
        %9631 = vmatpush.bf16.msra.mxu0 %v7835
        %9632 = vmatpush.bf16.msra.mxu0 %v7831
        %9633 = vmatpush.bf16.msra.mxu0 %v7827
        %9634 = vmatpush.bf16.msra.mxu0 %v7823
        %9635 = vmatmul.bf16.gmra.mxu0 %v6515
        %v9636 = vpop.f32.mrf.mxu0
        %v9637 = vadd.f32 %v9588, %v9636
        %v9638 = vpop.f32.mrf.mxu0
        %v9639 = vadd.f32 %v9590, %v9638
        %9640 = vmatmul.bf16.gmra.mxu0 %v6523
        %v9641 = vpop.f32.mrf.mxu0
        %v9642 = vadd.f32 %v9593, %v9641
        %v9643 = vpop.f32.mrf.mxu0
        %v9644 = vadd.f32 %v9595, %v9643
        %9645 = vmatmul.bf16.gmra.mxu0 %v6531
        %v9646 = vpop.f32.mrf.mxu0
        %v9647 = vadd.f32 %v9598, %v9646
        %v9648 = vpop.f32.mrf.mxu0
        %v9649 = vadd.f32 %v9600, %v9648
        %9650 = vmatmul.bf16.gmra.mxu0 %v6539
        %v9651 = vpop.f32.mrf.mxu0
        %v9652 = vadd.f32 %v9603, %v9651
        %v9653 = vpop.f32.mrf.mxu0
        %v9654 = vadd.f32 %v9605, %v9653
        %9655 = vmatmul.bf16.gmra.mxu0 %v6547
        %v9656 = vpop.f32.mrf.mxu0
        %v9657 = vadd.f32 %v9608, %v9656
        %v9658 = vpop.f32.mrf.mxu0
        %v9659 = vadd.f32 %v9610, %v9658
        %9660 = vmatmul.bf16.gmra.mxu0 %v6555
        %v9661 = vpop.f32.mrf.mxu0
        %v9662 = vadd.f32 %v9613, %v9661
        %v9663 = vpop.f32.mrf.mxu0
        %v9664 = vadd.f32 %v9615, %v9663
        %9665 = vmatmul.bf16.gmra.mxu0 %v6563
        %v9666 = vpop.f32.mrf.mxu0
        %v9667 = vadd.f32 %v9618, %v9666
        %v9668 = vpop.f32.mrf.mxu0
        %v9669 = vadd.f32 %v9620, %v9668
        %9670 = vmatmul.bf16.gmra.mxu0 %v6571
        %v9671 = vpop.f32.mrf.mxu0
        %v9672 = vadd.f32 %v9623, %v9671
        %v9673 = vpop.f32.mrf.mxu0
        %v9674 = vadd.f32 %v9625, %v9673
        %9675 = vdwg.mxu0
        %v9676 = vadd.f32 %v6444, %v8461
        %v9677 = vadd.f32 %v6445, %v8853
        %v9678 = vadd.f32 %v6446, %v9245
        %v9679 = vadd.f32 %v6447, %v9637
        %v9680 = vadd.f32 %v6448, %v8463
        %v9681 = vadd.f32 %v6449, %v8855
        %v9682 = vadd.f32 %v6450, %v9247
        %v9683 = vadd.f32 %v6451, %v9639
        %v9684 = vadd.f32 %v6452, %v8466
        %v9685 = vadd.f32 %v6453, %v8858
        %v9686 = vadd.f32 %v6454, %v9250
        %v9687 = vadd.f32 %v6455, %v9642
        %v9688 = vadd.f32 %v6456, %v8468
        %v9689 = vadd.f32 %v6457, %v8860
        %v9690 = vadd.f32 %v6458, %v9252
        %v9691 = vadd.f32 %v6459, %v9644
        %v9692 = vadd.f32 %v6460, %v8471
        %v9693 = vadd.f32 %v6461, %v8863
        %v9694 = vadd.f32 %v6462, %v9255
        %v9695 = vadd.f32 %v6463, %v9647
        %v9696 = vadd.f32 %v6464, %v8473
        %v9697 = vadd.f32 %v6465, %v8865
        %v9698 = vadd.f32 %v6466, %v9257
        %v9699 = vadd.f32 %v6467, %v9649
        %v9700 = vadd.f32 %v6468, %v8476
        %v9701 = vadd.f32 %v6469, %v8868
        %v9702 = vadd.f32 %v6470, %v9260
        %v9703 = vadd.f32 %v6471, %v9652
        %v9704 = vadd.f32 %v6472, %v8478
        %v9705 = vadd.f32 %v6473, %v8870
        %v9706 = vadd.f32 %v6474, %v9262
        %v9707 = vadd.f32 %v6475, %v9654
        %v9708 = vadd.f32 %v6476, %v8481
        %v9709 = vadd.f32 %v6477, %v8873
        %v9710 = vadd.f32 %v6478, %v9265
        %v9711 = vadd.f32 %v6479, %v9657
        %v9712 = vadd.f32 %v6480, %v8483
        %v9713 = vadd.f32 %v6481, %v8875
        %v9714 = vadd.f32 %v6482, %v9267
        %v9715 = vadd.f32 %v6483, %v9659
        %v9716 = vadd.f32 %v6484, %v8486
        %v9717 = vadd.f32 %v6485, %v8878
        %v9718 = vadd.f32 %v6486, %v9270
        %v9719 = vadd.f32 %v6487, %v9662
        %v9720 = vadd.f32 %v6488, %v8488
        %v9721 = vadd.f32 %v6489, %v8880
        %v9722 = vadd.f32 %v6490, %v9272
        %v9723 = vadd.f32 %v6491, %v9664
        %v9724 = vadd.f32 %v6492, %v8491
        %v9725 = vadd.f32 %v6493, %v8883
        %v9726 = vadd.f32 %v6494, %v9275
        %v9727 = vadd.f32 %v6495, %v9667
        %v9728 = vadd.f32 %v6496, %v8493
        %v9729 = vadd.f32 %v6497, %v8885
        %v9730 = vadd.f32 %v6498, %v9277
        %v9731 = vadd.f32 %v6499, %v9669
        %v9732 = vadd.f32 %v6500, %v8496
        %v9733 = vadd.f32 %v6501, %v8888
        %v9734 = vadd.f32 %v6502, %v9280
        %v9735 = vadd.f32 %v6503, %v9672
        %v9736 = vadd.f32 %v6504, %v8498
        %v9737 = vadd.f32 %v6505, %v8890
        %v9738 = vadd.f32 %v6506, %v9282
        %v9739 = vadd.f32 %v6507, %v9674
        %9740 = vst [vmem:[#allocation2] sm:$0xff] %v9676
        %9741 = vst [vmem:[#allocation2 + $0x8] sm:$0xff] %v9677
        %9742 = vst [vmem:[#allocation2 + $0x10] sm:$0xff] %v9678
        %9743 = vst [vmem:[#allocation2 + $0x18] sm:$0xff] %v9679
        %9744 = vst [vmem:[#allocation2 + $0x20] sm:$0xff] %v9680
        %9745 = vst [vmem:[#allocation2 + $0x28] sm:$0xff] %v9681
        %9746 = vst [vmem:[#allocation2 + $0x30] sm:$0xff] %v9682
        %9747 = vst [vmem:[#allocation2 + $0x38] sm:$0xff] %v9683
        %9748 = vst [vmem:[#allocation2 + $0x40] sm:$0xff] %v9684
        %9749 = vst [vmem:[#allocation2 + $0x48] sm:$0xff] %v9685
        %9750 = vst [vmem:[#allocation2 + $0x50] sm:$0xff] %v9686
        %9751 = vst [vmem:[#allocation2 + $0x58] sm:$0xff] %v9687
        %9752 = vst [vmem:[#allocation2 + $0x60] sm:$0xff] %v9688
        %9753 = vst [vmem:[#allocation2 + $0x68] sm:$0xff] %v9689
        %9754 = vst [vmem:[#allocation2 + $0x70] sm:$0xff] %v9690
        %9755 = vst [vmem:[#allocation2 + $0x78] sm:$0xff] %v9691
        %9756 = vst [vmem:[#allocation2 + $0x80] sm:$0xff] %v9692
        %9757 = vst [vmem:[#allocation2 + $0x88] sm:$0xff] %v9693
        %9758 = vst [vmem:[#allocation2 + $0x90] sm:$0xff] %v9694
        %9759 = vst [vmem:[#allocation2 + $0x98] sm:$0xff] %v9695
        %9760 = vst [vmem:[#allocation2 + $0xa0] sm:$0xff] %v9696
        %9761 = vst [vmem:[#allocation2 + $0xa8] sm:$0xff] %v9697
        %9762 = vst [vmem:[#allocation2 + $0xb0] sm:$0xff] %v9698
        %9763 = vst [vmem:[#allocation2 + $0xb8] sm:$0xff] %v9699
        %9764 = vst [vmem:[#allocation2 + $0xc0] sm:$0xff] %v9700
        %9765 = vst [vmem:[#allocation2 + $0xc8] sm:$0xff] %v9701
        %9766 = vst [vmem:[#allocation2 + $0xd0] sm:$0xff] %v9702
        %9767 = vst [vmem:[#allocation2 + $0xd8] sm:$0xff] %v9703
        %9768 = vst [vmem:[#allocation2 + $0xe0] sm:$0xff] %v9704
        %9769 = vst [vmem:[#allocation2 + $0xe8] sm:$0xff] %v9705
        %9770 = vst [vmem:[#allocation2 + $0xf0] sm:$0xff] %v9706
        %9771 = vst [vmem:[#allocation2 + $0xf8] sm:$0xff] %v9707
        %9772 = vst [vmem:[#allocation2 + $0x100] sm:$0xff] %v9708
        %9773 = vst [vmem:[#allocation2 + $0x108] sm:$0xff] %v9709
        %9774 = vst [vmem:[#allocation2 + $0x110] sm:$0xff] %v9710
        %9775 = vst [vmem:[#allocation2 + $0x118] sm:$0xff] %v9711
        %9776 = vst [vmem:[#allocation2 + $0x120] sm:$0xff] %v9712
        %9777 = vst [vmem:[#allocation2 + $0x128] sm:$0xff] %v9713
        %9778 = vst [vmem:[#allocation2 + $0x130] sm:$0xff] %v9714
        %9779 = vst [vmem:[#allocation2 + $0x138] sm:$0xff] %v9715
        %9780 = vst [vmem:[#allocation2 + $0x140] sm:$0xff] %v9716
        %9781 = vst [vmem:[#allocation2 + $0x148] sm:$0xff] %v9717
        %9782 = vst [vmem:[#allocation2 + $0x150] sm:$0xff] %v9718
        %9783 = vst [vmem:[#allocation2 + $0x158] sm:$0xff] %v9719
        %9784 = vst [vmem:[#allocation2 + $0x160] sm:$0xff] %v9720
        %9785 = vst [vmem:[#allocation2 + $0x168] sm:$0xff] %v9721
        %9786 = vst [vmem:[#allocation2 + $0x170] sm:$0xff] %v9722
        %9787 = vst [vmem:[#allocation2 + $0x178] sm:$0xff] %v9723
        %9788 = vst [vmem:[#allocation2 + $0x180] sm:$0xff] %v9724
        %9789 = vst [vmem:[#allocation2 + $0x188] sm:$0xff] %v9725
        %9790 = vst [vmem:[#allocation2 + $0x190] sm:$0xff] %v9726
        %9791 = vst [vmem:[#allocation2 + $0x198] sm:$0xff] %v9727
        %9792 = vst [vmem:[#allocation2 + $0x1a0] sm:$0xff] %v9728
        %9793 = vst [vmem:[#allocation2 + $0x1a8] sm:$0xff] %v9729
        %9794 = vst [vmem:[#allocation2 + $0x1b0] sm:$0xff] %v9730
        %9795 = vst [vmem:[#allocation2 + $0x1b8] sm:$0xff] %v9731
        %9796 = vst [vmem:[#allocation2 + $0x1c0] sm:$0xff] %v9732
        %9797 = vst [vmem:[#allocation2 + $0x1c8] sm:$0xff] %v9733
        %9798 = vst [vmem:[#allocation2 + $0x1d0] sm:$0xff] %v9734
        %9799 = vst [vmem:[#allocation2 + $0x1d8] sm:$0xff] %v9735
        %9800 = vst [vmem:[#allocation2 + $0x1e0] sm:$0xff] %v9736
        %9801 = vst [vmem:[#allocation2 + $0x1e8] sm:$0xff] %v9737
        %9802 = vst [vmem:[#allocation2 + $0x1f0] sm:$0xff] %v9738
        %9803 = vst [vmem:[#allocation2 + $0x1f8] sm:$0xff] %v9739
        %p9804 = scmp.eq.s32.totalorder %s29, 1
        // Predicated region
        $region65: #{tpu_custom_call.1} parent=39 // pred_check
          %p9805 = pneg %p9804
        $region66: #{tpu_custom_call.1} parent=39 // pred_check_branch
          %9807 = sbr.rel (%p9805) target = $region68
        $region67: #{tpu_custom_call.1} parent=39 // pred_region
          %v9808 = vld [vmem:[#allocation2] sm:$0xff]
          %v9809 = vld [vmem:[#allocation2 + $0x8] sm:$0xff]
          %v9810 = vld [vmem:[#allocation2 + $0x10] sm:$0xff]
          %v9811 = vld [vmem:[#allocation2 + $0x18] sm:$0xff]
          %v9812 = vld [vmem:[#allocation2 + $0x20] sm:$0xff]
          %v9813 = vld [vmem:[#allocation2 + $0x28] sm:$0xff]
          %v9814 = vld [vmem:[#allocation2 + $0x30] sm:$0xff]
          %v9815 = vld [vmem:[#allocation2 + $0x38] sm:$0xff]
          %v9816 = vld [vmem:[#allocation2 + $0x40] sm:$0xff]
          %v9817 = vld [vmem:[#allocation2 + $0x48] sm:$0xff]
          %v9818 = vld [vmem:[#allocation2 + $0x50] sm:$0xff]
          %v9819 = vld [vmem:[#allocation2 + $0x58] sm:$0xff]
          %v9820 = vld [vmem:[#allocation2 + $0x60] sm:$0xff]
          %v9821 = vld [vmem:[#allocation2 + $0x68] sm:$0xff]
          %v9822 = vld [vmem:[#allocation2 + $0x70] sm:$0xff]
          %v9823 = vld [vmem:[#allocation2 + $0x78] sm:$0xff]
          %v9824 = vld [vmem:[#allocation2 + $0x80] sm:$0xff]
          %v9825 = vld [vmem:[#allocation2 + $0x88] sm:$0xff]
          %v9826 = vld [vmem:[#allocation2 + $0x90] sm:$0xff]
          %v9827 = vld [vmem:[#allocation2 + $0x98] sm:$0xff]
          %v9828 = vld [vmem:[#allocation2 + $0xa0] sm:$0xff]
          %v9829 = vld [vmem:[#allocation2 + $0xa8] sm:$0xff]
          %v9830 = vld [vmem:[#allocation2 + $0xb0] sm:$0xff]
          %v9831 = vld [vmem:[#allocation2 + $0xb8] sm:$0xff]
          %v9832 = vld [vmem:[#allocation2 + $0xc0] sm:$0xff]
          %v9833 = vld [vmem:[#allocation2 + $0xc8] sm:$0xff]
          %v9834 = vld [vmem:[#allocation2 + $0xd0] sm:$0xff]
          %v9835 = vld [vmem:[#allocation2 + $0xd8] sm:$0xff]
          %v9836 = vld [vmem:[#allocation2 + $0xe0] sm:$0xff]
          %v9837 = vld [vmem:[#allocation2 + $0xe8] sm:$0xff]
          %v9838 = vld [vmem:[#allocation2 + $0xf0] sm:$0xff]
          %v9839 = vld [vmem:[#allocation2 + $0xf8] sm:$0xff]
          %v9840 = vld [vmem:[#allocation2 + $0x100] sm:$0xff]
          %v9841 = vld [vmem:[#allocation2 + $0x108] sm:$0xff]
          %v9842 = vld [vmem:[#allocation2 + $0x110] sm:$0xff]
          %v9843 = vld [vmem:[#allocation2 + $0x118] sm:$0xff]
          %v9844 = vld [vmem:[#allocation2 + $0x120] sm:$0xff]
          %v9845 = vld [vmem:[#allocation2 + $0x128] sm:$0xff]
          %v9846 = vld [vmem:[#allocation2 + $0x130] sm:$0xff]
          %v9847 = vld [vmem:[#allocation2 + $0x138] sm:$0xff]
          %v9848 = vld [vmem:[#allocation2 + $0x140] sm:$0xff]
          %v9849 = vld [vmem:[#allocation2 + $0x148] sm:$0xff]
          %v9850 = vld [vmem:[#allocation2 + $0x150] sm:$0xff]
          %v9851 = vld [vmem:[#allocation2 + $0x158] sm:$0xff]
          %v9852 = vld [vmem:[#allocation2 + $0x160] sm:$0xff]
          %v9853 = vld [vmem:[#allocation2 + $0x168] sm:$0xff]
          %v9854 = vld [vmem:[#allocation2 + $0x170] sm:$0xff]
          %v9855 = vld [vmem:[#allocation2 + $0x178] sm:$0xff]
          %v9856 = vld [vmem:[#allocation2 + $0x180] sm:$0xff]
          %v9857 = vld [vmem:[#allocation2 + $0x188] sm:$0xff]
          %v9858 = vld [vmem:[#allocation2 + $0x190] sm:$0xff]
          %v9859 = vld [vmem:[#allocation2 + $0x198] sm:$0xff]
          %v9860 = vld [vmem:[#allocation2 + $0x1a0] sm:$0xff]
          %v9861 = vld [vmem:[#allocation2 + $0x1a8] sm:$0xff]
          %v9862 = vld [vmem:[#allocation2 + $0x1b0] sm:$0xff]
          %v9863 = vld [vmem:[#allocation2 + $0x1b8] sm:$0xff]
          %v9864 = vld [vmem:[#allocation2 + $0x1c0] sm:$0xff]
          %v9865 = vld [vmem:[#allocation2 + $0x1c8] sm:$0xff]
          %v9866 = vld [vmem:[#allocation2 + $0x1d0] sm:$0xff]
          %v9867 = vld [vmem:[#allocation2 + $0x1d8] sm:$0xff]
          %v9868 = vld [vmem:[#allocation2 + $0x1e0] sm:$0xff]
          %v9869 = vld [vmem:[#allocation2 + $0x1e8] sm:$0xff]
          %v9870 = vld [vmem:[#allocation2 + $0x1f0] sm:$0xff]
          %v9871 = vld [vmem:[#allocation2 + $0x1f8] sm:$0xff]
          %v9872 = vld [vmem:[#allocation11] sm:$0xf]
          %v9874 = vperm.slane %v9872, 0
          %v9875 = vperm.slane %v9872, 1
          %v9876 = vperm.slane %v9872, 2
          %v9877 = vperm.slane %v9872, 3
          %v9882 = vadd.f32 %v9808, %v9874
          %v9883 = vadd.f32 %v9809, %v9875
          %v9884 = vadd.f32 %v9810, %v9876
          %v9885 = vadd.f32 %v9811, %v9877
          %v9886 = vadd.f32 %v9812, %v9874
          %v9887 = vadd.f32 %v9813, %v9875
          %v9888 = vadd.f32 %v9814, %v9876
          %v9889 = vadd.f32 %v9815, %v9877
          %v9890 = vadd.f32 %v9816, %v9874
          %v9891 = vadd.f32 %v9817, %v9875
          %v9892 = vadd.f32 %v9818, %v9876
          %v9893 = vadd.f32 %v9819, %v9877
          %v9894 = vadd.f32 %v9820, %v9874
          %v9895 = vadd.f32 %v9821, %v9875
          %v9896 = vadd.f32 %v9822, %v9876
          %v9897 = vadd.f32 %v9823, %v9877
          %v9898 = vadd.f32 %v9824, %v9874
          %v9899 = vadd.f32 %v9825, %v9875
          %v9900 = vadd.f32 %v9826, %v9876
          %v9901 = vadd.f32 %v9827, %v9877
          %v9902 = vadd.f32 %v9828, %v9874
          %v9903 = vadd.f32 %v9829, %v9875
          %v9904 = vadd.f32 %v9830, %v9876
          %v9905 = vadd.f32 %v9831, %v9877
          %v9906 = vadd.f32 %v9832, %v9874
          %v9907 = vadd.f32 %v9833, %v9875
          %v9908 = vadd.f32 %v9834, %v9876
          %v9909 = vadd.f32 %v9835, %v9877
          %v9910 = vadd.f32 %v9836, %v9874
          %v9911 = vadd.f32 %v9837, %v9875
          %v9912 = vadd.f32 %v9838, %v9876
          %v9913 = vadd.f32 %v9839, %v9877
          %v9914 = vadd.f32 %v9840, %v9874
          %v9915 = vadd.f32 %v9841, %v9875
          %v9916 = vadd.f32 %v9842, %v9876
          %v9917 = vadd.f32 %v9843, %v9877
          %v9918 = vadd.f32 %v9844, %v9874
          %v9919 = vadd.f32 %v9845, %v9875
          %v9920 = vadd.f32 %v9846, %v9876
          %v9921 = vadd.f32 %v9847, %v9877
          %v9922 = vadd.f32 %v9848, %v9874
          %v9923 = vadd.f32 %v9849, %v9875
          %v9924 = vadd.f32 %v9850, %v9876
          %v9925 = vadd.f32 %v9851, %v9877
          %v9926 = vadd.f32 %v9852, %v9874
          %v9927 = vadd.f32 %v9853, %v9875
          %v9928 = vadd.f32 %v9854, %v9876
          %v9929 = vadd.f32 %v9855, %v9877
          %v9930 = vadd.f32 %v9856, %v9874
          %v9931 = vadd.f32 %v9857, %v9875
          %v9932 = vadd.f32 %v9858, %v9876
          %v9933 = vadd.f32 %v9859, %v9877
          %v9934 = vadd.f32 %v9860, %v9874
          %v9935 = vadd.f32 %v9861, %v9875
          %v9936 = vadd.f32 %v9862, %v9876
          %v9937 = vadd.f32 %v9863, %v9877
          %v9938 = vadd.f32 %v9864, %v9874
          %v9939 = vadd.f32 %v9865, %v9875
          %v9940 = vadd.f32 %v9866, %v9876
          %v9941 = vadd.f32 %v9867, %v9877
          %v9942 = vadd.f32 %v9868, %v9874
          %v9943 = vadd.f32 %v9869, %v9875
          %v9944 = vadd.f32 %v9870, %v9876
          %v9945 = vadd.f32 %v9871, %v9877
          %v9946 = vpack.c.bf16 %v9883, %v9882
          %v9947 = vpack.c.bf16 %v9885, %v9884
          %v9948 = vpack.c.bf16 %v9887, %v9886
          %v9949 = vpack.c.bf16 %v9889, %v9888
          %v9950 = vpack.c.bf16 %v9891, %v9890
          %v9951 = vpack.c.bf16 %v9893, %v9892
          %v9952 = vpack.c.bf16 %v9895, %v9894
          %v9953 = vpack.c.bf16 %v9897, %v9896
          %v9954 = vpack.c.bf16 %v9899, %v9898
          %v9955 = vpack.c.bf16 %v9901, %v9900
          %v9956 = vpack.c.bf16 %v9903, %v9902
          %v9957 = vpack.c.bf16 %v9905, %v9904
          %v9958 = vpack.c.bf16 %v9907, %v9906
          %v9959 = vpack.c.bf16 %v9909, %v9908
          %v9960 = vpack.c.bf16 %v9911, %v9910
          %v9961 = vpack.c.bf16 %v9913, %v9912
          %v9962 = vpack.c.bf16 %v9915, %v9914
          %v9963 = vpack.c.bf16 %v9917, %v9916
          %v9964 = vpack.c.bf16 %v9919, %v9918
          %v9965 = vpack.c.bf16 %v9921, %v9920
          %v9966 = vpack.c.bf16 %v9923, %v9922
          %v9967 = vpack.c.bf16 %v9925, %v9924
          %v9968 = vpack.c.bf16 %v9927, %v9926
          %v9969 = vpack.c.bf16 %v9929, %v9928
          %v9970 = vpack.c.bf16 %v9931, %v9930
          %v9971 = vpack.c.bf16 %v9933, %v9932
          %v9972 = vpack.c.bf16 %v9935, %v9934
          %v9973 = vpack.c.bf16 %v9937, %v9936
          %v9974 = vpack.c.bf16 %v9939, %v9938
          %v9975 = vpack.c.bf16 %v9941, %v9940
          %v9976 = vpack.c.bf16 %v9943, %v9942
          %v9977 = vpack.c.bf16 %v9945, %v9944
          %9978 = vst [vmem:[#allocation12] sm:$0xff] %v9946
          %9979 = vst [vmem:[#allocation12 + $0x8] sm:$0xff] %v9947
          %9980 = vst [vmem:[#allocation12 + $0x10] sm:$0xff] %v9948
          %9981 = vst [vmem:[#allocation12 + $0x18] sm:$0xff] %v9949
          %9982 = vst [vmem:[#allocation12 + $0x20] sm:$0xff] %v9950
          %9983 = vst [vmem:[#allocation12 + $0x28] sm:$0xff] %v9951
          %9984 = vst [vmem:[#allocation12 + $0x30] sm:$0xff] %v9952
          %9985 = vst [vmem:[#allocation12 + $0x38] sm:$0xff] %v9953
          %9986 = vst [vmem:[#allocation12 + $0x40] sm:$0xff] %v9954
          %9987 = vst [vmem:[#allocation12 + $0x48] sm:$0xff] %v9955
          %9988 = vst [vmem:[#allocation12 + $0x50] sm:$0xff] %v9956
          %9989 = vst [vmem:[#allocation12 + $0x58] sm:$0xff] %v9957
          %9990 = vst [vmem:[#allocation12 + $0x60] sm:$0xff] %v9958
          %9991 = vst [vmem:[#allocation12 + $0x68] sm:$0xff] %v9959
          %9992 = vst [vmem:[#allocation12 + $0x70] sm:$0xff] %v9960
          %9993 = vst [vmem:[#allocation12 + $0x78] sm:$0xff] %v9961
          %9994 = vst [vmem:[#allocation12 + $0x80] sm:$0xff] %v9962
          %9995 = vst [vmem:[#allocation12 + $0x88] sm:$0xff] %v9963
          %9996 = vst [vmem:[#allocation12 + $0x90] sm:$0xff] %v9964
          %9997 = vst [vmem:[#allocation12 + $0x98] sm:$0xff] %v9965
          %9998 = vst [vmem:[#allocation12 + $0xa0] sm:$0xff] %v9966
          %9999 = vst [vmem:[#allocation12 + $0xa8] sm:$0xff] %v9967
          %10000 = vst [vmem:[#allocation12 + $0xb0] sm:$0xff] %v9968
          %10001 = vst [vmem:[#allocation12 + $0xb8] sm:$0xff] %v9969
          %10002 = vst [vmem:[#allocation12 + $0xc0] sm:$0xff] %v9970
          %10003 = vst [vmem:[#allocation12 + $0xc8] sm:$0xff] %v9971
          %10004 = vst [vmem:[#allocation12 + $0xd0] sm:$0xff] %v9972
          %10005 = vst [vmem:[#allocation12 + $0xd8] sm:$0xff] %v9973
          %10006 = vst [vmem:[#allocation12 + $0xe0] sm:$0xff] %v9974
          %10007 = vst [vmem:[#allocation12 + $0xe8] sm:$0xff] %v9975
          %10008 = vst [vmem:[#allocation12 + $0xf0] sm:$0xff] %v9976
          %10009 = vst [vmem:[#allocation12 + $0xf8] sm:$0xff] %v9977
        $region68: #{tpu_custom_call.1} parent=39 // pred_fallthru
          _
        // Predicated region
        $region69: #{tpu_custom_call.1} parent=39 // pred_check
          %p10010 = pneg %p179
        $region70: #{tpu_custom_call.1} parent=39 // pred_check_branch
          %10012 = sbr.rel (%p10010) target = $region72
        $region71: #{tpu_custom_call.1} parent=39 // pred_region
          %s10013 = smul.u32 16, %s28
          %10015 = vsyncadd [#allocation5], 0
          %s10016 = smul.addr %s10013, 4
          %s10017 = smul.addr %s10016, 4
          %s10018 = scalar_lea.hbm %s5, %s10017
          %s10019 = sshll.u32 [#allocation12], 4
          %s10020 = int_to_ptr.vmem [resolvable:$true] %s10019
          %s10021 = sshll.u32 %s10018, 4
          %s10022 = int_to_ptr.hbm [resolvable:$true] %s10021
          %10027 = dma.vmem_to_hbm [thread:$0]  %s10020, 4096, %s10022, [#allocation5], 256, 256, 16
        $region72: #{tpu_custom_call.1} parent=39 // pred_fallthru
          _
        // Predicated region
        $region73: #{tpu_custom_call.1} parent=39 // pred_check
          %p10028 = pneg %p179
        $region74: #{tpu_custom_call.1} parent=39 // pred_check_branch
          %10030 = sbr.rel (%p10028) target = $region76
        $region75: #{tpu_custom_call.1} parent=39 // pred_region
          %10032 = dma.done [#allocation5], 4096
        $region76: #{tpu_custom_call.1} parent=39 // pred_fallthru
          _
      $region40: #{tpu_custom_call.1} parent=5 // pred_fallthru
        _
      %p10033 = scmp.le.s32.totalorder 2, %s19
      // Predicated region
      $region77: #{tpu_custom_call.1} parent=5 // pred_check
        %p10034 = pneg %p10033
      $region78: #{tpu_custom_call.1} parent=5 // pred_check_branch
        %10036 = sbr.rel (%p10034) target = $region80
      $region79: #{tpu_custom_call.1} parent=5 // pred_region
        %s10037 = ssub.s32 %s19, 2
      $region80: #{tpu_custom_call.1} parent=5 // pred_fallthru
        _
    $region6: #{tpu_custom_call.1} parent=1 // loop_footer
      %s23 = sadd.s32 1, %s19
    $region7: #{tpu_custom_call.1} parent=1 // loop_footer_branch
      %18 = sbr.rel target = $region3
    $region8: #{tpu_custom_call.1} parent=1 // loop_exit
      _
    %10038 = vsyncpa [#allocation4], 1
    %s10039 = scalar_lea.sflag [#allocation4], 1
    %10040 = vsyncpa %s10039, 1
    %10041 = vsyncpa [#allocation7], 1
    %s10042 = scalar_lea.sflag [#allocation7], 1
    %10043 = vsyncpa %s10042, 1
    %10044 = vsyncpa [#allocation10], 1
    %s10045 = scalar_lea.sflag [#allocation10], 1
    %10046 = vsyncpa %s10045, 1
    %10047 = vsyncpa [#allocation5], 1
    %s10048 = scalar_lea.sflag [#allocation5], 1
    %10049 = vsyncpa %s10048, 1

</llo_original>
